<compile_context>
chip_gen: v5e
topology: v5e:2x2
jax: 0.10.0
libtpu: 0.0.40
codegen_flags: <defaults>
</compile_context>

<pallas_src>
import functools
import math

import jax
import jax.numpy as jnp
from jax.experimental import pallas as pl
from jax.experimental.pallas import tpu as pltpu

_GN_EPS = 1e-5
_GROUPS = 4
# Safe scoped-VMEM limit on v5e/v6e (128 MiB phys) and v7x (64 MiB phys);
# worst-case tiles below are ~3 MB.
_VMEM_LIMIT_BYTES = 32 * 1024 * 1024
# Largest per-batch patches tile (bytes) the fused single-step conv path accepts.
_MAX_PATCH_TILE_BYTES = 8 * 1024 * 1024

# (Cin, Cout, ksz, query_stride, key_stride) for every Conv4d layer, in order.
IN_CH = 4
LAYER_CFG = [
    # block1
    (IN_CH, 16, 5, 2, 2),
    # block2
    (16, 16, 3, 1, 1),
    (16, 32, 3, 2, 2),
    # block3
    (32, 32, 3, 1, 1),
    (32, 32, 3, 1, 1),
    (32, 64, 3, 2, 2),
    # block4
    (64, 64, 3, 1, 1),
    (64, 64, 3, 1, 1),
    (64, 128, 3, 1, 1),
]
MLP_HIDDEN = 128
MLP_OUT = 2


# ---------------------------------------------------------------------------
# Small helpers
# ---------------------------------------------------------------------------
def _round_up(x, m):
    return (x + m - 1) // m * m


def _group_select_matrix(c, groups):
    # (C, C) 0/1 symmetric matrix: 1 where two channels belong to the same group.
    gid = jnp.arange(c, dtype=jnp.int32) // (c // groups)
    return (gid[:, None] == gid[None, :]).astype(jnp.float32)


def _full_spec(shape):
    # single-block spec: block == full array (exempt from the (8,128) rule)
    return pl.BlockSpec(shape, lambda i, _n=len(shape): (0,) * _n)


# ---------------------------------------------------------------------------
# Pallas kernels
# ---------------------------------------------------------------------------
def _conv_gn_relu_kernel(x_ref, w_ref, b_ref, g_ref, bt_ref, gsel_ref, o_ref,
                         *, inv_count, eps):
    """Whole-layer fused conv matmul + bias + GroupNorm + ReLU, one batch element.

    x_ref:    (1, S, Kp)  bf16 im2col patches of one batch element
    w_ref:    (C, Kp)     bf16 weights
    b/g/bt:   (C, 1)      f32 bias / gamma / beta
    gsel_ref: (C, C)      f32 group-membership matrix
    o_ref:    (1, C, S)   bf16 channel-first output
    """
    # (C, Kp) x (S, Kp)^T -> (C, S), f32 accumulation on the MXU, single step.
    y = jax.lax.dot_general(
        w_ref[...], x_ref[0],
        dimension_numbers=(((1,), (1,)), ((), ())),
        preferred_element_type=jnp.float32)
    y = y + b_ref[...]
    # GroupNorm (centered two-pass variance) + ReLU, all in f32.
    s1 = jnp.sum(y, axis=1, keepdims=True)                                 # (C, 1)
    mean = jnp.dot(gsel_ref[...], s1, preferred_element_type=jnp.float32) * inv_count
    d = y - mean
    s2 = jnp.sum(d * d, axis=1, keepdims=True)
    var = jnp.dot(gsel_ref[...], s2, preferred_element_type=jnp.float32) * inv_count
    inv = jax.lax.rsqrt(var + eps)
    out = jnp.maximum(d * (inv * g_ref[...]) + bt_ref[...], 0.0)
    o_ref[0] = out.astype(o_ref.dtype)


def _tail_kernel(x_ref, w6_ref, p6_ref, w7_ref, p7_ref, w8_ref, p8_ref,
                 w9_ref, p9_ref, gsel64_ref, gsel128_ref,
                 mw1_ref, mb1_ref, mw2_ref, mb2_ref, o_ref, *, eps, cgs):
    """Layers 6-9 (Conv4d collapsed to tap-matmuls) + GN + ReLU + pool + MLP.

    All activations are (B, C) with channels on lanes (lane-dense); everything
    stays resident in VMEM / vregs for the whole tail.
    p*_ref: (3, C) f32 rows = [bias, gamma, beta].
    """
    def layer(h, w_ref, p_ref, gsel, cg):
        y = jnp.dot(h.astype(jnp.bfloat16), w_ref[...],
                    preferred_element_type=jnp.float32) + p_ref[0:1, :]
        inv_count = 1.0 / cg          # GroupNorm with spatial extent 1
        mean = jnp.dot(y, gsel, preferred_element_type=jnp.float32) * inv_count
        d = y - mean
        var = jnp.dot(d * d, gsel, preferred_element_type=jnp.float32) * inv_count
        inv = jax.lax.rsqrt(var + eps)
        return jnp.maximum(d * (inv * p_ref[1:2, :]) + p_ref[2:3, :], 0.0)

    g64 = gsel64_ref[...]
    g128 = gsel128_ref[...]
    h = layer(x_ref[...], w6_ref, p6_ref, g64, cgs[0])
    h = layer(h, w7_ref, p7_ref, g64, cgs[1])
    h = layer(h, w8_ref, p8_ref, g64, cgs[2])
    h = layer(h, w9_ref, p9_ref, g128, cgs[3])
    # Mean over the size-1 spatial extent is the identity; MLP in f32.
    h1 = jnp.maximum(
        jnp.dot(h, mw1_ref[...], preferred_element_type=jnp.float32) + mb1_ref[...],
        0.0)
    o_ref[...] = (jnp.dot(h1, mw2_ref[...], preferred_element_type=jnp.float32)
                  + mb2_ref[...])


# ---------------------------------------------------------------------------
# pallas_call wrappers
# ---------------------------------------------------------------------------
def _conv_mm_gn_fused(patches, wt, bias, gamma, beta, gsel, *, inv_count):
    B, S, Kp = patches.shape
    C = wt.shape[0]
    kernel = functools.partial(_conv_gn_relu_kernel, inv_count=inv_count, eps=_GN_EPS)
    cost = pl.CostEstimate(
        flops=2 * B * S * Kp * C,
        transcendentals=B * C,
        bytes_accessed=2 * patches.size + 2 * wt.size + 2 * B * C * S)
    return pl.pallas_call(
        kernel,
        out_shape=jax.ShapeDtypeStruct((B, C, S), jnp.bfloat16),
        grid_spec=pltpu.PrefetchScalarGridSpec(
            num_scalar_prefetch=0,
            grid=(B,),
            in_specs=[
                pl.BlockSpec((1, S, Kp), lambda b: (b, 0, 0)),
                pl.BlockSpec((C, Kp), lambda b: (0, 0)),
                pl.BlockSpec((C, 1), lambda b: (0, 0)),
                pl.BlockSpec((C, 1), lambda b: (0, 0)),
                pl.BlockSpec((C, 1), lambda b: (0, 0)),
                pl.BlockSpec((C, C), lambda b: (0, 0)),
            ],
            out_specs=pl.BlockSpec((1, C, S), lambda b: (b, 0, 0)),
        ),
        compiler_params=pltpu.CompilerParams(
            dimension_semantics=("parallel",),
            vmem_limit_bytes=_VMEM_LIMIT_BYTES),
        cost_estimate=cost,
    )(patches, wt, bias, gamma, beta, gsel)


def _tail_fused_call(args, B, cgs):
    kernel = functools.partial(_tail_kernel, eps=_GN_EPS, cgs=cgs)
    in_specs = [_full_spec(a.shape) for a in args]
    return pl.pallas_call(
        kernel,
        out_shape=jax.ShapeDtypeStruct((B, MLP_OUT), jnp.float32),
        grid=(1,),
        in_specs=in_specs,
        out_specs=_full_spec((B, MLP_OUT)),
        compiler_params=pltpu.CompilerParams(vmem_limit_bytes=_VMEM_LIMIT_BYTES),
    )(*args)


# ---------------------------------------------------------------------------
# JAX glue: im2col for the true 4-D convolution (pure data movement, bf16)
# ---------------------------------------------------------------------------
def _unfold_axis(x, axis, k, stride, pad):
    """Sliding windows of size k / given stride along `axis` (zero padded).
    Appends a new kernel-tap axis at the end."""
    pads = [(0, 0)] * x.ndim
    pads[axis] = (pad, pad)
    xp = jnp.pad(x, pads)
    L = xp.shape[axis]
    out_len = (L - k) // stride + 1
    taps = []
    for t in range(k):
        idx = [slice(None)] * xp.ndim
        idx[axis] = slice(t, t + (out_len - 1) * stride + 1, stride)
        taps.append(xp[tuple(idx)])
    return jnp.stack(taps, axis=xp.ndim)


def extract_patches_4d(x, k, strides, pad):
    """x: (B, Cin, Ha, Wa, Hb, Wb) -> patches (B, S_out, Cin*k^4), K ordered as
    (ci, ka, kb, kc, kd) to match W.reshape(Cout, -1).

    The channel axis is moved last BEFORE the k^4 expansion so the expanded
    tensor reshapes straight into (B, S, K) with no post-expansion transpose.
    """
    B, Cin = x.shape[0], x.shape[1]
    p = jnp.moveaxis(x, 1, -1)                      # (B, Ha, Wa, Hb, Wb, Cin) - small
    for n, (ax, s) in enumerate(zip((1, 2, 3, 4), strides)):
        p = _unfold_axis(p, ax, k, s, pad)
        if n > 0:  # keep rank <= 8: merge the trailing tap axes as we go
            p = p.reshape(p.shape[:-2] + (p.shape[-2] * p.shape[-1],))
    Oa, Ob, Oc, Od = p.shape[1:5]
    patches = p.reshape(B, Oa * Ob * Oc * Od, Cin * (k ** 4))
    return patches, (Oa, Ob, Oc, Od)


def conv4d_gn_relu(x, w, bias, gamma, beta, k, qs, ks, groups=_GROUPS):
    """One `Conv4d -> GroupNorm -> ReLU` layer.  x: (B, Cin, Ha, Wa, Hb, Wb)."""
    B = x.shape[0]
    Cout = w.shape[0]
    pad = k // 2

    patches, out_dims = extract_patches_4d(
        x.astype(jnp.bfloat16), k, (qs, qs, ks, ks), pad)          # (B, S, K)
    S, K = patches.shape[1], patches.shape[2]

    Kp = _round_up(K, 128)
    if Kp != K:  # zero padding: contributes nothing to the dot product
        patches = jnp.pad(patches, ((0, 0), (0, 0), (0, Kp - K)))
    wt = w.reshape(Cout, -1).astype(jnp.bfloat16)                  # (Cout, K)
    if Kp != K:
        wt = jnp.pad(wt, ((0, 0), (0, Kp - K)))

    # Single full-K grid step per batch element; must fit VMEM (always true here).
    assert S * Kp * 2 <= _MAX_PATCH_TILE_BYTES, "add S/K tiling for this shape"

    Cg = Cout // groups
    inv_count = 1.0 / float(Cg * S)
    gsel = _group_select_matrix(Cout, groups)
    y = _conv_mm_gn_fused(
        patches, wt,
        bias.reshape(Cout, 1).astype(jnp.float32),
        gamma.reshape(Cout, 1).astype(jnp.float32),
        beta.reshape(Cout, 1).astype(jnp.float32),
        gsel, inv_count=inv_count)
    return y.reshape(B, Cout, *out_dims)


def tail_fused_forward(x5, params, groups=_GROUPS):
    """Layers 6-9 + GroupNorm/ReLU + mean-pool + MLP as one Pallas kernel.

    x5: layer-5 output (B, 32, 2, 2, 2, 2) bf16.  Layer 6 (k=3, stride 2, pad 1)
    over a 2^4 spatial extent only touches kernel taps (1,2)^4; layers 7-9
    (k=3, stride 1, pad 1) over a 1^4 extent only touch the centre tap, so each
    Conv4d collapses to a matmul over the corresponding weight subset.
    """
    B = x5.shape[0]
    assert x5.shape[1:] == (32, 2, 2, 2, 2), x5.shape
    for li in (5, 6, 7, 8):
        assert LAYER_CFG[li][2] == 3
    assert LAYER_CFG[5][3] == LAYER_CFG[5][4] == 2
    for li in (6, 7, 8):
        assert LAYER_CFG[li][3] == LAYER_CFG[li][4] == 1

    x = x5.reshape(B, 32 * 16).astype(jnp.bfloat16)   # order (cin, oa, ob, oc, od)

    (w6, b6, g6, bt6) = params["conv"][5]
    (w7, b7, g7, bt7) = params["conv"][6]
    (w8, b8, g8, bt8) = params["conv"][7]
    (w9, b9, g9, bt9) = params["conv"][8]

    # Layer 6: valid taps are indices 1..2 along each of the 4 kernel dims.
    w6m = w6[:, :, 1:, 1:, 1:, 1:].reshape(w6.shape[0], -1).T.astype(jnp.bfloat16)
    # Layers 7-9: only the centre tap sees non-padding input.
    w7m = w7[:, :, 1, 1, 1, 1].T.astype(jnp.bfloat16)
    w8m = w8[:, :, 1, 1, 1, 1].T.astype(jnp.bfloat16)
    w9m = w9[:, :, 1, 1, 1, 1].T.astype(jnp.bfloat16)

    def pstack(b, g, bt):
        return jnp.stack([b, g, bt]).astype(jnp.float32)   # (3, C)

    p6, p7, p8, p9 = (pstack(b6, g6, bt6), pstack(b7, g7, bt7),
                      pstack(b8, g8, bt8), pstack(b9, g9, bt9))
    gsel64 = _group_select_matrix(64, groups)
    gsel128 = _group_select_matrix(128, groups)
    cgs = (64 // groups, 64 // groups, 64 // groups, 128 // groups)

    args = (x, w6m, p6, w7m, p7, w8m, p8, w9m, p9, gsel64, gsel128,
            params["w1"], params["b1"], params["w2"], params["b2"])
    return _tail_fused_call(args, B, cgs)


# ---------------------------------------------------------------------------
# Parameters (deterministic synthetic init, shapes match the PyTorch module)
# ---------------------------------------------------------------------------
def init_params(key):
    params = {"conv": []}
    for (cin, cout, k, _qs, _ks) in LAYER_CFG:
        key, kw, kb, kg, kbt = jax.random.split(key, 5)
        fan_in = cin * k ** 4
        w = jax.random.normal(kw, (cout, cin, k, k, k, k), jnp.float32) / math.sqrt(fan_in)
        b = 0.01 * jax.random.normal(kb, (cout,), jnp.float32)
        gamma = 1.0 + 0.1 * jax.random.normal(kg, (cout,), jnp.float32)
        beta = 0.1 * jax.random.normal(kbt, (cout,), jnp.float32)
        params["conv"].append((w, b, gamma, beta))
    key, k1, k2, k3, k4 = jax.random.split(key, 5)
    params["w1"] = jax.random.normal(k1, (MLP_HIDDEN, MLP_HIDDEN), jnp.float32) / math.sqrt(MLP_HIDDEN)
    params["b1"] = 0.01 * jax.random.normal(k2, (1, MLP_HIDDEN), jnp.float32)
    params["w2"] = jax.random.normal(k3, (MLP_HIDDEN, MLP_OUT), jnp.float32) / math.sqrt(MLP_HIDDEN)
    params["b2"] = 0.01 * jax.random.normal(k4, (1, MLP_OUT), jnp.float32)
    return params


# ---------------------------------------------------------------------------
# CVLearner forward
# ---------------------------------------------------------------------------
@jax.jit
def cvlearner_forward(params, corr):
    # corr: (B, C=inch[1], Ha, Wa, Hb, Wb)
    x = corr
    # Layers 1-5: per-layer fused conv+GN+ReLU kernels (bf16 activations).
    for (cin, cout, k, qs, ks), (w, b, gamma, beta) in zip(
            LAYER_CFG[:5], params["conv"][:5]):
        x = conv4d_gn_relu(x, w, b, gamma, beta, k, qs, ks)
    # Layers 6-9 + pool + MLP: one fused VMEM-resident kernel -> (B, 2) logits.
    logits = tail_fused_forward(x, params)
    # .squeeze(-1).squeeze(-1) is a no-op for a (B, 2) tensor with B, 2 > 1.
    return logits
    # TODO(synk): interpolate_support_dims / interpolate_query_dims are never
    # called in forward(), so they are intentionally not implemented.


if __name__ == "__main__":
    key = jax.random.PRNGKey(0)
    corr = jax.random.normal(key, (2, IN_CH, 8, 8, 8, 8), jnp.float32)
    params = init_params(jax.random.PRNGKey(1))

    logits = cvlearner_forward(params, corr)
    logits = jax.block_until_ready(logits)

    assert logits.shape == (2, 2), logits.shape
    assert bool(jnp.all(jnp.isfinite(logits)))
    print("KERNEL_OK")
</pallas_src>

<mosaic_0001>
module attributes {stable_mosaic.version = 11 : i64} {
  func.func @_conv_gn_relu_kernel(%arg0: i32, %arg1: memref<1x256x2560xbf16, #tpu.memory_space<vmem>>, %arg2: memref<16x2560xbf16, #tpu.memory_space<vmem>>, %arg3: memref<16x1xf32, #tpu.memory_space<vmem>>, %arg4: memref<16x1xf32, #tpu.memory_space<vmem>>, %arg5: memref<16x1xf32, #tpu.memory_space<vmem>>, %arg6: memref<16x16xf32, #tpu.memory_space<vmem>>, %arg7: memref<1x16x256xbf16, #tpu.memory_space<vmem>>) attributes {dimension_semantics = [#tpu.dimension_semantics<parallel>], iteration_bounds = array<i64: 2>, scalar_prefetch = 0 : i64, scratch_operands = 0 : i64, tpu.core_type = #tpu.core_type<tc>, window_params = [{transform_indices = @transform_0, window_bounds = array<i64: 1, 256, 2560>}, {pipeline_mode = #tpu.pipeline_mode<synchronous>, transform_indices = @transform_1, window_bounds = array<i64: 16, 2560>}, {pipeline_mode = #tpu.pipeline_mode<synchronous>, transform_indices = @transform_2, window_bounds = array<i64: 16, 1>}, {pipeline_mode = #tpu.pipeline_mode<synchronous>, transform_indices = @transform_3, window_bounds = array<i64: 16, 1>}, {pipeline_mode = #tpu.pipeline_mode<synchronous>, transform_indices = @transform_4, window_bounds = array<i64: 16, 1>}, {pipeline_mode = #tpu.pipeline_mode<synchronous>, transform_indices = @transform_5, window_bounds = array<i64: 16, 16>}, {transform_indices = @transform_6, window_bounds = array<i64: 1, 16, 256>}]} {
    %c0 = arith.constant 0 : index
    %c0_0 = arith.constant 0 : index
    %0 = vector.load %arg2[%c0, %c0_0] : memref<16x2560xbf16, #tpu.memory_space<vmem>>, vector<16x2560xbf16>
    %c0_1 = arith.constant 0 : index
    %c0_2 = arith.constant 0 : index
    %c0_3 = arith.constant 0 : index
    %1 = vector.load %arg1[%c0_1, %c0_2, %c0_3] : memref<1x256x2560xbf16, #tpu.memory_space<vmem>>, vector<1x256x2560xbf16>
    %2 = vector.shape_cast %1 : vector<1x256x2560xbf16> to vector<256x2560xbf16>
    %cst = arith.constant dense<0.000000e+00> : vector<16x256xf32>
    %3 = tpu.matmul %0, %2, %cst {dimension_numbers = #tpu.dot_dimension_numbers<[1], [1], [0], [0], [0, 0, 1, 0], [], []>} : vector<16x2560xbf16>, vector<256x2560xbf16>, vector<16x256xf32> -> vector<16x256xf32>
    %c0_4 = arith.constant 0 : index
    %c0_5 = arith.constant 0 : index
    %4 = vector.load %arg3[%c0_4, %c0_5] : memref<16x1xf32, #tpu.memory_space<vmem>>, vector<16x1xf32>
    %5 = vector.broadcast %4 : vector<16x1xf32> to vector<16x256xf32>
    %6 = arith.addf %3, %5 : vector<16x256xf32>
    %cst_6 = arith.constant dense<0.000000e+00> : vector<16xf32>
    %7 = vector.multi_reduction <add>, %6, %cst_6 [1] : vector<16x256xf32> to vector<16xf32>
    %8 = vector.shape_cast %7 : vector<16xf32> to vector<16x1xf32>
    %c0_7 = arith.constant 0 : index
    %c0_8 = arith.constant 0 : index
    %9 = vector.load %arg6[%c0_7, %c0_8] : memref<16x16xf32, #tpu.memory_space<vmem>>, vector<16x16xf32>
    %cst_9 = arith.constant dense<0.000000e+00> : vector<16x1xf32>
    %10 = tpu.matmul %9, %8, %cst_9 {dimension_numbers = #tpu.dot_dimension_numbers<[1], [0], [0], [1], [0, 0, 1, 1], [], []>} : vector<16x16xf32>, vector<16x1xf32>, vector<16x1xf32> -> vector<16x1xf32>
    %cst_10 = arith.constant 9.765625E-4 : f32
    %11 = vector.broadcast %cst_10 : f32 to vector<16x1xf32>
    %12 = arith.mulf %10, %11 : vector<16x1xf32>
    %13 = vector.broadcast %12 : vector<16x1xf32> to vector<16x256xf32>
    %14 = arith.subf %6, %13 : vector<16x256xf32>
    %15 = arith.mulf %14, %14 : vector<16x256xf32>
    %cst_11 = arith.constant dense<0.000000e+00> : vector<16xf32>
    %16 = vector.multi_reduction <add>, %15, %cst_11 [1] : vector<16x256xf32> to vector<16xf32>
    %17 = vector.shape_cast %16 : vector<16xf32> to vector<16x1xf32>
    %c0_12 = arith.constant 0 : index
    %c0_13 = arith.constant 0 : index
    %18 = vector.load %arg6[%c0_12, %c0_13] : memref<16x16xf32, #tpu.memory_space<vmem>>, vector<16x16xf32>
    %cst_14 = arith.constant dense<0.000000e+00> : vector<16x1xf32>
    %19 = tpu.matmul %18, %17, %cst_14 {dimension_numbers = #tpu.dot_dimension_numbers<[1], [0], [0], [1], [0, 0, 1, 1], [], []>} : vector<16x16xf32>, vector<16x1xf32>, vector<16x1xf32> -> vector<16x1xf32>
    %cst_15 = arith.constant 9.765625E-4 : f32
    %20 = vector.broadcast %cst_15 : f32 to vector<16x1xf32>
    %21 = arith.mulf %19, %20 : vector<16x1xf32>
    %cst_16 = arith.constant 9.99999974E-6 : f32
    %22 = vector.broadcast %cst_16 : f32 to vector<16x1xf32>
    %23 = arith.addf %21, %22 : vector<16x1xf32>
    %24 = math.rsqrt %23 : vector<16x1xf32>
    %c0_17 = arith.constant 0 : index
    %c0_18 = arith.constant 0 : index
    %25 = vector.load %arg4[%c0_17, %c0_18] : memref<16x1xf32, #tpu.memory_space<vmem>>, vector<16x1xf32>
    %26 = arith.mulf %24, %25 : vector<16x1xf32>
    %27 = vector.broadcast %26 : vector<16x1xf32> to vector<16x256xf32>
    %28 = arith.mulf %14, %27 : vector<16x256xf32>
    %c0_19 = arith.constant 0 : index
    %c0_20 = arith.constant 0 : index
    %29 = vector.load %arg5[%c0_19, %c0_20] : memref<16x1xf32, #tpu.memory_space<vmem>>, vector<16x1xf32>
    %30 = vector.broadcast %29 : vector<16x1xf32> to vector<16x256xf32>
    %31 = arith.addf %28, %30 : vector<16x256xf32>
    %cst_21 = arith.constant 0.000000e+00 : f32
    %32 = vector.broadcast %cst_21 : f32 to vector<16x256xf32>
    %33 = arith.maximumf %31, %32 : vector<16x256xf32>
    %34 = arith.truncf %33 : vector<16x256xf32> to vector<16x256xbf16>
    %c0_22 = arith.constant 0 : index
    %c0_23 = arith.constant 0 : index
    %c0_24 = arith.constant 0 : index
    %35 = vector.load %arg7[%c0_22, %c0_23, %c0_24] : memref<1x16x256xbf16, #tpu.memory_space<vmem>>, vector<1x16x256xbf16>
    %36 = vector.shape_cast %35 : vector<1x16x256xbf16> to vector<16x256xbf16>
    %37 = vector.shape_cast %34 : vector<16x256xbf16> to vector<1x16x256xbf16>
    tpu.vector_store %arg7[%c0_22, %c0_23, %c0_24], %37 {strides = array<i32>} : memref<1x16x256xbf16, #tpu.memory_space<vmem>>, vector<1x16x256xbf16>,
    return
  }
  func.func @transform_0(%arg0: i32) -> (i32, i32, i32) {
    %c0_i32 = arith.constant 0 : i32
    %c0_i32_0 = arith.constant 0 : i32
    %c0_i32_1 = arith.constant 0 : i32
    return %arg0, %c0_i32, %c0_i32_0 : i32, i32, i32
  }
  func.func @transform_1(%arg0: i32) -> (i32, i32) {
    %c0_i32 = arith.constant 0 : i32
    %c0_i32_0 = arith.constant 0 : i32
    %c0_i32_1 = arith.constant 0 : i32
    return %c0_i32, %c0_i32_0 : i32, i32
  }
  func.func @transform_2(%arg0: i32) -> (i32, i32) {
    %c0_i32 = arith.constant 0 : i32
    %c0_i32_0 = arith.constant 0 : i32
    %c0_i32_1 = arith.constant 0 : i32
    return %c0_i32, %c0_i32_0 : i32, i32
  }
  func.func @transform_3(%arg0: i32) -> (i32, i32) {
    %c0_i32 = arith.constant 0 : i32
    %c0_i32_0 = arith.constant 0 : i32
    %c0_i32_1 = arith.constant 0 : i32
    return %c0_i32, %c0_i32_0 : i32, i32
  }
  func.func @transform_4(%arg0: i32) -> (i32, i32) {
    %c0_i32 = arith.constant 0 : i32
    %c0_i32_0 = arith.constant 0 : i32
    %c0_i32_1 = arith.constant 0 : i32
    return %c0_i32, %c0_i32_0 : i32, i32
  }
  func.func @transform_5(%arg0: i32) -> (i32, i32) {
    %c0_i32 = arith.constant 0 : i32
    %c0_i32_0 = arith.constant 0 : i32
    %c0_i32_1 = arith.constant 0 : i32
    return %c0_i32, %c0_i32_0 : i32, i32
  }
  func.func @transform_6(%arg0: i32) -> (i32, i32, i32) {
    %c0_i32 = arith.constant 0 : i32
    %c0_i32_0 = arith.constant 0 : i32
    %c0_i32_1 = arith.constant 0 : i32
    return %arg0, %c0_i32, %c0_i32_0 : i32, i32, i32
  }
}

module attributes {stable_mosaic.version = 11 : i64} {
  func.func @_conv_gn_relu_kernel(%arg0: i32, %arg1: memref<1x256x1408xbf16, #tpu.memory_space<vmem>>, %arg2: memref<16x1408xbf16, #tpu.memory_space<vmem>>, %arg3: memref<16x1xf32, #tpu.memory_space<vmem>>, %arg4: memref<16x1xf32, #tpu.memory_space<vmem>>, %arg5: memref<16x1xf32, #tpu.memory_space<vmem>>, %arg6: memref<16x16xf32, #tpu.memory_space<vmem>>, %arg7: memref<1x16x256xbf16, #tpu.memory_space<vmem>>) attributes {dimension_semantics = [#tpu.dimension_semantics<parallel>], iteration_bounds = array<i64: 2>, scalar_prefetch = 0 : i64, scratch_operands = 0 : i64, tpu.core_type = #tpu.core_type<tc>, window_params = [{transform_indices = @transform_0, window_bounds = array<i64: 1, 256, 1408>}, {pipeline_mode = #tpu.pipeline_mode<synchronous>, transform_indices = @transform_1, window_bounds = array<i64: 16, 1408>}, {pipeline_mode = #tpu.pipeline_mode<synchronous>, transform_indices = @transform_2, window_bounds = array<i64: 16, 1>}, {pipeline_mode = #tpu.pipeline_mode<synchronous>, transform_indices = @transform_3, window_bounds = array<i64: 16, 1>}, {pipeline_mode = #tpu.pipeline_mode<synchronous>, transform_indices = @transform_4, window_bounds = array<i64: 16, 1>}, {pipeline_mode = #tpu.pipeline_mode<synchronous>, transform_indices = @transform_5, window_bounds = array<i64: 16, 16>}, {transform_indices = @transform_6, window_bounds = array<i64: 1, 16, 256>}]} {
    %c0 = arith.constant 0 : index
    %c0_0 = arith.constant 0 : index
    %0 = vector.load %arg2[%c0, %c0_0] : memref<16x1408xbf16, #tpu.memory_space<vmem>>, vector<16x1408xbf16>
    %c0_1 = arith.constant 0 : index
    %c0_2 = arith.constant 0 : index
    %c0_3 = arith.constant 0 : index
    %1 = vector.load %arg1[%c0_1, %c0_2, %c0_3] : memref<1x256x1408xbf16, #tpu.memory_space<vmem>>, vector<1x256x1408xbf16>
    %2 = vector.shape_cast %1 : vector<1x256x1408xbf16> to vector<256x1408xbf16>
    %cst = arith.constant dense<0.000000e+00> : vector<16x256xf32>
    %3 = tpu.matmul %0, %2, %cst {dimension_numbers = #tpu.dot_dimension_numbers<[1], [1], [0], [0], [0, 0, 1, 0], [], []>} : vector<16x1408xbf16>, vector<256x1408xbf16>, vector<16x256xf32> -> vector<16x256xf32>
    %c0_4 = arith.constant 0 : index
    %c0_5 = arith.constant 0 : index
    %4 = vector.load %arg3[%c0_4, %c0_5] : memref<16x1xf32, #tpu.memory_space<vmem>>, vector<16x1xf32>
    %5 = vector.broadcast %4 : vector<16x1xf32> to vector<16x256xf32>
    %6 = arith.addf %3, %5 : vector<16x256xf32>
    %cst_6 = arith.constant dense<0.000000e+00> : vector<16xf32>
    %7 = vector.multi_reduction <add>, %6, %cst_6 [1] : vector<16x256xf32> to vector<16xf32>
    %8 = vector.shape_cast %7 : vector<16xf32> to vector<16x1xf32>
    %c0_7 = arith.constant 0 : index
    %c0_8 = arith.constant 0 : index
    %9 = vector.load %arg6[%c0_7, %c0_8] : memref<16x16xf32, #tpu.memory_space<vmem>>, vector<16x16xf32>
    %cst_9 = arith.constant dense<0.000000e+00> : vector<16x1xf32>
    %10 = tpu.matmul %9, %8, %cst_9 {dimension_numbers = #tpu.dot_dimension_numbers<[1], [0], [0], [1], [0, 0, 1, 1], [], []>} : vector<16x16xf32>, vector<16x1xf32>, vector<16x1xf32> -> vector<16x1xf32>
    %cst_10 = arith.constant 9.765625E-4 : f32
    %11 = vector.broadcast %cst_10 : f32 to vector<16x1xf32>
    %12 = arith.mulf %10, %11 : vector<16x1xf32>
    %13 = vector.broadcast %12 : vector<16x1xf32> to vector<16x256xf32>
    %14 = arith.subf %6, %13 : vector<16x256xf32>
    %15 = arith.mulf %14, %14 : vector<16x256xf32>
    %cst_11 = arith.constant dense<0.000000e+00> : vector<16xf32>
    %16 = vector.multi_reduction <add>, %15, %cst_11 [1] : vector<16x256xf32> to vector<16xf32>
    %17 = vector.shape_cast %16 : vector<16xf32> to vector<16x1xf32>
    %c0_12 = arith.constant 0 : index
    %c0_13 = arith.constant 0 : index
    %18 = vector.load %arg6[%c0_12, %c0_13] : memref<16x16xf32, #tpu.memory_space<vmem>>, vector<16x16xf32>
    %cst_14 = arith.constant dense<0.000000e+00> : vector<16x1xf32>
    %19 = tpu.matmul %18, %17, %cst_14 {dimension_numbers = #tpu.dot_dimension_numbers<[1], [0], [0], [1], [0, 0, 1, 1], [], []>} : vector<16x16xf32>, vector<16x1xf32>, vector<16x1xf32> -> vector<16x1xf32>
    %cst_15 = arith.constant 9.765625E-4 : f32
    %20 = vector.broadcast %cst_15 : f32 to vector<16x1xf32>
    %21 = arith.mulf %19, %20 : vector<16x1xf32>
    %cst_16 = arith.constant 9.99999974E-6 : f32
    %22 = vector.broadcast %cst_16 : f32 to vector<16x1xf32>
    %23 = arith.addf %21, %22 : vector<16x1xf32>
    %24 = math.rsqrt %23 : vector<16x1xf32>
    %c0_17 = arith.constant 0 : index
    %c0_18 = arith.constant 0 : index
    %25 = vector.load %arg4[%c0_17, %c0_18] : memref<16x1xf32, #tpu.memory_space<vmem>>, vector<16x1xf32>
    %26 = arith.mulf %24, %25 : vector<16x1xf32>
    %27 = vector.broadcast %26 : vector<16x1xf32> to vector<16x256xf32>
    %28 = arith.mulf %14, %27 : vector<16x256xf32>
    %c0_19 = arith.constant 0 : index
    %c0_20 = arith.constant 0 : index
    %29 = vector.load %arg5[%c0_19, %c0_20] : memref<16x1xf32, #tpu.memory_space<vmem>>, vector<16x1xf32>
    %30 = vector.broadcast %29 : vector<16x1xf32> to vector<16x256xf32>
    %31 = arith.addf %28, %30 : vector<16x256xf32>
    %cst_21 = arith.constant 0.000000e+00 : f32
    %32 = vector.broadcast %cst_21 : f32 to vector<16x256xf32>
    %33 = arith.maximumf %31, %32 : vector<16x256xf32>
    %34 = arith.truncf %33 : vector<16x256xf32> to vector<16x256xbf16>
    %c0_22 = arith.constant 0 : index
    %c0_23 = arith.constant 0 : index
    %c0_24 = arith.constant 0 : index
    %35 = vector.load %arg7[%c0_22, %c0_23, %c0_24] : memref<1x16x256xbf16, #tpu.memory_space<vmem>>, vector<1x16x256xbf16>
    %36 = vector.shape_cast %35 : vector<1x16x256xbf16> to vector<16x256xbf16>
    %37 = vector.shape_cast %34 : vector<16x256xbf16> to vector<1x16x256xbf16>
    tpu.vector_store %arg7[%c0_22, %c0_23, %c0_24], %37 {strides = array<i32>} : memref<1x16x256xbf16, #tpu.memory_space<vmem>>, vector<1x16x256xbf16>,
    return
  }
  func.func @transform_0(%arg0: i32) -> (i32, i32, i32) {
    %c0_i32 = arith.constant 0 : i32
    %c0_i32_0 = arith.constant 0 : i32
    %c0_i32_1 = arith.constant 0 : i32
    return %arg0, %c0_i32, %c0_i32_0 : i32, i32, i32
  }
  func.func @transform_1(%arg0: i32) -> (i32, i32) {
    %c0_i32 = arith.constant 0 : i32
    %c0_i32_0 = arith.constant 0 : i32
    %c0_i32_1 = arith.constant 0 : i32
    return %c0_i32, %c0_i32_0 : i32, i32
  }
  func.func @transform_2(%arg0: i32) -> (i32, i32) {
    %c0_i32 = arith.constant 0 : i32
    %c0_i32_0 = arith.constant 0 : i32
    %c0_i32_1 = arith.constant 0 : i32
    return %c0_i32, %c0_i32_0 : i32, i32
  }
  func.func @transform_3(%arg0: i32) -> (i32, i32) {
    %c0_i32 = arith.constant 0 : i32
    %c0_i32_0 = arith.constant 0 : i32
    %c0_i32_1 = arith.constant 0 : i32
    return %c0_i32, %c0_i32_0 : i32, i32
  }
  func.func @transform_4(%arg0: i32) -> (i32, i32) {
    %c0_i32 = arith.constant 0 : i32
    %c0_i32_0 = arith.constant 0 : i32
    %c0_i32_1 = arith.constant 0 : i32
    return %c0_i32, %c0_i32_0 : i32, i32
  }
  func.func @transform_5(%arg0: i32) -> (i32, i32) {
    %c0_i32 = arith.constant 0 : i32
    %c0_i32_0 = arith.constant 0 : i32
    %c0_i32_1 = arith.constant 0 : i32
    return %c0_i32, %c0_i32_0 : i32, i32
  }
  func.func @transform_6(%arg0: i32) -> (i32, i32, i32) {
    %c0_i32 = arith.constant 0 : i32
    %c0_i32_0 = arith.constant 0 : i32
    %c0_i32_1 = arith.constant 0 : i32
    return %arg0, %c0_i32, %c0_i32_0 : i32, i32, i32
  }
}

module attributes {stable_mosaic.version = 11 : i64} {
  func.func @_conv_gn_relu_kernel(%arg0: i32, %arg1: memref<1x16x1408xbf16, #tpu.memory_space<vmem>>, %arg2: memref<32x1408xbf16, #tpu.memory_space<vmem>>, %arg3: memref<32x1xf32, #tpu.memory_space<vmem>>, %arg4: memref<32x1xf32, #tpu.memory_space<vmem>>, %arg5: memref<32x1xf32, #tpu.memory_space<vmem>>, %arg6: memref<32x32xf32, #tpu.memory_space<vmem>>, %arg7: memref<1x32x16xbf16, #tpu.memory_space<vmem>>) attributes {dimension_semantics = [#tpu.dimension_semantics<parallel>], iteration_bounds = array<i64: 2>, scalar_prefetch = 0 : i64, scratch_operands = 0 : i64, tpu.core_type = #tpu.core_type<tc>, window_params = [{transform_indices = @transform_0, window_bounds = array<i64: 1, 16, 1408>}, {pipeline_mode = #tpu.pipeline_mode<synchronous>, transform_indices = @transform_1, window_bounds = array<i64: 32, 1408>}, {pipeline_mode = #tpu.pipeline_mode<synchronous>, transform_indices = @transform_2, window_bounds = array<i64: 32, 1>}, {pipeline_mode = #tpu.pipeline_mode<synchronous>, transform_indices = @transform_3, window_bounds = array<i64: 32, 1>}, {pipeline_mode = #tpu.pipeline_mode<synchronous>, transform_indices = @transform_4, window_bounds = array<i64: 32, 1>}, {pipeline_mode = #tpu.pipeline_mode<synchronous>, transform_indices = @transform_5, window_bounds = array<i64: 32, 32>}, {transform_indices = @transform_6, window_bounds = array<i64: 1, 32, 16>}]} {
    %c0 = arith.constant 0 : index
    %c0_0 = arith.constant 0 : index
    %0 = vector.load %arg2[%c0, %c0_0] : memref<32x1408xbf16, #tpu.memory_space<vmem>>, vector<32x1408xbf16>
    %c0_1 = arith.constant 0 : index
    %c0_2 = arith.constant 0 : index
    %c0_3 = arith.constant 0 : index
    %1 = vector.load %arg1[%c0_1, %c0_2, %c0_3] : memref<1x16x1408xbf16, #tpu.memory_space<vmem>>, vector<1x16x1408xbf16>
    %2 = vector.shape_cast %1 : vector<1x16x1408xbf16> to vector<16x1408xbf16>
    %cst = arith.constant dense<0.000000e+00> : vector<32x16xf32>
    %3 = tpu.matmul %0, %2, %cst {dimension_numbers = #tpu.dot_dimension_numbers<[1], [1], [0], [0], [0, 0, 1, 0], [], []>} : vector<32x1408xbf16>, vector<16x1408xbf16>, vector<32x16xf32> -> vector<32x16xf32>
    %c0_4 = arith.constant 0 : index
    %c0_5 = arith.constant 0 : index
    %4 = vector.load %arg3[%c0_4, %c0_5] : memref<32x1xf32, #tpu.memory_space<vmem>>, vector<32x1xf32>
    %5 = vector.broadcast %4 : vector<32x1xf32> to vector<32x16xf32>
    %6 = arith.addf %3, %5 : vector<32x16xf32>
    %cst_6 = arith.constant dense<0.000000e+00> : vector<32xf32>
    %7 = vector.multi_reduction <add>, %6, %cst_6 [1] : vector<32x16xf32> to vector<32xf32>
    %8 = vector.shape_cast %7 : vector<32xf32> to vector<32x1xf32>
    %c0_7 = arith.constant 0 : index
    %c0_8 = arith.constant 0 : index
    %9 = vector.load %arg6[%c0_7, %c0_8] : memref<32x32xf32, #tpu.memory_space<vmem>>, vector<32x32xf32>
    %cst_9 = arith.constant dense<0.000000e+00> : vector<32x1xf32>
    %10 = tpu.matmul %9, %8, %cst_9 {dimension_numbers = #tpu.dot_dimension_numbers<[1], [0], [0], [1], [0, 0, 1, 1], [], []>} : vector<32x32xf32>, vector<32x1xf32>, vector<32x1xf32> -> vector<32x1xf32>
    %cst_10 = arith.constant 7.812500e-03 : f32
    %11 = vector.broadcast %cst_10 : f32 to vector<32x1xf32>
    %12 = arith.mulf %10, %11 : vector<32x1xf32>
    %13 = vector.broadcast %12 : vector<32x1xf32> to vector<32x16xf32>
    %14 = arith.subf %6, %13 : vector<32x16xf32>
    %15 = arith.mulf %14, %14 : vector<32x16xf32>
    %cst_11 = arith.constant dense<0.000000e+00> : vector<32xf32>
    %16 = vector.multi_reduction <add>, %15, %cst_11 [1] : vector<32x16xf32> to vector<32xf32>
    %17 = vector.shape_cast %16 : vector<32xf32> to vector<32x1xf32>
    %c0_12 = arith.constant 0 : index
    %c0_13 = arith.constant 0 : index
    %18 = vector.load %arg6[%c0_12, %c0_13] : memref<32x32xf32, #tpu.memory_space<vmem>>, vector<32x32xf32>
    %cst_14 = arith.constant dense<0.000000e+00> : vector<32x1xf32>
    %19 = tpu.matmul %18, %17, %cst_14 {dimension_numbers = #tpu.dot_dimension_numbers<[1], [0], [0], [1], [0, 0, 1, 1], [], []>} : vector<32x32xf32>, vector<32x1xf32>, vector<32x1xf32> -> vector<32x1xf32>
    %cst_15 = arith.constant 7.812500e-03 : f32
    %20 = vector.broadcast %cst_15 : f32 to vector<32x1xf32>
    %21 = arith.mulf %19, %20 : vector<32x1xf32>
    %cst_16 = arith.constant 9.99999974E-6 : f32
    %22 = vector.broadcast %cst_16 : f32 to vector<32x1xf32>
    %23 = arith.addf %21, %22 : vector<32x1xf32>
    %24 = math.rsqrt %23 : vector<32x1xf32>
    %c0_17 = arith.constant 0 : index
    %c0_18 = arith.constant 0 : index
    %25 = vector.load %arg4[%c0_17, %c0_18] : memref<32x1xf32, #tpu.memory_space<vmem>>, vector<32x1xf32>
    %26 = arith.mulf %24, %25 : vector<32x1xf32>
    %27 = vector.broadcast %26 : vector<32x1xf32> to vector<32x16xf32>
    %28 = arith.mulf %14, %27 : vector<32x16xf32>
    %c0_19 = arith.constant 0 : index
    %c0_20 = arith.constant 0 : index
    %29 = vector.load %arg5[%c0_19, %c0_20] : memref<32x1xf32, #tpu.memory_space<vmem>>, vector<32x1xf32>
    %30 = vector.broadcast %29 : vector<32x1xf32> to vector<32x16xf32>
    %31 = arith.addf %28, %30 : vector<32x16xf32>
    %cst_21 = arith.constant 0.000000e+00 : f32
    %32 = vector.broadcast %cst_21 : f32 to vector<32x16xf32>
    %33 = arith.maximumf %31, %32 : vector<32x16xf32>
    %34 = arith.truncf %33 : vector<32x16xf32> to vector<32x16xbf16>
    %c0_22 = arith.constant 0 : index
    %c0_23 = arith.constant 0 : index
    %c0_24 = arith.constant 0 : index
    %35 = vector.load %arg7[%c0_22, %c0_23, %c0_24] : memref<1x32x16xbf16, #tpu.memory_space<vmem>>, vector<1x32x16xbf16>
    %36 = vector.shape_cast %35 : vector<1x32x16xbf16> to vector<32x16xbf16>
    %37 = vector.shape_cast %34 : vector<32x16xbf16> to vector<1x32x16xbf16>
    tpu.vector_store %arg7[%c0_22, %c0_23, %c0_24], %37 {strides = array<i32>} : memref<1x32x16xbf16, #tpu.memory_space<vmem>>, vector<1x32x16xbf16>,
    return
  }
  func.func @transform_0(%arg0: i32) -> (i32, i32, i32) {
    %c0_i32 = arith.constant 0 : i32
    %c0_i32_0 = arith.constant 0 : i32
    %c0_i32_1 = arith.constant 0 : i32
    return %arg0, %c0_i32, %c0_i32_0 : i32, i32, i32
  }
  func.func @transform_1(%arg0: i32) -> (i32, i32) {
    %c0_i32 = arith.constant 0 : i32
    %c0_i32_0 = arith.constant 0 : i32
    %c0_i32_1 = arith.constant 0 : i32
    return %c0_i32, %c0_i32_0 : i32, i32
  }
  func.func @transform_2(%arg0: i32) -> (i32, i32) {
    %c0_i32 = arith.constant 0 : i32
    %c0_i32_0 = arith.constant 0 : i32
    %c0_i32_1 = arith.constant 0 : i32
    return %c0_i32, %c0_i32_0 : i32, i32
  }
  func.func @transform_3(%arg0: i32) -> (i32, i32) {
    %c0_i32 = arith.constant 0 : i32
    %c0_i32_0 = arith.constant 0 : i32
    %c0_i32_1 = arith.constant 0 : i32
    return %c0_i32, %c0_i32_0 : i32, i32
  }
  func.func @transform_4(%arg0: i32) -> (i32, i32) {
    %c0_i32 = arith.constant 0 : i32
    %c0_i32_0 = arith.constant 0 : i32
    %c0_i32_1 = arith.constant 0 : i32
    return %c0_i32, %c0_i32_0 : i32, i32
  }
  func.func @transform_5(%arg0: i32) -> (i32, i32) {
    %c0_i32 = arith.constant 0 : i32
    %c0_i32_0 = arith.constant 0 : i32
    %c0_i32_1 = arith.constant 0 : i32
    return %c0_i32, %c0_i32_0 : i32, i32
  }
  func.func @transform_6(%arg0: i32) -> (i32, i32, i32) {
    %c0_i32 = arith.constant 0 : i32
    %c0_i32_0 = arith.constant 0 : i32
    %c0_i32_1 = arith.constant 0 : i32
    return %arg0, %c0_i32, %c0_i32_0 : i32, i32, i32
  }
}

module attributes {stable_mosaic.version = 11 : i64} {
  func.func @_conv_gn_relu_kernel(%arg0: i32, %arg1: memref<1x16x2688xbf16, #tpu.memory_space<vmem>>, %arg2: memref<32x2688xbf16, #tpu.memory_space<vmem>>, %arg3: memref<32x1xf32, #tpu.memory_space<vmem>>, %arg4: memref<32x1xf32, #tpu.memory_space<vmem>>, %arg5: memref<32x1xf32, #tpu.memory_space<vmem>>, %arg6: memref<32x32xf32, #tpu.memory_space<vmem>>, %arg7: memref<1x32x16xbf16, #tpu.memory_space<vmem>>) attributes {dimension_semantics = [#tpu.dimension_semantics<parallel>], iteration_bounds = array<i64: 2>, scalar_prefetch = 0 : i64, scratch_operands = 0 : i64, tpu.core_type = #tpu.core_type<tc>, window_params = [{transform_indices = @transform_0, window_bounds = array<i64: 1, 16, 2688>}, {pipeline_mode = #tpu.pipeline_mode<synchronous>, transform_indices = @transform_1, window_bounds = array<i64: 32, 2688>}, {pipeline_mode = #tpu.pipeline_mode<synchronous>, transform_indices = @transform_2, window_bounds = array<i64: 32, 1>}, {pipeline_mode = #tpu.pipeline_mode<synchronous>, transform_indices = @transform_3, window_bounds = array<i64: 32, 1>}, {pipeline_mode = #tpu.pipeline_mode<synchronous>, transform_indices = @transform_4, window_bounds = array<i64: 32, 1>}, {pipeline_mode = #tpu.pipeline_mode<synchronous>, transform_indices = @transform_5, window_bounds = array<i64: 32, 32>}, {transform_indices = @transform_6, window_bounds = array<i64: 1, 32, 16>}]} {
    %c0 = arith.constant 0 : index
    %c0_0 = arith.constant 0 : index
    %0 = vector.load %arg2[%c0, %c0_0] : memref<32x2688xbf16, #tpu.memory_space<vmem>>, vector<32x2688xbf16>
    %c0_1 = arith.constant 0 : index
    %c0_2 = arith.constant 0 : index
    %c0_3 = arith.constant 0 : index
    %1 = vector.load %arg1[%c0_1, %c0_2, %c0_3] : memref<1x16x2688xbf16, #tpu.memory_space<vmem>>, vector<1x16x2688xbf16>
    %2 = vector.shape_cast %1 : vector<1x16x2688xbf16> to vector<16x2688xbf16>
    %cst = arith.constant dense<0.000000e+00> : vector<32x16xf32>
    %3 = tpu.matmul %0, %2, %cst {dimension_numbers = #tpu.dot_dimension_numbers<[1], [1], [0], [0], [0, 0, 1, 0], [], []>} : vector<32x2688xbf16>, vector<16x2688xbf16>, vector<32x16xf32> -> vector<32x16xf32>
    %c0_4 = arith.constant 0 : index
    %c0_5 = arith.constant 0 : index
    %4 = vector.load %arg3[%c0_4, %c0_5] : memref<32x1xf32, #tpu.memory_space<vmem>>, vector<32x1xf32>
    %5 = vector.broadcast %4 : vector<32x1xf32> to vector<32x16xf32>
    %6 = arith.addf %3, %5 : vector<32x16xf32>
    %cst_6 = arith.constant dense<0.000000e+00> : vector<32xf32>
    %7 = vector.multi_reduction <add>, %6, %cst_6 [1] : vector<32x16xf32> to vector<32xf32>
    %8 = vector.shape_cast %7 : vector<32xf32> to vector<32x1xf32>
    %c0_7 = arith.constant 0 : index
    %c0_8 = arith.constant 0 : index
    %9 = vector.load %arg6[%c0_7, %c0_8] : memref<32x32xf32, #tpu.memory_space<vmem>>, vector<32x32xf32>
    %cst_9 = arith.constant dense<0.000000e+00> : vector<32x1xf32>
    %10 = tpu.matmul %9, %8, %cst_9 {dimension_numbers = #tpu.dot_dimension_numbers<[1], [0], [0], [1], [0, 0, 1, 1], [], []>} : vector<32x32xf32>, vector<32x1xf32>, vector<32x1xf32> -> vector<32x1xf32>
    %cst_10 = arith.constant 7.812500e-03 : f32
    %11 = vector.broadcast %cst_10 : f32 to vector<32x1xf32>
    %12 = arith.mulf %10, %11 : vector<32x1xf32>
    %13 = vector.broadcast %12 : vector<32x1xf32> to vector<32x16xf32>
    %14 = arith.subf %6, %13 : vector<32x16xf32>
    %15 = arith.mulf %14, %14 : vector<32x16xf32>
    %cst_11 = arith.constant dense<0.000000e+00> : vector<32xf32>
    %16 = vector.multi_reduction <add>, %15, %cst_11 [1] : vector<32x16xf32> to vector<32xf32>
    %17 = vector.shape_cast %16 : vector<32xf32> to vector<32x1xf32>
    %c0_12 = arith.constant 0 : index
    %c0_13 = arith.constant 0 : index
    %18 = vector.load %arg6[%c0_12, %c0_13] : memref<32x32xf32, #tpu.memory_space<vmem>>, vector<32x32xf32>
    %cst_14 = arith.constant dense<0.000000e+00> : vector<32x1xf32>
    %19 = tpu.matmul %18, %17, %cst_14 {dimension_numbers = #tpu.dot_dimension_numbers<[1], [0], [0], [1], [0, 0, 1, 1], [], []>} : vector<32x32xf32>, vector<32x1xf32>, vector<32x1xf32> -> vector<32x1xf32>
    %cst_15 = arith.constant 7.812500e-03 : f32
    %20 = vector.broadcast %cst_15 : f32 to vector<32x1xf32>
    %21 = arith.mulf %19, %20 : vector<32x1xf32>
    %cst_16 = arith.constant 9.99999974E-6 : f32
    %22 = vector.broadcast %cst_16 : f32 to vector<32x1xf32>
    %23 = arith.addf %21, %22 : vector<32x1xf32>
    %24 = math.rsqrt %23 : vector<32x1xf32>
    %c0_17 = arith.constant 0 : index
    %c0_18 = arith.constant 0 : index
    %25 = vector.load %arg4[%c0_17, %c0_18] : memref<32x1xf32, #tpu.memory_space<vmem>>, vector<32x1xf32>
    %26 = arith.mulf %24, %25 : vector<32x1xf32>
    %27 = vector.broadcast %26 : vector<32x1xf32> to vector<32x16xf32>
    %28 = arith.mulf %14, %27 : vector<32x16xf32>
    %c0_19 = arith.constant 0 : index
    %c0_20 = arith.constant 0 : index
    %29 = vector.load %arg5[%c0_19, %c0_20] : memref<32x1xf32, #tpu.memory_space<vmem>>, vector<32x1xf32>
    %30 = vector.broadcast %29 : vector<32x1xf32> to vector<32x16xf32>
    %31 = arith.addf %28, %30 : vector<32x16xf32>
    %cst_21 = arith.constant 0.000000e+00 : f32
    %32 = vector.broadcast %cst_21 : f32 to vector<32x16xf32>
    %33 = arith.maximumf %31, %32 : vector<32x16xf32>
    %34 = arith.truncf %33 : vector<32x16xf32> to vector<32x16xbf16>
    %c0_22 = arith.constant 0 : index
    %c0_23 = arith.constant 0 : index
    %c0_24 = arith.constant 0 : index
    %35 = vector.load %arg7[%c0_22, %c0_23, %c0_24] : memref<1x32x16xbf16, #tpu.memory_space<vmem>>, vector<1x32x16xbf16>
    %36 = vector.shape_cast %35 : vector<1x32x16xbf16> to vector<32x16xbf16>
    %37 = vector.shape_cast %34 : vector<32x16xbf16> to vector<1x32x16xbf16>
    tpu.vector_store %arg7[%c0_22, %c0_23, %c0_24], %37 {strides = array<i32>} : memref<1x32x16xbf16, #tpu.memory_space<vmem>>, vector<1x32x16xbf16>,
    return
  }
  func.func @transform_0(%arg0: i32) -> (i32, i32, i32) {
    %c0_i32 = arith.constant 0 : i32
    %c0_i32_0 = arith.constant 0 : i32
    %c0_i32_1 = arith.constant 0 : i32
    return %arg0, %c0_i32, %c0_i32_0 : i32, i32, i32
  }
  func.func @transform_1(%arg0: i32) -> (i32, i32) {
    %c0_i32 = arith.constant 0 : i32
    %c0_i32_0 = arith.constant 0 : i32
    %c0_i32_1 = arith.constant 0 : i32
    return %c0_i32, %c0_i32_0 : i32, i32
  }
  func.func @transform_2(%arg0: i32) -> (i32, i32) {
    %c0_i32 = arith.constant 0 : i32
    %c0_i32_0 = arith.constant 0 : i32
    %c0_i32_1 = arith.constant 0 : i32
    return %c0_i32, %c0_i32_0 : i32, i32
  }
  func.func @transform_3(%arg0: i32) -> (i32, i32) {
    %c0_i32 = arith.constant 0 : i32
    %c0_i32_0 = arith.constant 0 : i32
    %c0_i32_1 = arith.constant 0 : i32
    return %c0_i32, %c0_i32_0 : i32, i32
  }
  func.func @transform_4(%arg0: i32) -> (i32, i32) {
    %c0_i32 = arith.constant 0 : i32
    %c0_i32_0 = arith.constant 0 : i32
    %c0_i32_1 = arith.constant 0 : i32
    return %c0_i32, %c0_i32_0 : i32, i32
  }
  func.func @transform_5(%arg0: i32) -> (i32, i32) {
    %c0_i32 = arith.constant 0 : i32
    %c0_i32_0 = arith.constant 0 : i32
    %c0_i32_1 = arith.constant 0 : i32
    return %c0_i32, %c0_i32_0 : i32, i32
  }
  func.func @transform_6(%arg0: i32) -> (i32, i32, i32) {
    %c0_i32 = arith.constant 0 : i32
    %c0_i32_0 = arith.constant 0 : i32
    %c0_i32_1 = arith.constant 0 : i32
    return %arg0, %c0_i32, %c0_i32_0 : i32, i32, i32
  }
}

module attributes {stable_mosaic.version = 11 : i64} {
  func.func @_tail_kernel(%arg0: i32, %arg1: memref<2x512xbf16, #tpu.memory_space<vmem>>, %arg2: memref<512x64xbf16, #tpu.memory_space<vmem>>, %arg3: memref<3x64xf32, #tpu.memory_space<vmem>>, %arg4: memref<64x64xbf16, #tpu.memory_space<vmem>>, %arg5: memref<3x64xf32, #tpu.memory_space<vmem>>, %arg6: memref<64x64xbf16, #tpu.memory_space<vmem>>, %arg7: memref<3x64xf32, #tpu.memory_space<vmem>>, %arg8: memref<64x128xbf16, #tpu.memory_space<vmem>>, %arg9: memref<3x128xf32, #tpu.memory_space<vmem>>, %arg10: memref<64x64xf32, #tpu.memory_space<vmem>>, %arg11: memref<128x128xf32, #tpu.memory_space<vmem>>, %arg12: memref<128x128xf32, #tpu.memory_space<vmem>>, %arg13: memref<1x128xf32, #tpu.memory_space<vmem>>, %arg14: memref<128x2xf32, #tpu.memory_space<vmem>>, %arg15: memref<1x2xf32, #tpu.memory_space<vmem>>, %arg16: memref<2x2xf32, #tpu.memory_space<vmem>>) attributes {dimension_semantics = [#tpu.dimension_semantics<arbitrary>], iteration_bounds = array<i64: 1>, scalar_prefetch = 0 : i64, scratch_operands = 0 : i64, tpu.core_type = #tpu.core_type<tc>, window_params = [{pipeline_mode = #tpu.pipeline_mode<synchronous>, transform_indices = @transform_0, window_bounds = array<i64: 2, 512>}, {pipeline_mode = #tpu.pipeline_mode<synchronous>, transform_indices = @transform_1, window_bounds = array<i64: 512, 64>}, {pipeline_mode = #tpu.pipeline_mode<synchronous>, transform_indices = @transform_2, window_bounds = array<i64: 3, 64>}, {pipeline_mode = #tpu.pipeline_mode<synchronous>, transform_indices = @transform_3, window_bounds = array<i64: 64, 64>}, {pipeline_mode = #tpu.pipeline_mode<synchronous>, transform_indices = @transform_4, window_bounds = array<i64: 3, 64>}, {pipeline_mode = #tpu.pipeline_mode<synchronous>, transform_indices = @transform_5, window_bounds = array<i64: 64, 64>}, {pipeline_mode = #tpu.pipeline_mode<synchronous>, transform_indices = @transform_6, window_bounds = array<i64: 3, 64>}, {pipeline_mode = #tpu.pipeline_mode<synchronous>, transform_indices = @transform_7, window_bounds = array<i64: 64, 128>}, {pipeline_mode = #tpu.pipeline_mode<synchronous>, transform_indices = @transform_8, window_bounds = array<i64: 3, 128>}, {pipeline_mode = #tpu.pipeline_mode<synchronous>, transform_indices = @transform_9, window_bounds = array<i64: 64, 64>}, {pipeline_mode = #tpu.pipeline_mode<synchronous>, transform_indices = @transform_10, window_bounds = array<i64: 128, 128>}, {pipeline_mode = #tpu.pipeline_mode<synchronous>, transform_indices = @transform_11, window_bounds = array<i64: 128, 128>}, {pipeline_mode = #tpu.pipeline_mode<synchronous>, transform_indices = @transform_12, window_bounds = array<i64: 1, 128>}, {pipeline_mode = #tpu.pipeline_mode<synchronous>, transform_indices = @transform_13, window_bounds = array<i64: 128, 2>}, {pipeline_mode = #tpu.pipeline_mode<synchronous>, transform_indices = @transform_14, window_bounds = array<i64: 1, 2>}, {pipeline_mode = #tpu.pipeline_mode<synchronous>, transform_indices = @transform_15, window_bounds = array<i64: 2, 2>}]} {
    %c0 = arith.constant 0 : index
    %c0_0 = arith.constant 0 : index
    %0 = vector.load %arg10[%c0, %c0_0] : memref<64x64xf32, #tpu.memory_space<vmem>>, vector<64x64xf32>
    %c0_1 = arith.constant 0 : index
    %c0_2 = arith.constant 0 : index
    %1 = vector.load %arg11[%c0_1, %c0_2] : memref<128x128xf32, #tpu.memory_space<vmem>>, vector<128x128xf32>
    %c0_3 = arith.constant 0 : index
    %c0_4 = arith.constant 0 : index
    %2 = vector.load %arg1[%c0_3, %c0_4] : memref<2x512xbf16, #tpu.memory_space<vmem>>, vector<2x512xbf16>
    %c0_5 = arith.constant 0 : index
    %c0_6 = arith.constant 0 : index
    %3 = vector.load %arg2[%c0_5, %c0_6] : memref<512x64xbf16, #tpu.memory_space<vmem>>, vector<512x64xbf16>
    %cst = arith.constant dense<0.000000e+00> : vector<2x64xf32>
    %4 = tpu.matmul %2, %3, %cst {dimension_numbers = #tpu.dot_dimension_numbers<[1], [0], [0], [1], [0, 0, 1, 1], [], []>} : vector<2x512xbf16>, vector<512x64xbf16>, vector<2x64xf32> -> vector<2x64xf32>
    %c0_7 = arith.constant 0 : index
    %c0_8 = arith.constant 0 : index
    %5 = vector.load %arg3[%c0_7, %c0_8] : memref<3x64xf32, #tpu.memory_space<vmem>>, vector<1x64xf32>
    %6 = vector.broadcast %5 : vector<1x64xf32> to vector<2x64xf32>
    %7 = arith.addf %4, %6 : vector<2x64xf32>
    %cst_9 = arith.constant dense<0.000000e+00> : vector<2x64xf32>
    %8 = tpu.matmul %7, %0, %cst_9 {dimension_numbers = #tpu.dot_dimension_numbers<[1], [0], [0], [1], [0, 0, 1, 1], [], []>} : vector<2x64xf32>, vector<64x64xf32>, vector<2x64xf32> -> vector<2x64xf32>
    %cst_10 = arith.constant 6.250000e-02 : f32
    %9 = vector.broadcast %cst_10 : f32 to vector<2x64xf32>
    %10 = arith.mulf %8, %9 : vector<2x64xf32>
    %11 = arith.subf %7, %10 : vector<2x64xf32>
    %12 = arith.mulf %11, %11 : vector<2x64xf32>
    %cst_11 = arith.constant dense<0.000000e+00> : vector<2x64xf32>
    %13 = tpu.matmul %12, %0, %cst_11 {dimension_numbers = #tpu.dot_dimension_numbers<[1], [0], [0], [1], [0, 0, 1, 1], [], []>} : vector<2x64xf32>, vector<64x64xf32>, vector<2x64xf32> -> vector<2x64xf32>
    %cst_12 = arith.constant 6.250000e-02 : f32
    %14 = vector.broadcast %cst_12 : f32 to vector<2x64xf32>
    %15 = arith.mulf %13, %14 : vector<2x64xf32>
    %cst_13 = arith.constant 9.99999974E-6 : f32
    %16 = vector.broadcast %cst_13 : f32 to vector<2x64xf32>
    %17 = arith.addf %15, %16 : vector<2x64xf32>
    %18 = math.rsqrt %17 : vector<2x64xf32>
    %c1 = arith.constant 1 : index
    %c0_14 = arith.constant 0 : index
    %19 = vector.load %arg3[%c1, %c0_14] : memref<3x64xf32, #tpu.memory_space<vmem>>, vector<1x64xf32>
    %20 = vector.broadcast %19 : vector<1x64xf32> to vector<2x64xf32>
    %21 = arith.mulf %18, %20 : vector<2x64xf32>
    %22 = arith.mulf %11, %21 : vector<2x64xf32>
    %c2 = arith.constant 2 : index
    %c0_15 = arith.constant 0 : index
    %23 = vector.load %arg3[%c2, %c0_15] : memref<3x64xf32, #tpu.memory_space<vmem>>, vector<1x64xf32>
    %24 = vector.broadcast %23 : vector<1x64xf32> to vector<2x64xf32>
    %25 = arith.addf %22, %24 : vector<2x64xf32>
    %cst_16 = arith.constant 0.000000e+00 : f32
    %26 = vector.broadcast %cst_16 : f32 to vector<2x64xf32>
    %27 = arith.maximumf %25, %26 : vector<2x64xf32>
    %28 = arith.truncf %27 : vector<2x64xf32> to vector<2x64xbf16>
    %c0_17 = arith.constant 0 : index
    %c0_18 = arith.constant 0 : index
    %29 = vector.load %arg4[%c0_17, %c0_18] : memref<64x64xbf16, #tpu.memory_space<vmem>>, vector<64x64xbf16>
    %cst_19 = arith.constant dense<0.000000e+00> : vector<2x64xf32>
    %30 = tpu.matmul %28, %29, %cst_19 {dimension_numbers = #tpu.dot_dimension_numbers<[1], [0], [0], [1], [0, 0, 1, 1], [], []>} : vector<2x64xbf16>, vector<64x64xbf16>, vector<2x64xf32> -> vector<2x64xf32>
    %c0_20 = arith.constant 0 : index
    %c0_21 = arith.constant 0 : index
    %31 = vector.load %arg5[%c0_20, %c0_21] : memref<3x64xf32, #tpu.memory_space<vmem>>, vector<1x64xf32>
    %32 = vector.broadcast %31 : vector<1x64xf32> to vector<2x64xf32>
    %33 = arith.addf %30, %32 : vector<2x64xf32>
    %cst_22 = arith.constant dense<0.000000e+00> : vector<2x64xf32>
    %34 = tpu.matmul %33, %0, %cst_22 {dimension_numbers = #tpu.dot_dimension_numbers<[1], [0], [0], [1], [0, 0, 1, 1], [], []>} : vector<2x64xf32>, vector<64x64xf32>, vector<2x64xf32> -> vector<2x64xf32>
    %cst_23 = arith.constant 6.250000e-02 : f32
    %35 = vector.broadcast %cst_23 : f32 to vector<2x64xf32>
    %36 = arith.mulf %34, %35 : vector<2x64xf32>
    %37 = arith.subf %33, %36 : vector<2x64xf32>
    %38 = arith.mulf %37, %37 : vector<2x64xf32>
    %cst_24 = arith.constant dense<0.000000e+00> : vector<2x64xf32>
    %39 = tpu.matmul %38, %0, %cst_24 {dimension_numbers = #tpu.dot_dimension_numbers<[1], [0], [0], [1], [0, 0, 1, 1], [], []>} : vector<2x64xf32>, vector<64x64xf32>, vector<2x64xf32> -> vector<2x64xf32>
    %cst_25 = arith.constant 6.250000e-02 : f32
    %40 = vector.broadcast %cst_25 : f32 to vector<2x64xf32>
    %41 = arith.mulf %39, %40 : vector<2x64xf32>
    %cst_26 = arith.constant 9.99999974E-6 : f32
    %42 = vector.broadcast %cst_26 : f32 to vector<2x64xf32>
    %43 = arith.addf %41, %42 : vector<2x64xf32>
    %44 = math.rsqrt %43 : vector<2x64xf32>
    %c1_27 = arith.constant 1 : index
    %c0_28 = arith.constant 0 : index
    %45 = vector.load %arg5[%c1_27, %c0_28] : memref<3x64xf32, #tpu.memory_space<vmem>>, vector<1x64xf32>
    %46 = vector.broadcast %45 : vector<1x64xf32> to vector<2x64xf32>
    %47 = arith.mulf %44, %46 : vector<2x64xf32>
    %48 = arith.mulf %37, %47 : vector<2x64xf32>
    %c2_29 = arith.constant 2 : index
    %c0_30 = arith.constant 0 : index
    %49 = vector.load %arg5[%c2_29, %c0_30] : memref<3x64xf32, #tpu.memory_space<vmem>>, vector<1x64xf32>
    %50 = vector.broadcast %49 : vector<1x64xf32> to vector<2x64xf32>
    %51 = arith.addf %48, %50 : vector<2x64xf32>
    %cst_31 = arith.constant 0.000000e+00 : f32
    %52 = vector.broadcast %cst_31 : f32 to vector<2x64xf32>
    %53 = arith.maximumf %51, %52 : vector<2x64xf32>
    %54 = arith.truncf %53 : vector<2x64xf32> to vector<2x64xbf16>
    %c0_32 = arith.constant 0 : index
    %c0_33 = arith.constant 0 : index
    %55 = vector.load %arg6[%c0_32, %c0_33] : memref<64x64xbf16, #tpu.memory_space<vmem>>, vector<64x64xbf16>
    %cst_34 = arith.constant dense<0.000000e+00> : vector<2x64xf32>
    %56 = tpu.matmul %54, %55, %cst_34 {dimension_numbers = #tpu.dot_dimension_numbers<[1], [0], [0], [1], [0, 0, 1, 1], [], []>} : vector<2x64xbf16>, vector<64x64xbf16>, vector<2x64xf32> -> vector<2x64xf32>
    %c0_35 = arith.constant 0 : index
    %c0_36 = arith.constant 0 : index
    %57 = vector.load %arg7[%c0_35, %c0_36] : memref<3x64xf32, #tpu.memory_space<vmem>>, vector<1x64xf32>
    %58 = vector.broadcast %57 : vector<1x64xf32> to vector<2x64xf32>
    %59 = arith.addf %56, %58 : vector<2x64xf32>
    %cst_37 = arith.constant dense<0.000000e+00> : vector<2x64xf32>
    %60 = tpu.matmul %59, %0, %cst_37 {dimension_numbers = #tpu.dot_dimension_numbers<[1], [0], [0], [1], [0, 0, 1, 1], [], []>} : vector<2x64xf32>, vector<64x64xf32>, vector<2x64xf32> -> vector<2x64xf32>
    %cst_38 = arith.constant 6.250000e-02 : f32
    %61 = vector.broadcast %cst_38 : f32 to vector<2x64xf32>
    %62 = arith.mulf %60, %61 : vector<2x64xf32>
    %63 = arith.subf %59, %62 : vector<2x64xf32>
    %64 = arith.mulf %63, %63 : vector<2x64xf32>
    %cst_39 = arith.constant dense<0.000000e+00> : vector<2x64xf32>
    %65 = tpu.matmul %64, %0, %cst_39 {dimension_numbers = #tpu.dot_dimension_numbers<[1], [0], [0], [1], [0, 0, 1, 1], [], []>} : vector<2x64xf32>, vector<64x64xf32>, vector<2x64xf32> -> vector<2x64xf32>
    %cst_40 = arith.constant 6.250000e-02 : f32
    %66 = vector.broadcast %cst_40 : f32 to vector<2x64xf32>
    %67 = arith.mulf %65, %66 : vector<2x64xf32>
    %cst_41 = arith.constant 9.99999974E-6 : f32
    %68 = vector.broadcast %cst_41 : f32 to vector<2x64xf32>
    %69 = arith.addf %67, %68 : vector<2x64xf32>
    %70 = math.rsqrt %69 : vector<2x64xf32>
    %c1_42 = arith.constant 1 : index
    %c0_43 = arith.constant 0 : index
    %71 = vector.load %arg7[%c1_42, %c0_43] : memref<3x64xf32, #tpu.memory_space<vmem>>, vector<1x64xf32>
    %72 = vector.broadcast %71 : vector<1x64xf32> to vector<2x64xf32>
    %73 = arith.mulf %70, %72 : vector<2x64xf32>
    %74 = arith.mulf %63, %73 : vector<2x64xf32>
    %c2_44 = arith.constant 2 : index
    %c0_45 = arith.constant 0 : index
    %75 = vector.load %arg7[%c2_44, %c0_45] : memref<3x64xf32, #tpu.memory_space<vmem>>, vector<1x64xf32>
    %76 = vector.broadcast %75 : vector<1x64xf32> to vector<2x64xf32>
    %77 = arith.addf %74, %76 : vector<2x64xf32>
    %cst_46 = arith.constant 0.000000e+00 : f32
    %78 = vector.broadcast %cst_46 : f32 to vector<2x64xf32>
    %79 = arith.maximumf %77, %78 : vector<2x64xf32>
    %80 = arith.truncf %79 : vector<2x64xf32> to vector<2x64xbf16>
    %c0_47 = arith.constant 0 : index
    %c0_48 = arith.constant 0 : index
    %81 = vector.load %arg8[%c0_47, %c0_48] : memref<64x128xbf16, #tpu.memory_space<vmem>>, vector<64x128xbf16>
    %cst_49 = arith.constant dense<0.000000e+00> : vector<2x128xf32>
    %82 = tpu.matmul %80, %81, %cst_49 {dimension_numbers = #tpu.dot_dimension_numbers<[1], [0], [0], [1], [0, 0, 1, 1], [], []>} : vector<2x64xbf16>, vector<64x128xbf16>, vector<2x128xf32> -> vector<2x128xf32>
    %c0_50 = arith.constant 0 : index
    %c0_51 = arith.constant 0 : index
    %83 = vector.load %arg9[%c0_50, %c0_51] : memref<3x128xf32, #tpu.memory_space<vmem>>, vector<1x128xf32>
    %84 = vector.broadcast %83 : vector<1x128xf32> to vector<2x128xf32>
    %85 = arith.addf %82, %84 : vector<2x128xf32>
    %cst_52 = arith.constant dense<0.000000e+00> : vector<2x128xf32>
    %86 = tpu.matmul %85, %1, %cst_52 {dimension_numbers = #tpu.dot_dimension_numbers<[1], [0], [0], [1], [0, 0, 1, 1], [], []>} : vector<2x128xf32>, vector<128x128xf32>, vector<2x128xf32> -> vector<2x128xf32>
    %cst_53 = arith.constant 3.125000e-02 : f32
    %87 = vector.broadcast %cst_53 : f32 to vector<2x128xf32>
    %88 = arith.mulf %86, %87 : vector<2x128xf32>
    %89 = arith.subf %85, %88 : vector<2x128xf32>
    %90 = arith.mulf %89, %89 : vector<2x128xf32>
    %cst_54 = arith.constant dense<0.000000e+00> : vector<2x128xf32>
    %91 = tpu.matmul %90, %1, %cst_54 {dimension_numbers = #tpu.dot_dimension_numbers<[1], [0], [0], [1], [0, 0, 1, 1], [], []>} : vector<2x128xf32>, vector<128x128xf32>, vector<2x128xf32> -> vector<2x128xf32>
    %cst_55 = arith.constant 3.125000e-02 : f32
    %92 = vector.broadcast %cst_55 : f32 to vector<2x128xf32>
    %93 = arith.mulf %91, %92 : vector<2x128xf32>
    %cst_56 = arith.constant 9.99999974E-6 : f32
    %94 = vector.broadcast %cst_56 : f32 to vector<2x128xf32>
    %95 = arith.addf %93, %94 : vector<2x128xf32>
    %96 = math.rsqrt %95 : vector<2x128xf32>
    %c1_57 = arith.constant 1 : index
    %c0_58 = arith.constant 0 : index
    %97 = vector.load %arg9[%c1_57, %c0_58] : memref<3x128xf32, #tpu.memory_space<vmem>>, vector<1x128xf32>
    %98 = vector.broadcast %97 : vector<1x128xf32> to vector<2x128xf32>
    %99 = arith.mulf %96, %98 : vector<2x128xf32>
    %100 = arith.mulf %89, %99 : vector<2x128xf32>
    %c2_59 = arith.constant 2 : index
    %c0_60 = arith.constant 0 : index
    %101 = vector.load %arg9[%c2_59, %c0_60] : memref<3x128xf32, #tpu.memory_space<vmem>>, vector<1x128xf32>
    %102 = vector.broadcast %101 : vector<1x128xf32> to vector<2x128xf32>
    %103 = arith.addf %100, %102 : vector<2x128xf32>
    %cst_61 = arith.constant 0.000000e+00 : f32
    %104 = vector.broadcast %cst_61 : f32 to vector<2x128xf32>
    %105 = arith.maximumf %103, %104 : vector<2x128xf32>
    %c0_62 = arith.constant 0 : index
    %c0_63 = arith.constant 0 : index
    %106 = vector.load %arg12[%c0_62, %c0_63] : memref<128x128xf32, #tpu.memory_space<vmem>>, vector<128x128xf32>
    %cst_64 = arith.constant dense<0.000000e+00> : vector<2x128xf32>
    %107 = tpu.matmul %105, %106, %cst_64 {dimension_numbers = #tpu.dot_dimension_numbers<[1], [0], [0], [1], [0, 0, 1, 1], [], []>} : vector<2x128xf32>, vector<128x128xf32>, vector<2x128xf32> -> vector<2x128xf32>
    %c0_65 = arith.constant 0 : index
    %c0_66 = arith.constant 0 : index
    %108 = vector.load %arg13[%c0_65, %c0_66] : memref<1x128xf32, #tpu.memory_space<vmem>>, vector<1x128xf32>
    %109 = vector.broadcast %108 : vector<1x128xf32> to vector<2x128xf32>
    %110 = arith.addf %107, %109 : vector<2x128xf32>
    %cst_67 = arith.constant 0.000000e+00 : f32
    %111 = vector.broadcast %cst_67 : f32 to vector<2x128xf32>
    %112 = arith.maximumf %110, %111 : vector<2x128xf32>
    %c0_68 = arith.constant 0 : index
    %c0_69 = arith.constant 0 : index
    %113 = vector.load %arg14[%c0_68, %c0_69] : memref<128x2xf32, #tpu.memory_space<vmem>>, vector<128x2xf32>
    %cst_70 = arith.constant dense<0.000000e+00> : vector<2x2xf32>
    %114 = tpu.matmul %112, %113, %cst_70 {dimension_numbers = #tpu.dot_dimension_numbers<[1], [0], [0], [1], [0, 0, 1, 1], [], []>} : vector<2x128xf32>, vector<128x2xf32>, vector<2x2xf32> -> vector<2x2xf32>
    %c0_71 = arith.constant 0 : index
    %c0_72 = arith.constant 0 : index
    %115 = vector.load %arg15[%c0_71, %c0_72] : memref<1x2xf32, #tpu.memory_space<vmem>>, vector<1x2xf32>
    %116 = vector.broadcast %115 : vector<1x2xf32> to vector<2x2xf32>
    %117 = arith.addf %114, %116 : vector<2x2xf32>
    %c0_73 = arith.constant 0 : index
    %c0_74 = arith.constant 0 : index
    %118 = vector.load %arg16[%c0_73, %c0_74] : memref<2x2xf32, #tpu.memory_space<vmem>>, vector<2x2xf32>
    tpu.vector_store %arg16[%c0_73, %c0_74], %117 {strides = array<i32>} : memref<2x2xf32, #tpu.memory_space<vmem>>, vector<2x2xf32>,
    return
  }
  func.func @transform_0(%arg0: i32) -> (i32, i32) {
    %c0_i32 = arith.constant 0 : i32
    %c0_i32_0 = arith.constant 0 : i32
    %c0_i32_1 = arith.constant 0 : i32
    return %c0_i32, %c0_i32_0 : i32, i32
  }
  func.func @transform_1(%arg0: i32) -> (i32, i32) {
    %c0_i32 = arith.constant 0 : i32
    %c0_i32_0 = arith.constant 0 : i32
    %c0_i32_1 = arith.constant 0 : i32
    return %c0_i32, %c0_i32_0 : i32, i32
  }
  func.func @transform_2(%arg0: i32) -> (i32, i32) {
    %c0_i32 = arith.constant 0 : i32
    %c0_i32_0 = arith.constant 0 : i32
    %c0_i32_1 = arith.constant 0 : i32
    return %c0_i32, %c0_i32_0 : i32, i32
  }
  func.func @transform_3(%arg0: i32) -> (i32, i32) {
    %c0_i32 = arith.constant 0 : i32
    %c0_i32_0 = arith.constant 0 : i32
    %c0_i32_1 = arith.constant 0 : i32
    return %c0_i32, %c0_i32_0 : i32, i32
  }
  func.func @transform_4(%arg0: i32) -> (i32, i32) {
    %c0_i32 = arith.constant 0 : i32
    %c0_i32_0 = arith.constant 0 : i32
    %c0_i32_1 = arith.constant 0 : i32
    return %c0_i32, %c0_i32_0 : i32, i32
  }
  func.func @transform_5(%arg0: i32) -> (i32, i32) {
    %c0_i32 = arith.constant 0 : i32
    %c0_i32_0 = arith.constant 0 : i32
    %c0_i32_1 = arith.constant 0 : i32
    return %c0_i32, %c0_i32_0 : i32, i32
  }
  func.func @transform_6(%arg0: i32) -> (i32, i32) {
    %c0_i32 = arith.constant 0 : i32
    %c0_i32_0 = arith.constant 0 : i32
    %c0_i32_1 = arith.constant 0 : i32
    return %c0_i32, %c0_i32_0 : i32, i32
  }
  func.func @transform_7(%arg0: i32) -> (i32, i32) {
    %c0_i32 = arith.constant 0 : i32
    %c0_i32_0 = arith.constant 0 : i32
    %c0_i32_1 = arith.constant 0 : i32
    return %c0_i32, %c0_i32_0 : i32, i32
  }
  func.func @transform_8(%arg0: i32) -> (i32, i32) {
    %c0_i32 = arith.constant 0 : i32
    %c0_i32_0 = arith.constant 0 : i32
    %c0_i32_1 = arith.constant 0 : i32
    return %c0_i32, %c0_i32_0 : i32, i32
  }
  func.func @transform_9(%arg0: i32) -> (i32, i32) {
    %c0_i32 = arith.constant 0 : i32
    %c0_i32_0 = arith.constant 0 : i32
    %c0_i32_1 = arith.constant 0 : i32
    return %c0_i32, %c0_i32_0 : i32, i32
  }
  func.func @transform_10(%arg0: i32) -> (i32, i32) {
    %c0_i32 = arith.constant 0 : i32
    %c0_i32_0 = arith.constant 0 : i32
    %c0_i32_1 = arith.constant 0 : i32
    return %c0_i32, %c0_i32_0 : i32, i32
  }
  func.func @transform_11(%arg0: i32) -> (i32, i32) {
    %c0_i32 = arith.constant 0 : i32
    %c0_i32_0 = arith.constant 0 : i32
    %c0_i32_1 = arith.constant 0 : i32
    return %c0_i32, %c0_i32_0 : i32, i32
  }
  func.func @transform_12(%arg0: i32) -> (i32, i32) {
    %c0_i32 = arith.constant 0 : i32
    %c0_i32_0 = arith.constant 0 : i32
    %c0_i32_1 = arith.constant 0 : i32
    return %c0_i32, %c0_i32_0 : i32, i32
  }
  func.func @transform_13(%arg0: i32) -> (i32, i32) {
    %c0_i32 = arith.constant 0 : i32
    %c0_i32_0 = arith.constant 0 : i32
    %c0_i32_1 = arith.constant 0 : i32
    return %c0_i32, %c0_i32_0 : i32, i32
  }
  func.func @transform_14(%arg0: i32) -> (i32, i32) {
    %c0_i32 = arith.constant 0 : i32
    %c0_i32_0 = arith.constant 0 : i32
    %c0_i32_1 = arith.constant 0 : i32
    return %c0_i32, %c0_i32_0 : i32, i32
  }
  func.func @transform_15(%arg0: i32) -> (i32, i32) {
    %c0_i32 = arith.constant 0 : i32
    %c0_i32_0 = arith.constant 0 : i32
    %c0_i32_1 = arith.constant 0 : i32
    return %c0_i32, %c0_i32_0 : i32, i32
  }
}

</mosaic_0001>

<llo_original>
// kernel: cvlearner_forward.6
$region0: #{cvlearner_forward.6}
  #allocation0 [shape = 'u32[]', space=smem, size = 0x4, offset = 0x4, fixed_abs, tag = 'smem constant byte address 0x4 - core index']
  #allocation1 [shape = 'u32[72,128]{1,0:T(1,128)}', space=vmem, size = 0x9000, scoped, tag = 'internal scratch']
  %s0 = inlined_call_operand.vmem [shape: bf16[2,256,2560], index: 0, kind: input, shape index: {}]
  %s1 = inlined_call_operand.vmem [shape: bf16[16,2560], index: 1, kind: input, shape index: {}]
  %s2 = inlined_call_operand.vmem [shape: f32[16,1], index: 2, kind: input, shape index: {}]
  %s3 = inlined_call_operand.vmem [shape: f32[16,1], index: 3, kind: input, shape index: {}]
  %s4 = inlined_call_operand.vmem [shape: f32[16,1], index: 4, kind: input, shape index: {}]
  %s5 = inlined_call_operand.vmem [shape: f32[16,16], index: 5, kind: input, shape index: {}]
  %s6 = inlined_call_operand.vmem [shape: bf16[2,16,256], index: 6, kind: output, shape index: {}]
  %s7 = sld [smem:[#allocation0]]
  $region57: #{cvlearner_forward.6} parent=0
    _
  %s9 = ssub.s32 1, %s7
  %s10 = scalar_select 0, %s9, %s7
  loop: start=0, step=1, limit=4
  $region2: #{cvlearner_forward.6} parent=0 // loop_pre_header
    _
  $region3: #{cvlearner_forward.6} parent=0 // loop_header
    %s12 = sphi 0, %s16
    %p13 = scmp.ge.s32.totalorder %s12, 4
    %s22 = sphi 0, %s24
    %s25 = sphi 0, %s22
    %s26 = sphi 0, %s25
    %s42 = sphi 0, %s26
    %s46 = sphi 0, %s46
    %s48 = sphi 0, %s46
    %s49 = sphi 0, %s48
    %s63 = sphi 0, %s49
    %s67 = sphi 0, %s67
    %s69 = sphi 0, %s67
    %s70 = sphi 0, %s69
    %s84 = sphi 0, %s70
    %s88 = sphi 0, %s88
    %s90 = sphi 0, %s88
    %s91 = sphi 0, %s90
    %s105 = sphi 0, %s91
    %s109 = sphi 0, %s109
    %s111 = sphi 0, %s109
    %s112 = sphi 0, %s111
    %s126 = sphi 0, %s112
    %s130 = sphi 0, %s130
    %s132 = sphi 0, %s130
    %s133 = sphi 0, %s132
    %s147 = sphi 0, %s133
    %s153 = sphi 0, %s155
    %s156 = sphi 0, %s153
    %s157 = sphi 0, %s156
    %s173 = sphi 0, %s157
  $region4: #{cvlearner_forward.6} parent=0 // loop_header_branch
    %15 = sbr.rel (%p13) target = $region8
  $region5: #{cvlearner_forward.6} parent=0 // loop_body
    %s17 = ssub.s32 %s12, 1
    %s18 = ssub.s32 %s12, 2
    %s19 = sadd.s32 %s12, 1
    %s20 = ssub.s32 %s12, %s19
    %p21 = scmp.eq.s32.totalorder %s20, 0
    %s23 = sadd.s32 %s22, 1
    %s24 = scalar_select %p21, %s22, %s23
    %p27 = pneg %p21
    %p28 = scmp.eq.s32.totalorder %s12, 1
    %p29 = por %p27, %p28
    %p30 = scmp.ne.s32.totalorder %s22, %s25
    %p31 = scmp.eq.s32.totalorder %s12, 0
    %p32 = por %p30, %p31
    %p33 = scmp.ne.s32.totalorder %s22, %s25
    %p34 = scmp.eq.s32.totalorder %s17, 1
    %p35 = por %p33, %p34
    %p36 = scmp.ne.s32.totalorder %s25, %s26
    %p37 = scmp.eq.s32.totalorder %s17, 0
    %p38 = por %p36, %p37
    %p39 = scmp.ne.s32.totalorder %s25, %s26
    %p40 = scmp.eq.s32.totalorder %s18, 1
    %p41 = por %p39, %p40
    %p43 = scmp.ne.s32.totalorder %s26, %s42
    %p44 = scmp.eq.s32.totalorder %s18, 0
    %p45 = por %p43, %p44
    %s47 = sadd.s32 %s46, 1
    %p50 = scmp.eq.s32.totalorder %s12, 1
    %p51 = scmp.ne.s32.totalorder %s46, %s48
    %p52 = scmp.eq.s32.totalorder %s12, 0
    %p53 = por %p51, %p52
    %p54 = scmp.ne.s32.totalorder %s46, %s48
    %p55 = scmp.eq.s32.totalorder %s17, 1
    %p56 = por %p54, %p55
    %p57 = scmp.ne.s32.totalorder %s48, %s49
    %p58 = scmp.eq.s32.totalorder %s17, 0
    %p59 = por %p57, %p58
    %p60 = scmp.ne.s32.totalorder %s48, %s49
    %p61 = scmp.eq.s32.totalorder %s18, 1
    %p62 = por %p60, %p61
    %p64 = scmp.ne.s32.totalorder %s49, %s63
    %p65 = scmp.eq.s32.totalorder %s18, 0
    %p66 = por %p64, %p65
    %s68 = sadd.s32 %s67, 1
    %p71 = scmp.eq.s32.totalorder %s12, 1
    %p72 = scmp.ne.s32.totalorder %s67, %s69
    %p73 = scmp.eq.s32.totalorder %s12, 0
    %p74 = por %p72, %p73
    %p75 = scmp.ne.s32.totalorder %s67, %s69
    %p76 = scmp.eq.s32.totalorder %s17, 1
    %p77 = por %p75, %p76
    %p78 = scmp.ne.s32.totalorder %s69, %s70
    %p79 = scmp.eq.s32.totalorder %s17, 0
    %p80 = por %p78, %p79
    %p81 = scmp.ne.s32.totalorder %s69, %s70
    %p82 = scmp.eq.s32.totalorder %s18, 1
    %p83 = por %p81, %p82
    %p85 = scmp.ne.s32.totalorder %s70, %s84
    %p86 = scmp.eq.s32.totalorder %s18, 0
    %p87 = por %p85, %p86
    %s89 = sadd.s32 %s88, 1
    %p92 = scmp.eq.s32.totalorder %s12, 1
    %p93 = scmp.ne.s32.totalorder %s88, %s90
    %p94 = scmp.eq.s32.totalorder %s12, 0
    %p95 = por %p93, %p94
    %p96 = scmp.ne.s32.totalorder %s88, %s90
    %p97 = scmp.eq.s32.totalorder %s17, 1
    %p98 = por %p96, %p97
    %p99 = scmp.ne.s32.totalorder %s90, %s91
    %p100 = scmp.eq.s32.totalorder %s17, 0
    %p101 = por %p99, %p100
    %p102 = scmp.ne.s32.totalorder %s90, %s91
    %p103 = scmp.eq.s32.totalorder %s18, 1
    %p104 = por %p102, %p103
    %p106 = scmp.ne.s32.totalorder %s91, %s105
    %p107 = scmp.eq.s32.totalorder %s18, 0
    %p108 = por %p106, %p107
    %s110 = sadd.s32 %s109, 1
    %p113 = scmp.eq.s32.totalorder %s12, 1
    %p114 = scmp.ne.s32.totalorder %s109, %s111
    %p115 = scmp.eq.s32.totalorder %s12, 0
    %p116 = por %p114, %p115
    %p117 = scmp.ne.s32.totalorder %s109, %s111
    %p118 = scmp.eq.s32.totalorder %s17, 1
    %p119 = por %p117, %p118
    %p120 = scmp.ne.s32.totalorder %s111, %s112
    %p121 = scmp.eq.s32.totalorder %s17, 0
    %p122 = por %p120, %p121
    %p123 = scmp.ne.s32.totalorder %s111, %s112
    %p124 = scmp.eq.s32.totalorder %s18, 1
    %p125 = por %p123, %p124
    %p127 = scmp.ne.s32.totalorder %s112, %s126
    %p128 = scmp.eq.s32.totalorder %s18, 0
    %p129 = por %p127, %p128
    %s131 = sadd.s32 %s130, 1
    %p134 = scmp.eq.s32.totalorder %s12, 1
    %p135 = scmp.ne.s32.totalorder %s130, %s132
    %p136 = scmp.eq.s32.totalorder %s12, 0
    %p137 = por %p135, %p136
    %p138 = scmp.ne.s32.totalorder %s130, %s132
    %p139 = scmp.eq.s32.totalorder %s17, 1
    %p140 = por %p138, %p139
    %p141 = scmp.ne.s32.totalorder %s132, %s133
    %p142 = scmp.eq.s32.totalorder %s17, 0
    %p143 = por %p141, %p142
    %p144 = scmp.ne.s32.totalorder %s132, %s133
    %p145 = scmp.eq.s32.totalorder %s18, 1
    %p146 = por %p144, %p145
    %p148 = scmp.ne.s32.totalorder %s133, %s147
    %p149 = scmp.eq.s32.totalorder %s18, 0
    %p150 = por %p148, %p149
    %s151 = ssub.s32 %s12, %s19
    %p152 = scmp.eq.s32.totalorder %s151, 0
    %s154 = sadd.s32 %s153, 1
    %s155 = scalar_select %p152, %s153, %s154
    %p158 = pneg %p152
    %p159 = scmp.eq.s32.totalorder %s12, 1
    %p160 = por %p158, %p159
    %p161 = scmp.ne.s32.totalorder %s153, %s156
    %p162 = scmp.eq.s32.totalorder %s12, 0
    %p163 = por %p161, %p162
    %p164 = scmp.ne.s32.totalorder %s153, %s156
    %p165 = scmp.eq.s32.totalorder %s17, 1
    %p166 = por %p164, %p165
    %p167 = scmp.ne.s32.totalorder %s156, %s157
    %p168 = scmp.eq.s32.totalorder %s17, 0
    %p169 = por %p167, %p168
    %p170 = scmp.ne.s32.totalorder %s156, %s157
    %p171 = scmp.eq.s32.totalorder %s18, 1
    %p172 = por %p170, %p171
    %p174 = scmp.ne.s32.totalorder %s157, %s173
    %p175 = scmp.eq.s32.totalorder %s18, 0
    %p176 = por %p174, %p175
    %p177 = scmp.le.s32.totalorder 1, %s12
    %p178 = scmp.lt.s32.totalorder %s12, 3
    %p179 = pnand %p177, %p178
    %p180 = pneg %p179
    // Predicated region
    $region9: #{cvlearner_forward.6} parent=5 // pred_check
      _
    $region10: #{cvlearner_forward.6} parent=5 // pred_check_branch
      %182 = sbr.rel (%p179) target = $region12
    $region11: #{cvlearner_forward.6} parent=5 // pred_region
      %s183 = ssub.s32 %s12, 1
      // Predicated region
      $region13: #{cvlearner_forward.6} parent=11 // pred_check
        %p184 = pneg %p59
      $region14: #{cvlearner_forward.6} parent=11 // pred_check_branch
        %186 = sbr.rel (%p184) target = $region16
      $region15: #{cvlearner_forward.6} parent=11 // pred_region
        _
      $region16: #{cvlearner_forward.6} parent=11 // pred_fallthru
        _
      // Predicated region
      $region17: #{cvlearner_forward.6} parent=11 // pred_check
        %p187 = pneg %p80
      $region18: #{cvlearner_forward.6} parent=11 // pred_check_branch
        %189 = sbr.rel (%p187) target = $region20
      $region19: #{cvlearner_forward.6} parent=11 // pred_region
        _
      $region20: #{cvlearner_forward.6} parent=11 // pred_fallthru
        _
      // Predicated region
      $region21: #{cvlearner_forward.6} parent=11 // pred_check
        %p190 = pneg %p101
      $region22: #{cvlearner_forward.6} parent=11 // pred_check_branch
        %192 = sbr.rel (%p190) target = $region24
      $region23: #{cvlearner_forward.6} parent=11 // pred_region
        _
      $region24: #{cvlearner_forward.6} parent=11 // pred_fallthru
        _
      // Predicated region
      $region25: #{cvlearner_forward.6} parent=11 // pred_check
        %p193 = pneg %p122
      $region26: #{cvlearner_forward.6} parent=11 // pred_check_branch
        %195 = sbr.rel (%p193) target = $region28
      $region27: #{cvlearner_forward.6} parent=11 // pred_region
        _
      $region28: #{cvlearner_forward.6} parent=11 // pred_fallthru
        _
      // Predicated region
      $region29: #{cvlearner_forward.6} parent=11 // pred_check
        %p196 = pneg %p143
      $region30: #{cvlearner_forward.6} parent=11 // pred_check_branch
        %198 = sbr.rel (%p196) target = $region32
      $region31: #{cvlearner_forward.6} parent=11 // pred_region
        _
      $region32: #{cvlearner_forward.6} parent=11 // pred_fallthru
        _
    $region12: #{cvlearner_forward.6} parent=5 // pred_fallthru
      _
    %p199 = scmp.lt.s32.totalorder %s12, 2
    // Predicated region
    $region33: #{cvlearner_forward.6} parent=5 // pred_check
      %p200 = pneg %p199
    $region34: #{cvlearner_forward.6} parent=5 // pred_check_branch
      %202 = sbr.rel (%p200) target = $region36
    $region35: #{cvlearner_forward.6} parent=5 // pred_region
      // Predicated region
      $region37: #{cvlearner_forward.6} parent=35 // pred_check
        %p203 = pneg %p32
      $region38: #{cvlearner_forward.6} parent=35 // pred_check_branch
        %205 = sbr.rel (%p203) target = $region40
      $region39: #{cvlearner_forward.6} parent=35 // pred_region
        %p206 = scmp.lt.s32.totalorder %s12, 1
        %s207 = scalar_select %p206, %s12, 1
        %s208 = smul.addr %s207, 640
        %s209 = smul.addr %s208, 4
        %s210 = scalar_lea.vmem %s0, %s209
      $region40: #{cvlearner_forward.6} parent=35 // pred_fallthru
        _
    $region36: #{cvlearner_forward.6} parent=5 // pred_fallthru
      _
    %p211 = scmp.le.s32.totalorder 1, %s12
    %p212 = scmp.lt.s32.totalorder %s12, 3
    %p213 = pnand %p211, %p212
    %p214 = pneg %p213
    // Predicated region
    $region41: #{cvlearner_forward.6} parent=5 // pred_check
      _
    $region42: #{cvlearner_forward.6} parent=5 // pred_check_branch
      %216 = sbr.rel (%p213) target = $region44
    $region43: #{cvlearner_forward.6} parent=5 // pred_region
      %s217 = ssub.s32 %s12, 1
      %p218 = scmp.lt.s32.totalorder %s17, 1
      %s219 = scalar_select %p218, %s17, 1
      %s220 = smul.addr %s219, 640
      %s221 = smul.addr %s220, 4
      %s222 = scalar_lea.vmem %s0, %s221
      %p223 = pneg %p38
      %p224 = pneg %p35
      %p225 = pneg %p59
      %p226 = pneg %p56
      %p227 = pneg %p80
      %p228 = pneg %p77
      %p229 = pneg %p101
      %p230 = pneg %p98
      %p231 = pneg %p122
      %p232 = pneg %p119
      %p233 = pneg %p143
      %p234 = pneg %p140
      %p235 = pneg %p169
      %p236 = pneg %p166
      %p237 = scmp.lt.s32.totalorder %s17, 1
      %s238 = scalar_select %p237, %s17, 1
      %s239 = smul.addr %s238, 4
      %s240 = smul.addr %s239, 4
      %s241 = scalar_lea.vmem %s6, %s240
      %p242 = scmp.lt.s32.totalorder %s17, 1
      %s243 = scalar_select %p242, %s17, 1
      %s244 = smul.addr %s243, 640
      %s245 = smul.addr %s244, 4
      %s246 = scalar_lea.vmem %s0, %s245
      %p247 = scmp.lt.s32.totalorder %s17, 1
      %s248 = scalar_select %p247, %s17, 1
      %s249 = smul.addr %s248, 4
      %s250 = smul.addr %s249, 4
      %s251 = scalar_lea.vmem %s6, %s250
      %v252 = vld [vmem:[%s1] sm:$0xff]
      %v253 = vld [vmem:[%s1 + $0x8] sm:$0xff]
      %v254 = vld [vmem:[%s1 + $0x10] sm:$0xff]
      %v255 = vld [vmem:[%s1 + $0x18] sm:$0xff]
      %v256 = vld [vmem:[%s1 + $0x20] sm:$0xff]
      %v257 = vld [vmem:[%s1 + $0x28] sm:$0xff]
      %v258 = vld [vmem:[%s1 + $0x30] sm:$0xff]
      %v259 = vld [vmem:[%s1 + $0x38] sm:$0xff]
      %v260 = vld [vmem:[%s1 + $0x40] sm:$0xff]
      %v261 = vld [vmem:[%s1 + $0x48] sm:$0xff]
      %v262 = vld [vmem:[%s1 + $0x50] sm:$0xff]
      %v263 = vld [vmem:[%s1 + $0x58] sm:$0xff]
      %v264 = vld [vmem:[%s1 + $0x60] sm:$0xff]
      %v265 = vld [vmem:[%s1 + $0x68] sm:$0xff]
      %v266 = vld [vmem:[%s1 + $0x70] sm:$0xff]
      %v267 = vld [vmem:[%s1 + $0x78] sm:$0xff]
      %v268 = vld [vmem:[%s1 + $0x80] sm:$0xff]
      %v269 = vld [vmem:[%s1 + $0x88] sm:$0xff]
      %v270 = vld [vmem:[%s1 + $0x90] sm:$0xff]
      %v271 = vld [vmem:[%s1 + $0x98] sm:$0xff]
      %v272 = vld [vmem:[%s246] sm:$0xff]
      %v273 = vld [vmem:[%s246 + $0x8] sm:$0xff]
      %v274 = vld [vmem:[%s246 + $0x10] sm:$0xff]
      %v275 = vld [vmem:[%s246 + $0x18] sm:$0xff]
      %v276 = vld [vmem:[%s246 + $0x20] sm:$0xff]
      %v277 = vld [vmem:[%s246 + $0x28] sm:$0xff]
      %v278 = vld [vmem:[%s246 + $0x30] sm:$0xff]
      %v279 = vld [vmem:[%s246 + $0x38] sm:$0xff]
      %v280 = vld [vmem:[%s246 + $0x40] sm:$0xff]
      %v281 = vld [vmem:[%s246 + $0x48] sm:$0xff]
      %v282 = vld [vmem:[%s246 + $0x50] sm:$0xff]
      %v283 = vld [vmem:[%s246 + $0x58] sm:$0xff]
      %v284 = vld [vmem:[%s246 + $0x60] sm:$0xff]
      %v285 = vld [vmem:[%s246 + $0x68] sm:$0xff]
      %v286 = vld [vmem:[%s246 + $0x70] sm:$0xff]
      %v287 = vld [vmem:[%s246 + $0x78] sm:$0xff]
      %v288 = vld [vmem:[%s246 + $0x80] sm:$0xff]
      %v289 = vld [vmem:[%s246 + $0x88] sm:$0xff]
      %v290 = vld [vmem:[%s246 + $0x90] sm:$0xff]
      %v291 = vld [vmem:[%s246 + $0x98] sm:$0xff]
      %v292 = vld [vmem:[%s246 + $0xa0] sm:$0xff]
      %v293 = vld [vmem:[%s246 + $0xa8] sm:$0xff]
      %v294 = vld [vmem:[%s246 + $0xb0] sm:$0xff]
      %v295 = vld [vmem:[%s246 + $0xb8] sm:$0xff]
      %v296 = vld [vmem:[%s246 + $0xc0] sm:$0xff]
      %v297 = vld [vmem:[%s246 + $0xc8] sm:$0xff]
      %v298 = vld [vmem:[%s246 + $0xd0] sm:$0xff]
      %v299 = vld [vmem:[%s246 + $0xd8] sm:$0xff]
      %v300 = vld [vmem:[%s246 + $0xe0] sm:$0xff]
      %v301 = vld [vmem:[%s246 + $0xe8] sm:$0xff]
      %v302 = vld [vmem:[%s246 + $0xf0] sm:$0xff]
      %v303 = vld [vmem:[%s246 + $0xf8] sm:$0xff]
      %v304 = vld [vmem:[%s246 + $0x100] sm:$0xff]
      %v305 = vld [vmem:[%s246 + $0x108] sm:$0xff]
      %v306 = vld [vmem:[%s246 + $0x110] sm:$0xff]
      %v307 = vld [vmem:[%s246 + $0x118] sm:$0xff]
      %v308 = vld [vmem:[%s246 + $0x120] sm:$0xff]
      %v309 = vld [vmem:[%s246 + $0x128] sm:$0xff]
      %v310 = vld [vmem:[%s246 + $0x130] sm:$0xff]
      %v311 = vld [vmem:[%s246 + $0x138] sm:$0xff]
      %v312 = vld [vmem:[%s246 + $0x140] sm:$0xff]
      %v313 = vld [vmem:[%s246 + $0x148] sm:$0xff]
      %v314 = vld [vmem:[%s246 + $0x150] sm:$0xff]
      %v315 = vld [vmem:[%s246 + $0x158] sm:$0xff]
      %v316 = vld [vmem:[%s246 + $0x160] sm:$0xff]
      %v317 = vld [vmem:[%s246 + $0x168] sm:$0xff]
      %v318 = vld [vmem:[%s246 + $0x170] sm:$0xff]
      %v319 = vld [vmem:[%s246 + $0x178] sm:$0xff]
      %v320 = vld [vmem:[%s246 + $0x180] sm:$0xff]
      %v321 = vld [vmem:[%s246 + $0x188] sm:$0xff]
      %v322 = vld [vmem:[%s246 + $0x190] sm:$0xff]
      %v323 = vld [vmem:[%s246 + $0x198] sm:$0xff]
      %v324 = vld [vmem:[%s246 + $0x1a0] sm:$0xff]
      %v325 = vld [vmem:[%s246 + $0x1a8] sm:$0xff]
      %v326 = vld [vmem:[%s246 + $0x1b0] sm:$0xff]
      %v327 = vld [vmem:[%s246 + $0x1b8] sm:$0xff]
      %v328 = vld [vmem:[%s246 + $0x1c0] sm:$0xff]
      %v329 = vld [vmem:[%s246 + $0x1c8] sm:$0xff]
      %v330 = vld [vmem:[%s246 + $0x1d0] sm:$0xff]
      %v331 = vld [vmem:[%s246 + $0x1d8] sm:$0xff]
      %v332 = vld [vmem:[%s246 + $0x1e0] sm:$0xff]
      %v333 = vld [vmem:[%s246 + $0x1e8] sm:$0xff]
      %v334 = vld [vmem:[%s246 + $0x1f0] sm:$0xff]
      %v335 = vld [vmem:[%s246 + $0x1f8] sm:$0xff]
      %v336 = vld [vmem:[%s246 + $0x200] sm:$0xff]
      %v337 = vld [vmem:[%s246 + $0x208] sm:$0xff]
      %v338 = vld [vmem:[%s246 + $0x210] sm:$0xff]
      %v339 = vld [vmem:[%s246 + $0x218] sm:$0xff]
      %v340 = vld [vmem:[%s246 + $0x220] sm:$0xff]
      %v341 = vld [vmem:[%s246 + $0x228] sm:$0xff]
      %v342 = vld [vmem:[%s246 + $0x230] sm:$0xff]
      %v343 = vld [vmem:[%s246 + $0x238] sm:$0xff]
      %v344 = vld [vmem:[%s246 + $0x240] sm:$0xff]
      %v345 = vld [vmem:[%s246 + $0x248] sm:$0xff]
      %v346 = vld [vmem:[%s246 + $0x250] sm:$0xff]
      %v347 = vld [vmem:[%s246 + $0x258] sm:$0xff]
      %v348 = vld [vmem:[%s246 + $0x260] sm:$0xff]
      %v349 = vld [vmem:[%s246 + $0x268] sm:$0xff]
      %v350 = vld [vmem:[%s246 + $0x270] sm:$0xff]
      %v351 = vld [vmem:[%s246 + $0x278] sm:$0xff]
      %v352 = vld [vmem:[%s246 + $0x280] sm:$0xff]
      %v353 = vld [vmem:[%s246 + $0x288] sm:$0xff]
      %v354 = vld [vmem:[%s246 + $0x290] sm:$0xff]
      %v355 = vld [vmem:[%s246 + $0x298] sm:$0xff]
      %v356 = vld [vmem:[%s246 + $0x2a0] sm:$0xff]
      %v357 = vld [vmem:[%s246 + $0x2a8] sm:$0xff]
      %v358 = vld [vmem:[%s246 + $0x2b0] sm:$0xff]
      %v359 = vld [vmem:[%s246 + $0x2b8] sm:$0xff]
      %v360 = vld [vmem:[%s246 + $0x2c0] sm:$0xff]
      %v361 = vld [vmem:[%s246 + $0x2c8] sm:$0xff]
      %v362 = vld [vmem:[%s246 + $0x2d0] sm:$0xff]
      %v363 = vld [vmem:[%s246 + $0x2d8] sm:$0xff]
      %v364 = vld [vmem:[%s246 + $0x2e0] sm:$0xff]
      %v365 = vld [vmem:[%s246 + $0x2e8] sm:$0xff]
      %v366 = vld [vmem:[%s246 + $0x2f0] sm:$0xff]
      %v367 = vld [vmem:[%s246 + $0x2f8] sm:$0xff]
      %v368 = vld [vmem:[%s246 + $0x300] sm:$0xff]
      %v369 = vld [vmem:[%s246 + $0x308] sm:$0xff]
      %v370 = vld [vmem:[%s246 + $0x310] sm:$0xff]
      %v371 = vld [vmem:[%s246 + $0x318] sm:$0xff]
      %v372 = vld [vmem:[%s246 + $0x320] sm:$0xff]
      %v373 = vld [vmem:[%s246 + $0x328] sm:$0xff]
      %v374 = vld [vmem:[%s246 + $0x330] sm:$0xff]
      %v375 = vld [vmem:[%s246 + $0x338] sm:$0xff]
      %v376 = vld [vmem:[%s246 + $0x340] sm:$0xff]
      %v377 = vld [vmem:[%s246 + $0x348] sm:$0xff]
      %v378 = vld [vmem:[%s246 + $0x350] sm:$0xff]
      %v379 = vld [vmem:[%s246 + $0x358] sm:$0xff]
      %v380 = vld [vmem:[%s246 + $0x360] sm:$0xff]
      %v381 = vld [vmem:[%s246 + $0x368] sm:$0xff]
      %v382 = vld [vmem:[%s246 + $0x370] sm:$0xff]
      %v383 = vld [vmem:[%s246 + $0x378] sm:$0xff]
      %v384 = vld [vmem:[%s246 + $0x380] sm:$0xff]
      %v385 = vld [vmem:[%s246 + $0x388] sm:$0xff]
      %v386 = vld [vmem:[%s246 + $0x390] sm:$0xff]
      %v387 = vld [vmem:[%s246 + $0x398] sm:$0xff]
      %v388 = vld [vmem:[%s246 + $0x3a0] sm:$0xff]
      %v389 = vld [vmem:[%s246 + $0x3a8] sm:$0xff]
      %v390 = vld [vmem:[%s246 + $0x3b0] sm:$0xff]
      %v391 = vld [vmem:[%s246 + $0x3b8] sm:$0xff]
      %v392 = vld [vmem:[%s246 + $0x3c0] sm:$0xff]
      %v393 = vld [vmem:[%s246 + $0x3c8] sm:$0xff]
      %v394 = vld [vmem:[%s246 + $0x3d0] sm:$0xff]
      %v395 = vld [vmem:[%s246 + $0x3d8] sm:$0xff]
      %v396 = vld [vmem:[%s246 + $0x3e0] sm:$0xff]
      %v397 = vld [vmem:[%s246 + $0x3e8] sm:$0xff]
      %v398 = vld [vmem:[%s246 + $0x3f0] sm:$0xff]
      %v399 = vld [vmem:[%s246 + $0x3f8] sm:$0xff]
      %v400 = vld [vmem:[%s246 + $0x400] sm:$0xff]
      %v401 = vld [vmem:[%s246 + $0x408] sm:$0xff]
      %v402 = vld [vmem:[%s246 + $0x410] sm:$0xff]
      %v403 = vld [vmem:[%s246 + $0x418] sm:$0xff]
      %v404 = vld [vmem:[%s246 + $0x420] sm:$0xff]
      %v405 = vld [vmem:[%s246 + $0x428] sm:$0xff]
      %v406 = vld [vmem:[%s246 + $0x430] sm:$0xff]
      %v407 = vld [vmem:[%s246 + $0x438] sm:$0xff]
      %v408 = vld [vmem:[%s246 + $0x440] sm:$0xff]
      %v409 = vld [vmem:[%s246 + $0x448] sm:$0xff]
      %v410 = vld [vmem:[%s246 + $0x450] sm:$0xff]
      %v411 = vld [vmem:[%s246 + $0x458] sm:$0xff]
      %v412 = vld [vmem:[%s246 + $0x460] sm:$0xff]
      %v413 = vld [vmem:[%s246 + $0x468] sm:$0xff]
      %v414 = vld [vmem:[%s246 + $0x470] sm:$0xff]
      %v415 = vld [vmem:[%s246 + $0x478] sm:$0xff]
      %v416 = vld [vmem:[%s246 + $0x480] sm:$0xff]
      %v417 = vld [vmem:[%s246 + $0x488] sm:$0xff]
      %v418 = vld [vmem:[%s246 + $0x490] sm:$0xff]
      %v419 = vld [vmem:[%s246 + $0x498] sm:$0xff]
      %v420 = vld [vmem:[%s246 + $0x4a0] sm:$0xff]
      %v421 = vld [vmem:[%s246 + $0x4a8] sm:$0xff]
      %v422 = vld [vmem:[%s246 + $0x4b0] sm:$0xff]
      %v423 = vld [vmem:[%s246 + $0x4b8] sm:$0xff]
      %v424 = vld [vmem:[%s246 + $0x4c0] sm:$0xff]
      %v425 = vld [vmem:[%s246 + $0x4c8] sm:$0xff]
      %v426 = vld [vmem:[%s246 + $0x4d0] sm:$0xff]
      %v427 = vld [vmem:[%s246 + $0x4d8] sm:$0xff]
      %v428 = vld [vmem:[%s246 + $0x4e0] sm:$0xff]
      %v429 = vld [vmem:[%s246 + $0x4e8] sm:$0xff]
      %v430 = vld [vmem:[%s246 + $0x4f0] sm:$0xff]
      %v431 = vld [vmem:[%s246 + $0x4f8] sm:$0xff]
      %v432 = vld [vmem:[%s246 + $0x500] sm:$0xff]
      %v433 = vld [vmem:[%s246 + $0x508] sm:$0xff]
      %v434 = vld [vmem:[%s246 + $0x510] sm:$0xff]
      %v435 = vld [vmem:[%s246 + $0x518] sm:$0xff]
      %v436 = vld [vmem:[%s246 + $0x520] sm:$0xff]
      %v437 = vld [vmem:[%s246 + $0x528] sm:$0xff]
      %v438 = vld [vmem:[%s246 + $0x530] sm:$0xff]
      %v439 = vld [vmem:[%s246 + $0x538] sm:$0xff]
      %v440 = vld [vmem:[%s246 + $0x540] sm:$0xff]
      %v441 = vld [vmem:[%s246 + $0x548] sm:$0xff]
      %v442 = vld [vmem:[%s246 + $0x550] sm:$0xff]
      %v443 = vld [vmem:[%s246 + $0x558] sm:$0xff]
      %v444 = vld [vmem:[%s246 + $0x560] sm:$0xff]
      %v445 = vld [vmem:[%s246 + $0x568] sm:$0xff]
      %v446 = vld [vmem:[%s246 + $0x570] sm:$0xff]
      %v447 = vld [vmem:[%s246 + $0x578] sm:$0xff]
      %v448 = vld [vmem:[%s246 + $0x580] sm:$0xff]
      %v449 = vld [vmem:[%s246 + $0x588] sm:$0xff]
      %v450 = vld [vmem:[%s246 + $0x590] sm:$0xff]
      %v451 = vld [vmem:[%s246 + $0x598] sm:$0xff]
      %v452 = vld [vmem:[%s246 + $0x5a0] sm:$0xff]
      %v453 = vld [vmem:[%s246 + $0x5a8] sm:$0xff]
      %v454 = vld [vmem:[%s246 + $0x5b0] sm:$0xff]
      %v455 = vld [vmem:[%s246 + $0x5b8] sm:$0xff]
      %v456 = vld [vmem:[%s246 + $0x5c0] sm:$0xff]
      %v457 = vld [vmem:[%s246 + $0x5c8] sm:$0xff]
      %v458 = vld [vmem:[%s246 + $0x5d0] sm:$0xff]
      %v459 = vld [vmem:[%s246 + $0x5d8] sm:$0xff]
      %v460 = vld [vmem:[%s246 + $0x5e0] sm:$0xff]
      %v461 = vld [vmem:[%s246 + $0x5e8] sm:$0xff]
      %v462 = vld [vmem:[%s246 + $0x5f0] sm:$0xff]
      %v463 = vld [vmem:[%s246 + $0x5f8] sm:$0xff]
      %v464 = vld [vmem:[%s246 + $0x600] sm:$0xff]
      %v465 = vld [vmem:[%s246 + $0x608] sm:$0xff]
      %v466 = vld [vmem:[%s246 + $0x610] sm:$0xff]
      %v467 = vld [vmem:[%s246 + $0x618] sm:$0xff]
      %v468 = vld [vmem:[%s246 + $0x620] sm:$0xff]
      %v469 = vld [vmem:[%s246 + $0x628] sm:$0xff]
      %v470 = vld [vmem:[%s246 + $0x630] sm:$0xff]
      %v471 = vld [vmem:[%s246 + $0x638] sm:$0xff]
      %v472 = vld [vmem:[%s246 + $0x640] sm:$0xff]
      %v473 = vld [vmem:[%s246 + $0x648] sm:$0xff]
      %v474 = vld [vmem:[%s246 + $0x650] sm:$0xff]
      %v475 = vld [vmem:[%s246 + $0x658] sm:$0xff]
      %v476 = vld [vmem:[%s246 + $0x660] sm:$0xff]
      %v477 = vld [vmem:[%s246 + $0x668] sm:$0xff]
      %v478 = vld [vmem:[%s246 + $0x670] sm:$0xff]
      %v479 = vld [vmem:[%s246 + $0x678] sm:$0xff]
      %v480 = vld [vmem:[%s246 + $0x680] sm:$0xff]
      %v481 = vld [vmem:[%s246 + $0x688] sm:$0xff]
      %v482 = vld [vmem:[%s246 + $0x690] sm:$0xff]
      %v483 = vld [vmem:[%s246 + $0x698] sm:$0xff]
      %v484 = vld [vmem:[%s246 + $0x6a0] sm:$0xff]
      %v485 = vld [vmem:[%s246 + $0x6a8] sm:$0xff]
      %v486 = vld [vmem:[%s246 + $0x6b0] sm:$0xff]
      %v487 = vld [vmem:[%s246 + $0x6b8] sm:$0xff]
      %v488 = vld [vmem:[%s246 + $0x6c0] sm:$0xff]
      %v489 = vld [vmem:[%s246 + $0x6c8] sm:$0xff]
      %v490 = vld [vmem:[%s246 + $0x6d0] sm:$0xff]
      %v491 = vld [vmem:[%s246 + $0x6d8] sm:$0xff]
      %v492 = vld [vmem:[%s246 + $0x6e0] sm:$0xff]
      %v493 = vld [vmem:[%s246 + $0x6e8] sm:$0xff]
      %v494 = vld [vmem:[%s246 + $0x6f0] sm:$0xff]
      %v495 = vld [vmem:[%s246 + $0x6f8] sm:$0xff]
      %v496 = vld [vmem:[%s246 + $0x700] sm:$0xff]
      %v497 = vld [vmem:[%s246 + $0x708] sm:$0xff]
      %v498 = vld [vmem:[%s246 + $0x710] sm:$0xff]
      %v499 = vld [vmem:[%s246 + $0x718] sm:$0xff]
      %v500 = vld [vmem:[%s246 + $0x720] sm:$0xff]
      %v501 = vld [vmem:[%s246 + $0x728] sm:$0xff]
      %v502 = vld [vmem:[%s246 + $0x730] sm:$0xff]
      %v503 = vld [vmem:[%s246 + $0x738] sm:$0xff]
      %v504 = vld [vmem:[%s246 + $0x740] sm:$0xff]
      %v505 = vld [vmem:[%s246 + $0x748] sm:$0xff]
      %v506 = vld [vmem:[%s246 + $0x750] sm:$0xff]
      %v507 = vld [vmem:[%s246 + $0x758] sm:$0xff]
      %v508 = vld [vmem:[%s246 + $0x760] sm:$0xff]
      %v509 = vld [vmem:[%s246 + $0x768] sm:$0xff]
      %v510 = vld [vmem:[%s246 + $0x770] sm:$0xff]
      %v511 = vld [vmem:[%s246 + $0x778] sm:$0xff]
      %v512 = vld [vmem:[%s246 + $0x780] sm:$0xff]
      %v513 = vld [vmem:[%s246 + $0x788] sm:$0xff]
      %v514 = vld [vmem:[%s246 + $0x790] sm:$0xff]
      %v515 = vld [vmem:[%s246 + $0x798] sm:$0xff]
      %v516 = vld [vmem:[%s246 + $0x7a0] sm:$0xff]
      %v517 = vld [vmem:[%s246 + $0x7a8] sm:$0xff]
      %v518 = vld [vmem:[%s246 + $0x7b0] sm:$0xff]
      %v519 = vld [vmem:[%s246 + $0x7b8] sm:$0xff]
      %v520 = vld [vmem:[%s246 + $0x7c0] sm:$0xff]
      %v521 = vld [vmem:[%s246 + $0x7c8] sm:$0xff]
      %v522 = vld [vmem:[%s246 + $0x7d0] sm:$0xff]
      %v523 = vld [vmem:[%s246 + $0x7d8] sm:$0xff]
      %v524 = vld [vmem:[%s246 + $0x7e0] sm:$0xff]
      %v525 = vld [vmem:[%s246 + $0x7e8] sm:$0xff]
      %v526 = vld [vmem:[%s246 + $0x7f0] sm:$0xff]
      %v527 = vld [vmem:[%s246 + $0x7f8] sm:$0xff]
      %v528 = vld [vmem:[%s246 + $0x800] sm:$0xff]
      %v529 = vld [vmem:[%s246 + $0x808] sm:$0xff]
      %v530 = vld [vmem:[%s246 + $0x810] sm:$0xff]
      %v531 = vld [vmem:[%s246 + $0x818] sm:$0xff]
      %v532 = vld [vmem:[%s246 + $0x820] sm:$0xff]
      %v533 = vld [vmem:[%s246 + $0x828] sm:$0xff]
      %v534 = vld [vmem:[%s246 + $0x830] sm:$0xff]
      %v535 = vld [vmem:[%s246 + $0x838] sm:$0xff]
      %v536 = vld [vmem:[%s246 + $0x840] sm:$0xff]
      %v537 = vld [vmem:[%s246 + $0x848] sm:$0xff]
      %v538 = vld [vmem:[%s246 + $0x850] sm:$0xff]
      %v539 = vld [vmem:[%s246 + $0x858] sm:$0xff]
      %v540 = vld [vmem:[%s246 + $0x860] sm:$0xff]
      %v541 = vld [vmem:[%s246 + $0x868] sm:$0xff]
      %v542 = vld [vmem:[%s246 + $0x870] sm:$0xff]
      %v543 = vld [vmem:[%s246 + $0x878] sm:$0xff]
      %v544 = vld [vmem:[%s246 + $0x880] sm:$0xff]
      %v545 = vld [vmem:[%s246 + $0x888] sm:$0xff]
      %v546 = vld [vmem:[%s246 + $0x890] sm:$0xff]
      %v547 = vld [vmem:[%s246 + $0x898] sm:$0xff]
      %v548 = vld [vmem:[%s246 + $0x8a0] sm:$0xff]
      %v549 = vld [vmem:[%s246 + $0x8a8] sm:$0xff]
      %v550 = vld [vmem:[%s246 + $0x8b0] sm:$0xff]
      %v551 = vld [vmem:[%s246 + $0x8b8] sm:$0xff]
      %v552 = vld [vmem:[%s246 + $0x8c0] sm:$0xff]
      %v553 = vld [vmem:[%s246 + $0x8c8] sm:$0xff]
      %v554 = vld [vmem:[%s246 + $0x8d0] sm:$0xff]
      %v555 = vld [vmem:[%s246 + $0x8d8] sm:$0xff]
      %v556 = vld [vmem:[%s246 + $0x8e0] sm:$0xff]
      %v557 = vld [vmem:[%s246 + $0x8e8] sm:$0xff]
      %v558 = vld [vmem:[%s246 + $0x8f0] sm:$0xff]
      %v559 = vld [vmem:[%s246 + $0x8f8] sm:$0xff]
      %v560 = vld [vmem:[%s246 + $0x900] sm:$0xff]
      %v561 = vld [vmem:[%s246 + $0x908] sm:$0xff]
      %v562 = vld [vmem:[%s246 + $0x910] sm:$0xff]
      %v563 = vld [vmem:[%s246 + $0x918] sm:$0xff]
      %v564 = vld [vmem:[%s246 + $0x920] sm:$0xff]
      %v565 = vld [vmem:[%s246 + $0x928] sm:$0xff]
      %v566 = vld [vmem:[%s246 + $0x930] sm:$0xff]
      %v567 = vld [vmem:[%s246 + $0x938] sm:$0xff]
      %v568 = vld [vmem:[%s246 + $0x940] sm:$0xff]
      %v569 = vld [vmem:[%s246 + $0x948] sm:$0xff]
      %v570 = vld [vmem:[%s246 + $0x950] sm:$0xff]
      %v571 = vld [vmem:[%s246 + $0x958] sm:$0xff]
      %v572 = vld [vmem:[%s246 + $0x960] sm:$0xff]
      %v573 = vld [vmem:[%s246 + $0x968] sm:$0xff]
      %v574 = vld [vmem:[%s246 + $0x970] sm:$0xff]
      %v575 = vld [vmem:[%s246 + $0x978] sm:$0xff]
      %v576 = vld [vmem:[%s246 + $0x980] sm:$0xff]
      %v577 = vld [vmem:[%s246 + $0x988] sm:$0xff]
      %v578 = vld [vmem:[%s246 + $0x990] sm:$0xff]
      %v579 = vld [vmem:[%s246 + $0x998] sm:$0xff]
      %v580 = vld [vmem:[%s246 + $0x9a0] sm:$0xff]
      %v581 = vld [vmem:[%s246 + $0x9a8] sm:$0xff]
      %v582 = vld [vmem:[%s246 + $0x9b0] sm:$0xff]
      %v583 = vld [vmem:[%s246 + $0x9b8] sm:$0xff]
      %v584 = vld [vmem:[%s246 + $0x9c0] sm:$0xff]
      %v585 = vld [vmem:[%s246 + $0x9c8] sm:$0xff]
      %v586 = vld [vmem:[%s246 + $0x9d0] sm:$0xff]
      %v587 = vld [vmem:[%s246 + $0x9d8] sm:$0xff]
      %v588 = vld [vmem:[%s246 + $0x9e0] sm:$0xff]
      %v589 = vld [vmem:[%s246 + $0x9e8] sm:$0xff]
      %v590 = vld [vmem:[%s246 + $0x9f0] sm:$0xff]
      %v591 = vld [vmem:[%s246 + $0x9f8] sm:$0xff]
      %v592 = vld [vmem:[%s2] sm:$0xff]
      %v593 = vld [vmem:[%s2 + $0x8] sm:$0xff]
      %595 = vset.pattern.permute.xlu0 0
      %596 = vperm.xlu0 %595, %v592
      %v597 = vpop.permute.xlu0 %596
      %600 = vset.pattern.permute.xlu0 0
      %601 = vperm.xlu0 %600, %v593
      %v602 = vpop.permute.xlu0 %601
      %v624 = vunpack.c.l.b16 %v252
      %v625 = vunpack.c.h.b16 %v252
      %v626 = vunpack.c.l.b16 %v253
      %v627 = vunpack.c.h.b16 %v253
      %v628 = vunpack.c.l.b16 %v254
      %v629 = vunpack.c.h.b16 %v254
      %v630 = vunpack.c.l.b16 %v255
      %v631 = vunpack.c.h.b16 %v255
      %v632 = vunpack.c.l.b16 %v256
      %v633 = vunpack.c.h.b16 %v256
      %v634 = vunpack.c.l.b16 %v257
      %v635 = vunpack.c.h.b16 %v257
      %v636 = vunpack.c.l.b16 %v258
      %v637 = vunpack.c.h.b16 %v258
      %v638 = vunpack.c.l.b16 %v259
      %v639 = vunpack.c.h.b16 %v259
      %v640 = vunpack.c.l.b16 %v260
      %v641 = vunpack.c.h.b16 %v260
      %v642 = vunpack.c.l.b16 %v261
      %v643 = vunpack.c.h.b16 %v261
      %v644 = vunpack.c.l.b16 %v262
      %v645 = vunpack.c.h.b16 %v262
      %v646 = vunpack.c.l.b16 %v263
      %v647 = vunpack.c.h.b16 %v263
      %v648 = vunpack.c.l.b16 %v264
      %v649 = vunpack.c.h.b16 %v264
      %v650 = vunpack.c.l.b16 %v265
      %v651 = vunpack.c.h.b16 %v265
      %v652 = vunpack.c.l.b16 %v266
      %v653 = vunpack.c.h.b16 %v266
      %v654 = vunpack.c.l.b16 %v267
      %v655 = vunpack.c.h.b16 %v267
      %v656 = vunpack.c.l.b16 %v268
      %v657 = vunpack.c.h.b16 %v268
      %v658 = vunpack.c.l.b16 %v269
      %v659 = vunpack.c.h.b16 %v269
      %v660 = vunpack.c.l.b16 %v270
      %v661 = vunpack.c.h.b16 %v270
      %v662 = vunpack.c.l.b16 %v271
      %v663 = vunpack.c.h.b16 %v271
      %v664 = vpack.c.b16 %v644, %v624
      %v665 = vpack.c.b16 %v645, %v625
      %v666 = vpack.c.b16 %v646, %v626
      %v667 = vpack.c.b16 %v647, %v627
      %v668 = vpack.c.b16 %v648, %v628
      %v669 = vpack.c.b16 %v649, %v629
      %v670 = vpack.c.b16 %v650, %v630
      %v671 = vpack.c.b16 %v651, %v631
      %v672 = vpack.c.b16 %v652, %v632
      %v673 = vpack.c.b16 %v653, %v633
      %v674 = vpack.c.b16 %v654, %v634
      %v675 = vpack.c.b16 %v655, %v635
      %v676 = vpack.c.b16 %v656, %v636
      %v677 = vpack.c.b16 %v657, %v637
      %v678 = vpack.c.b16 %v658, %v638
      %v679 = vpack.c.b16 %v659, %v639
      %v680 = vpack.c.b16 %v660, %v640
      %v681 = vpack.c.b16 %v661, %v641
      %v682 = vpack.c.b16 %v662, %v642
      %v683 = vpack.c.b16 %v663, %v643
      %v1024 = vunpack.c.l.b16 %v272
      %v1025 = vunpack.c.h.b16 %v272
      %v1026 = vunpack.c.l.b16 %v273
      %v1027 = vunpack.c.h.b16 %v273
      %v1028 = vunpack.c.l.b16 %v274
      %v1029 = vunpack.c.h.b16 %v274
      %v1030 = vunpack.c.l.b16 %v275
      %v1031 = vunpack.c.h.b16 %v275
      %v1032 = vunpack.c.l.b16 %v276
      %v1033 = vunpack.c.h.b16 %v276
      %v1034 = vunpack.c.l.b16 %v277
      %v1035 = vunpack.c.h.b16 %v277
      %v1036 = vunpack.c.l.b16 %v278
      %v1037 = vunpack.c.h.b16 %v278
      %v1038 = vunpack.c.l.b16 %v279
      %v1039 = vunpack.c.h.b16 %v279
      %v1040 = vunpack.c.l.b16 %v280
      %v1041 = vunpack.c.h.b16 %v280
      %v1042 = vunpack.c.l.b16 %v281
      %v1043 = vunpack.c.h.b16 %v281
      %v1044 = vunpack.c.l.b16 %v282
      %v1045 = vunpack.c.h.b16 %v282
      %v1046 = vunpack.c.l.b16 %v283
      %v1047 = vunpack.c.h.b16 %v283
      %v1048 = vunpack.c.l.b16 %v284
      %v1049 = vunpack.c.h.b16 %v284
      %v1050 = vunpack.c.l.b16 %v285
      %v1051 = vunpack.c.h.b16 %v285
      %v1052 = vunpack.c.l.b16 %v286
      %v1053 = vunpack.c.h.b16 %v286
      %v1054 = vunpack.c.l.b16 %v287
      %v1055 = vunpack.c.h.b16 %v287
      %v1056 = vunpack.c.l.b16 %v288
      %v1057 = vunpack.c.h.b16 %v288
      %v1058 = vunpack.c.l.b16 %v289
      %v1059 = vunpack.c.h.b16 %v289
      %v1060 = vunpack.c.l.b16 %v290
      %v1061 = vunpack.c.h.b16 %v290
      %v1062 = vunpack.c.l.b16 %v291
      %v1063 = vunpack.c.h.b16 %v291
      %v1064 = vunpack.c.l.b16 %v292
      %v1065 = vunpack.c.h.b16 %v292
      %v1066 = vunpack.c.l.b16 %v293
      %v1067 = vunpack.c.h.b16 %v293
      %v1068 = vunpack.c.l.b16 %v294
      %v1069 = vunpack.c.h.b16 %v294
      %v1070 = vunpack.c.l.b16 %v295
      %v1071 = vunpack.c.h.b16 %v295
      %v1072 = vunpack.c.l.b16 %v296
      %v1073 = vunpack.c.h.b16 %v296
      %v1074 = vunpack.c.l.b16 %v297
      %v1075 = vunpack.c.h.b16 %v297
      %v1076 = vunpack.c.l.b16 %v298
      %v1077 = vunpack.c.h.b16 %v298
      %v1078 = vunpack.c.l.b16 %v299
      %v1079 = vunpack.c.h.b16 %v299
      %v1080 = vunpack.c.l.b16 %v300
      %v1081 = vunpack.c.h.b16 %v300
      %v1082 = vunpack.c.l.b16 %v301
      %v1083 = vunpack.c.h.b16 %v301
      %v1084 = vunpack.c.l.b16 %v302
      %v1085 = vunpack.c.h.b16 %v302
      %v1086 = vunpack.c.l.b16 %v303
      %v1087 = vunpack.c.h.b16 %v303
      %v1088 = vunpack.c.l.b16 %v304
      %v1089 = vunpack.c.h.b16 %v304
      %v1090 = vunpack.c.l.b16 %v305
      %v1091 = vunpack.c.h.b16 %v305
      %v1092 = vunpack.c.l.b16 %v306
      %v1093 = vunpack.c.h.b16 %v306
      %v1094 = vunpack.c.l.b16 %v307
      %v1095 = vunpack.c.h.b16 %v307
      %v1096 = vunpack.c.l.b16 %v308
      %v1097 = vunpack.c.h.b16 %v308
      %v1098 = vunpack.c.l.b16 %v309
      %v1099 = vunpack.c.h.b16 %v309
      %v1100 = vunpack.c.l.b16 %v310
      %v1101 = vunpack.c.h.b16 %v310
      %v1102 = vunpack.c.l.b16 %v311
      %v1103 = vunpack.c.h.b16 %v311
      %v1104 = vunpack.c.l.b16 %v312
      %v1105 = vunpack.c.h.b16 %v312
      %v1106 = vunpack.c.l.b16 %v313
      %v1107 = vunpack.c.h.b16 %v313
      %v1108 = vunpack.c.l.b16 %v314
      %v1109 = vunpack.c.h.b16 %v314
      %v1110 = vunpack.c.l.b16 %v315
      %v1111 = vunpack.c.h.b16 %v315
      %v1112 = vunpack.c.l.b16 %v316
      %v1113 = vunpack.c.h.b16 %v316
      %v1114 = vunpack.c.l.b16 %v317
      %v1115 = vunpack.c.h.b16 %v317
      %v1116 = vunpack.c.l.b16 %v318
      %v1117 = vunpack.c.h.b16 %v318
      %v1118 = vunpack.c.l.b16 %v319
      %v1119 = vunpack.c.h.b16 %v319
      %v1120 = vunpack.c.l.b16 %v320
      %v1121 = vunpack.c.h.b16 %v320
      %v1122 = vunpack.c.l.b16 %v321
      %v1123 = vunpack.c.h.b16 %v321
      %v1124 = vunpack.c.l.b16 %v322
      %v1125 = vunpack.c.h.b16 %v322
      %v1126 = vunpack.c.l.b16 %v323
      %v1127 = vunpack.c.h.b16 %v323
      %v1128 = vunpack.c.l.b16 %v324
      %v1129 = vunpack.c.h.b16 %v324
      %v1130 = vunpack.c.l.b16 %v325
      %v1131 = vunpack.c.h.b16 %v325
      %v1132 = vunpack.c.l.b16 %v326
      %v1133 = vunpack.c.h.b16 %v326
      %v1134 = vunpack.c.l.b16 %v327
      %v1135 = vunpack.c.h.b16 %v327
      %v1136 = vunpack.c.l.b16 %v328
      %v1137 = vunpack.c.h.b16 %v328
      %v1138 = vunpack.c.l.b16 %v329
      %v1139 = vunpack.c.h.b16 %v329
      %v1140 = vunpack.c.l.b16 %v330
      %v1141 = vunpack.c.h.b16 %v330
      %v1142 = vunpack.c.l.b16 %v331
      %v1143 = vunpack.c.h.b16 %v331
      %v1144 = vunpack.c.l.b16 %v332
      %v1145 = vunpack.c.h.b16 %v332
      %v1146 = vunpack.c.l.b16 %v333
      %v1147 = vunpack.c.h.b16 %v333
      %v1148 = vunpack.c.l.b16 %v334
      %v1149 = vunpack.c.h.b16 %v334
      %v1150 = vunpack.c.l.b16 %v335
      %v1151 = vunpack.c.h.b16 %v335
      %v1152 = vunpack.c.l.b16 %v336
      %v1153 = vunpack.c.h.b16 %v336
      %v1154 = vunpack.c.l.b16 %v337
      %v1155 = vunpack.c.h.b16 %v337
      %v1156 = vunpack.c.l.b16 %v338
      %v1157 = vunpack.c.h.b16 %v338
      %v1158 = vunpack.c.l.b16 %v339
      %v1159 = vunpack.c.h.b16 %v339
      %v1160 = vunpack.c.l.b16 %v340
      %v1161 = vunpack.c.h.b16 %v340
      %v1162 = vunpack.c.l.b16 %v341
      %v1163 = vunpack.c.h.b16 %v341
      %v1164 = vunpack.c.l.b16 %v342
      %v1165 = vunpack.c.h.b16 %v342
      %v1166 = vunpack.c.l.b16 %v343
      %v1167 = vunpack.c.h.b16 %v343
      %v1168 = vunpack.c.l.b16 %v344
      %v1169 = vunpack.c.h.b16 %v344
      %v1170 = vunpack.c.l.b16 %v345
      %v1171 = vunpack.c.h.b16 %v345
      %v1172 = vunpack.c.l.b16 %v346
      %v1173 = vunpack.c.h.b16 %v346
      %v1174 = vunpack.c.l.b16 %v347
      %v1175 = vunpack.c.h.b16 %v347
      %v1176 = vunpack.c.l.b16 %v348
      %v1177 = vunpack.c.h.b16 %v348
      %v1178 = vunpack.c.l.b16 %v349
      %v1179 = vunpack.c.h.b16 %v349
      %v1180 = vunpack.c.l.b16 %v350
      %v1181 = vunpack.c.h.b16 %v350
      %v1182 = vunpack.c.l.b16 %v351
      %v1183 = vunpack.c.h.b16 %v351
      %v1184 = vunpack.c.l.b16 %v352
      %v1185 = vunpack.c.h.b16 %v352
      %v1186 = vunpack.c.l.b16 %v353
      %v1187 = vunpack.c.h.b16 %v353
      %v1188 = vunpack.c.l.b16 %v354
      %v1189 = vunpack.c.h.b16 %v354
      %v1190 = vunpack.c.l.b16 %v355
      %v1191 = vunpack.c.h.b16 %v355
      %v1192 = vunpack.c.l.b16 %v356
      %v1193 = vunpack.c.h.b16 %v356
      %v1194 = vunpack.c.l.b16 %v357
      %v1195 = vunpack.c.h.b16 %v357
      %v1196 = vunpack.c.l.b16 %v358
      %v1197 = vunpack.c.h.b16 %v358
      %v1198 = vunpack.c.l.b16 %v359
      %v1199 = vunpack.c.h.b16 %v359
      %v1200 = vunpack.c.l.b16 %v360
      %v1201 = vunpack.c.h.b16 %v360
      %v1202 = vunpack.c.l.b16 %v361
      %v1203 = vunpack.c.h.b16 %v361
      %v1204 = vunpack.c.l.b16 %v362
      %v1205 = vunpack.c.h.b16 %v362
      %v1206 = vunpack.c.l.b16 %v363
      %v1207 = vunpack.c.h.b16 %v363
      %v1208 = vunpack.c.l.b16 %v364
      %v1209 = vunpack.c.h.b16 %v364
      %v1210 = vunpack.c.l.b16 %v365
      %v1211 = vunpack.c.h.b16 %v365
      %v1212 = vunpack.c.l.b16 %v366
      %v1213 = vunpack.c.h.b16 %v366
      %v1214 = vunpack.c.l.b16 %v367
      %v1215 = vunpack.c.h.b16 %v367
      %v1216 = vunpack.c.l.b16 %v368
      %v1217 = vunpack.c.h.b16 %v368
      %v1218 = vunpack.c.l.b16 %v369
      %v1219 = vunpack.c.h.b16 %v369
      %v1220 = vunpack.c.l.b16 %v370
      %v1221 = vunpack.c.h.b16 %v370
      %v1222 = vunpack.c.l.b16 %v371
      %v1223 = vunpack.c.h.b16 %v371
      %v1224 = vunpack.c.l.b16 %v372
      %v1225 = vunpack.c.h.b16 %v372
      %v1226 = vunpack.c.l.b16 %v373
      %v1227 = vunpack.c.h.b16 %v373
      %v1228 = vunpack.c.l.b16 %v374
      %v1229 = vunpack.c.h.b16 %v374
      %v1230 = vunpack.c.l.b16 %v375
      %v1231 = vunpack.c.h.b16 %v375
      %v1232 = vunpack.c.l.b16 %v376
      %v1233 = vunpack.c.h.b16 %v376
      %v1234 = vunpack.c.l.b16 %v377
      %v1235 = vunpack.c.h.b16 %v377
      %v1236 = vunpack.c.l.b16 %v378
      %v1237 = vunpack.c.h.b16 %v378
      %v1238 = vunpack.c.l.b16 %v379
      %v1239 = vunpack.c.h.b16 %v379
      %v1240 = vunpack.c.l.b16 %v380
      %v1241 = vunpack.c.h.b16 %v380
      %v1242 = vunpack.c.l.b16 %v381
      %v1243 = vunpack.c.h.b16 %v381
      %v1244 = vunpack.c.l.b16 %v382
      %v1245 = vunpack.c.h.b16 %v382
      %v1246 = vunpack.c.l.b16 %v383
      %v1247 = vunpack.c.h.b16 %v383
      %v1248 = vunpack.c.l.b16 %v384
      %v1249 = vunpack.c.h.b16 %v384
      %v1250 = vunpack.c.l.b16 %v385
      %v1251 = vunpack.c.h.b16 %v385
      %v1252 = vunpack.c.l.b16 %v386
      %v1253 = vunpack.c.h.b16 %v386
      %v1254 = vunpack.c.l.b16 %v387
      %v1255 = vunpack.c.h.b16 %v387
      %v1256 = vunpack.c.l.b16 %v388
      %v1257 = vunpack.c.h.b16 %v388
      %v1258 = vunpack.c.l.b16 %v389
      %v1259 = vunpack.c.h.b16 %v389
      %v1260 = vunpack.c.l.b16 %v390
      %v1261 = vunpack.c.h.b16 %v390
      %v1262 = vunpack.c.l.b16 %v391
      %v1263 = vunpack.c.h.b16 %v391
      %v1264 = vunpack.c.l.b16 %v392
      %v1265 = vunpack.c.h.b16 %v392
      %v1266 = vunpack.c.l.b16 %v393
      %v1267 = vunpack.c.h.b16 %v393
      %v1268 = vunpack.c.l.b16 %v394
      %v1269 = vunpack.c.h.b16 %v394
      %v1270 = vunpack.c.l.b16 %v395
      %v1271 = vunpack.c.h.b16 %v395
      %v1272 = vunpack.c.l.b16 %v396
      %v1273 = vunpack.c.h.b16 %v396
      %v1274 = vunpack.c.l.b16 %v397
      %v1275 = vunpack.c.h.b16 %v397
      %v1276 = vunpack.c.l.b16 %v398
      %v1277 = vunpack.c.h.b16 %v398
      %v1278 = vunpack.c.l.b16 %v399
      %v1279 = vunpack.c.h.b16 %v399
      %v1280 = vunpack.c.l.b16 %v400
      %v1281 = vunpack.c.h.b16 %v400
      %v1282 = vunpack.c.l.b16 %v401
      %v1283 = vunpack.c.h.b16 %v401
      %v1284 = vunpack.c.l.b16 %v402
      %v1285 = vunpack.c.h.b16 %v402
      %v1286 = vunpack.c.l.b16 %v403
      %v1287 = vunpack.c.h.b16 %v403
      %v1288 = vunpack.c.l.b16 %v404
      %v1289 = vunpack.c.h.b16 %v404
      %v1290 = vunpack.c.l.b16 %v405
      %v1291 = vunpack.c.h.b16 %v405
      %v1292 = vunpack.c.l.b16 %v406
      %v1293 = vunpack.c.h.b16 %v406
      %v1294 = vunpack.c.l.b16 %v407
      %v1295 = vunpack.c.h.b16 %v407
      %v1296 = vunpack.c.l.b16 %v408
      %v1297 = vunpack.c.h.b16 %v408
      %v1298 = vunpack.c.l.b16 %v409
      %v1299 = vunpack.c.h.b16 %v409
      %v1300 = vunpack.c.l.b16 %v410
      %v1301 = vunpack.c.h.b16 %v410
      %v1302 = vunpack.c.l.b16 %v411
      %v1303 = vunpack.c.h.b16 %v411
      %v1304 = vunpack.c.l.b16 %v412
      %v1305 = vunpack.c.h.b16 %v412
      %v1306 = vunpack.c.l.b16 %v413
      %v1307 = vunpack.c.h.b16 %v413
      %v1308 = vunpack.c.l.b16 %v414
      %v1309 = vunpack.c.h.b16 %v414
      %v1310 = vunpack.c.l.b16 %v415
      %v1311 = vunpack.c.h.b16 %v415
      %v1312 = vunpack.c.l.b16 %v416
      %v1313 = vunpack.c.h.b16 %v416
      %v1314 = vunpack.c.l.b16 %v417
      %v1315 = vunpack.c.h.b16 %v417
      %v1316 = vunpack.c.l.b16 %v418
      %v1317 = vunpack.c.h.b16 %v418
      %v1318 = vunpack.c.l.b16 %v419
      %v1319 = vunpack.c.h.b16 %v419
      %v1320 = vunpack.c.l.b16 %v420
      %v1321 = vunpack.c.h.b16 %v420
      %v1322 = vunpack.c.l.b16 %v421
      %v1323 = vunpack.c.h.b16 %v421
      %v1324 = vunpack.c.l.b16 %v422
      %v1325 = vunpack.c.h.b16 %v422
      %v1326 = vunpack.c.l.b16 %v423
      %v1327 = vunpack.c.h.b16 %v423
      %v1328 = vunpack.c.l.b16 %v424
      %v1329 = vunpack.c.h.b16 %v424
      %v1330 = vunpack.c.l.b16 %v425
      %v1331 = vunpack.c.h.b16 %v425
      %v1332 = vunpack.c.l.b16 %v426
      %v1333 = vunpack.c.h.b16 %v426
      %v1334 = vunpack.c.l.b16 %v427
      %v1335 = vunpack.c.h.b16 %v427
      %v1336 = vunpack.c.l.b16 %v428
      %v1337 = vunpack.c.h.b16 %v428
      %v1338 = vunpack.c.l.b16 %v429
      %v1339 = vunpack.c.h.b16 %v429
      %v1340 = vunpack.c.l.b16 %v430
      %v1341 = vunpack.c.h.b16 %v430
      %v1342 = vunpack.c.l.b16 %v431
      %v1343 = vunpack.c.h.b16 %v431
      %v1344 = vunpack.c.l.b16 %v432
      %v1345 = vunpack.c.h.b16 %v432
      %v1346 = vunpack.c.l.b16 %v433
      %v1347 = vunpack.c.h.b16 %v433
      %v1348 = vunpack.c.l.b16 %v434
      %v1349 = vunpack.c.h.b16 %v434
      %v1350 = vunpack.c.l.b16 %v435
      %v1351 = vunpack.c.h.b16 %v435
      %v1352 = vunpack.c.l.b16 %v436
      %v1353 = vunpack.c.h.b16 %v436
      %v1354 = vunpack.c.l.b16 %v437
      %v1355 = vunpack.c.h.b16 %v437
      %v1356 = vunpack.c.l.b16 %v438
      %v1357 = vunpack.c.h.b16 %v438
      %v1358 = vunpack.c.l.b16 %v439
      %v1359 = vunpack.c.h.b16 %v439
      %v1360 = vunpack.c.l.b16 %v440
      %v1361 = vunpack.c.h.b16 %v440
      %v1362 = vunpack.c.l.b16 %v441
      %v1363 = vunpack.c.h.b16 %v441
      %v1364 = vunpack.c.l.b16 %v442
      %v1365 = vunpack.c.h.b16 %v442
      %v1366 = vunpack.c.l.b16 %v443
      %v1367 = vunpack.c.h.b16 %v443
      %v1368 = vunpack.c.l.b16 %v444
      %v1369 = vunpack.c.h.b16 %v444
      %v1370 = vunpack.c.l.b16 %v445
      %v1371 = vunpack.c.h.b16 %v445
      %v1372 = vunpack.c.l.b16 %v446
      %v1373 = vunpack.c.h.b16 %v446
      %v1374 = vunpack.c.l.b16 %v447
      %v1375 = vunpack.c.h.b16 %v447
      %v1376 = vunpack.c.l.b16 %v448
      %v1377 = vunpack.c.h.b16 %v448
      %v1378 = vunpack.c.l.b16 %v449
      %v1379 = vunpack.c.h.b16 %v449
      %v1380 = vunpack.c.l.b16 %v450
      %v1381 = vunpack.c.h.b16 %v450
      %v1382 = vunpack.c.l.b16 %v451
      %v1383 = vunpack.c.h.b16 %v451
      %v1384 = vunpack.c.l.b16 %v452
      %v1385 = vunpack.c.h.b16 %v452
      %v1386 = vunpack.c.l.b16 %v453
      %v1387 = vunpack.c.h.b16 %v453
      %v1388 = vunpack.c.l.b16 %v454
      %v1389 = vunpack.c.h.b16 %v454
      %v1390 = vunpack.c.l.b16 %v455
      %v1391 = vunpack.c.h.b16 %v455
      %v1392 = vunpack.c.l.b16 %v456
      %v1393 = vunpack.c.h.b16 %v456
      %v1394 = vunpack.c.l.b16 %v457
      %v1395 = vunpack.c.h.b16 %v457
      %v1396 = vunpack.c.l.b16 %v458
      %v1397 = vunpack.c.h.b16 %v458
      %v1398 = vunpack.c.l.b16 %v459
      %v1399 = vunpack.c.h.b16 %v459
      %v1400 = vunpack.c.l.b16 %v460
      %v1401 = vunpack.c.h.b16 %v460
      %v1402 = vunpack.c.l.b16 %v461
      %v1403 = vunpack.c.h.b16 %v461
      %v1404 = vunpack.c.l.b16 %v462
      %v1405 = vunpack.c.h.b16 %v462
      %v1406 = vunpack.c.l.b16 %v463
      %v1407 = vunpack.c.h.b16 %v463
      %v1408 = vunpack.c.l.b16 %v464
      %v1409 = vunpack.c.h.b16 %v464
      %v1410 = vunpack.c.l.b16 %v465
      %v1411 = vunpack.c.h.b16 %v465
      %v1412 = vunpack.c.l.b16 %v466
      %v1413 = vunpack.c.h.b16 %v466
      %v1414 = vunpack.c.l.b16 %v467
      %v1415 = vunpack.c.h.b16 %v467
      %v1416 = vunpack.c.l.b16 %v468
      %v1417 = vunpack.c.h.b16 %v468
      %v1418 = vunpack.c.l.b16 %v469
      %v1419 = vunpack.c.h.b16 %v469
      %v1420 = vunpack.c.l.b16 %v470
      %v1421 = vunpack.c.h.b16 %v470
      %v1422 = vunpack.c.l.b16 %v471
      %v1423 = vunpack.c.h.b16 %v471
      %v1424 = vunpack.c.l.b16 %v472
      %v1425 = vunpack.c.h.b16 %v472
      %v1426 = vunpack.c.l.b16 %v473
      %v1427 = vunpack.c.h.b16 %v473
      %v1428 = vunpack.c.l.b16 %v474
      %v1429 = vunpack.c.h.b16 %v474
      %v1430 = vunpack.c.l.b16 %v475
      %v1431 = vunpack.c.h.b16 %v475
      %v1432 = vunpack.c.l.b16 %v476
      %v1433 = vunpack.c.h.b16 %v476
      %v1434 = vunpack.c.l.b16 %v477
      %v1435 = vunpack.c.h.b16 %v477
      %v1436 = vunpack.c.l.b16 %v478
      %v1437 = vunpack.c.h.b16 %v478
      %v1438 = vunpack.c.l.b16 %v479
      %v1439 = vunpack.c.h.b16 %v479
      %v1440 = vunpack.c.l.b16 %v480
      %v1441 = vunpack.c.h.b16 %v480
      %v1442 = vunpack.c.l.b16 %v481
      %v1443 = vunpack.c.h.b16 %v481
      %v1444 = vunpack.c.l.b16 %v482
      %v1445 = vunpack.c.h.b16 %v482
      %v1446 = vunpack.c.l.b16 %v483
      %v1447 = vunpack.c.h.b16 %v483
      %v1448 = vunpack.c.l.b16 %v484
      %v1449 = vunpack.c.h.b16 %v484
      %v1450 = vunpack.c.l.b16 %v485
      %v1451 = vunpack.c.h.b16 %v485
      %v1452 = vunpack.c.l.b16 %v486
      %v1453 = vunpack.c.h.b16 %v486
      %v1454 = vunpack.c.l.b16 %v487
      %v1455 = vunpack.c.h.b16 %v487
      %v1456 = vunpack.c.l.b16 %v488
      %v1457 = vunpack.c.h.b16 %v488
      %v1458 = vunpack.c.l.b16 %v489
      %v1459 = vunpack.c.h.b16 %v489
      %v1460 = vunpack.c.l.b16 %v490
      %v1461 = vunpack.c.h.b16 %v490
      %v1462 = vunpack.c.l.b16 %v491
      %v1463 = vunpack.c.h.b16 %v491
      %v1464 = vunpack.c.l.b16 %v492
      %v1465 = vunpack.c.h.b16 %v492
      %v1466 = vunpack.c.l.b16 %v493
      %v1467 = vunpack.c.h.b16 %v493
      %v1468 = vunpack.c.l.b16 %v494
      %v1469 = vunpack.c.h.b16 %v494
      %v1470 = vunpack.c.l.b16 %v495
      %v1471 = vunpack.c.h.b16 %v495
      %v1472 = vunpack.c.l.b16 %v496
      %v1473 = vunpack.c.h.b16 %v496
      %v1474 = vunpack.c.l.b16 %v497
      %v1475 = vunpack.c.h.b16 %v497
      %v1476 = vunpack.c.l.b16 %v498
      %v1477 = vunpack.c.h.b16 %v498
      %v1478 = vunpack.c.l.b16 %v499
      %v1479 = vunpack.c.h.b16 %v499
      %v1480 = vunpack.c.l.b16 %v500
      %v1481 = vunpack.c.h.b16 %v500
      %v1482 = vunpack.c.l.b16 %v501
      %v1483 = vunpack.c.h.b16 %v501
      %v1484 = vunpack.c.l.b16 %v502
      %v1485 = vunpack.c.h.b16 %v502
      %v1486 = vunpack.c.l.b16 %v503
      %v1487 = vunpack.c.h.b16 %v503
      %v1488 = vunpack.c.l.b16 %v504
      %v1489 = vunpack.c.h.b16 %v504
      %v1490 = vunpack.c.l.b16 %v505
      %v1491 = vunpack.c.h.b16 %v505
      %v1492 = vunpack.c.l.b16 %v506
      %v1493 = vunpack.c.h.b16 %v506
      %v1494 = vunpack.c.l.b16 %v507
      %v1495 = vunpack.c.h.b16 %v507
      %v1496 = vunpack.c.l.b16 %v508
      %v1497 = vunpack.c.h.b16 %v508
      %v1498 = vunpack.c.l.b16 %v509
      %v1499 = vunpack.c.h.b16 %v509
      %v1500 = vunpack.c.l.b16 %v510
      %v1501 = vunpack.c.h.b16 %v510
      %v1502 = vunpack.c.l.b16 %v511
      %v1503 = vunpack.c.h.b16 %v511
      %v1504 = vunpack.c.l.b16 %v512
      %v1505 = vunpack.c.h.b16 %v512
      %v1506 = vunpack.c.l.b16 %v513
      %v1507 = vunpack.c.h.b16 %v513
      %v1508 = vunpack.c.l.b16 %v514
      %v1509 = vunpack.c.h.b16 %v514
      %v1510 = vunpack.c.l.b16 %v515
      %v1511 = vunpack.c.h.b16 %v515
      %v1512 = vunpack.c.l.b16 %v516
      %v1513 = vunpack.c.h.b16 %v516
      %v1514 = vunpack.c.l.b16 %v517
      %v1515 = vunpack.c.h.b16 %v517
      %v1516 = vunpack.c.l.b16 %v518
      %v1517 = vunpack.c.h.b16 %v518
      %v1518 = vunpack.c.l.b16 %v519
      %v1519 = vunpack.c.h.b16 %v519
      %v1520 = vunpack.c.l.b16 %v520
      %v1521 = vunpack.c.h.b16 %v520
      %v1522 = vunpack.c.l.b16 %v521
      %v1523 = vunpack.c.h.b16 %v521
      %v1524 = vunpack.c.l.b16 %v522
      %v1525 = vunpack.c.h.b16 %v522
      %v1526 = vunpack.c.l.b16 %v523
      %v1527 = vunpack.c.h.b16 %v523
      %v1528 = vunpack.c.l.b16 %v524
      %v1529 = vunpack.c.h.b16 %v524
      %v1530 = vunpack.c.l.b16 %v525
      %v1531 = vunpack.c.h.b16 %v525
      %v1532 = vunpack.c.l.b16 %v526
      %v1533 = vunpack.c.h.b16 %v526
      %v1534 = vunpack.c.l.b16 %v527
      %v1535 = vunpack.c.h.b16 %v527
      %v1536 = vunpack.c.l.b16 %v528
      %v1537 = vunpack.c.h.b16 %v528
      %v1538 = vunpack.c.l.b16 %v529
      %v1539 = vunpack.c.h.b16 %v529
      %v1540 = vunpack.c.l.b16 %v530
      %v1541 = vunpack.c.h.b16 %v530
      %v1542 = vunpack.c.l.b16 %v531
      %v1543 = vunpack.c.h.b16 %v531
      %v1544 = vunpack.c.l.b16 %v532
      %v1545 = vunpack.c.h.b16 %v532
      %v1546 = vunpack.c.l.b16 %v533
      %v1547 = vunpack.c.h.b16 %v533
      %v1548 = vunpack.c.l.b16 %v534
      %v1549 = vunpack.c.h.b16 %v534
      %v1550 = vunpack.c.l.b16 %v535
      %v1551 = vunpack.c.h.b16 %v535
      %v1552 = vunpack.c.l.b16 %v536
      %v1553 = vunpack.c.h.b16 %v536
      %v1554 = vunpack.c.l.b16 %v537
      %v1555 = vunpack.c.h.b16 %v537
      %v1556 = vunpack.c.l.b16 %v538
      %v1557 = vunpack.c.h.b16 %v538
      %v1558 = vunpack.c.l.b16 %v539
      %v1559 = vunpack.c.h.b16 %v539
      %v1560 = vunpack.c.l.b16 %v540
      %v1561 = vunpack.c.h.b16 %v540
      %v1562 = vunpack.c.l.b16 %v541
      %v1563 = vunpack.c.h.b16 %v541
      %v1564 = vunpack.c.l.b16 %v542
      %v1565 = vunpack.c.h.b16 %v542
      %v1566 = vunpack.c.l.b16 %v543
      %v1567 = vunpack.c.h.b16 %v543
      %v1568 = vunpack.c.l.b16 %v544
      %v1569 = vunpack.c.h.b16 %v544
      %v1570 = vunpack.c.l.b16 %v545
      %v1571 = vunpack.c.h.b16 %v545
      %v1572 = vunpack.c.l.b16 %v546
      %v1573 = vunpack.c.h.b16 %v546
      %v1574 = vunpack.c.l.b16 %v547
      %v1575 = vunpack.c.h.b16 %v547
      %v1576 = vunpack.c.l.b16 %v548
      %v1577 = vunpack.c.h.b16 %v548
      %v1578 = vunpack.c.l.b16 %v549
      %v1579 = vunpack.c.h.b16 %v549
      %v1580 = vunpack.c.l.b16 %v550
      %v1581 = vunpack.c.h.b16 %v550
      %v1582 = vunpack.c.l.b16 %v551
      %v1583 = vunpack.c.h.b16 %v551
      %v1584 = vunpack.c.l.b16 %v552
      %v1585 = vunpack.c.h.b16 %v552
      %v1586 = vunpack.c.l.b16 %v553
      %v1587 = vunpack.c.h.b16 %v553
      %v1588 = vunpack.c.l.b16 %v554
      %v1589 = vunpack.c.h.b16 %v554
      %v1590 = vunpack.c.l.b16 %v555
      %v1591 = vunpack.c.h.b16 %v555
      %v1592 = vunpack.c.l.b16 %v556
      %v1593 = vunpack.c.h.b16 %v556
      %v1594 = vunpack.c.l.b16 %v557
      %v1595 = vunpack.c.h.b16 %v557
      %v1596 = vunpack.c.l.b16 %v558
      %v1597 = vunpack.c.h.b16 %v558
      %v1598 = vunpack.c.l.b16 %v559
      %v1599 = vunpack.c.h.b16 %v559
      %v1600 = vunpack.c.l.b16 %v560
      %v1601 = vunpack.c.h.b16 %v560
      %v1602 = vunpack.c.l.b16 %v561
      %v1603 = vunpack.c.h.b16 %v561
      %v1604 = vunpack.c.l.b16 %v562
      %v1605 = vunpack.c.h.b16 %v562
      %v1606 = vunpack.c.l.b16 %v563
      %v1607 = vunpack.c.h.b16 %v563
      %v1608 = vunpack.c.l.b16 %v564
      %v1609 = vunpack.c.h.b16 %v564
      %v1610 = vunpack.c.l.b16 %v565
      %v1611 = vunpack.c.h.b16 %v565
      %v1612 = vunpack.c.l.b16 %v566
      %v1613 = vunpack.c.h.b16 %v566
      %v1614 = vunpack.c.l.b16 %v567
      %v1615 = vunpack.c.h.b16 %v567
      %v1616 = vunpack.c.l.b16 %v568
      %v1617 = vunpack.c.h.b16 %v568
      %v1618 = vunpack.c.l.b16 %v569
      %v1619 = vunpack.c.h.b16 %v569
      %v1620 = vunpack.c.l.b16 %v570
      %v1621 = vunpack.c.h.b16 %v570
      %v1622 = vunpack.c.l.b16 %v571
      %v1623 = vunpack.c.h.b16 %v571
      %v1624 = vunpack.c.l.b16 %v572
      %v1625 = vunpack.c.h.b16 %v572
      %v1626 = vunpack.c.l.b16 %v573
      %v1627 = vunpack.c.h.b16 %v573
      %v1628 = vunpack.c.l.b16 %v574
      %v1629 = vunpack.c.h.b16 %v574
      %v1630 = vunpack.c.l.b16 %v575
      %v1631 = vunpack.c.h.b16 %v575
      %v1632 = vunpack.c.l.b16 %v576
      %v1633 = vunpack.c.h.b16 %v576
      %v1634 = vunpack.c.l.b16 %v577
      %v1635 = vunpack.c.h.b16 %v577
      %v1636 = vunpack.c.l.b16 %v578
      %v1637 = vunpack.c.h.b16 %v578
      %v1638 = vunpack.c.l.b16 %v579
      %v1639 = vunpack.c.h.b16 %v579
      %v1640 = vunpack.c.l.b16 %v580
      %v1641 = vunpack.c.h.b16 %v580
      %v1642 = vunpack.c.l.b16 %v581
      %v1643 = vunpack.c.h.b16 %v581
      %v1644 = vunpack.c.l.b16 %v582
      %v1645 = vunpack.c.h.b16 %v582
      %v1646 = vunpack.c.l.b16 %v583
      %v1647 = vunpack.c.h.b16 %v583
      %v1648 = vunpack.c.l.b16 %v584
      %v1649 = vunpack.c.h.b16 %v584
      %v1650 = vunpack.c.l.b16 %v585
      %v1651 = vunpack.c.h.b16 %v585
      %v1652 = vunpack.c.l.b16 %v586
      %v1653 = vunpack.c.h.b16 %v586
      %v1654 = vunpack.c.l.b16 %v587
      %v1655 = vunpack.c.h.b16 %v587
      %v1656 = vunpack.c.l.b16 %v588
      %v1657 = vunpack.c.h.b16 %v588
      %v1658 = vunpack.c.l.b16 %v589
      %v1659 = vunpack.c.h.b16 %v589
      %v1660 = vunpack.c.l.b16 %v590
      %v1661 = vunpack.c.h.b16 %v590
      %v1662 = vunpack.c.l.b16 %v591
      %v1663 = vunpack.c.h.b16 %v591
      %v1664 = vpack.c.b16 %v1044, %v1024
      %v1665 = vpack.c.b16 %v1045, %v1025
      %v1666 = vpack.c.b16 %v1046, %v1026
      %v1667 = vpack.c.b16 %v1047, %v1027
      %v1668 = vpack.c.b16 %v1048, %v1028
      %v1669 = vpack.c.b16 %v1049, %v1029
      %v1670 = vpack.c.b16 %v1050, %v1030
      %v1671 = vpack.c.b16 %v1051, %v1031
      %v1672 = vpack.c.b16 %v1052, %v1032
      %v1673 = vpack.c.b16 %v1053, %v1033
      %v1674 = vpack.c.b16 %v1054, %v1034
      %v1675 = vpack.c.b16 %v1055, %v1035
      %v1676 = vpack.c.b16 %v1056, %v1036
      %v1677 = vpack.c.b16 %v1057, %v1037
      %v1678 = vpack.c.b16 %v1058, %v1038
      %v1679 = vpack.c.b16 %v1059, %v1039
      %v1680 = vpack.c.b16 %v1060, %v1040
      %v1681 = vpack.c.b16 %v1061, %v1041
      %v1682 = vpack.c.b16 %v1062, %v1042
      %v1683 = vpack.c.b16 %v1063, %v1043
      %v1684 = vpack.c.b16 %v1084, %v1064
      %v1685 = vpack.c.b16 %v1085, %v1065
      %v1686 = vpack.c.b16 %v1086, %v1066
      %v1687 = vpack.c.b16 %v1087, %v1067
      %v1688 = vpack.c.b16 %v1088, %v1068
      %v1689 = vpack.c.b16 %v1089, %v1069
      %v1690 = vpack.c.b16 %v1090, %v1070
      %v1691 = vpack.c.b16 %v1091, %v1071
      %v1692 = vpack.c.b16 %v1092, %v1072
      %v1693 = vpack.c.b16 %v1093, %v1073
      %v1694 = vpack.c.b16 %v1094, %v1074
      %v1695 = vpack.c.b16 %v1095, %v1075
      %v1696 = vpack.c.b16 %v1096, %v1076
      %v1697 = vpack.c.b16 %v1097, %v1077
      %v1698 = vpack.c.b16 %v1098, %v1078
      %v1699 = vpack.c.b16 %v1099, %v1079
      %v1700 = vpack.c.b16 %v1100, %v1080
      %v1701 = vpack.c.b16 %v1101, %v1081
      %v1702 = vpack.c.b16 %v1102, %v1082
      %v1703 = vpack.c.b16 %v1103, %v1083
      %v1704 = vpack.c.b16 %v1124, %v1104
      %v1705 = vpack.c.b16 %v1125, %v1105
      %v1706 = vpack.c.b16 %v1126, %v1106
      %v1707 = vpack.c.b16 %v1127, %v1107
      %v1708 = vpack.c.b16 %v1128, %v1108
      %v1709 = vpack.c.b16 %v1129, %v1109
      %v1710 = vpack.c.b16 %v1130, %v1110
      %v1711 = vpack.c.b16 %v1131, %v1111
      %v1712 = vpack.c.b16 %v1132, %v1112
      %v1713 = vpack.c.b16 %v1133, %v1113
      %v1714 = vpack.c.b16 %v1134, %v1114
      %v1715 = vpack.c.b16 %v1135, %v1115
      %v1716 = vpack.c.b16 %v1136, %v1116
      %v1717 = vpack.c.b16 %v1137, %v1117
      %v1718 = vpack.c.b16 %v1138, %v1118
      %v1719 = vpack.c.b16 %v1139, %v1119
      %v1720 = vpack.c.b16 %v1140, %v1120
      %v1721 = vpack.c.b16 %v1141, %v1121
      %v1722 = vpack.c.b16 %v1142, %v1122
      %v1723 = vpack.c.b16 %v1143, %v1123
      %v1724 = vpack.c.b16 %v1164, %v1144
      %v1725 = vpack.c.b16 %v1165, %v1145
      %v1726 = vpack.c.b16 %v1166, %v1146
      %v1727 = vpack.c.b16 %v1167, %v1147
      %v1728 = vpack.c.b16 %v1168, %v1148
      %v1729 = vpack.c.b16 %v1169, %v1149
      %v1730 = vpack.c.b16 %v1170, %v1150
      %v1731 = vpack.c.b16 %v1171, %v1151
      %v1732 = vpack.c.b16 %v1172, %v1152
      %v1733 = vpack.c.b16 %v1173, %v1153
      %v1734 = vpack.c.b16 %v1174, %v1154
      %v1735 = vpack.c.b16 %v1175, %v1155
      %v1736 = vpack.c.b16 %v1176, %v1156
      %v1737 = vpack.c.b16 %v1177, %v1157
      %v1738 = vpack.c.b16 %v1178, %v1158
      %v1739 = vpack.c.b16 %v1179, %v1159
      %v1740 = vpack.c.b16 %v1180, %v1160
      %v1741 = vpack.c.b16 %v1181, %v1161
      %v1742 = vpack.c.b16 %v1182, %v1162
      %v1743 = vpack.c.b16 %v1183, %v1163
      %v1744 = vpack.c.b16 %v1204, %v1184
      %v1745 = vpack.c.b16 %v1205, %v1185
      %v1746 = vpack.c.b16 %v1206, %v1186
      %v1747 = vpack.c.b16 %v1207, %v1187
      %v1748 = vpack.c.b16 %v1208, %v1188
      %v1749 = vpack.c.b16 %v1209, %v1189
      %v1750 = vpack.c.b16 %v1210, %v1190
      %v1751 = vpack.c.b16 %v1211, %v1191
      %v1752 = vpack.c.b16 %v1212, %v1192
      %v1753 = vpack.c.b16 %v1213, %v1193
      %v1754 = vpack.c.b16 %v1214, %v1194
      %v1755 = vpack.c.b16 %v1215, %v1195
      %v1756 = vpack.c.b16 %v1216, %v1196
      %v1757 = vpack.c.b16 %v1217, %v1197
      %v1758 = vpack.c.b16 %v1218, %v1198
      %v1759 = vpack.c.b16 %v1219, %v1199
      %v1760 = vpack.c.b16 %v1220, %v1200
      %v1761 = vpack.c.b16 %v1221, %v1201
      %v1762 = vpack.c.b16 %v1222, %v1202
      %v1763 = vpack.c.b16 %v1223, %v1203
      %v1764 = vpack.c.b16 %v1244, %v1224
      %v1765 = vpack.c.b16 %v1245, %v1225
      %v1766 = vpack.c.b16 %v1246, %v1226
      %v1767 = vpack.c.b16 %v1247, %v1227
      %v1768 = vpack.c.b16 %v1248, %v1228
      %v1769 = vpack.c.b16 %v1249, %v1229
      %v1770 = vpack.c.b16 %v1250, %v1230
      %v1771 = vpack.c.b16 %v1251, %v1231
      %v1772 = vpack.c.b16 %v1252, %v1232
      %v1773 = vpack.c.b16 %v1253, %v1233
      %v1774 = vpack.c.b16 %v1254, %v1234
      %v1775 = vpack.c.b16 %v1255, %v1235
      %v1776 = vpack.c.b16 %v1256, %v1236
      %v1777 = vpack.c.b16 %v1257, %v1237
      %v1778 = vpack.c.b16 %v1258, %v1238
      %v1779 = vpack.c.b16 %v1259, %v1239
      %v1780 = vpack.c.b16 %v1260, %v1240
      %v1781 = vpack.c.b16 %v1261, %v1241
      %v1782 = vpack.c.b16 %v1262, %v1242
      %v1783 = vpack.c.b16 %v1263, %v1243
      %v1784 = vpack.c.b16 %v1284, %v1264
      %v1785 = vpack.c.b16 %v1285, %v1265
      %v1786 = vpack.c.b16 %v1286, %v1266
      %v1787 = vpack.c.b16 %v1287, %v1267
      %v1788 = vpack.c.b16 %v1288, %v1268
      %v1789 = vpack.c.b16 %v1289, %v1269
      %v1790 = vpack.c.b16 %v1290, %v1270
      %v1791 = vpack.c.b16 %v1291, %v1271
      %v1792 = vpack.c.b16 %v1292, %v1272
      %v1793 = vpack.c.b16 %v1293, %v1273
      %v1794 = vpack.c.b16 %v1294, %v1274
      %v1795 = vpack.c.b16 %v1295, %v1275
      %v1796 = vpack.c.b16 %v1296, %v1276
      %v1797 = vpack.c.b16 %v1297, %v1277
      %v1798 = vpack.c.b16 %v1298, %v1278
      %v1799 = vpack.c.b16 %v1299, %v1279
      %v1800 = vpack.c.b16 %v1300, %v1280
      %v1801 = vpack.c.b16 %v1301, %v1281
      %v1802 = vpack.c.b16 %v1302, %v1282
      %v1803 = vpack.c.b16 %v1303, %v1283
      %v1804 = vpack.c.b16 %v1324, %v1304
      %v1805 = vpack.c.b16 %v1325, %v1305
      %v1806 = vpack.c.b16 %v1326, %v1306
      %v1807 = vpack.c.b16 %v1327, %v1307
      %v1808 = vpack.c.b16 %v1328, %v1308
      %v1809 = vpack.c.b16 %v1329, %v1309
      %v1810 = vpack.c.b16 %v1330, %v1310
      %v1811 = vpack.c.b16 %v1331, %v1311
      %v1812 = vpack.c.b16 %v1332, %v1312
      %v1813 = vpack.c.b16 %v1333, %v1313
      %v1814 = vpack.c.b16 %v1334, %v1314
      %v1815 = vpack.c.b16 %v1335, %v1315
      %v1816 = vpack.c.b16 %v1336, %v1316
      %v1817 = vpack.c.b16 %v1337, %v1317
      %v1818 = vpack.c.b16 %v1338, %v1318
      %v1819 = vpack.c.b16 %v1339, %v1319
      %v1820 = vpack.c.b16 %v1340, %v1320
      %v1821 = vpack.c.b16 %v1341, %v1321
      %v1822 = vpack.c.b16 %v1342, %v1322
      %v1823 = vpack.c.b16 %v1343, %v1323
      %v1824 = vpack.c.b16 %v1364, %v1344
      %v1825 = vpack.c.b16 %v1365, %v1345
      %v1826 = vpack.c.b16 %v1366, %v1346
      %v1827 = vpack.c.b16 %v1367, %v1347
      %v1828 = vpack.c.b16 %v1368, %v1348
      %v1829 = vpack.c.b16 %v1369, %v1349
      %v1830 = vpack.c.b16 %v1370, %v1350
      %v1831 = vpack.c.b16 %v1371, %v1351
      %v1832 = vpack.c.b16 %v1372, %v1352
      %v1833 = vpack.c.b16 %v1373, %v1353
      %v1834 = vpack.c.b16 %v1374, %v1354
      %v1835 = vpack.c.b16 %v1375, %v1355
      %v1836 = vpack.c.b16 %v1376, %v1356
      %v1837 = vpack.c.b16 %v1377, %v1357
      %v1838 = vpack.c.b16 %v1378, %v1358
      %v1839 = vpack.c.b16 %v1379, %v1359
      %v1840 = vpack.c.b16 %v1380, %v1360
      %v1841 = vpack.c.b16 %v1381, %v1361
      %v1842 = vpack.c.b16 %v1382, %v1362
      %v1843 = vpack.c.b16 %v1383, %v1363
      %v1844 = vpack.c.b16 %v1404, %v1384
      %v1845 = vpack.c.b16 %v1405, %v1385
      %v1846 = vpack.c.b16 %v1406, %v1386
      %v1847 = vpack.c.b16 %v1407, %v1387
      %v1848 = vpack.c.b16 %v1408, %v1388
      %v1849 = vpack.c.b16 %v1409, %v1389
      %v1850 = vpack.c.b16 %v1410, %v1390
      %v1851 = vpack.c.b16 %v1411, %v1391
      %v1852 = vpack.c.b16 %v1412, %v1392
      %v1853 = vpack.c.b16 %v1413, %v1393
      %v1854 = vpack.c.b16 %v1414, %v1394
      %v1855 = vpack.c.b16 %v1415, %v1395
      %v1856 = vpack.c.b16 %v1416, %v1396
      %v1857 = vpack.c.b16 %v1417, %v1397
      %v1858 = vpack.c.b16 %v1418, %v1398
      %v1859 = vpack.c.b16 %v1419, %v1399
      %v1860 = vpack.c.b16 %v1420, %v1400
      %v1861 = vpack.c.b16 %v1421, %v1401
      %v1862 = vpack.c.b16 %v1422, %v1402
      %v1863 = vpack.c.b16 %v1423, %v1403
      %v1864 = vpack.c.b16 %v1444, %v1424
      %v1865 = vpack.c.b16 %v1445, %v1425
      %v1866 = vpack.c.b16 %v1446, %v1426
      %v1867 = vpack.c.b16 %v1447, %v1427
      %v1868 = vpack.c.b16 %v1448, %v1428
      %v1869 = vpack.c.b16 %v1449, %v1429
      %v1870 = vpack.c.b16 %v1450, %v1430
      %v1871 = vpack.c.b16 %v1451, %v1431
      %v1872 = vpack.c.b16 %v1452, %v1432
      %v1873 = vpack.c.b16 %v1453, %v1433
      %v1874 = vpack.c.b16 %v1454, %v1434
      %v1875 = vpack.c.b16 %v1455, %v1435
      %v1876 = vpack.c.b16 %v1456, %v1436
      %v1877 = vpack.c.b16 %v1457, %v1437
      %v1878 = vpack.c.b16 %v1458, %v1438
      %v1879 = vpack.c.b16 %v1459, %v1439
      %v1880 = vpack.c.b16 %v1460, %v1440
      %v1881 = vpack.c.b16 %v1461, %v1441
      %v1882 = vpack.c.b16 %v1462, %v1442
      %v1883 = vpack.c.b16 %v1463, %v1443
      %v1884 = vpack.c.b16 %v1484, %v1464
      %v1885 = vpack.c.b16 %v1485, %v1465
      %v1886 = vpack.c.b16 %v1486, %v1466
      %v1887 = vpack.c.b16 %v1487, %v1467
      %v1888 = vpack.c.b16 %v1488, %v1468
      %v1889 = vpack.c.b16 %v1489, %v1469
      %v1890 = vpack.c.b16 %v1490, %v1470
      %v1891 = vpack.c.b16 %v1491, %v1471
      %v1892 = vpack.c.b16 %v1492, %v1472
      %v1893 = vpack.c.b16 %v1493, %v1473
      %v1894 = vpack.c.b16 %v1494, %v1474
      %v1895 = vpack.c.b16 %v1495, %v1475
      %v1896 = vpack.c.b16 %v1496, %v1476
      %v1897 = vpack.c.b16 %v1497, %v1477
      %v1898 = vpack.c.b16 %v1498, %v1478
      %v1899 = vpack.c.b16 %v1499, %v1479
      %v1900 = vpack.c.b16 %v1500, %v1480
      %v1901 = vpack.c.b16 %v1501, %v1481
      %v1902 = vpack.c.b16 %v1502, %v1482
      %v1903 = vpack.c.b16 %v1503, %v1483
      %v1904 = vpack.c.b16 %v1524, %v1504
      %v1905 = vpack.c.b16 %v1525, %v1505
      %v1906 = vpack.c.b16 %v1526, %v1506
      %v1907 = vpack.c.b16 %v1527, %v1507
      %v1908 = vpack.c.b16 %v1528, %v1508
      %v1909 = vpack.c.b16 %v1529, %v1509
      %v1910 = vpack.c.b16 %v1530, %v1510
      %v1911 = vpack.c.b16 %v1531, %v1511
      %v1912 = vpack.c.b16 %v1532, %v1512
      %v1913 = vpack.c.b16 %v1533, %v1513
      %v1914 = vpack.c.b16 %v1534, %v1514
      %v1915 = vpack.c.b16 %v1535, %v1515
      %v1916 = vpack.c.b16 %v1536, %v1516
      %v1917 = vpack.c.b16 %v1537, %v1517
      %v1918 = vpack.c.b16 %v1538, %v1518
      %v1919 = vpack.c.b16 %v1539, %v1519
      %v1920 = vpack.c.b16 %v1540, %v1520
      %v1921 = vpack.c.b16 %v1541, %v1521
      %v1922 = vpack.c.b16 %v1542, %v1522
      %v1923 = vpack.c.b16 %v1543, %v1523
      %v1924 = vpack.c.b16 %v1564, %v1544
      %v1925 = vpack.c.b16 %v1565, %v1545
      %v1926 = vpack.c.b16 %v1566, %v1546
      %v1927 = vpack.c.b16 %v1567, %v1547
      %v1928 = vpack.c.b16 %v1568, %v1548
      %v1929 = vpack.c.b16 %v1569, %v1549
      %v1930 = vpack.c.b16 %v1570, %v1550
      %v1931 = vpack.c.b16 %v1571, %v1551
      %v1932 = vpack.c.b16 %v1572, %v1552
      %v1933 = vpack.c.b16 %v1573, %v1553
      %v1934 = vpack.c.b16 %v1574, %v1554
      %v1935 = vpack.c.b16 %v1575, %v1555
      %v1936 = vpack.c.b16 %v1576, %v1556
      %v1937 = vpack.c.b16 %v1577, %v1557
      %v1938 = vpack.c.b16 %v1578, %v1558
      %v1939 = vpack.c.b16 %v1579, %v1559
      %v1940 = vpack.c.b16 %v1580, %v1560
      %v1941 = vpack.c.b16 %v1581, %v1561
      %v1942 = vpack.c.b16 %v1582, %v1562
      %v1943 = vpack.c.b16 %v1583, %v1563
      %v1944 = vpack.c.b16 %v1604, %v1584
      %v1945 = vpack.c.b16 %v1605, %v1585
      %v1946 = vpack.c.b16 %v1606, %v1586
      %v1947 = vpack.c.b16 %v1607, %v1587
      %v1948 = vpack.c.b16 %v1608, %v1588
      %v1949 = vpack.c.b16 %v1609, %v1589
      %v1950 = vpack.c.b16 %v1610, %v1590
      %v1951 = vpack.c.b16 %v1611, %v1591
      %v1952 = vpack.c.b16 %v1612, %v1592
      %v1953 = vpack.c.b16 %v1613, %v1593
      %v1954 = vpack.c.b16 %v1614, %v1594
      %v1955 = vpack.c.b16 %v1615, %v1595
      %v1956 = vpack.c.b16 %v1616, %v1596
      %v1957 = vpack.c.b16 %v1617, %v1597
      %v1958 = vpack.c.b16 %v1618, %v1598
      %v1959 = vpack.c.b16 %v1619, %v1599
      %v1960 = vpack.c.b16 %v1620, %v1600
      %v1961 = vpack.c.b16 %v1621, %v1601
      %v1962 = vpack.c.b16 %v1622, %v1602
      %v1963 = vpack.c.b16 %v1623, %v1603
      %v1964 = vpack.c.b16 %v1644, %v1624
      %v1965 = vpack.c.b16 %v1645, %v1625
      %v1966 = vpack.c.b16 %v1646, %v1626
      %v1967 = vpack.c.b16 %v1647, %v1627
      %v1968 = vpack.c.b16 %v1648, %v1628
      %v1969 = vpack.c.b16 %v1649, %v1629
      %v1970 = vpack.c.b16 %v1650, %v1630
      %v1971 = vpack.c.b16 %v1651, %v1631
      %v1972 = vpack.c.b16 %v1652, %v1632
      %v1973 = vpack.c.b16 %v1653, %v1633
      %v1974 = vpack.c.b16 %v1654, %v1634
      %v1975 = vpack.c.b16 %v1655, %v1635
      %v1976 = vpack.c.b16 %v1656, %v1636
      %v1977 = vpack.c.b16 %v1657, %v1637
      %v1978 = vpack.c.b16 %v1658, %v1638
      %v1979 = vpack.c.b16 %v1659, %v1639
      %v1980 = vpack.c.b16 %v1660, %v1640
      %v1981 = vpack.c.b16 %v1661, %v1641
      %v1982 = vpack.c.b16 %v1662, %v1642
      %v1983 = vpack.c.b16 %v1663, %v1643
      %2304 = vmatpush.bf16.xpose.msra.mxu0 %v1804
      %2305 = vmatpush.bf16.xpose.msra.mxu0 %v1784
      %2306 = vmatpush.bf16.xpose.msra.mxu0 %v1764
      %2307 = vmatpush.bf16.xpose.msra.mxu0 %v1744
      %2308 = vmatpush.bf16.xpose.msra.mxu0 %v1724
      %2309 = vmatpush.bf16.xpose.msra.mxu0 %v1704
      %2310 = vmatpush.bf16.xpose.msra.mxu0 %v1684
      %2311 = vmatpush.bf16.xpose.msra.mxu0 %v1664
      %2312 = vmatmul.bf16.gmra.mxu0 %v664
      %v2313 = vpop.f32.mrf.mxu0
      %v2314 = vadd.f32 %v597, %v2313
      %v2315 = vpop.f32.mrf.mxu0
      %v2316 = vadd.f32 %v602, %v2315
      %2317 = vdwg.mxu0
      %2318 = vmatpush.bf16.xpose.msra.mxu0 %v1805
      %2319 = vmatpush.bf16.xpose.msra.mxu0 %v1785
      %2320 = vmatpush.bf16.xpose.msra.mxu0 %v1765
      %2321 = vmatpush.bf16.xpose.msra.mxu0 %v1745
      %2322 = vmatpush.bf16.xpose.msra.mxu0 %v1725
      %2323 = vmatpush.bf16.xpose.msra.mxu0 %v1705
      %2324 = vmatpush.bf16.xpose.msra.mxu0 %v1685
      %2325 = vmatpush.bf16.xpose.msra.mxu0 %v1665
      %2326 = vmatmul.bf16.gmra.mxu0 %v665
      %v2327 = vpop.f32.mrf.mxu0
      %v2328 = vadd.f32 %v2314, %v2327
      %v2329 = vpop.f32.mrf.mxu0
      %v2330 = vadd.f32 %v2316, %v2329
      %2331 = vdwg.mxu0
      %2332 = vmatpush.bf16.xpose.msra.mxu0 %v1806
      %2333 = vmatpush.bf16.xpose.msra.mxu0 %v1786
      %2334 = vmatpush.bf16.xpose.msra.mxu0 %v1766
      %2335 = vmatpush.bf16.xpose.msra.mxu0 %v1746
      %2336 = vmatpush.bf16.xpose.msra.mxu0 %v1726
      %2337 = vmatpush.bf16.xpose.msra.mxu0 %v1706
      %2338 = vmatpush.bf16.xpose.msra.mxu0 %v1686
      %2339 = vmatpush.bf16.xpose.msra.mxu0 %v1666
      %2340 = vmatmul.bf16.gmra.mxu0 %v666
      %v2341 = vpop.f32.mrf.mxu0
      %v2342 = vadd.f32 %v2328, %v2341
      %v2343 = vpop.f32.mrf.mxu0
      %v2344 = vadd.f32 %v2330, %v2343
      %2345 = vdwg.mxu0
      %2346 = vmatpush.bf16.xpose.msra.mxu0 %v1807
      %2347 = vmatpush.bf16.xpose.msra.mxu0 %v1787
      %2348 = vmatpush.bf16.xpose.msra.mxu0 %v1767
      %2349 = vmatpush.bf16.xpose.msra.mxu0 %v1747
      %2350 = vmatpush.bf16.xpose.msra.mxu0 %v1727
      %2351 = vmatpush.bf16.xpose.msra.mxu0 %v1707
      %2352 = vmatpush.bf16.xpose.msra.mxu0 %v1687
      %2353 = vmatpush.bf16.xpose.msra.mxu0 %v1667
      %2354 = vmatmul.bf16.gmra.mxu0 %v667
      %v2355 = vpop.f32.mrf.mxu0
      %v2356 = vadd.f32 %v2342, %v2355
      %v2357 = vpop.f32.mrf.mxu0
      %v2358 = vadd.f32 %v2344, %v2357
      %2359 = vdwg.mxu0
      %2360 = vmatpush.bf16.xpose.msra.mxu0 %v1808
      %2361 = vmatpush.bf16.xpose.msra.mxu0 %v1788
      %2362 = vmatpush.bf16.xpose.msra.mxu0 %v1768
      %2363 = vmatpush.bf16.xpose.msra.mxu0 %v1748
      %2364 = vmatpush.bf16.xpose.msra.mxu0 %v1728
      %2365 = vmatpush.bf16.xpose.msra.mxu0 %v1708
      %2366 = vmatpush.bf16.xpose.msra.mxu0 %v1688
      %2367 = vmatpush.bf16.xpose.msra.mxu0 %v1668
      %2368 = vmatmul.bf16.gmra.mxu0 %v668
      %v2369 = vpop.f32.mrf.mxu0
      %v2370 = vadd.f32 %v2356, %v2369
      %v2371 = vpop.f32.mrf.mxu0
      %v2372 = vadd.f32 %v2358, %v2371
      %2373 = vdwg.mxu0
      %2374 = vmatpush.bf16.xpose.msra.mxu0 %v1809
      %2375 = vmatpush.bf16.xpose.msra.mxu0 %v1789
      %2376 = vmatpush.bf16.xpose.msra.mxu0 %v1769
      %2377 = vmatpush.bf16.xpose.msra.mxu0 %v1749
      %2378 = vmatpush.bf16.xpose.msra.mxu0 %v1729
      %2379 = vmatpush.bf16.xpose.msra.mxu0 %v1709
      %2380 = vmatpush.bf16.xpose.msra.mxu0 %v1689
      %2381 = vmatpush.bf16.xpose.msra.mxu0 %v1669
      %2382 = vmatmul.bf16.gmra.mxu0 %v669
      %v2383 = vpop.f32.mrf.mxu0
      %v2384 = vadd.f32 %v2370, %v2383
      %v2385 = vpop.f32.mrf.mxu0
      %v2386 = vadd.f32 %v2372, %v2385
      %2387 = vdwg.mxu0
      %2388 = vmatpush.bf16.xpose.msra.mxu0 %v1810
      %2389 = vmatpush.bf16.xpose.msra.mxu0 %v1790
      %2390 = vmatpush.bf16.xpose.msra.mxu0 %v1770
      %2391 = vmatpush.bf16.xpose.msra.mxu0 %v1750
      %2392 = vmatpush.bf16.xpose.msra.mxu0 %v1730
      %2393 = vmatpush.bf16.xpose.msra.mxu0 %v1710
      %2394 = vmatpush.bf16.xpose.msra.mxu0 %v1690
      %2395 = vmatpush.bf16.xpose.msra.mxu0 %v1670
      %2396 = vmatmul.bf16.gmra.mxu0 %v670
      %v2397 = vpop.f32.mrf.mxu0
      %v2398 = vadd.f32 %v2384, %v2397
      %v2399 = vpop.f32.mrf.mxu0
      %v2400 = vadd.f32 %v2386, %v2399
      %2401 = vdwg.mxu0
      %2402 = vmatpush.bf16.xpose.msra.mxu0 %v1811
      %2403 = vmatpush.bf16.xpose.msra.mxu0 %v1791
      %2404 = vmatpush.bf16.xpose.msra.mxu0 %v1771
      %2405 = vmatpush.bf16.xpose.msra.mxu0 %v1751
      %2406 = vmatpush.bf16.xpose.msra.mxu0 %v1731
      %2407 = vmatpush.bf16.xpose.msra.mxu0 %v1711
      %2408 = vmatpush.bf16.xpose.msra.mxu0 %v1691
      %2409 = vmatpush.bf16.xpose.msra.mxu0 %v1671
      %2410 = vmatmul.bf16.gmra.mxu0 %v671
      %v2411 = vpop.f32.mrf.mxu0
      %v2412 = vadd.f32 %v2398, %v2411
      %v2413 = vpop.f32.mrf.mxu0
      %v2414 = vadd.f32 %v2400, %v2413
      %2415 = vdwg.mxu0
      %2416 = vmatpush.bf16.xpose.msra.mxu0 %v1812
      %2417 = vmatpush.bf16.xpose.msra.mxu0 %v1792
      %2418 = vmatpush.bf16.xpose.msra.mxu0 %v1772
      %2419 = vmatpush.bf16.xpose.msra.mxu0 %v1752
      %2420 = vmatpush.bf16.xpose.msra.mxu0 %v1732
      %2421 = vmatpush.bf16.xpose.msra.mxu0 %v1712
      %2422 = vmatpush.bf16.xpose.msra.mxu0 %v1692
      %2423 = vmatpush.bf16.xpose.msra.mxu0 %v1672
      %2424 = vmatmul.bf16.gmra.mxu0 %v672
      %v2425 = vpop.f32.mrf.mxu0
      %v2426 = vadd.f32 %v2412, %v2425
      %v2427 = vpop.f32.mrf.mxu0
      %v2428 = vadd.f32 %v2414, %v2427
      %2429 = vdwg.mxu0
      %2430 = vmatpush.bf16.xpose.msra.mxu0 %v1813
      %2431 = vmatpush.bf16.xpose.msra.mxu0 %v1793
      %2432 = vmatpush.bf16.xpose.msra.mxu0 %v1773
      %2433 = vmatpush.bf16.xpose.msra.mxu0 %v1753
      %2434 = vmatpush.bf16.xpose.msra.mxu0 %v1733
      %2435 = vmatpush.bf16.xpose.msra.mxu0 %v1713
      %2436 = vmatpush.bf16.xpose.msra.mxu0 %v1693
      %2437 = vmatpush.bf16.xpose.msra.mxu0 %v1673
      %2438 = vmatmul.bf16.gmra.mxu0 %v673
      %v2439 = vpop.f32.mrf.mxu0
      %v2440 = vadd.f32 %v2426, %v2439
      %v2441 = vpop.f32.mrf.mxu0
      %v2442 = vadd.f32 %v2428, %v2441
      %2443 = vdwg.mxu0
      %2444 = vmatpush.bf16.xpose.msra.mxu0 %v1814
      %2445 = vmatpush.bf16.xpose.msra.mxu0 %v1794
      %2446 = vmatpush.bf16.xpose.msra.mxu0 %v1774
      %2447 = vmatpush.bf16.xpose.msra.mxu0 %v1754
      %2448 = vmatpush.bf16.xpose.msra.mxu0 %v1734
      %2449 = vmatpush.bf16.xpose.msra.mxu0 %v1714
      %2450 = vmatpush.bf16.xpose.msra.mxu0 %v1694
      %2451 = vmatpush.bf16.xpose.msra.mxu0 %v1674
      %2452 = vmatmul.bf16.gmra.mxu0 %v674
      %v2453 = vpop.f32.mrf.mxu0
      %v2454 = vadd.f32 %v2440, %v2453
      %v2455 = vpop.f32.mrf.mxu0
      %v2456 = vadd.f32 %v2442, %v2455
      %2457 = vdwg.mxu0
      %2458 = vmatpush.bf16.xpose.msra.mxu0 %v1815
      %2459 = vmatpush.bf16.xpose.msra.mxu0 %v1795
      %2460 = vmatpush.bf16.xpose.msra.mxu0 %v1775
      %2461 = vmatpush.bf16.xpose.msra.mxu0 %v1755
      %2462 = vmatpush.bf16.xpose.msra.mxu0 %v1735
      %2463 = vmatpush.bf16.xpose.msra.mxu0 %v1715
      %2464 = vmatpush.bf16.xpose.msra.mxu0 %v1695
      %2465 = vmatpush.bf16.xpose.msra.mxu0 %v1675
      %2466 = vmatmul.bf16.gmra.mxu0 %v675
      %v2467 = vpop.f32.mrf.mxu0
      %v2468 = vadd.f32 %v2454, %v2467
      %v2469 = vpop.f32.mrf.mxu0
      %v2470 = vadd.f32 %v2456, %v2469
      %2471 = vdwg.mxu0
      %2472 = vmatpush.bf16.xpose.msra.mxu0 %v1816
      %2473 = vmatpush.bf16.xpose.msra.mxu0 %v1796
      %2474 = vmatpush.bf16.xpose.msra.mxu0 %v1776
      %2475 = vmatpush.bf16.xpose.msra.mxu0 %v1756
      %2476 = vmatpush.bf16.xpose.msra.mxu0 %v1736
      %2477 = vmatpush.bf16.xpose.msra.mxu0 %v1716
      %2478 = vmatpush.bf16.xpose.msra.mxu0 %v1696
      %2479 = vmatpush.bf16.xpose.msra.mxu0 %v1676
      %2480 = vmatmul.bf16.gmra.mxu0 %v676
      %v2481 = vpop.f32.mrf.mxu0
      %v2482 = vadd.f32 %v2468, %v2481
      %v2483 = vpop.f32.mrf.mxu0
      %v2484 = vadd.f32 %v2470, %v2483
      %2485 = vdwg.mxu0
      %2486 = vmatpush.bf16.xpose.msra.mxu0 %v1817
      %2487 = vmatpush.bf16.xpose.msra.mxu0 %v1797
      %2488 = vmatpush.bf16.xpose.msra.mxu0 %v1777
      %2489 = vmatpush.bf16.xpose.msra.mxu0 %v1757
      %2490 = vmatpush.bf16.xpose.msra.mxu0 %v1737
      %2491 = vmatpush.bf16.xpose.msra.mxu0 %v1717
      %2492 = vmatpush.bf16.xpose.msra.mxu0 %v1697
      %2493 = vmatpush.bf16.xpose.msra.mxu0 %v1677
      %2494 = vmatmul.bf16.gmra.mxu0 %v677
      %v2495 = vpop.f32.mrf.mxu0
      %v2496 = vadd.f32 %v2482, %v2495
      %v2497 = vpop.f32.mrf.mxu0
      %v2498 = vadd.f32 %v2484, %v2497
      %2499 = vdwg.mxu0
      %2500 = vmatpush.bf16.xpose.msra.mxu0 %v1818
      %2501 = vmatpush.bf16.xpose.msra.mxu0 %v1798
      %2502 = vmatpush.bf16.xpose.msra.mxu0 %v1778
      %2503 = vmatpush.bf16.xpose.msra.mxu0 %v1758
      %2504 = vmatpush.bf16.xpose.msra.mxu0 %v1738
      %2505 = vmatpush.bf16.xpose.msra.mxu0 %v1718
      %2506 = vmatpush.bf16.xpose.msra.mxu0 %v1698
      %2507 = vmatpush.bf16.xpose.msra.mxu0 %v1678
      %2508 = vmatmul.bf16.gmra.mxu0 %v678
      %v2509 = vpop.f32.mrf.mxu0
      %v2510 = vadd.f32 %v2496, %v2509
      %v2511 = vpop.f32.mrf.mxu0
      %v2512 = vadd.f32 %v2498, %v2511
      %2513 = vdwg.mxu0
      %2514 = vmatpush.bf16.xpose.msra.mxu0 %v1819
      %2515 = vmatpush.bf16.xpose.msra.mxu0 %v1799
      %2516 = vmatpush.bf16.xpose.msra.mxu0 %v1779
      %2517 = vmatpush.bf16.xpose.msra.mxu0 %v1759
      %2518 = vmatpush.bf16.xpose.msra.mxu0 %v1739
      %2519 = vmatpush.bf16.xpose.msra.mxu0 %v1719
      %2520 = vmatpush.bf16.xpose.msra.mxu0 %v1699
      %2521 = vmatpush.bf16.xpose.msra.mxu0 %v1679
      %2522 = vmatmul.bf16.gmra.mxu0 %v679
      %v2523 = vpop.f32.mrf.mxu0
      %v2524 = vadd.f32 %v2510, %v2523
      %v2525 = vpop.f32.mrf.mxu0
      %v2526 = vadd.f32 %v2512, %v2525
      %2527 = vdwg.mxu0
      %2528 = vmatpush.bf16.xpose.msra.mxu0 %v1820
      %2529 = vmatpush.bf16.xpose.msra.mxu0 %v1800
      %2530 = vmatpush.bf16.xpose.msra.mxu0 %v1780
      %2531 = vmatpush.bf16.xpose.msra.mxu0 %v1760
      %2532 = vmatpush.bf16.xpose.msra.mxu0 %v1740
      %2533 = vmatpush.bf16.xpose.msra.mxu0 %v1720
      %2534 = vmatpush.bf16.xpose.msra.mxu0 %v1700
      %2535 = vmatpush.bf16.xpose.msra.mxu0 %v1680
      %2536 = vmatmul.bf16.gmra.mxu0 %v680
      %v2537 = vpop.f32.mrf.mxu0
      %v2538 = vadd.f32 %v2524, %v2537
      %v2539 = vpop.f32.mrf.mxu0
      %v2540 = vadd.f32 %v2526, %v2539
      %2541 = vdwg.mxu0
      %2542 = vmatpush.bf16.xpose.msra.mxu0 %v1821
      %2543 = vmatpush.bf16.xpose.msra.mxu0 %v1801
      %2544 = vmatpush.bf16.xpose.msra.mxu0 %v1781
      %2545 = vmatpush.bf16.xpose.msra.mxu0 %v1761
      %2546 = vmatpush.bf16.xpose.msra.mxu0 %v1741
      %2547 = vmatpush.bf16.xpose.msra.mxu0 %v1721
      %2548 = vmatpush.bf16.xpose.msra.mxu0 %v1701
      %2549 = vmatpush.bf16.xpose.msra.mxu0 %v1681
      %2550 = vmatmul.bf16.gmra.mxu0 %v681
      %v2551 = vpop.f32.mrf.mxu0
      %v2552 = vadd.f32 %v2538, %v2551
      %v2553 = vpop.f32.mrf.mxu0
      %v2554 = vadd.f32 %v2540, %v2553
      %2555 = vdwg.mxu0
      %2556 = vmatpush.bf16.xpose.msra.mxu0 %v1822
      %2557 = vmatpush.bf16.xpose.msra.mxu0 %v1802
      %2558 = vmatpush.bf16.xpose.msra.mxu0 %v1782
      %2559 = vmatpush.bf16.xpose.msra.mxu0 %v1762
      %2560 = vmatpush.bf16.xpose.msra.mxu0 %v1742
      %2561 = vmatpush.bf16.xpose.msra.mxu0 %v1722
      %2562 = vmatpush.bf16.xpose.msra.mxu0 %v1702
      %2563 = vmatpush.bf16.xpose.msra.mxu0 %v1682
      %2564 = vmatmul.bf16.gmra.mxu0 %v682
      %v2565 = vpop.f32.mrf.mxu0
      %v2566 = vadd.f32 %v2552, %v2565
      %v2567 = vpop.f32.mrf.mxu0
      %v2568 = vadd.f32 %v2554, %v2567
      %2569 = vdwg.mxu0
      %2570 = vmatpush.bf16.xpose.msra.mxu0 %v1823
      %2571 = vmatpush.bf16.xpose.msra.mxu0 %v1803
      %2572 = vmatpush.bf16.xpose.msra.mxu0 %v1783
      %2573 = vmatpush.bf16.xpose.msra.mxu0 %v1763
      %2574 = vmatpush.bf16.xpose.msra.mxu0 %v1743
      %2575 = vmatpush.bf16.xpose.msra.mxu0 %v1723
      %2576 = vmatpush.bf16.xpose.msra.mxu0 %v1703
      %2577 = vmatpush.bf16.xpose.msra.mxu0 %v1683
      %2578 = vmatmul.bf16.gmra.mxu0 %v683
      %v2579 = vpop.f32.mrf.mxu0
      %v2580 = vadd.f32 %v2566, %v2579
      %v2581 = vpop.f32.mrf.mxu0
      %v2582 = vadd.f32 %v2568, %v2581
      %2583 = vdwg.mxu0
      %2584 = vmatpush.bf16.xpose.msra.mxu0 %v1964
      %2585 = vmatpush.bf16.xpose.msra.mxu0 %v1944
      %2586 = vmatpush.bf16.xpose.msra.mxu0 %v1924
      %2587 = vmatpush.bf16.xpose.msra.mxu0 %v1904
      %2588 = vmatpush.bf16.xpose.msra.mxu0 %v1884
      %2589 = vmatpush.bf16.xpose.msra.mxu0 %v1864
      %2590 = vmatpush.bf16.xpose.msra.mxu0 %v1844
      %2591 = vmatpush.bf16.xpose.msra.mxu0 %v1824
      %2592 = vmatmul.bf16.gmra.mxu0 %v664
      %v2593 = vpop.f32.mrf.mxu0
      %v2594 = vadd.f32 %v597, %v2593
      %v2595 = vpop.f32.mrf.mxu0
      %v2596 = vadd.f32 %v602, %v2595
      %2597 = vdwg.mxu0
      %2598 = vmatpush.bf16.xpose.msra.mxu0 %v1965
      %2599 = vmatpush.bf16.xpose.msra.mxu0 %v1945
      %2600 = vmatpush.bf16.xpose.msra.mxu0 %v1925
      %2601 = vmatpush.bf16.xpose.msra.mxu0 %v1905
      %2602 = vmatpush.bf16.xpose.msra.mxu0 %v1885
      %2603 = vmatpush.bf16.xpose.msra.mxu0 %v1865
      %2604 = vmatpush.bf16.xpose.msra.mxu0 %v1845
      %2605 = vmatpush.bf16.xpose.msra.mxu0 %v1825
      %2606 = vmatmul.bf16.gmra.mxu0 %v665
      %v2607 = vpop.f32.mrf.mxu0
      %v2608 = vadd.f32 %v2594, %v2607
      %v2609 = vpop.f32.mrf.mxu0
      %v2610 = vadd.f32 %v2596, %v2609
      %2611 = vdwg.mxu0
      %2612 = vmatpush.bf16.xpose.msra.mxu0 %v1966
      %2613 = vmatpush.bf16.xpose.msra.mxu0 %v1946
      %2614 = vmatpush.bf16.xpose.msra.mxu0 %v1926
      %2615 = vmatpush.bf16.xpose.msra.mxu0 %v1906
      %2616 = vmatpush.bf16.xpose.msra.mxu0 %v1886
      %2617 = vmatpush.bf16.xpose.msra.mxu0 %v1866
      %2618 = vmatpush.bf16.xpose.msra.mxu0 %v1846
      %2619 = vmatpush.bf16.xpose.msra.mxu0 %v1826
      %2620 = vmatmul.bf16.gmra.mxu0 %v666
      %v2621 = vpop.f32.mrf.mxu0
      %v2622 = vadd.f32 %v2608, %v2621
      %v2623 = vpop.f32.mrf.mxu0
      %v2624 = vadd.f32 %v2610, %v2623
      %2625 = vdwg.mxu0
      %2626 = vmatpush.bf16.xpose.msra.mxu0 %v1967
      %2627 = vmatpush.bf16.xpose.msra.mxu0 %v1947
      %2628 = vmatpush.bf16.xpose.msra.mxu0 %v1927
      %2629 = vmatpush.bf16.xpose.msra.mxu0 %v1907
      %2630 = vmatpush.bf16.xpose.msra.mxu0 %v1887
      %2631 = vmatpush.bf16.xpose.msra.mxu0 %v1867
      %2632 = vmatpush.bf16.xpose.msra.mxu0 %v1847
      %2633 = vmatpush.bf16.xpose.msra.mxu0 %v1827
      %2634 = vmatmul.bf16.gmra.mxu0 %v667
      %v2635 = vpop.f32.mrf.mxu0
      %v2636 = vadd.f32 %v2622, %v2635
      %v2637 = vpop.f32.mrf.mxu0
      %v2638 = vadd.f32 %v2624, %v2637
      %2639 = vdwg.mxu0
      %2640 = vmatpush.bf16.xpose.msra.mxu0 %v1968
      %2641 = vmatpush.bf16.xpose.msra.mxu0 %v1948
      %2642 = vmatpush.bf16.xpose.msra.mxu0 %v1928
      %2643 = vmatpush.bf16.xpose.msra.mxu0 %v1908
      %2644 = vmatpush.bf16.xpose.msra.mxu0 %v1888
      %2645 = vmatpush.bf16.xpose.msra.mxu0 %v1868
      %2646 = vmatpush.bf16.xpose.msra.mxu0 %v1848
      %2647 = vmatpush.bf16.xpose.msra.mxu0 %v1828
      %2648 = vmatmul.bf16.gmra.mxu0 %v668
      %v2649 = vpop.f32.mrf.mxu0
      %v2650 = vadd.f32 %v2636, %v2649
      %v2651 = vpop.f32.mrf.mxu0
      %v2652 = vadd.f32 %v2638, %v2651
      %2653 = vdwg.mxu0
      %2654 = vmatpush.bf16.xpose.msra.mxu0 %v1969
      %2655 = vmatpush.bf16.xpose.msra.mxu0 %v1949
      %2656 = vmatpush.bf16.xpose.msra.mxu0 %v1929
      %2657 = vmatpush.bf16.xpose.msra.mxu0 %v1909
      %2658 = vmatpush.bf16.xpose.msra.mxu0 %v1889
      %2659 = vmatpush.bf16.xpose.msra.mxu0 %v1869
      %2660 = vmatpush.bf16.xpose.msra.mxu0 %v1849
      %2661 = vmatpush.bf16.xpose.msra.mxu0 %v1829
      %2662 = vmatmul.bf16.gmra.mxu0 %v669
      %v2663 = vpop.f32.mrf.mxu0
      %v2664 = vadd.f32 %v2650, %v2663
      %v2665 = vpop.f32.mrf.mxu0
      %v2666 = vadd.f32 %v2652, %v2665
      %2667 = vdwg.mxu0
      %2668 = vmatpush.bf16.xpose.msra.mxu0 %v1970
      %2669 = vmatpush.bf16.xpose.msra.mxu0 %v1950
      %2670 = vmatpush.bf16.xpose.msra.mxu0 %v1930
      %2671 = vmatpush.bf16.xpose.msra.mxu0 %v1910
      %2672 = vmatpush.bf16.xpose.msra.mxu0 %v1890
      %2673 = vmatpush.bf16.xpose.msra.mxu0 %v1870
      %2674 = vmatpush.bf16.xpose.msra.mxu0 %v1850
      %2675 = vmatpush.bf16.xpose.msra.mxu0 %v1830
      %2676 = vmatmul.bf16.gmra.mxu0 %v670
      %v2677 = vpop.f32.mrf.mxu0
      %v2678 = vadd.f32 %v2664, %v2677
      %v2679 = vpop.f32.mrf.mxu0
      %v2680 = vadd.f32 %v2666, %v2679
      %2681 = vdwg.mxu0
      %2682 = vmatpush.bf16.xpose.msra.mxu0 %v1971
      %2683 = vmatpush.bf16.xpose.msra.mxu0 %v1951
      %2684 = vmatpush.bf16.xpose.msra.mxu0 %v1931
      %2685 = vmatpush.bf16.xpose.msra.mxu0 %v1911
      %2686 = vmatpush.bf16.xpose.msra.mxu0 %v1891
      %2687 = vmatpush.bf16.xpose.msra.mxu0 %v1871
      %2688 = vmatpush.bf16.xpose.msra.mxu0 %v1851
      %2689 = vmatpush.bf16.xpose.msra.mxu0 %v1831
      %2690 = vmatmul.bf16.gmra.mxu0 %v671
      %v2691 = vpop.f32.mrf.mxu0
      %v2692 = vadd.f32 %v2678, %v2691
      %v2693 = vpop.f32.mrf.mxu0
      %v2694 = vadd.f32 %v2680, %v2693
      %2695 = vdwg.mxu0
      %2696 = vmatpush.bf16.xpose.msra.mxu0 %v1972
      %2697 = vmatpush.bf16.xpose.msra.mxu0 %v1952
      %2698 = vmatpush.bf16.xpose.msra.mxu0 %v1932
      %2699 = vmatpush.bf16.xpose.msra.mxu0 %v1912
      %2700 = vmatpush.bf16.xpose.msra.mxu0 %v1892
      %2701 = vmatpush.bf16.xpose.msra.mxu0 %v1872
      %2702 = vmatpush.bf16.xpose.msra.mxu0 %v1852
      %2703 = vmatpush.bf16.xpose.msra.mxu0 %v1832
      %2704 = vmatmul.bf16.gmra.mxu0 %v672
      %v2705 = vpop.f32.mrf.mxu0
      %v2706 = vadd.f32 %v2692, %v2705
      %v2707 = vpop.f32.mrf.mxu0
      %v2708 = vadd.f32 %v2694, %v2707
      %2709 = vdwg.mxu0
      %2710 = vmatpush.bf16.xpose.msra.mxu0 %v1973
      %2711 = vmatpush.bf16.xpose.msra.mxu0 %v1953
      %2712 = vmatpush.bf16.xpose.msra.mxu0 %v1933
      %2713 = vmatpush.bf16.xpose.msra.mxu0 %v1913
      %2714 = vmatpush.bf16.xpose.msra.mxu0 %v1893
      %2715 = vmatpush.bf16.xpose.msra.mxu0 %v1873
      %2716 = vmatpush.bf16.xpose.msra.mxu0 %v1853
      %2717 = vmatpush.bf16.xpose.msra.mxu0 %v1833
      %2718 = vmatmul.bf16.gmra.mxu0 %v673
      %v2719 = vpop.f32.mrf.mxu0
      %v2720 = vadd.f32 %v2706, %v2719
      %v2721 = vpop.f32.mrf.mxu0
      %v2722 = vadd.f32 %v2708, %v2721
      %2723 = vdwg.mxu0
      %2724 = vmatpush.bf16.xpose.msra.mxu0 %v1974
      %2725 = vmatpush.bf16.xpose.msra.mxu0 %v1954
      %2726 = vmatpush.bf16.xpose.msra.mxu0 %v1934
      %2727 = vmatpush.bf16.xpose.msra.mxu0 %v1914
      %2728 = vmatpush.bf16.xpose.msra.mxu0 %v1894
      %2729 = vmatpush.bf16.xpose.msra.mxu0 %v1874
      %2730 = vmatpush.bf16.xpose.msra.mxu0 %v1854
      %2731 = vmatpush.bf16.xpose.msra.mxu0 %v1834
      %2732 = vmatmul.bf16.gmra.mxu0 %v674
      %v2733 = vpop.f32.mrf.mxu0
      %v2734 = vadd.f32 %v2720, %v2733
      %v2735 = vpop.f32.mrf.mxu0
      %v2736 = vadd.f32 %v2722, %v2735
      %2737 = vdwg.mxu0
      %2738 = vmatpush.bf16.xpose.msra.mxu0 %v1975
      %2739 = vmatpush.bf16.xpose.msra.mxu0 %v1955
      %2740 = vmatpush.bf16.xpose.msra.mxu0 %v1935
      %2741 = vmatpush.bf16.xpose.msra.mxu0 %v1915
      %2742 = vmatpush.bf16.xpose.msra.mxu0 %v1895
      %2743 = vmatpush.bf16.xpose.msra.mxu0 %v1875
      %2744 = vmatpush.bf16.xpose.msra.mxu0 %v1855
      %2745 = vmatpush.bf16.xpose.msra.mxu0 %v1835
      %2746 = vmatmul.bf16.gmra.mxu0 %v675
      %v2747 = vpop.f32.mrf.mxu0
      %v2748 = vadd.f32 %v2734, %v2747
      %v2749 = vpop.f32.mrf.mxu0
      %v2750 = vadd.f32 %v2736, %v2749
      %2751 = vdwg.mxu0
      %2752 = vmatpush.bf16.xpose.msra.mxu0 %v1976
      %2753 = vmatpush.bf16.xpose.msra.mxu0 %v1956
      %2754 = vmatpush.bf16.xpose.msra.mxu0 %v1936
      %2755 = vmatpush.bf16.xpose.msra.mxu0 %v1916
      %2756 = vmatpush.bf16.xpose.msra.mxu0 %v1896
      %2757 = vmatpush.bf16.xpose.msra.mxu0 %v1876
      %2758 = vmatpush.bf16.xpose.msra.mxu0 %v1856
      %2759 = vmatpush.bf16.xpose.msra.mxu0 %v1836
      %2760 = vmatmul.bf16.gmra.mxu0 %v676
      %v2761 = vpop.f32.mrf.mxu0
      %v2762 = vadd.f32 %v2748, %v2761
      %v2763 = vpop.f32.mrf.mxu0
      %v2764 = vadd.f32 %v2750, %v2763
      %2765 = vdwg.mxu0
      %2766 = vmatpush.bf16.xpose.msra.mxu0 %v1977
      %2767 = vmatpush.bf16.xpose.msra.mxu0 %v1957
      %2768 = vmatpush.bf16.xpose.msra.mxu0 %v1937
      %2769 = vmatpush.bf16.xpose.msra.mxu0 %v1917
      %2770 = vmatpush.bf16.xpose.msra.mxu0 %v1897
      %2771 = vmatpush.bf16.xpose.msra.mxu0 %v1877
      %2772 = vmatpush.bf16.xpose.msra.mxu0 %v1857
      %2773 = vmatpush.bf16.xpose.msra.mxu0 %v1837
      %2774 = vmatmul.bf16.gmra.mxu0 %v677
      %v2775 = vpop.f32.mrf.mxu0
      %v2776 = vadd.f32 %v2762, %v2775
      %v2777 = vpop.f32.mrf.mxu0
      %v2778 = vadd.f32 %v2764, %v2777
      %2779 = vdwg.mxu0
      %2780 = vmatpush.bf16.xpose.msra.mxu0 %v1978
      %2781 = vmatpush.bf16.xpose.msra.mxu0 %v1958
      %2782 = vmatpush.bf16.xpose.msra.mxu0 %v1938
      %2783 = vmatpush.bf16.xpose.msra.mxu0 %v1918
      %2784 = vmatpush.bf16.xpose.msra.mxu0 %v1898
      %2785 = vmatpush.bf16.xpose.msra.mxu0 %v1878
      %2786 = vmatpush.bf16.xpose.msra.mxu0 %v1858
      %2787 = vmatpush.bf16.xpose.msra.mxu0 %v1838
      %2788 = vmatmul.bf16.gmra.mxu0 %v678
      %v2789 = vpop.f32.mrf.mxu0
      %v2790 = vadd.f32 %v2776, %v2789
      %v2791 = vpop.f32.mrf.mxu0
      %v2792 = vadd.f32 %v2778, %v2791
      %2793 = vdwg.mxu0
      %2794 = vmatpush.bf16.xpose.msra.mxu0 %v1979
      %2795 = vmatpush.bf16.xpose.msra.mxu0 %v1959
      %2796 = vmatpush.bf16.xpose.msra.mxu0 %v1939
      %2797 = vmatpush.bf16.xpose.msra.mxu0 %v1919
      %2798 = vmatpush.bf16.xpose.msra.mxu0 %v1899
      %2799 = vmatpush.bf16.xpose.msra.mxu0 %v1879
      %2800 = vmatpush.bf16.xpose.msra.mxu0 %v1859
      %2801 = vmatpush.bf16.xpose.msra.mxu0 %v1839
      %2802 = vmatmul.bf16.gmra.mxu0 %v679
      %v2803 = vpop.f32.mrf.mxu0
      %v2804 = vadd.f32 %v2790, %v2803
      %v2805 = vpop.f32.mrf.mxu0
      %v2806 = vadd.f32 %v2792, %v2805
      %2807 = vdwg.mxu0
      %2808 = vmatpush.bf16.xpose.msra.mxu0 %v1980
      %2809 = vmatpush.bf16.xpose.msra.mxu0 %v1960
      %2810 = vmatpush.bf16.xpose.msra.mxu0 %v1940
      %2811 = vmatpush.bf16.xpose.msra.mxu0 %v1920
      %2812 = vmatpush.bf16.xpose.msra.mxu0 %v1900
      %2813 = vmatpush.bf16.xpose.msra.mxu0 %v1880
      %2814 = vmatpush.bf16.xpose.msra.mxu0 %v1860
      %2815 = vmatpush.bf16.xpose.msra.mxu0 %v1840
      %2816 = vmatmul.bf16.gmra.mxu0 %v680
      %v2817 = vpop.f32.mrf.mxu0
      %v2818 = vadd.f32 %v2804, %v2817
      %v2819 = vpop.f32.mrf.mxu0
      %v2820 = vadd.f32 %v2806, %v2819
      %2821 = vdwg.mxu0
      %2822 = vmatpush.bf16.xpose.msra.mxu0 %v1981
      %2823 = vmatpush.bf16.xpose.msra.mxu0 %v1961
      %2824 = vmatpush.bf16.xpose.msra.mxu0 %v1941
      %2825 = vmatpush.bf16.xpose.msra.mxu0 %v1921
      %2826 = vmatpush.bf16.xpose.msra.mxu0 %v1901
      %2827 = vmatpush.bf16.xpose.msra.mxu0 %v1881
      %2828 = vmatpush.bf16.xpose.msra.mxu0 %v1861
      %2829 = vmatpush.bf16.xpose.msra.mxu0 %v1841
      %2830 = vmatmul.bf16.gmra.mxu0 %v681
      %v2831 = vpop.f32.mrf.mxu0
      %v2832 = vadd.f32 %v2818, %v2831
      %v2833 = vpop.f32.mrf.mxu0
      %v2834 = vadd.f32 %v2820, %v2833
      %2835 = vdwg.mxu0
      %2836 = vmatpush.bf16.xpose.msra.mxu0 %v1982
      %2837 = vmatpush.bf16.xpose.msra.mxu0 %v1962
      %2838 = vmatpush.bf16.xpose.msra.mxu0 %v1942
      %2839 = vmatpush.bf16.xpose.msra.mxu0 %v1922
      %2840 = vmatpush.bf16.xpose.msra.mxu0 %v1902
      %2841 = vmatpush.bf16.xpose.msra.mxu0 %v1882
      %2842 = vmatpush.bf16.xpose.msra.mxu0 %v1862
      %2843 = vmatpush.bf16.xpose.msra.mxu0 %v1842
      %2844 = vmatmul.bf16.gmra.mxu0 %v682
      %v2845 = vpop.f32.mrf.mxu0
      %v2846 = vadd.f32 %v2832, %v2845
      %v2847 = vpop.f32.mrf.mxu0
      %v2848 = vadd.f32 %v2834, %v2847
      %2849 = vdwg.mxu0
      %2850 = vmatpush.bf16.xpose.msra.mxu0 %v1983
      %2851 = vmatpush.bf16.xpose.msra.mxu0 %v1963
      %2852 = vmatpush.bf16.xpose.msra.mxu0 %v1943
      %2853 = vmatpush.bf16.xpose.msra.mxu0 %v1923
      %2854 = vmatpush.bf16.xpose.msra.mxu0 %v1903
      %2855 = vmatpush.bf16.xpose.msra.mxu0 %v1883
      %2856 = vmatpush.bf16.xpose.msra.mxu0 %v1863
      %2857 = vmatpush.bf16.xpose.msra.mxu0 %v1843
      %2858 = vmatmul.bf16.gmra.mxu0 %v683
      %v2859 = vpop.f32.mrf.mxu0
      %v2860 = vadd.f32 %v2846, %v2859
      %v2861 = vpop.f32.mrf.mxu0
      %v2862 = vadd.f32 %v2848, %v2861
      %2863 = vdwg.mxu0
      %v2864 = vadd.f32 %v2580, %v2860
      %2865 = vadd.xlane.f32.xlu0 %v2864
      %v2866 = vpop.xlane.xlu0 %2865
      %v2867 = vadd.f32 %v2582, %v2862
      %2868 = vadd.xlane.f32.xlu0 %v2867
      %v2869 = vpop.xlane.xlu0 %2868
      %v2870 = vld [vmem:[%s5] sm:$0xff]
      %v2871 = vld [vmem:[%s5 + $0x8] sm:$0xff]
      %vm2872 = vcmask 130048
      %v2874 = vsel %vm2872, %v2870, 0
      %v2877 = vsel %vm2872, %v2871, 0
      %2879 = vmatpush.msra.mxu0 0.0
      %2880 = vmatpush.msra.mxu0 0.0
      %2881 = vmatpush.msra.mxu0 0.0
      %2882 = vmatpush.msra.mxu0 0.0
      %2883 = vmatpush.msra.mxu0 0.0
      %2884 = vmatpush.msra.mxu0 0.0
      %2885 = vmatpush.msra.mxu0 0.0
      %2886 = vmatpush.msra.mxu0 0.0
      %2887 = vmatpush.msra.mxu0 0.0
      %2888 = vmatpush.msra.mxu0 0.0
      %2889 = vmatpush.msra.mxu0 0.0
      %2890 = vmatpush.msra.mxu0 0.0
      %2891 = vmatpush.msra.mxu0 0.0
      %2892 = vmatpush.msra.mxu0 0.0
      %2893 = vmatpush.msra.mxu0 %v2869
      %2894 = vmatpush.msra.mxu0 %v2866
      %2895 = vmatmul.f32.gmra.mxu0 %v2874
      %v2896 = vpop.f32.mrf.mxu0
      %v2897 = vadd.f32 0.0, %v2896
      %2898 = vmatmul.f32.gmra.mxu0 %v2877
      %v2899 = vpop.f32.mrf.mxu0
      %v2900 = vadd.f32 0.0, %v2899
      %2901 = vdwg.mxu0
      %v2902 = vmul.f32 %v2897, 0.0009765625
      %v2903 = vmul.f32 %v2900, 0.0009765625
      %2905 = vset.pattern.permute.xlu0 0
      %2906 = vperm.xlu0 %2905, %v2902
      %v2907 = vpop.permute.xlu0 %2906
      %2910 = vset.pattern.permute.xlu0 0
      %2911 = vperm.xlu0 %2910, %v2903
      %v2912 = vpop.permute.xlu0 %2911
      %v2914 = vsub.f32 %v2580, %v2907
      %v2915 = vsub.f32 %v2860, %v2907
      %v2916 = vsub.f32 %v2582, %v2912
      %v2917 = vsub.f32 %v2862, %v2912
      %v2918 = vmul.f32 %v2914, %v2914
      %v2919 = vmul.f32 %v2915, %v2915
      %v2920 = vmul.f32 %v2916, %v2916
      %v2921 = vmul.f32 %v2917, %v2917
      %v2922 = vadd.f32 %v2918, %v2919
      %2923 = vadd.xlane.f32.xlu0 %v2922
      %v2924 = vpop.xlane.xlu0 %2923
      %v2925 = vadd.f32 %v2920, %v2921
      %2926 = vadd.xlane.f32.xlu0 %v2925
      %v2927 = vpop.xlane.xlu0 %2926
      %2928 = vmatpush.msra.mxu0 0.0
      %2929 = vmatpush.msra.mxu0 0.0
      %2930 = vmatpush.msra.mxu0 0.0
      %2931 = vmatpush.msra.mxu0 0.0
      %2932 = vmatpush.msra.mxu0 0.0
      %2933 = vmatpush.msra.mxu0 0.0
      %2934 = vmatpush.msra.mxu0 0.0
      %2935 = vmatpush.msra.mxu0 0.0
      %2936 = vmatpush.msra.mxu0 0.0
      %2937 = vmatpush.msra.mxu0 0.0
      %2938 = vmatpush.msra.mxu0 0.0
      %2939 = vmatpush.msra.mxu0 0.0
      %2940 = vmatpush.msra.mxu0 0.0
      %2941 = vmatpush.msra.mxu0 0.0
      %2942 = vmatpush.msra.mxu0 %v2927
      %2943 = vmatpush.msra.mxu0 %v2924
      %2944 = vmatmul.f32.gmra.mxu0 %v2874
      %v2945 = vpop.f32.mrf.mxu0
      %v2946 = vadd.f32 0.0, %v2945
      %2947 = vmatmul.f32.gmra.mxu0 %v2877
      %v2948 = vpop.f32.mrf.mxu0
      %v2949 = vadd.f32 0.0, %v2948
      %2950 = vdwg.mxu0
      %v2951 = vmul.f32 %v2946, 0.0009765625
      %v2952 = vmul.f32 %v2949, 0.0009765625
      %v2953 = vadd.f32 %v2951, 1e-05
      %v2954 = vadd.f32 %v2952, 1e-05
      %v2955 = vrsqrt.pop %v2953
      %v2956 = vmul.f32 %v2955, %v2953
      %v2957 = vmul.f32 %v2956, %v2955
      %v2958 = vmul.f32 0.5, %v2957
      %v2959 = vsub.f32 1.5, %v2958
      %v2960 = vmul.f32 %v2955, %v2959
      %vm2961 = vweird.f32 %v2953
      %vm2962 = vweird.f32 %v2955
      %vm2963 = vmor %vm2961, %vm2962
      %v2964 = vsel %vm2963, %v2955, %v2960
      %v2965 = vrsqrt.pop %v2954
      %v2966 = vmul.f32 %v2965, %v2954
      %v2967 = vmul.f32 %v2966, %v2965
      %v2968 = vmul.f32 0.5, %v2967
      %v2969 = vsub.f32 1.5, %v2968
      %v2970 = vmul.f32 %v2965, %v2969
      %vm2971 = vweird.f32 %v2954
      %vm2972 = vweird.f32 %v2965
      %vm2973 = vmor %vm2971, %vm2972
      %v2974 = vsel %vm2973, %v2965, %v2970
      %v2975 = vld [vmem:[%s3] sm:$0xff]
      %v2976 = vld [vmem:[%s3 + $0x8] sm:$0xff]
      %v2977 = vmul.f32 %v2964, %v2975
      %v2978 = vmul.f32 %v2974, %v2976
      %2980 = vset.pattern.permute.xlu0 0
      %2981 = vperm.xlu0 %2980, %v2977
      %v2982 = vpop.permute.xlu0 %2981
      %2985 = vset.pattern.permute.xlu0 0
      %2986 = vperm.xlu0 %2985, %v2978
      %v2987 = vpop.permute.xlu0 %2986
      %v2989 = vmul.f32 %v2914, %v2982
      %v2990 = vmul.f32 %v2915, %v2982
      %v2991 = vmul.f32 %v2916, %v2987
      %v2992 = vmul.f32 %v2917, %v2987
      %v2993 = vld [vmem:[%s4] sm:$0xff]
      %v2994 = vld [vmem:[%s4 + $0x8] sm:$0xff]
      %2996 = vset.pattern.permute.xlu0 0
      %2997 = vperm.xlu0 %2996, %v2993
      %v2998 = vpop.permute.xlu0 %2997
      %3001 = vset.pattern.permute.xlu0 0
      %3002 = vperm.xlu0 %3001, %v2994
      %v3003 = vpop.permute.xlu0 %3002
      %v3005 = vadd.f32 %v2989, %v2998
      %v3006 = vadd.f32 %v2990, %v2998
      %v3007 = vadd.f32 %v2991, %v3003
      %v3008 = vadd.f32 %v2992, %v3003
      %v3009 = vmax.f32 %v3005, 0.0
      %v3010 = vmax.f32 %v3006, 0.0
      %v3011 = vmax.f32 %v3007, 0.0
      %v3012 = vmax.f32 %v3008, 0.0
      %v3013 = vpack.c.bf16 %v3010, %v3009
      %v3014 = vpack.c.bf16 %v3012, %v3011
      %3015 = vst [vmem:[%s251] sm:$0xff] %v3013
      %3016 = vst [vmem:[%s251 + $0x8] sm:$0xff] %v3014
      %p3017 = scmp.lt.s32.totalorder %s17, 1
      %s3018 = scalar_select %p3017, %s17, 1
      %s3019 = smul.addr %s3018, 4
      %s3020 = smul.addr %s3019, 4
      %s3021 = scalar_lea.vmem %s6, %s3020
      // Predicated region
      $region45: #{cvlearner_forward.6} parent=43 // pred_check
        %p3022 = pneg %p166
      $region46: #{cvlearner_forward.6} parent=43 // pred_check_branch
        %3024 = sbr.rel (%p3022) target = $region48
      $region47: #{cvlearner_forward.6} parent=43 // pred_region
        _
      $region48: #{cvlearner_forward.6} parent=43 // pred_fallthru
        _
    $region44: #{cvlearner_forward.6} parent=5 // pred_fallthru
      _
    %p3025 = scmp.le.s32.totalorder 2, %s12
    // Predicated region
    $region49: #{cvlearner_forward.6} parent=5 // pred_check
      %p3026 = pneg %p3025
    $region50: #{cvlearner_forward.6} parent=5 // pred_check_branch
      %3028 = sbr.rel (%p3026) target = $region52
    $region51: #{cvlearner_forward.6} parent=5 // pred_region
      %s3029 = ssub.s32 %s12, 2
      // Predicated region
      $region53: #{cvlearner_forward.6} parent=51 // pred_check
        %p3030 = pneg %p172
      $region54: #{cvlearner_forward.6} parent=51 // pred_check_branch
        %3032 = sbr.rel (%p3030) target = $region56
      $region55: #{cvlearner_forward.6} parent=51 // pred_region
        %p3033 = scmp.lt.s32.totalorder %s18, 1
        %s3034 = scalar_select %p3033, %s18, 1
        %s3035 = smul.addr %s3034, 4
        %s3036 = smul.addr %s3035, 4
        %s3037 = scalar_lea.vmem %s6, %s3036
      $region56: #{cvlearner_forward.6} parent=51 // pred_fallthru
        _
    $region52: #{cvlearner_forward.6} parent=5 // pred_fallthru
      _
  $region6: #{cvlearner_forward.6} parent=0 // loop_footer
    %s16 = sadd.s32 1, %s12
  $region7: #{cvlearner_forward.6} parent=0 // loop_footer_branch
    %11 = sbr.rel target = $region3
  $region8: #{cvlearner_forward.6} parent=0 // loop_exit
    _

// kernel: cvlearner_forward.7
$region0: #{cvlearner_forward.7}
  #allocation0 [shape = 'u32[]', space=smem, size = 0x4, offset = 0x4, fixed_abs, tag = 'smem constant byte address 0x4 - core index']
  #allocation1 [shape = 'u32[72,128]{1,0:T(1,128)}', space=vmem, size = 0x9000, scoped, tag = 'internal scratch']
  %s0 = inlined_call_operand.vmem [shape: bf16[2,256,1408], index: 0, kind: input, shape index: {}]
  %s1 = inlined_call_operand.vmem [shape: bf16[16,1408], index: 1, kind: input, shape index: {}]
  %s2 = inlined_call_operand.vmem [shape: f32[16,1], index: 2, kind: input, shape index: {}]
  %s3 = inlined_call_operand.vmem [shape: f32[16,1], index: 3, kind: input, shape index: {}]
  %s4 = inlined_call_operand.vmem [shape: f32[16,1], index: 4, kind: input, shape index: {}]
  %s5 = inlined_call_operand.vmem [shape: f32[16,16], index: 5, kind: input, shape index: {}]
  %s6 = inlined_call_operand.vmem [shape: bf16[2,16,256], index: 6, kind: output, shape index: {}]
  %s7 = sld [smem:[#allocation0]]
  $region57: #{cvlearner_forward.7} parent=0
    _
  %s9 = ssub.s32 1, %s7
  %s10 = scalar_select 0, %s9, %s7
  loop: start=0, step=1, limit=4
  $region2: #{cvlearner_forward.7} parent=0 // loop_pre_header
    _
  $region3: #{cvlearner_forward.7} parent=0 // loop_header
    %s12 = sphi 0, %s16
    %p13 = scmp.ge.s32.totalorder %s12, 4
    %s22 = sphi 0, %s24
    %s25 = sphi 0, %s22
    %s26 = sphi 0, %s25
    %s42 = sphi 0, %s26
    %s46 = sphi 0, %s46
    %s48 = sphi 0, %s46
    %s49 = sphi 0, %s48
    %s63 = sphi 0, %s49
    %s67 = sphi 0, %s67
    %s69 = sphi 0, %s67
    %s70 = sphi 0, %s69
    %s84 = sphi 0, %s70
    %s88 = sphi 0, %s88
    %s90 = sphi 0, %s88
    %s91 = sphi 0, %s90
    %s105 = sphi 0, %s91
    %s109 = sphi 0, %s109
    %s111 = sphi 0, %s109
    %s112 = sphi 0, %s111
    %s126 = sphi 0, %s112
    %s130 = sphi 0, %s130
    %s132 = sphi 0, %s130
    %s133 = sphi 0, %s132
    %s147 = sphi 0, %s133
    %s153 = sphi 0, %s155
    %s156 = sphi 0, %s153
    %s157 = sphi 0, %s156
    %s173 = sphi 0, %s157
  $region4: #{cvlearner_forward.7} parent=0 // loop_header_branch
    %15 = sbr.rel (%p13) target = $region8
  $region5: #{cvlearner_forward.7} parent=0 // loop_body
    %s17 = ssub.s32 %s12, 1
    %s18 = ssub.s32 %s12, 2
    %s19 = sadd.s32 %s12, 1
    %s20 = ssub.s32 %s12, %s19
    %p21 = scmp.eq.s32.totalorder %s20, 0
    %s23 = sadd.s32 %s22, 1
    %s24 = scalar_select %p21, %s22, %s23
    %p27 = pneg %p21
    %p28 = scmp.eq.s32.totalorder %s12, 1
    %p29 = por %p27, %p28
    %p30 = scmp.ne.s32.totalorder %s22, %s25
    %p31 = scmp.eq.s32.totalorder %s12, 0
    %p32 = por %p30, %p31
    %p33 = scmp.ne.s32.totalorder %s22, %s25
    %p34 = scmp.eq.s32.totalorder %s17, 1
    %p35 = por %p33, %p34
    %p36 = scmp.ne.s32.totalorder %s25, %s26
    %p37 = scmp.eq.s32.totalorder %s17, 0
    %p38 = por %p36, %p37
    %p39 = scmp.ne.s32.totalorder %s25, %s26
    %p40 = scmp.eq.s32.totalorder %s18, 1
    %p41 = por %p39, %p40
    %p43 = scmp.ne.s32.totalorder %s26, %s42
    %p44 = scmp.eq.s32.totalorder %s18, 0
    %p45 = por %p43, %p44
    %s47 = sadd.s32 %s46, 1
    %p50 = scmp.eq.s32.totalorder %s12, 1
    %p51 = scmp.ne.s32.totalorder %s46, %s48
    %p52 = scmp.eq.s32.totalorder %s12, 0
    %p53 = por %p51, %p52
    %p54 = scmp.ne.s32.totalorder %s46, %s48
    %p55 = scmp.eq.s32.totalorder %s17, 1
    %p56 = por %p54, %p55
    %p57 = scmp.ne.s32.totalorder %s48, %s49
    %p58 = scmp.eq.s32.totalorder %s17, 0
    %p59 = por %p57, %p58
    %p60 = scmp.ne.s32.totalorder %s48, %s49
    %p61 = scmp.eq.s32.totalorder %s18, 1
    %p62 = por %p60, %p61
    %p64 = scmp.ne.s32.totalorder %s49, %s63
    %p65 = scmp.eq.s32.totalorder %s18, 0
    %p66 = por %p64, %p65
    %s68 = sadd.s32 %s67, 1
    %p71 = scmp.eq.s32.totalorder %s12, 1
    %p72 = scmp.ne.s32.totalorder %s67, %s69
    %p73 = scmp.eq.s32.totalorder %s12, 0
    %p74 = por %p72, %p73
    %p75 = scmp.ne.s32.totalorder %s67, %s69
    %p76 = scmp.eq.s32.totalorder %s17, 1
    %p77 = por %p75, %p76
    %p78 = scmp.ne.s32.totalorder %s69, %s70
    %p79 = scmp.eq.s32.totalorder %s17, 0
    %p80 = por %p78, %p79
    %p81 = scmp.ne.s32.totalorder %s69, %s70
    %p82 = scmp.eq.s32.totalorder %s18, 1
    %p83 = por %p81, %p82
    %p85 = scmp.ne.s32.totalorder %s70, %s84
    %p86 = scmp.eq.s32.totalorder %s18, 0
    %p87 = por %p85, %p86
    %s89 = sadd.s32 %s88, 1
    %p92 = scmp.eq.s32.totalorder %s12, 1
    %p93 = scmp.ne.s32.totalorder %s88, %s90
    %p94 = scmp.eq.s32.totalorder %s12, 0
    %p95 = por %p93, %p94
    %p96 = scmp.ne.s32.totalorder %s88, %s90
    %p97 = scmp.eq.s32.totalorder %s17, 1
    %p98 = por %p96, %p97
    %p99 = scmp.ne.s32.totalorder %s90, %s91
    %p100 = scmp.eq.s32.totalorder %s17, 0
    %p101 = por %p99, %p100
    %p102 = scmp.ne.s32.totalorder %s90, %s91
    %p103 = scmp.eq.s32.totalorder %s18, 1
    %p104 = por %p102, %p103
    %p106 = scmp.ne.s32.totalorder %s91, %s105
    %p107 = scmp.eq.s32.totalorder %s18, 0
    %p108 = por %p106, %p107
    %s110 = sadd.s32 %s109, 1
    %p113 = scmp.eq.s32.totalorder %s12, 1
    %p114 = scmp.ne.s32.totalorder %s109, %s111
    %p115 = scmp.eq.s32.totalorder %s12, 0
    %p116 = por %p114, %p115
    %p117 = scmp.ne.s32.totalorder %s109, %s111
    %p118 = scmp.eq.s32.totalorder %s17, 1
    %p119 = por %p117, %p118
    %p120 = scmp.ne.s32.totalorder %s111, %s112
    %p121 = scmp.eq.s32.totalorder %s17, 0
    %p122 = por %p120, %p121
    %p123 = scmp.ne.s32.totalorder %s111, %s112
    %p124 = scmp.eq.s32.totalorder %s18, 1
    %p125 = por %p123, %p124
    %p127 = scmp.ne.s32.totalorder %s112, %s126
    %p128 = scmp.eq.s32.totalorder %s18, 0
    %p129 = por %p127, %p128
    %s131 = sadd.s32 %s130, 1
    %p134 = scmp.eq.s32.totalorder %s12, 1
    %p135 = scmp.ne.s32.totalorder %s130, %s132
    %p136 = scmp.eq.s32.totalorder %s12, 0
    %p137 = por %p135, %p136
    %p138 = scmp.ne.s32.totalorder %s130, %s132
    %p139 = scmp.eq.s32.totalorder %s17, 1
    %p140 = por %p138, %p139
    %p141 = scmp.ne.s32.totalorder %s132, %s133
    %p142 = scmp.eq.s32.totalorder %s17, 0
    %p143 = por %p141, %p142
    %p144 = scmp.ne.s32.totalorder %s132, %s133
    %p145 = scmp.eq.s32.totalorder %s18, 1
    %p146 = por %p144, %p145
    %p148 = scmp.ne.s32.totalorder %s133, %s147
    %p149 = scmp.eq.s32.totalorder %s18, 0
    %p150 = por %p148, %p149
    %s151 = ssub.s32 %s12, %s19
    %p152 = scmp.eq.s32.totalorder %s151, 0
    %s154 = sadd.s32 %s153, 1
    %s155 = scalar_select %p152, %s153, %s154
    %p158 = pneg %p152
    %p159 = scmp.eq.s32.totalorder %s12, 1
    %p160 = por %p158, %p159
    %p161 = scmp.ne.s32.totalorder %s153, %s156
    %p162 = scmp.eq.s32.totalorder %s12, 0
    %p163 = por %p161, %p162
    %p164 = scmp.ne.s32.totalorder %s153, %s156
    %p165 = scmp.eq.s32.totalorder %s17, 1
    %p166 = por %p164, %p165
    %p167 = scmp.ne.s32.totalorder %s156, %s157
    %p168 = scmp.eq.s32.totalorder %s17, 0
    %p169 = por %p167, %p168
    %p170 = scmp.ne.s32.totalorder %s156, %s157
    %p171 = scmp.eq.s32.totalorder %s18, 1
    %p172 = por %p170, %p171
    %p174 = scmp.ne.s32.totalorder %s157, %s173
    %p175 = scmp.eq.s32.totalorder %s18, 0
    %p176 = por %p174, %p175
    %p177 = scmp.le.s32.totalorder 1, %s12
    %p178 = scmp.lt.s32.totalorder %s12, 3
    %p179 = pnand %p177, %p178
    %p180 = pneg %p179
    // Predicated region
    $region9: #{cvlearner_forward.7} parent=5 // pred_check
      _
    $region10: #{cvlearner_forward.7} parent=5 // pred_check_branch
      %182 = sbr.rel (%p179) target = $region12
    $region11: #{cvlearner_forward.7} parent=5 // pred_region
      %s183 = ssub.s32 %s12, 1
      // Predicated region
      $region13: #{cvlearner_forward.7} parent=11 // pred_check
        %p184 = pneg %p59
      $region14: #{cvlearner_forward.7} parent=11 // pred_check_branch
        %186 = sbr.rel (%p184) target = $region16
      $region15: #{cvlearner_forward.7} parent=11 // pred_region
        _
      $region16: #{cvlearner_forward.7} parent=11 // pred_fallthru
        _
      // Predicated region
      $region17: #{cvlearner_forward.7} parent=11 // pred_check
        %p187 = pneg %p80
      $region18: #{cvlearner_forward.7} parent=11 // pred_check_branch
        %189 = sbr.rel (%p187) target = $region20
      $region19: #{cvlearner_forward.7} parent=11 // pred_region
        _
      $region20: #{cvlearner_forward.7} parent=11 // pred_fallthru
        _
      // Predicated region
      $region21: #{cvlearner_forward.7} parent=11 // pred_check
        %p190 = pneg %p101
      $region22: #{cvlearner_forward.7} parent=11 // pred_check_branch
        %192 = sbr.rel (%p190) target = $region24
      $region23: #{cvlearner_forward.7} parent=11 // pred_region
        _
      $region24: #{cvlearner_forward.7} parent=11 // pred_fallthru
        _
      // Predicated region
      $region25: #{cvlearner_forward.7} parent=11 // pred_check
        %p193 = pneg %p122
      $region26: #{cvlearner_forward.7} parent=11 // pred_check_branch
        %195 = sbr.rel (%p193) target = $region28
      $region27: #{cvlearner_forward.7} parent=11 // pred_region
        _
      $region28: #{cvlearner_forward.7} parent=11 // pred_fallthru
        _
      // Predicated region
      $region29: #{cvlearner_forward.7} parent=11 // pred_check
        %p196 = pneg %p143
      $region30: #{cvlearner_forward.7} parent=11 // pred_check_branch
        %198 = sbr.rel (%p196) target = $region32
      $region31: #{cvlearner_forward.7} parent=11 // pred_region
        _
      $region32: #{cvlearner_forward.7} parent=11 // pred_fallthru
        _
    $region12: #{cvlearner_forward.7} parent=5 // pred_fallthru
      _
    %p199 = scmp.lt.s32.totalorder %s12, 2
    // Predicated region
    $region33: #{cvlearner_forward.7} parent=5 // pred_check
      %p200 = pneg %p199
    $region34: #{cvlearner_forward.7} parent=5 // pred_check_branch
      %202 = sbr.rel (%p200) target = $region36
    $region35: #{cvlearner_forward.7} parent=5 // pred_region
      // Predicated region
      $region37: #{cvlearner_forward.7} parent=35 // pred_check
        %p203 = pneg %p32
      $region38: #{cvlearner_forward.7} parent=35 // pred_check_branch
        %205 = sbr.rel (%p203) target = $region40
      $region39: #{cvlearner_forward.7} parent=35 // pred_region
        %p206 = scmp.lt.s32.totalorder %s12, 1
        %s207 = scalar_select %p206, %s12, 1
        %s208 = smul.addr %s207, 352
        %s209 = smul.addr %s208, 4
        %s210 = scalar_lea.vmem %s0, %s209
      $region40: #{cvlearner_forward.7} parent=35 // pred_fallthru
        _
    $region36: #{cvlearner_forward.7} parent=5 // pred_fallthru
      _
    %p211 = scmp.le.s32.totalorder 1, %s12
    %p212 = scmp.lt.s32.totalorder %s12, 3
    %p213 = pnand %p211, %p212
    %p214 = pneg %p213
    // Predicated region
    $region41: #{cvlearner_forward.7} parent=5 // pred_check
      _
    $region42: #{cvlearner_forward.7} parent=5 // pred_check_branch
      %216 = sbr.rel (%p213) target = $region44
    $region43: #{cvlearner_forward.7} parent=5 // pred_region
      %s217 = ssub.s32 %s12, 1
      %p218 = scmp.lt.s32.totalorder %s17, 1
      %s219 = scalar_select %p218, %s17, 1
      %s220 = smul.addr %s219, 352
      %s221 = smul.addr %s220, 4
      %s222 = scalar_lea.vmem %s0, %s221
      %p223 = pneg %p38
      %p224 = pneg %p35
      %p225 = pneg %p59
      %p226 = pneg %p56
      %p227 = pneg %p80
      %p228 = pneg %p77
      %p229 = pneg %p101
      %p230 = pneg %p98
      %p231 = pneg %p122
      %p232 = pneg %p119
      %p233 = pneg %p143
      %p234 = pneg %p140
      %p235 = pneg %p169
      %p236 = pneg %p166
      %p237 = scmp.lt.s32.totalorder %s17, 1
      %s238 = scalar_select %p237, %s17, 1
      %s239 = smul.addr %s238, 4
      %s240 = smul.addr %s239, 4
      %s241 = scalar_lea.vmem %s6, %s240
      %p242 = scmp.lt.s32.totalorder %s17, 1
      %s243 = scalar_select %p242, %s17, 1
      %s244 = smul.addr %s243, 352
      %s245 = smul.addr %s244, 4
      %s246 = scalar_lea.vmem %s0, %s245
      %p247 = scmp.lt.s32.totalorder %s17, 1
      %s248 = scalar_select %p247, %s17, 1
      %s249 = smul.addr %s248, 4
      %s250 = smul.addr %s249, 4
      %s251 = scalar_lea.vmem %s6, %s250
      %v252 = vld [vmem:[%s1] sm:$0xff]
      %v253 = vld [vmem:[%s1 + $0x8] sm:$0xff]
      %v254 = vld [vmem:[%s1 + $0x10] sm:$0xff]
      %v255 = vld [vmem:[%s1 + $0x18] sm:$0xff]
      %v256 = vld [vmem:[%s1 + $0x20] sm:$0xff]
      %v257 = vld [vmem:[%s1 + $0x28] sm:$0xf]
      %v258 = vld [vmem:[%s1 + $0x2c] sm:$0xff]
      %v259 = vld [vmem:[%s1 + $0x34] sm:$0xff]
      %v260 = vld [vmem:[%s1 + $0x3c] sm:$0xff]
      %v261 = vld [vmem:[%s1 + $0x44] sm:$0xff]
      %v262 = vld [vmem:[%s1 + $0x4c] sm:$0xff]
      %v263 = vld [vmem:[%s1 + $0x54] sm:$0xf]
      %v264 = vld [vmem:[%s246] sm:$0xff]
      %v265 = vld [vmem:[%s246 + $0x8] sm:$0xff]
      %v266 = vld [vmem:[%s246 + $0x10] sm:$0xff]
      %v267 = vld [vmem:[%s246 + $0x18] sm:$0xff]
      %v268 = vld [vmem:[%s246 + $0x20] sm:$0xff]
      %v269 = vld [vmem:[%s246 + $0x28] sm:$0xf]
      %v270 = vld [vmem:[%s246 + $0x2c] sm:$0xff]
      %v271 = vld [vmem:[%s246 + $0x34] sm:$0xff]
      %v272 = vld [vmem:[%s246 + $0x3c] sm:$0xff]
      %v273 = vld [vmem:[%s246 + $0x44] sm:$0xff]
      %v274 = vld [vmem:[%s246 + $0x4c] sm:$0xff]
      %v275 = vld [vmem:[%s246 + $0x54] sm:$0xf]
      %v276 = vld [vmem:[%s246 + $0x58] sm:$0xff]
      %v277 = vld [vmem:[%s246 + $0x60] sm:$0xff]
      %v278 = vld [vmem:[%s246 + $0x68] sm:$0xff]
      %v279 = vld [vmem:[%s246 + $0x70] sm:$0xff]
      %v280 = vld [vmem:[%s246 + $0x78] sm:$0xff]
      %v281 = vld [vmem:[%s246 + $0x80] sm:$0xf]
      %v282 = vld [vmem:[%s246 + $0x84] sm:$0xff]
      %v283 = vld [vmem:[%s246 + $0x8c] sm:$0xff]
      %v284 = vld [vmem:[%s246 + $0x94] sm:$0xff]
      %v285 = vld [vmem:[%s246 + $0x9c] sm:$0xff]
      %v286 = vld [vmem:[%s246 + $0xa4] sm:$0xff]
      %v287 = vld [vmem:[%s246 + $0xac] sm:$0xf]
      %v288 = vld [vmem:[%s246 + $0xb0] sm:$0xff]
      %v289 = vld [vmem:[%s246 + $0xb8] sm:$0xff]
      %v290 = vld [vmem:[%s246 + $0xc0] sm:$0xff]
      %v291 = vld [vmem:[%s246 + $0xc8] sm:$0xff]
      %v292 = vld [vmem:[%s246 + $0xd0] sm:$0xff]
      %v293 = vld [vmem:[%s246 + $0xd8] sm:$0xf]
      %v294 = vld [vmem:[%s246 + $0xdc] sm:$0xff]
      %v295 = vld [vmem:[%s246 + $0xe4] sm:$0xff]
      %v296 = vld [vmem:[%s246 + $0xec] sm:$0xff]
      %v297 = vld [vmem:[%s246 + $0xf4] sm:$0xff]
      %v298 = vld [vmem:[%s246 + $0xfc] sm:$0xff]
      %v299 = vld [vmem:[%s246 + $0x104] sm:$0xf]
      %v300 = vld [vmem:[%s246 + $0x108] sm:$0xff]
      %v301 = vld [vmem:[%s246 + $0x110] sm:$0xff]
      %v302 = vld [vmem:[%s246 + $0x118] sm:$0xff]
      %v303 = vld [vmem:[%s246 + $0x120] sm:$0xff]
      %v304 = vld [vmem:[%s246 + $0x128] sm:$0xff]
      %v305 = vld [vmem:[%s246 + $0x130] sm:$0xf]
      %v306 = vld [vmem:[%s246 + $0x134] sm:$0xff]
      %v307 = vld [vmem:[%s246 + $0x13c] sm:$0xff]
      %v308 = vld [vmem:[%s246 + $0x144] sm:$0xff]
      %v309 = vld [vmem:[%s246 + $0x14c] sm:$0xff]
      %v310 = vld [vmem:[%s246 + $0x154] sm:$0xff]
      %v311 = vld [vmem:[%s246 + $0x15c] sm:$0xf]
      %v312 = vld [vmem:[%s246 + $0x160] sm:$0xff]
      %v313 = vld [vmem:[%s246 + $0x168] sm:$0xff]
      %v314 = vld [vmem:[%s246 + $0x170] sm:$0xff]
      %v315 = vld [vmem:[%s246 + $0x178] sm:$0xff]
      %v316 = vld [vmem:[%s246 + $0x180] sm:$0xff]
      %v317 = vld [vmem:[%s246 + $0x188] sm:$0xf]
      %v318 = vld [vmem:[%s246 + $0x18c] sm:$0xff]
      %v319 = vld [vmem:[%s246 + $0x194] sm:$0xff]
      %v320 = vld [vmem:[%s246 + $0x19c] sm:$0xff]
      %v321 = vld [vmem:[%s246 + $0x1a4] sm:$0xff]
      %v322 = vld [vmem:[%s246 + $0x1ac] sm:$0xff]
      %v323 = vld [vmem:[%s246 + $0x1b4] sm:$0xf]
      %v324 = vld [vmem:[%s246 + $0x1b8] sm:$0xff]
      %v325 = vld [vmem:[%s246 + $0x1c0] sm:$0xff]
      %v326 = vld [vmem:[%s246 + $0x1c8] sm:$0xff]
      %v327 = vld [vmem:[%s246 + $0x1d0] sm:$0xff]
      %v328 = vld [vmem:[%s246 + $0x1d8] sm:$0xff]
      %v329 = vld [vmem:[%s246 + $0x1e0] sm:$0xf]
      %v330 = vld [vmem:[%s246 + $0x1e4] sm:$0xff]
      %v331 = vld [vmem:[%s246 + $0x1ec] sm:$0xff]
      %v332 = vld [vmem:[%s246 + $0x1f4] sm:$0xff]
      %v333 = vld [vmem:[%s246 + $0x1fc] sm:$0xff]
      %v334 = vld [vmem:[%s246 + $0x204] sm:$0xff]
      %v335 = vld [vmem:[%s246 + $0x20c] sm:$0xf]
      %v336 = vld [vmem:[%s246 + $0x210] sm:$0xff]
      %v337 = vld [vmem:[%s246 + $0x218] sm:$0xff]
      %v338 = vld [vmem:[%s246 + $0x220] sm:$0xff]
      %v339 = vld [vmem:[%s246 + $0x228] sm:$0xff]
      %v340 = vld [vmem:[%s246 + $0x230] sm:$0xff]
      %v341 = vld [vmem:[%s246 + $0x238] sm:$0xf]
      %v342 = vld [vmem:[%s246 + $0x23c] sm:$0xff]
      %v343 = vld [vmem:[%s246 + $0x244] sm:$0xff]
      %v344 = vld [vmem:[%s246 + $0x24c] sm:$0xff]
      %v345 = vld [vmem:[%s246 + $0x254] sm:$0xff]
      %v346 = vld [vmem:[%s246 + $0x25c] sm:$0xff]
      %v347 = vld [vmem:[%s246 + $0x264] sm:$0xf]
      %v348 = vld [vmem:[%s246 + $0x268] sm:$0xff]
      %v349 = vld [vmem:[%s246 + $0x270] sm:$0xff]
      %v350 = vld [vmem:[%s246 + $0x278] sm:$0xff]
      %v351 = vld [vmem:[%s246 + $0x280] sm:$0xff]
      %v352 = vld [vmem:[%s246 + $0x288] sm:$0xff]
      %v353 = vld [vmem:[%s246 + $0x290] sm:$0xf]
      %v354 = vld [vmem:[%s246 + $0x294] sm:$0xff]
      %v355 = vld [vmem:[%s246 + $0x29c] sm:$0xff]
      %v356 = vld [vmem:[%s246 + $0x2a4] sm:$0xff]
      %v357 = vld [vmem:[%s246 + $0x2ac] sm:$0xff]
      %v358 = vld [vmem:[%s246 + $0x2b4] sm:$0xff]
      %v359 = vld [vmem:[%s246 + $0x2bc] sm:$0xf]
      %v360 = vld [vmem:[%s246 + $0x2c0] sm:$0xff]
      %v361 = vld [vmem:[%s246 + $0x2c8] sm:$0xff]
      %v362 = vld [vmem:[%s246 + $0x2d0] sm:$0xff]
      %v363 = vld [vmem:[%s246 + $0x2d8] sm:$0xff]
      %v364 = vld [vmem:[%s246 + $0x2e0] sm:$0xff]
      %v365 = vld [vmem:[%s246 + $0x2e8] sm:$0xf]
      %v366 = vld [vmem:[%s246 + $0x2ec] sm:$0xff]
      %v367 = vld [vmem:[%s246 + $0x2f4] sm:$0xff]
      %v368 = vld [vmem:[%s246 + $0x2fc] sm:$0xff]
      %v369 = vld [vmem:[%s246 + $0x304] sm:$0xff]
      %v370 = vld [vmem:[%s246 + $0x30c] sm:$0xff]
      %v371 = vld [vmem:[%s246 + $0x314] sm:$0xf]
      %v372 = vld [vmem:[%s246 + $0x318] sm:$0xff]
      %v373 = vld [vmem:[%s246 + $0x320] sm:$0xff]
      %v374 = vld [vmem:[%s246 + $0x328] sm:$0xff]
      %v375 = vld [vmem:[%s246 + $0x330] sm:$0xff]
      %v376 = vld [vmem:[%s246 + $0x338] sm:$0xff]
      %v377 = vld [vmem:[%s246 + $0x340] sm:$0xf]
      %v378 = vld [vmem:[%s246 + $0x344] sm:$0xff]
      %v379 = vld [vmem:[%s246 + $0x34c] sm:$0xff]
      %v380 = vld [vmem:[%s246 + $0x354] sm:$0xff]
      %v381 = vld [vmem:[%s246 + $0x35c] sm:$0xff]
      %v382 = vld [vmem:[%s246 + $0x364] sm:$0xff]
      %v383 = vld [vmem:[%s246 + $0x36c] sm:$0xf]
      %v384 = vld [vmem:[%s246 + $0x370] sm:$0xff]
      %v385 = vld [vmem:[%s246 + $0x378] sm:$0xff]
      %v386 = vld [vmem:[%s246 + $0x380] sm:$0xff]
      %v387 = vld [vmem:[%s246 + $0x388] sm:$0xff]
      %v388 = vld [vmem:[%s246 + $0x390] sm:$0xff]
      %v389 = vld [vmem:[%s246 + $0x398] sm:$0xf]
      %v390 = vld [vmem:[%s246 + $0x39c] sm:$0xff]
      %v391 = vld [vmem:[%s246 + $0x3a4] sm:$0xff]
      %v392 = vld [vmem:[%s246 + $0x3ac] sm:$0xff]
      %v393 = vld [vmem:[%s246 + $0x3b4] sm:$0xff]
      %v394 = vld [vmem:[%s246 + $0x3bc] sm:$0xff]
      %v395 = vld [vmem:[%s246 + $0x3c4] sm:$0xf]
      %v396 = vld [vmem:[%s246 + $0x3c8] sm:$0xff]
      %v397 = vld [vmem:[%s246 + $0x3d0] sm:$0xff]
      %v398 = vld [vmem:[%s246 + $0x3d8] sm:$0xff]
      %v399 = vld [vmem:[%s246 + $0x3e0] sm:$0xff]
      %v400 = vld [vmem:[%s246 + $0x3e8] sm:$0xff]
      %v401 = vld [vmem:[%s246 + $0x3f0] sm:$0xf]
      %v402 = vld [vmem:[%s246 + $0x3f4] sm:$0xff]
      %v403 = vld [vmem:[%s246 + $0x3fc] sm:$0xff]
      %v404 = vld [vmem:[%s246 + $0x404] sm:$0xff]
      %v405 = vld [vmem:[%s246 + $0x40c] sm:$0xff]
      %v406 = vld [vmem:[%s246 + $0x414] sm:$0xff]
      %v407 = vld [vmem:[%s246 + $0x41c] sm:$0xf]
      %v408 = vld [vmem:[%s246 + $0x420] sm:$0xff]
      %v409 = vld [vmem:[%s246 + $0x428] sm:$0xff]
      %v410 = vld [vmem:[%s246 + $0x430] sm:$0xff]
      %v411 = vld [vmem:[%s246 + $0x438] sm:$0xff]
      %v412 = vld [vmem:[%s246 + $0x440] sm:$0xff]
      %v413 = vld [vmem:[%s246 + $0x448] sm:$0xf]
      %v414 = vld [vmem:[%s246 + $0x44c] sm:$0xff]
      %v415 = vld [vmem:[%s246 + $0x454] sm:$0xff]
      %v416 = vld [vmem:[%s246 + $0x45c] sm:$0xff]
      %v417 = vld [vmem:[%s246 + $0x464] sm:$0xff]
      %v418 = vld [vmem:[%s246 + $0x46c] sm:$0xff]
      %v419 = vld [vmem:[%s246 + $0x474] sm:$0xf]
      %v420 = vld [vmem:[%s246 + $0x478] sm:$0xff]
      %v421 = vld [vmem:[%s246 + $0x480] sm:$0xff]
      %v422 = vld [vmem:[%s246 + $0x488] sm:$0xff]
      %v423 = vld [vmem:[%s246 + $0x490] sm:$0xff]
      %v424 = vld [vmem:[%s246 + $0x498] sm:$0xff]
      %v425 = vld [vmem:[%s246 + $0x4a0] sm:$0xf]
      %v426 = vld [vmem:[%s246 + $0x4a4] sm:$0xff]
      %v427 = vld [vmem:[%s246 + $0x4ac] sm:$0xff]
      %v428 = vld [vmem:[%s246 + $0x4b4] sm:$0xff]
      %v429 = vld [vmem:[%s246 + $0x4bc] sm:$0xff]
      %v430 = vld [vmem:[%s246 + $0x4c4] sm:$0xff]
      %v431 = vld [vmem:[%s246 + $0x4cc] sm:$0xf]
      %v432 = vld [vmem:[%s246 + $0x4d0] sm:$0xff]
      %v433 = vld [vmem:[%s246 + $0x4d8] sm:$0xff]
      %v434 = vld [vmem:[%s246 + $0x4e0] sm:$0xff]
      %v435 = vld [vmem:[%s246 + $0x4e8] sm:$0xff]
      %v436 = vld [vmem:[%s246 + $0x4f0] sm:$0xff]
      %v437 = vld [vmem:[%s246 + $0x4f8] sm:$0xf]
      %v438 = vld [vmem:[%s246 + $0x4fc] sm:$0xff]
      %v439 = vld [vmem:[%s246 + $0x504] sm:$0xff]
      %v440 = vld [vmem:[%s246 + $0x50c] sm:$0xff]
      %v441 = vld [vmem:[%s246 + $0x514] sm:$0xff]
      %v442 = vld [vmem:[%s246 + $0x51c] sm:$0xff]
      %v443 = vld [vmem:[%s246 + $0x524] sm:$0xf]
      %v444 = vld [vmem:[%s246 + $0x528] sm:$0xff]
      %v445 = vld [vmem:[%s246 + $0x530] sm:$0xff]
      %v446 = vld [vmem:[%s246 + $0x538] sm:$0xff]
      %v447 = vld [vmem:[%s246 + $0x540] sm:$0xff]
      %v448 = vld [vmem:[%s246 + $0x548] sm:$0xff]
      %v449 = vld [vmem:[%s246 + $0x550] sm:$0xf]
      %v450 = vld [vmem:[%s246 + $0x554] sm:$0xff]
      %v451 = vld [vmem:[%s246 + $0x55c] sm:$0xff]
      %v452 = vld [vmem:[%s246 + $0x564] sm:$0xff]
      %v453 = vld [vmem:[%s246 + $0x56c] sm:$0xff]
      %v454 = vld [vmem:[%s246 + $0x574] sm:$0xff]
      %v455 = vld [vmem:[%s246 + $0x57c] sm:$0xf]
      %v456 = vld [vmem:[%s2] sm:$0xff]
      %v457 = vld [vmem:[%s2 + $0x8] sm:$0xff]
      %459 = vset.pattern.permute.xlu0 0
      %460 = vperm.xlu0 %459, %v456
      %v461 = vpop.permute.xlu0 %460
      %464 = vset.pattern.permute.xlu0 0
      %465 = vperm.xlu0 %464, %v457
      %v466 = vpop.permute.xlu0 %465
      %v480 = vunpack.c.l.b16 %v252
      %v481 = vunpack.c.h.b16 %v252
      %v482 = vunpack.c.l.b16 %v253
      %v483 = vunpack.c.h.b16 %v253
      %v484 = vunpack.c.l.b16 %v254
      %v485 = vunpack.c.h.b16 %v254
      %v486 = vunpack.c.l.b16 %v255
      %v487 = vunpack.c.h.b16 %v255
      %v488 = vunpack.c.l.b16 %v256
      %v489 = vunpack.c.h.b16 %v256
      %v490 = vunpack.c.l.b16 %v257
      %v491 = vunpack.c.l.b16 %v258
      %v492 = vunpack.c.h.b16 %v258
      %v493 = vunpack.c.l.b16 %v259
      %v494 = vunpack.c.h.b16 %v259
      %v495 = vunpack.c.l.b16 %v260
      %v496 = vunpack.c.h.b16 %v260
      %v497 = vunpack.c.l.b16 %v261
      %v498 = vunpack.c.h.b16 %v261
      %v499 = vunpack.c.l.b16 %v262
      %v500 = vunpack.c.h.b16 %v262
      %v501 = vunpack.c.l.b16 %v263
      %v502 = vpack.c.b16 %v491, %v480
      %v503 = vpack.c.b16 %v492, %v481
      %v504 = vpack.c.b16 %v493, %v482
      %v505 = vpack.c.b16 %v494, %v483
      %v506 = vpack.c.b16 %v495, %v484
      %v507 = vpack.c.b16 %v496, %v485
      %v508 = vpack.c.b16 %v497, %v486
      %v509 = vpack.c.b16 %v498, %v487
      %v510 = vpack.c.b16 %v499, %v488
      %v511 = vpack.c.b16 %v500, %v489
      %v512 = vpack.c.b16 %v501, %v490
      %v716 = vunpack.c.l.b16 %v264
      %v717 = vunpack.c.h.b16 %v264
      %v718 = vunpack.c.l.b16 %v265
      %v719 = vunpack.c.h.b16 %v265
      %v720 = vunpack.c.l.b16 %v266
      %v721 = vunpack.c.h.b16 %v266
      %v722 = vunpack.c.l.b16 %v267
      %v723 = vunpack.c.h.b16 %v267
      %v724 = vunpack.c.l.b16 %v268
      %v725 = vunpack.c.h.b16 %v268
      %v726 = vunpack.c.l.b16 %v269
      %v727 = vunpack.c.l.b16 %v270
      %v728 = vunpack.c.h.b16 %v270
      %v729 = vunpack.c.l.b16 %v271
      %v730 = vunpack.c.h.b16 %v271
      %v731 = vunpack.c.l.b16 %v272
      %v732 = vunpack.c.h.b16 %v272
      %v733 = vunpack.c.l.b16 %v273
      %v734 = vunpack.c.h.b16 %v273
      %v735 = vunpack.c.l.b16 %v274
      %v736 = vunpack.c.h.b16 %v274
      %v737 = vunpack.c.l.b16 %v275
      %v738 = vunpack.c.l.b16 %v276
      %v739 = vunpack.c.h.b16 %v276
      %v740 = vunpack.c.l.b16 %v277
      %v741 = vunpack.c.h.b16 %v277
      %v742 = vunpack.c.l.b16 %v278
      %v743 = vunpack.c.h.b16 %v278
      %v744 = vunpack.c.l.b16 %v279
      %v745 = vunpack.c.h.b16 %v279
      %v746 = vunpack.c.l.b16 %v280
      %v747 = vunpack.c.h.b16 %v280
      %v748 = vunpack.c.l.b16 %v281
      %v749 = vunpack.c.l.b16 %v282
      %v750 = vunpack.c.h.b16 %v282
      %v751 = vunpack.c.l.b16 %v283
      %v752 = vunpack.c.h.b16 %v283
      %v753 = vunpack.c.l.b16 %v284
      %v754 = vunpack.c.h.b16 %v284
      %v755 = vunpack.c.l.b16 %v285
      %v756 = vunpack.c.h.b16 %v285
      %v757 = vunpack.c.l.b16 %v286
      %v758 = vunpack.c.h.b16 %v286
      %v759 = vunpack.c.l.b16 %v287
      %v760 = vunpack.c.l.b16 %v288
      %v761 = vunpack.c.h.b16 %v288
      %v762 = vunpack.c.l.b16 %v289
      %v763 = vunpack.c.h.b16 %v289
      %v764 = vunpack.c.l.b16 %v290
      %v765 = vunpack.c.h.b16 %v290
      %v766 = vunpack.c.l.b16 %v291
      %v767 = vunpack.c.h.b16 %v291
      %v768 = vunpack.c.l.b16 %v292
      %v769 = vunpack.c.h.b16 %v292
      %v770 = vunpack.c.l.b16 %v293
      %v771 = vunpack.c.l.b16 %v294
      %v772 = vunpack.c.h.b16 %v294
      %v773 = vunpack.c.l.b16 %v295
      %v774 = vunpack.c.h.b16 %v295
      %v775 = vunpack.c.l.b16 %v296
      %v776 = vunpack.c.h.b16 %v296
      %v777 = vunpack.c.l.b16 %v297
      %v778 = vunpack.c.h.b16 %v297
      %v779 = vunpack.c.l.b16 %v298
      %v780 = vunpack.c.h.b16 %v298
      %v781 = vunpack.c.l.b16 %v299
      %v782 = vunpack.c.l.b16 %v300
      %v783 = vunpack.c.h.b16 %v300
      %v784 = vunpack.c.l.b16 %v301
      %v785 = vunpack.c.h.b16 %v301
      %v786 = vunpack.c.l.b16 %v302
      %v787 = vunpack.c.h.b16 %v302
      %v788 = vunpack.c.l.b16 %v303
      %v789 = vunpack.c.h.b16 %v303
      %v790 = vunpack.c.l.b16 %v304
      %v791 = vunpack.c.h.b16 %v304
      %v792 = vunpack.c.l.b16 %v305
      %v793 = vunpack.c.l.b16 %v306
      %v794 = vunpack.c.h.b16 %v306
      %v795 = vunpack.c.l.b16 %v307
      %v796 = vunpack.c.h.b16 %v307
      %v797 = vunpack.c.l.b16 %v308
      %v798 = vunpack.c.h.b16 %v308
      %v799 = vunpack.c.l.b16 %v309
      %v800 = vunpack.c.h.b16 %v309
      %v801 = vunpack.c.l.b16 %v310
      %v802 = vunpack.c.h.b16 %v310
      %v803 = vunpack.c.l.b16 %v311
      %v804 = vunpack.c.l.b16 %v312
      %v805 = vunpack.c.h.b16 %v312
      %v806 = vunpack.c.l.b16 %v313
      %v807 = vunpack.c.h.b16 %v313
      %v808 = vunpack.c.l.b16 %v314
      %v809 = vunpack.c.h.b16 %v314
      %v810 = vunpack.c.l.b16 %v315
      %v811 = vunpack.c.h.b16 %v315
      %v812 = vunpack.c.l.b16 %v316
      %v813 = vunpack.c.h.b16 %v316
      %v814 = vunpack.c.l.b16 %v317
      %v815 = vunpack.c.l.b16 %v318
      %v816 = vunpack.c.h.b16 %v318
      %v817 = vunpack.c.l.b16 %v319
      %v818 = vunpack.c.h.b16 %v319
      %v819 = vunpack.c.l.b16 %v320
      %v820 = vunpack.c.h.b16 %v320
      %v821 = vunpack.c.l.b16 %v321
      %v822 = vunpack.c.h.b16 %v321
      %v823 = vunpack.c.l.b16 %v322
      %v824 = vunpack.c.h.b16 %v322
      %v825 = vunpack.c.l.b16 %v323
      %v826 = vunpack.c.l.b16 %v324
      %v827 = vunpack.c.h.b16 %v324
      %v828 = vunpack.c.l.b16 %v325
      %v829 = vunpack.c.h.b16 %v325
      %v830 = vunpack.c.l.b16 %v326
      %v831 = vunpack.c.h.b16 %v326
      %v832 = vunpack.c.l.b16 %v327
      %v833 = vunpack.c.h.b16 %v327
      %v834 = vunpack.c.l.b16 %v328
      %v835 = vunpack.c.h.b16 %v328
      %v836 = vunpack.c.l.b16 %v329
      %v837 = vunpack.c.l.b16 %v330
      %v838 = vunpack.c.h.b16 %v330
      %v839 = vunpack.c.l.b16 %v331
      %v840 = vunpack.c.h.b16 %v331
      %v841 = vunpack.c.l.b16 %v332
      %v842 = vunpack.c.h.b16 %v332
      %v843 = vunpack.c.l.b16 %v333
      %v844 = vunpack.c.h.b16 %v333
      %v845 = vunpack.c.l.b16 %v334
      %v846 = vunpack.c.h.b16 %v334
      %v847 = vunpack.c.l.b16 %v335
      %v848 = vunpack.c.l.b16 %v336
      %v849 = vunpack.c.h.b16 %v336
      %v850 = vunpack.c.l.b16 %v337
      %v851 = vunpack.c.h.b16 %v337
      %v852 = vunpack.c.l.b16 %v338
      %v853 = vunpack.c.h.b16 %v338
      %v854 = vunpack.c.l.b16 %v339
      %v855 = vunpack.c.h.b16 %v339
      %v856 = vunpack.c.l.b16 %v340
      %v857 = vunpack.c.h.b16 %v340
      %v858 = vunpack.c.l.b16 %v341
      %v859 = vunpack.c.l.b16 %v342
      %v860 = vunpack.c.h.b16 %v342
      %v861 = vunpack.c.l.b16 %v343
      %v862 = vunpack.c.h.b16 %v343
      %v863 = vunpack.c.l.b16 %v344
      %v864 = vunpack.c.h.b16 %v344
      %v865 = vunpack.c.l.b16 %v345
      %v866 = vunpack.c.h.b16 %v345
      %v867 = vunpack.c.l.b16 %v346
      %v868 = vunpack.c.h.b16 %v346
      %v869 = vunpack.c.l.b16 %v347
      %v870 = vunpack.c.l.b16 %v348
      %v871 = vunpack.c.h.b16 %v348
      %v872 = vunpack.c.l.b16 %v349
      %v873 = vunpack.c.h.b16 %v349
      %v874 = vunpack.c.l.b16 %v350
      %v875 = vunpack.c.h.b16 %v350
      %v876 = vunpack.c.l.b16 %v351
      %v877 = vunpack.c.h.b16 %v351
      %v878 = vunpack.c.l.b16 %v352
      %v879 = vunpack.c.h.b16 %v352
      %v880 = vunpack.c.l.b16 %v353
      %v881 = vunpack.c.l.b16 %v354
      %v882 = vunpack.c.h.b16 %v354
      %v883 = vunpack.c.l.b16 %v355
      %v884 = vunpack.c.h.b16 %v355
      %v885 = vunpack.c.l.b16 %v356
      %v886 = vunpack.c.h.b16 %v356
      %v887 = vunpack.c.l.b16 %v357
      %v888 = vunpack.c.h.b16 %v357
      %v889 = vunpack.c.l.b16 %v358
      %v890 = vunpack.c.h.b16 %v358
      %v891 = vunpack.c.l.b16 %v359
      %v892 = vunpack.c.l.b16 %v360
      %v893 = vunpack.c.h.b16 %v360
      %v894 = vunpack.c.l.b16 %v361
      %v895 = vunpack.c.h.b16 %v361
      %v896 = vunpack.c.l.b16 %v362
      %v897 = vunpack.c.h.b16 %v362
      %v898 = vunpack.c.l.b16 %v363
      %v899 = vunpack.c.h.b16 %v363
      %v900 = vunpack.c.l.b16 %v364
      %v901 = vunpack.c.h.b16 %v364
      %v902 = vunpack.c.l.b16 %v365
      %v903 = vunpack.c.l.b16 %v366
      %v904 = vunpack.c.h.b16 %v366
      %v905 = vunpack.c.l.b16 %v367
      %v906 = vunpack.c.h.b16 %v367
      %v907 = vunpack.c.l.b16 %v368
      %v908 = vunpack.c.h.b16 %v368
      %v909 = vunpack.c.l.b16 %v369
      %v910 = vunpack.c.h.b16 %v369
      %v911 = vunpack.c.l.b16 %v370
      %v912 = vunpack.c.h.b16 %v370
      %v913 = vunpack.c.l.b16 %v371
      %v914 = vunpack.c.l.b16 %v372
      %v915 = vunpack.c.h.b16 %v372
      %v916 = vunpack.c.l.b16 %v373
      %v917 = vunpack.c.h.b16 %v373
      %v918 = vunpack.c.l.b16 %v374
      %v919 = vunpack.c.h.b16 %v374
      %v920 = vunpack.c.l.b16 %v375
      %v921 = vunpack.c.h.b16 %v375
      %v922 = vunpack.c.l.b16 %v376
      %v923 = vunpack.c.h.b16 %v376
      %v924 = vunpack.c.l.b16 %v377
      %v925 = vunpack.c.l.b16 %v378
      %v926 = vunpack.c.h.b16 %v378
      %v927 = vunpack.c.l.b16 %v379
      %v928 = vunpack.c.h.b16 %v379
      %v929 = vunpack.c.l.b16 %v380
      %v930 = vunpack.c.h.b16 %v380
      %v931 = vunpack.c.l.b16 %v381
      %v932 = vunpack.c.h.b16 %v381
      %v933 = vunpack.c.l.b16 %v382
      %v934 = vunpack.c.h.b16 %v382
      %v935 = vunpack.c.l.b16 %v383
      %v936 = vunpack.c.l.b16 %v384
      %v937 = vunpack.c.h.b16 %v384
      %v938 = vunpack.c.l.b16 %v385
      %v939 = vunpack.c.h.b16 %v385
      %v940 = vunpack.c.l.b16 %v386
      %v941 = vunpack.c.h.b16 %v386
      %v942 = vunpack.c.l.b16 %v387
      %v943 = vunpack.c.h.b16 %v387
      %v944 = vunpack.c.l.b16 %v388
      %v945 = vunpack.c.h.b16 %v388
      %v946 = vunpack.c.l.b16 %v389
      %v947 = vunpack.c.l.b16 %v390
      %v948 = vunpack.c.h.b16 %v390
      %v949 = vunpack.c.l.b16 %v391
      %v950 = vunpack.c.h.b16 %v391
      %v951 = vunpack.c.l.b16 %v392
      %v952 = vunpack.c.h.b16 %v392
      %v953 = vunpack.c.l.b16 %v393
      %v954 = vunpack.c.h.b16 %v393
      %v955 = vunpack.c.l.b16 %v394
      %v956 = vunpack.c.h.b16 %v394
      %v957 = vunpack.c.l.b16 %v395
      %v958 = vunpack.c.l.b16 %v396
      %v959 = vunpack.c.h.b16 %v396
      %v960 = vunpack.c.l.b16 %v397
      %v961 = vunpack.c.h.b16 %v397
      %v962 = vunpack.c.l.b16 %v398
      %v963 = vunpack.c.h.b16 %v398
      %v964 = vunpack.c.l.b16 %v399
      %v965 = vunpack.c.h.b16 %v399
      %v966 = vunpack.c.l.b16 %v400
      %v967 = vunpack.c.h.b16 %v400
      %v968 = vunpack.c.l.b16 %v401
      %v969 = vunpack.c.l.b16 %v402
      %v970 = vunpack.c.h.b16 %v402
      %v971 = vunpack.c.l.b16 %v403
      %v972 = vunpack.c.h.b16 %v403
      %v973 = vunpack.c.l.b16 %v404
      %v974 = vunpack.c.h.b16 %v404
      %v975 = vunpack.c.l.b16 %v405
      %v976 = vunpack.c.h.b16 %v405
      %v977 = vunpack.c.l.b16 %v406
      %v978 = vunpack.c.h.b16 %v406
      %v979 = vunpack.c.l.b16 %v407
      %v980 = vunpack.c.l.b16 %v408
      %v981 = vunpack.c.h.b16 %v408
      %v982 = vunpack.c.l.b16 %v409
      %v983 = vunpack.c.h.b16 %v409
      %v984 = vunpack.c.l.b16 %v410
      %v985 = vunpack.c.h.b16 %v410
      %v986 = vunpack.c.l.b16 %v411
      %v987 = vunpack.c.h.b16 %v411
      %v988 = vunpack.c.l.b16 %v412
      %v989 = vunpack.c.h.b16 %v412
      %v990 = vunpack.c.l.b16 %v413
      %v991 = vunpack.c.l.b16 %v414
      %v992 = vunpack.c.h.b16 %v414
      %v993 = vunpack.c.l.b16 %v415
      %v994 = vunpack.c.h.b16 %v415
      %v995 = vunpack.c.l.b16 %v416
      %v996 = vunpack.c.h.b16 %v416
      %v997 = vunpack.c.l.b16 %v417
      %v998 = vunpack.c.h.b16 %v417
      %v999 = vunpack.c.l.b16 %v418
      %v1000 = vunpack.c.h.b16 %v418
      %v1001 = vunpack.c.l.b16 %v419
      %v1002 = vunpack.c.l.b16 %v420
      %v1003 = vunpack.c.h.b16 %v420
      %v1004 = vunpack.c.l.b16 %v421
      %v1005 = vunpack.c.h.b16 %v421
      %v1006 = vunpack.c.l.b16 %v422
      %v1007 = vunpack.c.h.b16 %v422
      %v1008 = vunpack.c.l.b16 %v423
      %v1009 = vunpack.c.h.b16 %v423
      %v1010 = vunpack.c.l.b16 %v424
      %v1011 = vunpack.c.h.b16 %v424
      %v1012 = vunpack.c.l.b16 %v425
      %v1013 = vunpack.c.l.b16 %v426
      %v1014 = vunpack.c.h.b16 %v426
      %v1015 = vunpack.c.l.b16 %v427
      %v1016 = vunpack.c.h.b16 %v427
      %v1017 = vunpack.c.l.b16 %v428
      %v1018 = vunpack.c.h.b16 %v428
      %v1019 = vunpack.c.l.b16 %v429
      %v1020 = vunpack.c.h.b16 %v429
      %v1021 = vunpack.c.l.b16 %v430
      %v1022 = vunpack.c.h.b16 %v430
      %v1023 = vunpack.c.l.b16 %v431
      %v1024 = vunpack.c.l.b16 %v432
      %v1025 = vunpack.c.h.b16 %v432
      %v1026 = vunpack.c.l.b16 %v433
      %v1027 = vunpack.c.h.b16 %v433
      %v1028 = vunpack.c.l.b16 %v434
      %v1029 = vunpack.c.h.b16 %v434
      %v1030 = vunpack.c.l.b16 %v435
      %v1031 = vunpack.c.h.b16 %v435
      %v1032 = vunpack.c.l.b16 %v436
      %v1033 = vunpack.c.h.b16 %v436
      %v1034 = vunpack.c.l.b16 %v437
      %v1035 = vunpack.c.l.b16 %v438
      %v1036 = vunpack.c.h.b16 %v438
      %v1037 = vunpack.c.l.b16 %v439
      %v1038 = vunpack.c.h.b16 %v439
      %v1039 = vunpack.c.l.b16 %v440
      %v1040 = vunpack.c.h.b16 %v440
      %v1041 = vunpack.c.l.b16 %v441
      %v1042 = vunpack.c.h.b16 %v441
      %v1043 = vunpack.c.l.b16 %v442
      %v1044 = vunpack.c.h.b16 %v442
      %v1045 = vunpack.c.l.b16 %v443
      %v1046 = vunpack.c.l.b16 %v444
      %v1047 = vunpack.c.h.b16 %v444
      %v1048 = vunpack.c.l.b16 %v445
      %v1049 = vunpack.c.h.b16 %v445
      %v1050 = vunpack.c.l.b16 %v446
      %v1051 = vunpack.c.h.b16 %v446
      %v1052 = vunpack.c.l.b16 %v447
      %v1053 = vunpack.c.h.b16 %v447
      %v1054 = vunpack.c.l.b16 %v448
      %v1055 = vunpack.c.h.b16 %v448
      %v1056 = vunpack.c.l.b16 %v449
      %v1057 = vunpack.c.l.b16 %v450
      %v1058 = vunpack.c.h.b16 %v450
      %v1059 = vunpack.c.l.b16 %v451
      %v1060 = vunpack.c.h.b16 %v451
      %v1061 = vunpack.c.l.b16 %v452
      %v1062 = vunpack.c.h.b16 %v452
      %v1063 = vunpack.c.l.b16 %v453
      %v1064 = vunpack.c.h.b16 %v453
      %v1065 = vunpack.c.l.b16 %v454
      %v1066 = vunpack.c.h.b16 %v454
      %v1067 = vunpack.c.l.b16 %v455
      %v1068 = vpack.c.b16 %v727, %v716
      %v1069 = vpack.c.b16 %v728, %v717
      %v1070 = vpack.c.b16 %v729, %v718
      %v1071 = vpack.c.b16 %v730, %v719
      %v1072 = vpack.c.b16 %v731, %v720
      %v1073 = vpack.c.b16 %v732, %v721
      %v1074 = vpack.c.b16 %v733, %v722
      %v1075 = vpack.c.b16 %v734, %v723
      %v1076 = vpack.c.b16 %v735, %v724
      %v1077 = vpack.c.b16 %v736, %v725
      %v1078 = vpack.c.b16 %v737, %v726
      %v1079 = vpack.c.b16 %v749, %v738
      %v1080 = vpack.c.b16 %v750, %v739
      %v1081 = vpack.c.b16 %v751, %v740
      %v1082 = vpack.c.b16 %v752, %v741
      %v1083 = vpack.c.b16 %v753, %v742
      %v1084 = vpack.c.b16 %v754, %v743
      %v1085 = vpack.c.b16 %v755, %v744
      %v1086 = vpack.c.b16 %v756, %v745
      %v1087 = vpack.c.b16 %v757, %v746
      %v1088 = vpack.c.b16 %v758, %v747
      %v1089 = vpack.c.b16 %v759, %v748
      %v1090 = vpack.c.b16 %v771, %v760
      %v1091 = vpack.c.b16 %v772, %v761
      %v1092 = vpack.c.b16 %v773, %v762
      %v1093 = vpack.c.b16 %v774, %v763
      %v1094 = vpack.c.b16 %v775, %v764
      %v1095 = vpack.c.b16 %v776, %v765
      %v1096 = vpack.c.b16 %v777, %v766
      %v1097 = vpack.c.b16 %v778, %v767
      %v1098 = vpack.c.b16 %v779, %v768
      %v1099 = vpack.c.b16 %v780, %v769
      %v1100 = vpack.c.b16 %v781, %v770
      %v1101 = vpack.c.b16 %v793, %v782
      %v1102 = vpack.c.b16 %v794, %v783
      %v1103 = vpack.c.b16 %v795, %v784
      %v1104 = vpack.c.b16 %v796, %v785
      %v1105 = vpack.c.b16 %v797, %v786
      %v1106 = vpack.c.b16 %v798, %v787
      %v1107 = vpack.c.b16 %v799, %v788
      %v1108 = vpack.c.b16 %v800, %v789
      %v1109 = vpack.c.b16 %v801, %v790
      %v1110 = vpack.c.b16 %v802, %v791
      %v1111 = vpack.c.b16 %v803, %v792
      %v1112 = vpack.c.b16 %v815, %v804
      %v1113 = vpack.c.b16 %v816, %v805
      %v1114 = vpack.c.b16 %v817, %v806
      %v1115 = vpack.c.b16 %v818, %v807
      %v1116 = vpack.c.b16 %v819, %v808
      %v1117 = vpack.c.b16 %v820, %v809
      %v1118 = vpack.c.b16 %v821, %v810
      %v1119 = vpack.c.b16 %v822, %v811
      %v1120 = vpack.c.b16 %v823, %v812
      %v1121 = vpack.c.b16 %v824, %v813
      %v1122 = vpack.c.b16 %v825, %v814
      %v1123 = vpack.c.b16 %v837, %v826
      %v1124 = vpack.c.b16 %v838, %v827
      %v1125 = vpack.c.b16 %v839, %v828
      %v1126 = vpack.c.b16 %v840, %v829
      %v1127 = vpack.c.b16 %v841, %v830
      %v1128 = vpack.c.b16 %v842, %v831
      %v1129 = vpack.c.b16 %v843, %v832
      %v1130 = vpack.c.b16 %v844, %v833
      %v1131 = vpack.c.b16 %v845, %v834
      %v1132 = vpack.c.b16 %v846, %v835
      %v1133 = vpack.c.b16 %v847, %v836
      %v1134 = vpack.c.b16 %v859, %v848
      %v1135 = vpack.c.b16 %v860, %v849
      %v1136 = vpack.c.b16 %v861, %v850
      %v1137 = vpack.c.b16 %v862, %v851
      %v1138 = vpack.c.b16 %v863, %v852
      %v1139 = vpack.c.b16 %v864, %v853
      %v1140 = vpack.c.b16 %v865, %v854
      %v1141 = vpack.c.b16 %v866, %v855
      %v1142 = vpack.c.b16 %v867, %v856
      %v1143 = vpack.c.b16 %v868, %v857
      %v1144 = vpack.c.b16 %v869, %v858
      %v1145 = vpack.c.b16 %v881, %v870
      %v1146 = vpack.c.b16 %v882, %v871
      %v1147 = vpack.c.b16 %v883, %v872
      %v1148 = vpack.c.b16 %v884, %v873
      %v1149 = vpack.c.b16 %v885, %v874
      %v1150 = vpack.c.b16 %v886, %v875
      %v1151 = vpack.c.b16 %v887, %v876
      %v1152 = vpack.c.b16 %v888, %v877
      %v1153 = vpack.c.b16 %v889, %v878
      %v1154 = vpack.c.b16 %v890, %v879
      %v1155 = vpack.c.b16 %v891, %v880
      %v1156 = vpack.c.b16 %v903, %v892
      %v1157 = vpack.c.b16 %v904, %v893
      %v1158 = vpack.c.b16 %v905, %v894
      %v1159 = vpack.c.b16 %v906, %v895
      %v1160 = vpack.c.b16 %v907, %v896
      %v1161 = vpack.c.b16 %v908, %v897
      %v1162 = vpack.c.b16 %v909, %v898
      %v1163 = vpack.c.b16 %v910, %v899
      %v1164 = vpack.c.b16 %v911, %v900
      %v1165 = vpack.c.b16 %v912, %v901
      %v1166 = vpack.c.b16 %v913, %v902
      %v1167 = vpack.c.b16 %v925, %v914
      %v1168 = vpack.c.b16 %v926, %v915
      %v1169 = vpack.c.b16 %v927, %v916
      %v1170 = vpack.c.b16 %v928, %v917
      %v1171 = vpack.c.b16 %v929, %v918
      %v1172 = vpack.c.b16 %v930, %v919
      %v1173 = vpack.c.b16 %v931, %v920
      %v1174 = vpack.c.b16 %v932, %v921
      %v1175 = vpack.c.b16 %v933, %v922
      %v1176 = vpack.c.b16 %v934, %v923
      %v1177 = vpack.c.b16 %v935, %v924
      %v1178 = vpack.c.b16 %v947, %v936
      %v1179 = vpack.c.b16 %v948, %v937
      %v1180 = vpack.c.b16 %v949, %v938
      %v1181 = vpack.c.b16 %v950, %v939
      %v1182 = vpack.c.b16 %v951, %v940
      %v1183 = vpack.c.b16 %v952, %v941
      %v1184 = vpack.c.b16 %v953, %v942
      %v1185 = vpack.c.b16 %v954, %v943
      %v1186 = vpack.c.b16 %v955, %v944
      %v1187 = vpack.c.b16 %v956, %v945
      %v1188 = vpack.c.b16 %v957, %v946
      %v1189 = vpack.c.b16 %v969, %v958
      %v1190 = vpack.c.b16 %v970, %v959
      %v1191 = vpack.c.b16 %v971, %v960
      %v1192 = vpack.c.b16 %v972, %v961
      %v1193 = vpack.c.b16 %v973, %v962
      %v1194 = vpack.c.b16 %v974, %v963
      %v1195 = vpack.c.b16 %v975, %v964
      %v1196 = vpack.c.b16 %v976, %v965
      %v1197 = vpack.c.b16 %v977, %v966
      %v1198 = vpack.c.b16 %v978, %v967
      %v1199 = vpack.c.b16 %v979, %v968
      %v1200 = vpack.c.b16 %v991, %v980
      %v1201 = vpack.c.b16 %v992, %v981
      %v1202 = vpack.c.b16 %v993, %v982
      %v1203 = vpack.c.b16 %v994, %v983
      %v1204 = vpack.c.b16 %v995, %v984
      %v1205 = vpack.c.b16 %v996, %v985
      %v1206 = vpack.c.b16 %v997, %v986
      %v1207 = vpack.c.b16 %v998, %v987
      %v1208 = vpack.c.b16 %v999, %v988
      %v1209 = vpack.c.b16 %v1000, %v989
      %v1210 = vpack.c.b16 %v1001, %v990
      %v1211 = vpack.c.b16 %v1013, %v1002
      %v1212 = vpack.c.b16 %v1014, %v1003
      %v1213 = vpack.c.b16 %v1015, %v1004
      %v1214 = vpack.c.b16 %v1016, %v1005
      %v1215 = vpack.c.b16 %v1017, %v1006
      %v1216 = vpack.c.b16 %v1018, %v1007
      %v1217 = vpack.c.b16 %v1019, %v1008
      %v1218 = vpack.c.b16 %v1020, %v1009
      %v1219 = vpack.c.b16 %v1021, %v1010
      %v1220 = vpack.c.b16 %v1022, %v1011
      %v1221 = vpack.c.b16 %v1023, %v1012
      %v1222 = vpack.c.b16 %v1035, %v1024
      %v1223 = vpack.c.b16 %v1036, %v1025
      %v1224 = vpack.c.b16 %v1037, %v1026
      %v1225 = vpack.c.b16 %v1038, %v1027
      %v1226 = vpack.c.b16 %v1039, %v1028
      %v1227 = vpack.c.b16 %v1040, %v1029
      %v1228 = vpack.c.b16 %v1041, %v1030
      %v1229 = vpack.c.b16 %v1042, %v1031
      %v1230 = vpack.c.b16 %v1043, %v1032
      %v1231 = vpack.c.b16 %v1044, %v1033
      %v1232 = vpack.c.b16 %v1045, %v1034
      %v1233 = vpack.c.b16 %v1057, %v1046
      %v1234 = vpack.c.b16 %v1058, %v1047
      %v1235 = vpack.c.b16 %v1059, %v1048
      %v1236 = vpack.c.b16 %v1060, %v1049
      %v1237 = vpack.c.b16 %v1061, %v1050
      %v1238 = vpack.c.b16 %v1062, %v1051
      %v1239 = vpack.c.b16 %v1063, %v1052
      %v1240 = vpack.c.b16 %v1064, %v1053
      %v1241 = vpack.c.b16 %v1065, %v1054
      %v1242 = vpack.c.b16 %v1066, %v1055
      %v1243 = vpack.c.b16 %v1067, %v1056
      %1420 = vmatpush.bf16.xpose.msra.mxu0 %v1145
      %1421 = vmatpush.bf16.xpose.msra.mxu0 %v1134
      %1422 = vmatpush.bf16.xpose.msra.mxu0 %v1123
      %1423 = vmatpush.bf16.xpose.msra.mxu0 %v1112
      %1424 = vmatpush.bf16.xpose.msra.mxu0 %v1101
      %1425 = vmatpush.bf16.xpose.msra.mxu0 %v1090
      %1426 = vmatpush.bf16.xpose.msra.mxu0 %v1079
      %1427 = vmatpush.bf16.xpose.msra.mxu0 %v1068
      %1428 = vmatmul.bf16.gmra.mxu0 %v502
      %v1429 = vpop.f32.mrf.mxu0
      %v1430 = vadd.f32 %v461, %v1429
      %v1431 = vpop.f32.mrf.mxu0
      %v1432 = vadd.f32 %v466, %v1431
      %1433 = vdwg.mxu0
      %1434 = vmatpush.bf16.xpose.msra.mxu0 %v1146
      %1435 = vmatpush.bf16.xpose.msra.mxu0 %v1135
      %1436 = vmatpush.bf16.xpose.msra.mxu0 %v1124
      %1437 = vmatpush.bf16.xpose.msra.mxu0 %v1113
      %1438 = vmatpush.bf16.xpose.msra.mxu0 %v1102
      %1439 = vmatpush.bf16.xpose.msra.mxu0 %v1091
      %1440 = vmatpush.bf16.xpose.msra.mxu0 %v1080
      %1441 = vmatpush.bf16.xpose.msra.mxu0 %v1069
      %1442 = vmatmul.bf16.gmra.mxu0 %v503
      %v1443 = vpop.f32.mrf.mxu0
      %v1444 = vadd.f32 %v1430, %v1443
      %v1445 = vpop.f32.mrf.mxu0
      %v1446 = vadd.f32 %v1432, %v1445
      %1447 = vdwg.mxu0
      %1448 = vmatpush.bf16.xpose.msra.mxu0 %v1147
      %1449 = vmatpush.bf16.xpose.msra.mxu0 %v1136
      %1450 = vmatpush.bf16.xpose.msra.mxu0 %v1125
      %1451 = vmatpush.bf16.xpose.msra.mxu0 %v1114
      %1452 = vmatpush.bf16.xpose.msra.mxu0 %v1103
      %1453 = vmatpush.bf16.xpose.msra.mxu0 %v1092
      %1454 = vmatpush.bf16.xpose.msra.mxu0 %v1081
      %1455 = vmatpush.bf16.xpose.msra.mxu0 %v1070
      %1456 = vmatmul.bf16.gmra.mxu0 %v504
      %v1457 = vpop.f32.mrf.mxu0
      %v1458 = vadd.f32 %v1444, %v1457
      %v1459 = vpop.f32.mrf.mxu0
      %v1460 = vadd.f32 %v1446, %v1459
      %1461 = vdwg.mxu0
      %1462 = vmatpush.bf16.xpose.msra.mxu0 %v1148
      %1463 = vmatpush.bf16.xpose.msra.mxu0 %v1137
      %1464 = vmatpush.bf16.xpose.msra.mxu0 %v1126
      %1465 = vmatpush.bf16.xpose.msra.mxu0 %v1115
      %1466 = vmatpush.bf16.xpose.msra.mxu0 %v1104
      %1467 = vmatpush.bf16.xpose.msra.mxu0 %v1093
      %1468 = vmatpush.bf16.xpose.msra.mxu0 %v1082
      %1469 = vmatpush.bf16.xpose.msra.mxu0 %v1071
      %1470 = vmatmul.bf16.gmra.mxu0 %v505
      %v1471 = vpop.f32.mrf.mxu0
      %v1472 = vadd.f32 %v1458, %v1471
      %v1473 = vpop.f32.mrf.mxu0
      %v1474 = vadd.f32 %v1460, %v1473
      %1475 = vdwg.mxu0
      %1476 = vmatpush.bf16.xpose.msra.mxu0 %v1149
      %1477 = vmatpush.bf16.xpose.msra.mxu0 %v1138
      %1478 = vmatpush.bf16.xpose.msra.mxu0 %v1127
      %1479 = vmatpush.bf16.xpose.msra.mxu0 %v1116
      %1480 = vmatpush.bf16.xpose.msra.mxu0 %v1105
      %1481 = vmatpush.bf16.xpose.msra.mxu0 %v1094
      %1482 = vmatpush.bf16.xpose.msra.mxu0 %v1083
      %1483 = vmatpush.bf16.xpose.msra.mxu0 %v1072
      %1484 = vmatmul.bf16.gmra.mxu0 %v506
      %v1485 = vpop.f32.mrf.mxu0
      %v1486 = vadd.f32 %v1472, %v1485
      %v1487 = vpop.f32.mrf.mxu0
      %v1488 = vadd.f32 %v1474, %v1487
      %1489 = vdwg.mxu0
      %1490 = vmatpush.bf16.xpose.msra.mxu0 %v1150
      %1491 = vmatpush.bf16.xpose.msra.mxu0 %v1139
      %1492 = vmatpush.bf16.xpose.msra.mxu0 %v1128
      %1493 = vmatpush.bf16.xpose.msra.mxu0 %v1117
      %1494 = vmatpush.bf16.xpose.msra.mxu0 %v1106
      %1495 = vmatpush.bf16.xpose.msra.mxu0 %v1095
      %1496 = vmatpush.bf16.xpose.msra.mxu0 %v1084
      %1497 = vmatpush.bf16.xpose.msra.mxu0 %v1073
      %1498 = vmatmul.bf16.gmra.mxu0 %v507
      %v1499 = vpop.f32.mrf.mxu0
      %v1500 = vadd.f32 %v1486, %v1499
      %v1501 = vpop.f32.mrf.mxu0
      %v1502 = vadd.f32 %v1488, %v1501
      %1503 = vdwg.mxu0
      %1504 = vmatpush.bf16.xpose.msra.mxu0 %v1151
      %1505 = vmatpush.bf16.xpose.msra.mxu0 %v1140
      %1506 = vmatpush.bf16.xpose.msra.mxu0 %v1129
      %1507 = vmatpush.bf16.xpose.msra.mxu0 %v1118
      %1508 = vmatpush.bf16.xpose.msra.mxu0 %v1107
      %1509 = vmatpush.bf16.xpose.msra.mxu0 %v1096
      %1510 = vmatpush.bf16.xpose.msra.mxu0 %v1085
      %1511 = vmatpush.bf16.xpose.msra.mxu0 %v1074
      %1512 = vmatmul.bf16.gmra.mxu0 %v508
      %v1513 = vpop.f32.mrf.mxu0
      %v1514 = vadd.f32 %v1500, %v1513
      %v1515 = vpop.f32.mrf.mxu0
      %v1516 = vadd.f32 %v1502, %v1515
      %1517 = vdwg.mxu0
      %1518 = vmatpush.bf16.xpose.msra.mxu0 %v1152
      %1519 = vmatpush.bf16.xpose.msra.mxu0 %v1141
      %1520 = vmatpush.bf16.xpose.msra.mxu0 %v1130
      %1521 = vmatpush.bf16.xpose.msra.mxu0 %v1119
      %1522 = vmatpush.bf16.xpose.msra.mxu0 %v1108
      %1523 = vmatpush.bf16.xpose.msra.mxu0 %v1097
      %1524 = vmatpush.bf16.xpose.msra.mxu0 %v1086
      %1525 = vmatpush.bf16.xpose.msra.mxu0 %v1075
      %1526 = vmatmul.bf16.gmra.mxu0 %v509
      %v1527 = vpop.f32.mrf.mxu0
      %v1528 = vadd.f32 %v1514, %v1527
      %v1529 = vpop.f32.mrf.mxu0
      %v1530 = vadd.f32 %v1516, %v1529
      %1531 = vdwg.mxu0
      %1532 = vmatpush.bf16.xpose.msra.mxu0 %v1153
      %1533 = vmatpush.bf16.xpose.msra.mxu0 %v1142
      %1534 = vmatpush.bf16.xpose.msra.mxu0 %v1131
      %1535 = vmatpush.bf16.xpose.msra.mxu0 %v1120
      %1536 = vmatpush.bf16.xpose.msra.mxu0 %v1109
      %1537 = vmatpush.bf16.xpose.msra.mxu0 %v1098
      %1538 = vmatpush.bf16.xpose.msra.mxu0 %v1087
      %1539 = vmatpush.bf16.xpose.msra.mxu0 %v1076
      %1540 = vmatmul.bf16.gmra.mxu0 %v510
      %v1541 = vpop.f32.mrf.mxu0
      %v1542 = vadd.f32 %v1528, %v1541
      %v1543 = vpop.f32.mrf.mxu0
      %v1544 = vadd.f32 %v1530, %v1543
      %1545 = vdwg.mxu0
      %1546 = vmatpush.bf16.xpose.msra.mxu0 %v1154
      %1547 = vmatpush.bf16.xpose.msra.mxu0 %v1143
      %1548 = vmatpush.bf16.xpose.msra.mxu0 %v1132
      %1549 = vmatpush.bf16.xpose.msra.mxu0 %v1121
      %1550 = vmatpush.bf16.xpose.msra.mxu0 %v1110
      %1551 = vmatpush.bf16.xpose.msra.mxu0 %v1099
      %1552 = vmatpush.bf16.xpose.msra.mxu0 %v1088
      %1553 = vmatpush.bf16.xpose.msra.mxu0 %v1077
      %1554 = vmatmul.bf16.gmra.mxu0 %v511
      %v1555 = vpop.f32.mrf.mxu0
      %v1556 = vadd.f32 %v1542, %v1555
      %v1557 = vpop.f32.mrf.mxu0
      %v1558 = vadd.f32 %v1544, %v1557
      %1559 = vdwg.mxu0
      %1560 = vmatpush.bf16.xpose.msra.mxu0 %v1155
      %1561 = vmatpush.bf16.xpose.msra.mxu0 %v1144
      %1562 = vmatpush.bf16.xpose.msra.mxu0 %v1133
      %1563 = vmatpush.bf16.xpose.msra.mxu0 %v1122
      %1564 = vmatpush.bf16.xpose.msra.mxu0 %v1111
      %1565 = vmatpush.bf16.xpose.msra.mxu0 %v1100
      %1566 = vmatpush.bf16.xpose.msra.mxu0 %v1089
      %1567 = vmatpush.bf16.xpose.msra.mxu0 %v1078
      %1568 = vmatmul.bf16.gmra.mxu0 %v512
      %v1569 = vpop.f32.mrf.mxu0
      %v1570 = vadd.f32 %v1556, %v1569
      %v1571 = vpop.f32.mrf.mxu0
      %v1572 = vadd.f32 %v1558, %v1571
      %1573 = vdwg.mxu0
      %1574 = vmatpush.bf16.xpose.msra.mxu0 %v1233
      %1575 = vmatpush.bf16.xpose.msra.mxu0 %v1222
      %1576 = vmatpush.bf16.xpose.msra.mxu0 %v1211
      %1577 = vmatpush.bf16.xpose.msra.mxu0 %v1200
      %1578 = vmatpush.bf16.xpose.msra.mxu0 %v1189
      %1579 = vmatpush.bf16.xpose.msra.mxu0 %v1178
      %1580 = vmatpush.bf16.xpose.msra.mxu0 %v1167
      %1581 = vmatpush.bf16.xpose.msra.mxu0 %v1156
      %1582 = vmatmul.bf16.gmra.mxu0 %v502
      %v1583 = vpop.f32.mrf.mxu0
      %v1584 = vadd.f32 %v461, %v1583
      %v1585 = vpop.f32.mrf.mxu0
      %v1586 = vadd.f32 %v466, %v1585
      %1587 = vdwg.mxu0
      %1588 = vmatpush.bf16.xpose.msra.mxu0 %v1234
      %1589 = vmatpush.bf16.xpose.msra.mxu0 %v1223
      %1590 = vmatpush.bf16.xpose.msra.mxu0 %v1212
      %1591 = vmatpush.bf16.xpose.msra.mxu0 %v1201
      %1592 = vmatpush.bf16.xpose.msra.mxu0 %v1190
      %1593 = vmatpush.bf16.xpose.msra.mxu0 %v1179
      %1594 = vmatpush.bf16.xpose.msra.mxu0 %v1168
      %1595 = vmatpush.bf16.xpose.msra.mxu0 %v1157
      %1596 = vmatmul.bf16.gmra.mxu0 %v503
      %v1597 = vpop.f32.mrf.mxu0
      %v1598 = vadd.f32 %v1584, %v1597
      %v1599 = vpop.f32.mrf.mxu0
      %v1600 = vadd.f32 %v1586, %v1599
      %1601 = vdwg.mxu0
      %1602 = vmatpush.bf16.xpose.msra.mxu0 %v1235
      %1603 = vmatpush.bf16.xpose.msra.mxu0 %v1224
      %1604 = vmatpush.bf16.xpose.msra.mxu0 %v1213
      %1605 = vmatpush.bf16.xpose.msra.mxu0 %v1202
      %1606 = vmatpush.bf16.xpose.msra.mxu0 %v1191
      %1607 = vmatpush.bf16.xpose.msra.mxu0 %v1180
      %1608 = vmatpush.bf16.xpose.msra.mxu0 %v1169
      %1609 = vmatpush.bf16.xpose.msra.mxu0 %v1158
      %1610 = vmatmul.bf16.gmra.mxu0 %v504
      %v1611 = vpop.f32.mrf.mxu0
      %v1612 = vadd.f32 %v1598, %v1611
      %v1613 = vpop.f32.mrf.mxu0
      %v1614 = vadd.f32 %v1600, %v1613
      %1615 = vdwg.mxu0
      %1616 = vmatpush.bf16.xpose.msra.mxu0 %v1236
      %1617 = vmatpush.bf16.xpose.msra.mxu0 %v1225
      %1618 = vmatpush.bf16.xpose.msra.mxu0 %v1214
      %1619 = vmatpush.bf16.xpose.msra.mxu0 %v1203
      %1620 = vmatpush.bf16.xpose.msra.mxu0 %v1192
      %1621 = vmatpush.bf16.xpose.msra.mxu0 %v1181
      %1622 = vmatpush.bf16.xpose.msra.mxu0 %v1170
      %1623 = vmatpush.bf16.xpose.msra.mxu0 %v1159
      %1624 = vmatmul.bf16.gmra.mxu0 %v505
      %v1625 = vpop.f32.mrf.mxu0
      %v1626 = vadd.f32 %v1612, %v1625
      %v1627 = vpop.f32.mrf.mxu0
      %v1628 = vadd.f32 %v1614, %v1627
      %1629 = vdwg.mxu0
      %1630 = vmatpush.bf16.xpose.msra.mxu0 %v1237
      %1631 = vmatpush.bf16.xpose.msra.mxu0 %v1226
      %1632 = vmatpush.bf16.xpose.msra.mxu0 %v1215
      %1633 = vmatpush.bf16.xpose.msra.mxu0 %v1204
      %1634 = vmatpush.bf16.xpose.msra.mxu0 %v1193
      %1635 = vmatpush.bf16.xpose.msra.mxu0 %v1182
      %1636 = vmatpush.bf16.xpose.msra.mxu0 %v1171
      %1637 = vmatpush.bf16.xpose.msra.mxu0 %v1160
      %1638 = vmatmul.bf16.gmra.mxu0 %v506
      %v1639 = vpop.f32.mrf.mxu0
      %v1640 = vadd.f32 %v1626, %v1639
      %v1641 = vpop.f32.mrf.mxu0
      %v1642 = vadd.f32 %v1628, %v1641
      %1643 = vdwg.mxu0
      %1644 = vmatpush.bf16.xpose.msra.mxu0 %v1238
      %1645 = vmatpush.bf16.xpose.msra.mxu0 %v1227
      %1646 = vmatpush.bf16.xpose.msra.mxu0 %v1216
      %1647 = vmatpush.bf16.xpose.msra.mxu0 %v1205
      %1648 = vmatpush.bf16.xpose.msra.mxu0 %v1194
      %1649 = vmatpush.bf16.xpose.msra.mxu0 %v1183
      %1650 = vmatpush.bf16.xpose.msra.mxu0 %v1172
      %1651 = vmatpush.bf16.xpose.msra.mxu0 %v1161
      %1652 = vmatmul.bf16.gmra.mxu0 %v507
      %v1653 = vpop.f32.mrf.mxu0
      %v1654 = vadd.f32 %v1640, %v1653
      %v1655 = vpop.f32.mrf.mxu0
      %v1656 = vadd.f32 %v1642, %v1655
      %1657 = vdwg.mxu0
      %1658 = vmatpush.bf16.xpose.msra.mxu0 %v1239
      %1659 = vmatpush.bf16.xpose.msra.mxu0 %v1228
      %1660 = vmatpush.bf16.xpose.msra.mxu0 %v1217
      %1661 = vmatpush.bf16.xpose.msra.mxu0 %v1206
      %1662 = vmatpush.bf16.xpose.msra.mxu0 %v1195
      %1663 = vmatpush.bf16.xpose.msra.mxu0 %v1184
      %1664 = vmatpush.bf16.xpose.msra.mxu0 %v1173
      %1665 = vmatpush.bf16.xpose.msra.mxu0 %v1162
      %1666 = vmatmul.bf16.gmra.mxu0 %v508
      %v1667 = vpop.f32.mrf.mxu0
      %v1668 = vadd.f32 %v1654, %v1667
      %v1669 = vpop.f32.mrf.mxu0
      %v1670 = vadd.f32 %v1656, %v1669
      %1671 = vdwg.mxu0
      %1672 = vmatpush.bf16.xpose.msra.mxu0 %v1240
      %1673 = vmatpush.bf16.xpose.msra.mxu0 %v1229
      %1674 = vmatpush.bf16.xpose.msra.mxu0 %v1218
      %1675 = vmatpush.bf16.xpose.msra.mxu0 %v1207
      %1676 = vmatpush.bf16.xpose.msra.mxu0 %v1196
      %1677 = vmatpush.bf16.xpose.msra.mxu0 %v1185
      %1678 = vmatpush.bf16.xpose.msra.mxu0 %v1174
      %1679 = vmatpush.bf16.xpose.msra.mxu0 %v1163
      %1680 = vmatmul.bf16.gmra.mxu0 %v509
      %v1681 = vpop.f32.mrf.mxu0
      %v1682 = vadd.f32 %v1668, %v1681
      %v1683 = vpop.f32.mrf.mxu0
      %v1684 = vadd.f32 %v1670, %v1683
      %1685 = vdwg.mxu0
      %1686 = vmatpush.bf16.xpose.msra.mxu0 %v1241
      %1687 = vmatpush.bf16.xpose.msra.mxu0 %v1230
      %1688 = vmatpush.bf16.xpose.msra.mxu0 %v1219
      %1689 = vmatpush.bf16.xpose.msra.mxu0 %v1208
      %1690 = vmatpush.bf16.xpose.msra.mxu0 %v1197
      %1691 = vmatpush.bf16.xpose.msra.mxu0 %v1186
      %1692 = vmatpush.bf16.xpose.msra.mxu0 %v1175
      %1693 = vmatpush.bf16.xpose.msra.mxu0 %v1164
      %1694 = vmatmul.bf16.gmra.mxu0 %v510
      %v1695 = vpop.f32.mrf.mxu0
      %v1696 = vadd.f32 %v1682, %v1695
      %v1697 = vpop.f32.mrf.mxu0
      %v1698 = vadd.f32 %v1684, %v1697
      %1699 = vdwg.mxu0
      %1700 = vmatpush.bf16.xpose.msra.mxu0 %v1242
      %1701 = vmatpush.bf16.xpose.msra.mxu0 %v1231
      %1702 = vmatpush.bf16.xpose.msra.mxu0 %v1220
      %1703 = vmatpush.bf16.xpose.msra.mxu0 %v1209
      %1704 = vmatpush.bf16.xpose.msra.mxu0 %v1198
      %1705 = vmatpush.bf16.xpose.msra.mxu0 %v1187
      %1706 = vmatpush.bf16.xpose.msra.mxu0 %v1176
      %1707 = vmatpush.bf16.xpose.msra.mxu0 %v1165
      %1708 = vmatmul.bf16.gmra.mxu0 %v511
      %v1709 = vpop.f32.mrf.mxu0
      %v1710 = vadd.f32 %v1696, %v1709
      %v1711 = vpop.f32.mrf.mxu0
      %v1712 = vadd.f32 %v1698, %v1711
      %1713 = vdwg.mxu0
      %1714 = vmatpush.bf16.xpose.msra.mxu0 %v1243
      %1715 = vmatpush.bf16.xpose.msra.mxu0 %v1232
      %1716 = vmatpush.bf16.xpose.msra.mxu0 %v1221
      %1717 = vmatpush.bf16.xpose.msra.mxu0 %v1210
      %1718 = vmatpush.bf16.xpose.msra.mxu0 %v1199
      %1719 = vmatpush.bf16.xpose.msra.mxu0 %v1188
      %1720 = vmatpush.bf16.xpose.msra.mxu0 %v1177
      %1721 = vmatpush.bf16.xpose.msra.mxu0 %v1166
      %1722 = vmatmul.bf16.gmra.mxu0 %v512
      %v1723 = vpop.f32.mrf.mxu0
      %v1724 = vadd.f32 %v1710, %v1723
      %v1725 = vpop.f32.mrf.mxu0
      %v1726 = vadd.f32 %v1712, %v1725
      %1727 = vdwg.mxu0
      %v1728 = vadd.f32 %v1570, %v1724
      %1729 = vadd.xlane.f32.xlu0 %v1728
      %v1730 = vpop.xlane.xlu0 %1729
      %v1731 = vadd.f32 %v1572, %v1726
      %1732 = vadd.xlane.f32.xlu0 %v1731
      %v1733 = vpop.xlane.xlu0 %1732
      %v1734 = vld [vmem:[%s5] sm:$0xff]
      %v1735 = vld [vmem:[%s5 + $0x8] sm:$0xff]
      %vm1736 = vcmask 130048
      %v1738 = vsel %vm1736, %v1734, 0
      %v1741 = vsel %vm1736, %v1735, 0
      %1743 = vmatpush.msra.mxu0 0.0
      %1744 = vmatpush.msra.mxu0 0.0
      %1745 = vmatpush.msra.mxu0 0.0
      %1746 = vmatpush.msra.mxu0 0.0
      %1747 = vmatpush.msra.mxu0 0.0
      %1748 = vmatpush.msra.mxu0 0.0
      %1749 = vmatpush.msra.mxu0 0.0
      %1750 = vmatpush.msra.mxu0 0.0
      %1751 = vmatpush.msra.mxu0 0.0
      %1752 = vmatpush.msra.mxu0 0.0
      %1753 = vmatpush.msra.mxu0 0.0
      %1754 = vmatpush.msra.mxu0 0.0
      %1755 = vmatpush.msra.mxu0 0.0
      %1756 = vmatpush.msra.mxu0 0.0
      %1757 = vmatpush.msra.mxu0 %v1733
      %1758 = vmatpush.msra.mxu0 %v1730
      %1759 = vmatmul.f32.gmra.mxu0 %v1738
      %v1760 = vpop.f32.mrf.mxu0
      %v1761 = vadd.f32 0.0, %v1760
      %1762 = vmatmul.f32.gmra.mxu0 %v1741
      %v1763 = vpop.f32.mrf.mxu0
      %v1764 = vadd.f32 0.0, %v1763
      %1765 = vdwg.mxu0
      %v1766 = vmul.f32 %v1761, 0.0009765625
      %v1767 = vmul.f32 %v1764, 0.0009765625
      %1769 = vset.pattern.permute.xlu0 0
      %1770 = vperm.xlu0 %1769, %v1766
      %v1771 = vpop.permute.xlu0 %1770
      %1774 = vset.pattern.permute.xlu0 0
      %1775 = vperm.xlu0 %1774, %v1767
      %v1776 = vpop.permute.xlu0 %1775
      %v1778 = vsub.f32 %v1570, %v1771
      %v1779 = vsub.f32 %v1724, %v1771
      %v1780 = vsub.f32 %v1572, %v1776
      %v1781 = vsub.f32 %v1726, %v1776
      %v1782 = vmul.f32 %v1778, %v1778
      %v1783 = vmul.f32 %v1779, %v1779
      %v1784 = vmul.f32 %v1780, %v1780
      %v1785 = vmul.f32 %v1781, %v1781
      %v1786 = vadd.f32 %v1782, %v1783
      %1787 = vadd.xlane.f32.xlu0 %v1786
      %v1788 = vpop.xlane.xlu0 %1787
      %v1789 = vadd.f32 %v1784, %v1785
      %1790 = vadd.xlane.f32.xlu0 %v1789
      %v1791 = vpop.xlane.xlu0 %1790
      %1792 = vmatpush.msra.mxu0 0.0
      %1793 = vmatpush.msra.mxu0 0.0
      %1794 = vmatpush.msra.mxu0 0.0
      %1795 = vmatpush.msra.mxu0 0.0
      %1796 = vmatpush.msra.mxu0 0.0
      %1797 = vmatpush.msra.mxu0 0.0
      %1798 = vmatpush.msra.mxu0 0.0
      %1799 = vmatpush.msra.mxu0 0.0
      %1800 = vmatpush.msra.mxu0 0.0
      %1801 = vmatpush.msra.mxu0 0.0
      %1802 = vmatpush.msra.mxu0 0.0
      %1803 = vmatpush.msra.mxu0 0.0
      %1804 = vmatpush.msra.mxu0 0.0
      %1805 = vmatpush.msra.mxu0 0.0
      %1806 = vmatpush.msra.mxu0 %v1791
      %1807 = vmatpush.msra.mxu0 %v1788
      %1808 = vmatmul.f32.gmra.mxu0 %v1738
      %v1809 = vpop.f32.mrf.mxu0
      %v1810 = vadd.f32 0.0, %v1809
      %1811 = vmatmul.f32.gmra.mxu0 %v1741
      %v1812 = vpop.f32.mrf.mxu0
      %v1813 = vadd.f32 0.0, %v1812
      %1814 = vdwg.mxu0
      %v1815 = vmul.f32 %v1810, 0.0009765625
      %v1816 = vmul.f32 %v1813, 0.0009765625
      %v1817 = vadd.f32 %v1815, 1e-05
      %v1818 = vadd.f32 %v1816, 1e-05
      %v1819 = vrsqrt.pop %v1817
      %v1820 = vmul.f32 %v1819, %v1817
      %v1821 = vmul.f32 %v1820, %v1819
      %v1822 = vmul.f32 0.5, %v1821
      %v1823 = vsub.f32 1.5, %v1822
      %v1824 = vmul.f32 %v1819, %v1823
      %vm1825 = vweird.f32 %v1817
      %vm1826 = vweird.f32 %v1819
      %vm1827 = vmor %vm1825, %vm1826
      %v1828 = vsel %vm1827, %v1819, %v1824
      %v1829 = vrsqrt.pop %v1818
      %v1830 = vmul.f32 %v1829, %v1818
      %v1831 = vmul.f32 %v1830, %v1829
      %v1832 = vmul.f32 0.5, %v1831
      %v1833 = vsub.f32 1.5, %v1832
      %v1834 = vmul.f32 %v1829, %v1833
      %vm1835 = vweird.f32 %v1818
      %vm1836 = vweird.f32 %v1829
      %vm1837 = vmor %vm1835, %vm1836
      %v1838 = vsel %vm1837, %v1829, %v1834
      %v1839 = vld [vmem:[%s3] sm:$0xff]
      %v1840 = vld [vmem:[%s3 + $0x8] sm:$0xff]
      %v1841 = vmul.f32 %v1828, %v1839
      %v1842 = vmul.f32 %v1838, %v1840
      %1844 = vset.pattern.permute.xlu0 0
      %1845 = vperm.xlu0 %1844, %v1841
      %v1846 = vpop.permute.xlu0 %1845
      %1849 = vset.pattern.permute.xlu0 0
      %1850 = vperm.xlu0 %1849, %v1842
      %v1851 = vpop.permute.xlu0 %1850
      %v1853 = vmul.f32 %v1778, %v1846
      %v1854 = vmul.f32 %v1779, %v1846
      %v1855 = vmul.f32 %v1780, %v1851
      %v1856 = vmul.f32 %v1781, %v1851
      %v1857 = vld [vmem:[%s4] sm:$0xff]
      %v1858 = vld [vmem:[%s4 + $0x8] sm:$0xff]
      %1860 = vset.pattern.permute.xlu0 0
      %1861 = vperm.xlu0 %1860, %v1857
      %v1862 = vpop.permute.xlu0 %1861
      %1865 = vset.pattern.permute.xlu0 0
      %1866 = vperm.xlu0 %1865, %v1858
      %v1867 = vpop.permute.xlu0 %1866
      %v1869 = vadd.f32 %v1853, %v1862
      %v1870 = vadd.f32 %v1854, %v1862
      %v1871 = vadd.f32 %v1855, %v1867
      %v1872 = vadd.f32 %v1856, %v1867
      %v1873 = vmax.f32 %v1869, 0.0
      %v1874 = vmax.f32 %v1870, 0.0
      %v1875 = vmax.f32 %v1871, 0.0
      %v1876 = vmax.f32 %v1872, 0.0
      %v1877 = vpack.c.bf16 %v1874, %v1873
      %v1878 = vpack.c.bf16 %v1876, %v1875
      %1879 = vst [vmem:[%s251] sm:$0xff] %v1877
      %1880 = vst [vmem:[%s251 + $0x8] sm:$0xff] %v1878
      %p1881 = scmp.lt.s32.totalorder %s17, 1
      %s1882 = scalar_select %p1881, %s17, 1
      %s1883 = smul.addr %s1882, 4
      %s1884 = smul.addr %s1883, 4
      %s1885 = scalar_lea.vmem %s6, %s1884
      // Predicated region
      $region45: #{cvlearner_forward.7} parent=43 // pred_check
        %p1886 = pneg %p166
      $region46: #{cvlearner_forward.7} parent=43 // pred_check_branch
        %1888 = sbr.rel (%p1886) target = $region48
      $region47: #{cvlearner_forward.7} parent=43 // pred_region
        _
      $region48: #{cvlearner_forward.7} parent=43 // pred_fallthru
        _
    $region44: #{cvlearner_forward.7} parent=5 // pred_fallthru
      _
    %p1889 = scmp.le.s32.totalorder 2, %s12
    // Predicated region
    $region49: #{cvlearner_forward.7} parent=5 // pred_check
      %p1890 = pneg %p1889
    $region50: #{cvlearner_forward.7} parent=5 // pred_check_branch
      %1892 = sbr.rel (%p1890) target = $region52
    $region51: #{cvlearner_forward.7} parent=5 // pred_region
      %s1893 = ssub.s32 %s12, 2
      // Predicated region
      $region53: #{cvlearner_forward.7} parent=51 // pred_check
        %p1894 = pneg %p172
      $region54: #{cvlearner_forward.7} parent=51 // pred_check_branch
        %1896 = sbr.rel (%p1894) target = $region56
      $region55: #{cvlearner_forward.7} parent=51 // pred_region
        %p1897 = scmp.lt.s32.totalorder %s18, 1
        %s1898 = scalar_select %p1897, %s18, 1
        %s1899 = smul.addr %s1898, 4
        %s1900 = smul.addr %s1899, 4
        %s1901 = scalar_lea.vmem %s6, %s1900
      $region56: #{cvlearner_forward.7} parent=51 // pred_fallthru
        _
    $region52: #{cvlearner_forward.7} parent=5 // pred_fallthru
      _
  $region6: #{cvlearner_forward.7} parent=0 // loop_footer
    %s16 = sadd.s32 1, %s12
  $region7: #{cvlearner_forward.7} parent=0 // loop_footer_branch
    %11 = sbr.rel target = $region3
  $region8: #{cvlearner_forward.7} parent=0 // loop_exit
    _

// kernel: cvlearner_forward.8
$region0: #{cvlearner_forward.8}
  #allocation0 [shape = 'u32[]', space=smem, size = 0x4, offset = 0x4, fixed_abs, tag = 'smem constant byte address 0x4 - core index']
  #allocation1 [shape = 'u32[72,128]{1,0:T(1,128)}', space=vmem, size = 0x9000, scoped, tag = 'internal scratch']
  %s0 = inlined_call_operand.vmem [shape: bf16[2,16,1408], index: 0, kind: input, shape index: {}]
  %s1 = inlined_call_operand.vmem [shape: bf16[32,1408], index: 1, kind: input, shape index: {}]
  %s2 = inlined_call_operand.vmem [shape: f32[32,1], index: 2, kind: input, shape index: {}]
  %s3 = inlined_call_operand.vmem [shape: f32[32,1], index: 3, kind: input, shape index: {}]
  %s4 = inlined_call_operand.vmem [shape: f32[32,1], index: 4, kind: input, shape index: {}]
  %s5 = inlined_call_operand.vmem [shape: f32[32,32], index: 5, kind: input, shape index: {}]
  %s6 = inlined_call_operand.vmem [shape: bf16[2,32,16], index: 6, kind: output, shape index: {}]
  %s7 = sld [smem:[#allocation0]]
  $region57: #{cvlearner_forward.8} parent=0
    _
  %s9 = ssub.s32 1, %s7
  %s10 = scalar_select 0, %s9, %s7
  loop: start=0, step=1, limit=4
  $region2: #{cvlearner_forward.8} parent=0 // loop_pre_header
    _
  $region3: #{cvlearner_forward.8} parent=0 // loop_header
    %s12 = sphi 0, %s16
    %p13 = scmp.ge.s32.totalorder %s12, 4
    %s22 = sphi 0, %s24
    %s25 = sphi 0, %s22
    %s26 = sphi 0, %s25
    %s42 = sphi 0, %s26
    %s46 = sphi 0, %s46
    %s48 = sphi 0, %s46
    %s49 = sphi 0, %s48
    %s63 = sphi 0, %s49
    %s67 = sphi 0, %s67
    %s69 = sphi 0, %s67
    %s70 = sphi 0, %s69
    %s84 = sphi 0, %s70
    %s88 = sphi 0, %s88
    %s90 = sphi 0, %s88
    %s91 = sphi 0, %s90
    %s105 = sphi 0, %s91
    %s109 = sphi 0, %s109
    %s111 = sphi 0, %s109
    %s112 = sphi 0, %s111
    %s126 = sphi 0, %s112
    %s130 = sphi 0, %s130
    %s132 = sphi 0, %s130
    %s133 = sphi 0, %s132
    %s147 = sphi 0, %s133
    %s153 = sphi 0, %s155
    %s156 = sphi 0, %s153
    %s157 = sphi 0, %s156
    %s173 = sphi 0, %s157
  $region4: #{cvlearner_forward.8} parent=0 // loop_header_branch
    %15 = sbr.rel (%p13) target = $region8
  $region5: #{cvlearner_forward.8} parent=0 // loop_body
    %s17 = ssub.s32 %s12, 1
    %s18 = ssub.s32 %s12, 2
    %s19 = sadd.s32 %s12, 1
    %s20 = ssub.s32 %s12, %s19
    %p21 = scmp.eq.s32.totalorder %s20, 0
    %s23 = sadd.s32 %s22, 1
    %s24 = scalar_select %p21, %s22, %s23
    %p27 = pneg %p21
    %p28 = scmp.eq.s32.totalorder %s12, 1
    %p29 = por %p27, %p28
    %p30 = scmp.ne.s32.totalorder %s22, %s25
    %p31 = scmp.eq.s32.totalorder %s12, 0
    %p32 = por %p30, %p31
    %p33 = scmp.ne.s32.totalorder %s22, %s25
    %p34 = scmp.eq.s32.totalorder %s17, 1
    %p35 = por %p33, %p34
    %p36 = scmp.ne.s32.totalorder %s25, %s26
    %p37 = scmp.eq.s32.totalorder %s17, 0
    %p38 = por %p36, %p37
    %p39 = scmp.ne.s32.totalorder %s25, %s26
    %p40 = scmp.eq.s32.totalorder %s18, 1
    %p41 = por %p39, %p40
    %p43 = scmp.ne.s32.totalorder %s26, %s42
    %p44 = scmp.eq.s32.totalorder %s18, 0
    %p45 = por %p43, %p44
    %s47 = sadd.s32 %s46, 1
    %p50 = scmp.eq.s32.totalorder %s12, 1
    %p51 = scmp.ne.s32.totalorder %s46, %s48
    %p52 = scmp.eq.s32.totalorder %s12, 0
    %p53 = por %p51, %p52
    %p54 = scmp.ne.s32.totalorder %s46, %s48
    %p55 = scmp.eq.s32.totalorder %s17, 1
    %p56 = por %p54, %p55
    %p57 = scmp.ne.s32.totalorder %s48, %s49
    %p58 = scmp.eq.s32.totalorder %s17, 0
    %p59 = por %p57, %p58
    %p60 = scmp.ne.s32.totalorder %s48, %s49
    %p61 = scmp.eq.s32.totalorder %s18, 1
    %p62 = por %p60, %p61
    %p64 = scmp.ne.s32.totalorder %s49, %s63
    %p65 = scmp.eq.s32.totalorder %s18, 0
    %p66 = por %p64, %p65
    %s68 = sadd.s32 %s67, 1
    %p71 = scmp.eq.s32.totalorder %s12, 1
    %p72 = scmp.ne.s32.totalorder %s67, %s69
    %p73 = scmp.eq.s32.totalorder %s12, 0
    %p74 = por %p72, %p73
    %p75 = scmp.ne.s32.totalorder %s67, %s69
    %p76 = scmp.eq.s32.totalorder %s17, 1
    %p77 = por %p75, %p76
    %p78 = scmp.ne.s32.totalorder %s69, %s70
    %p79 = scmp.eq.s32.totalorder %s17, 0
    %p80 = por %p78, %p79
    %p81 = scmp.ne.s32.totalorder %s69, %s70
    %p82 = scmp.eq.s32.totalorder %s18, 1
    %p83 = por %p81, %p82
    %p85 = scmp.ne.s32.totalorder %s70, %s84
    %p86 = scmp.eq.s32.totalorder %s18, 0
    %p87 = por %p85, %p86
    %s89 = sadd.s32 %s88, 1
    %p92 = scmp.eq.s32.totalorder %s12, 1
    %p93 = scmp.ne.s32.totalorder %s88, %s90
    %p94 = scmp.eq.s32.totalorder %s12, 0
    %p95 = por %p93, %p94
    %p96 = scmp.ne.s32.totalorder %s88, %s90
    %p97 = scmp.eq.s32.totalorder %s17, 1
    %p98 = por %p96, %p97
    %p99 = scmp.ne.s32.totalorder %s90, %s91
    %p100 = scmp.eq.s32.totalorder %s17, 0
    %p101 = por %p99, %p100
    %p102 = scmp.ne.s32.totalorder %s90, %s91
    %p103 = scmp.eq.s32.totalorder %s18, 1
    %p104 = por %p102, %p103
    %p106 = scmp.ne.s32.totalorder %s91, %s105
    %p107 = scmp.eq.s32.totalorder %s18, 0
    %p108 = por %p106, %p107
    %s110 = sadd.s32 %s109, 1
    %p113 = scmp.eq.s32.totalorder %s12, 1
    %p114 = scmp.ne.s32.totalorder %s109, %s111
    %p115 = scmp.eq.s32.totalorder %s12, 0
    %p116 = por %p114, %p115
    %p117 = scmp.ne.s32.totalorder %s109, %s111
    %p118 = scmp.eq.s32.totalorder %s17, 1
    %p119 = por %p117, %p118
    %p120 = scmp.ne.s32.totalorder %s111, %s112
    %p121 = scmp.eq.s32.totalorder %s17, 0
    %p122 = por %p120, %p121
    %p123 = scmp.ne.s32.totalorder %s111, %s112
    %p124 = scmp.eq.s32.totalorder %s18, 1
    %p125 = por %p123, %p124
    %p127 = scmp.ne.s32.totalorder %s112, %s126
    %p128 = scmp.eq.s32.totalorder %s18, 0
    %p129 = por %p127, %p128
    %s131 = sadd.s32 %s130, 1
    %p134 = scmp.eq.s32.totalorder %s12, 1
    %p135 = scmp.ne.s32.totalorder %s130, %s132
    %p136 = scmp.eq.s32.totalorder %s12, 0
    %p137 = por %p135, %p136
    %p138 = scmp.ne.s32.totalorder %s130, %s132
    %p139 = scmp.eq.s32.totalorder %s17, 1
    %p140 = por %p138, %p139
    %p141 = scmp.ne.s32.totalorder %s132, %s133
    %p142 = scmp.eq.s32.totalorder %s17, 0
    %p143 = por %p141, %p142
    %p144 = scmp.ne.s32.totalorder %s132, %s133
    %p145 = scmp.eq.s32.totalorder %s18, 1
    %p146 = por %p144, %p145
    %p148 = scmp.ne.s32.totalorder %s133, %s147
    %p149 = scmp.eq.s32.totalorder %s18, 0
    %p150 = por %p148, %p149
    %s151 = ssub.s32 %s12, %s19
    %p152 = scmp.eq.s32.totalorder %s151, 0
    %s154 = sadd.s32 %s153, 1
    %s155 = scalar_select %p152, %s153, %s154
    %p158 = pneg %p152
    %p159 = scmp.eq.s32.totalorder %s12, 1
    %p160 = por %p158, %p159
    %p161 = scmp.ne.s32.totalorder %s153, %s156
    %p162 = scmp.eq.s32.totalorder %s12, 0
    %p163 = por %p161, %p162
    %p164 = scmp.ne.s32.totalorder %s153, %s156
    %p165 = scmp.eq.s32.totalorder %s17, 1
    %p166 = por %p164, %p165
    %p167 = scmp.ne.s32.totalorder %s156, %s157
    %p168 = scmp.eq.s32.totalorder %s17, 0
    %p169 = por %p167, %p168
    %p170 = scmp.ne.s32.totalorder %s156, %s157
    %p171 = scmp.eq.s32.totalorder %s18, 1
    %p172 = por %p170, %p171
    %p174 = scmp.ne.s32.totalorder %s157, %s173
    %p175 = scmp.eq.s32.totalorder %s18, 0
    %p176 = por %p174, %p175
    %p177 = scmp.le.s32.totalorder 1, %s12
    %p178 = scmp.lt.s32.totalorder %s12, 3
    %p179 = pnand %p177, %p178
    %p180 = pneg %p179
    // Predicated region
    $region9: #{cvlearner_forward.8} parent=5 // pred_check
      _
    $region10: #{cvlearner_forward.8} parent=5 // pred_check_branch
      %182 = sbr.rel (%p179) target = $region12
    $region11: #{cvlearner_forward.8} parent=5 // pred_region
      %s183 = ssub.s32 %s12, 1
      // Predicated region
      $region13: #{cvlearner_forward.8} parent=11 // pred_check
        %p184 = pneg %p59
      $region14: #{cvlearner_forward.8} parent=11 // pred_check_branch
        %186 = sbr.rel (%p184) target = $region16
      $region15: #{cvlearner_forward.8} parent=11 // pred_region
        _
      $region16: #{cvlearner_forward.8} parent=11 // pred_fallthru
        _
      // Predicated region
      $region17: #{cvlearner_forward.8} parent=11 // pred_check
        %p187 = pneg %p80
      $region18: #{cvlearner_forward.8} parent=11 // pred_check_branch
        %189 = sbr.rel (%p187) target = $region20
      $region19: #{cvlearner_forward.8} parent=11 // pred_region
        _
      $region20: #{cvlearner_forward.8} parent=11 // pred_fallthru
        _
      // Predicated region
      $region21: #{cvlearner_forward.8} parent=11 // pred_check
        %p190 = pneg %p101
      $region22: #{cvlearner_forward.8} parent=11 // pred_check_branch
        %192 = sbr.rel (%p190) target = $region24
      $region23: #{cvlearner_forward.8} parent=11 // pred_region
        _
      $region24: #{cvlearner_forward.8} parent=11 // pred_fallthru
        _
      // Predicated region
      $region25: #{cvlearner_forward.8} parent=11 // pred_check
        %p193 = pneg %p122
      $region26: #{cvlearner_forward.8} parent=11 // pred_check_branch
        %195 = sbr.rel (%p193) target = $region28
      $region27: #{cvlearner_forward.8} parent=11 // pred_region
        _
      $region28: #{cvlearner_forward.8} parent=11 // pred_fallthru
        _
      // Predicated region
      $region29: #{cvlearner_forward.8} parent=11 // pred_check
        %p196 = pneg %p143
      $region30: #{cvlearner_forward.8} parent=11 // pred_check_branch
        %198 = sbr.rel (%p196) target = $region32
      $region31: #{cvlearner_forward.8} parent=11 // pred_region
        _
      $region32: #{cvlearner_forward.8} parent=11 // pred_fallthru
        _
    $region12: #{cvlearner_forward.8} parent=5 // pred_fallthru
      _
    %p199 = scmp.lt.s32.totalorder %s12, 2
    // Predicated region
    $region33: #{cvlearner_forward.8} parent=5 // pred_check
      %p200 = pneg %p199
    $region34: #{cvlearner_forward.8} parent=5 // pred_check_branch
      %202 = sbr.rel (%p200) target = $region36
    $region35: #{cvlearner_forward.8} parent=5 // pred_region
      // Predicated region
      $region37: #{cvlearner_forward.8} parent=35 // pred_check
        %p203 = pneg %p32
      $region38: #{cvlearner_forward.8} parent=35 // pred_check_branch
        %205 = sbr.rel (%p203) target = $region40
      $region39: #{cvlearner_forward.8} parent=35 // pred_region
        %p206 = scmp.lt.s32.totalorder %s12, 1
        %s207 = scalar_select %p206, %s12, 1
        %s208 = smul.addr %s207, 22
        %s209 = smul.addr %s208, 4
        %s210 = scalar_lea.vmem %s0, %s209
      $region40: #{cvlearner_forward.8} parent=35 // pred_fallthru
        _
    $region36: #{cvlearner_forward.8} parent=5 // pred_fallthru
      _
    %p211 = scmp.le.s32.totalorder 1, %s12
    %p212 = scmp.lt.s32.totalorder %s12, 3
    %p213 = pnand %p211, %p212
    %p214 = pneg %p213
    // Predicated region
    $region41: #{cvlearner_forward.8} parent=5 // pred_check
      _
    $region42: #{cvlearner_forward.8} parent=5 // pred_check_branch
      %216 = sbr.rel (%p213) target = $region44
    $region43: #{cvlearner_forward.8} parent=5 // pred_region
      %s217 = ssub.s32 %s12, 1
      %p218 = scmp.lt.s32.totalorder %s17, 1
      %s219 = scalar_select %p218, %s17, 1
      %s220 = smul.addr %s219, 22
      %s221 = smul.addr %s220, 4
      %s222 = scalar_lea.vmem %s0, %s221
      %p223 = pneg %p38
      %p224 = pneg %p35
      %p225 = pneg %p59
      %p226 = pneg %p56
      %p227 = pneg %p80
      %p228 = pneg %p77
      %p229 = pneg %p101
      %p230 = pneg %p98
      %p231 = pneg %p122
      %p232 = pneg %p119
      %p233 = pneg %p143
      %p234 = pneg %p140
      %p235 = pneg %p169
      %p236 = pneg %p166
      %p237 = scmp.lt.s32.totalorder %s17, 1
      %s238 = scalar_select %p237, %s17, 1
      %s239 = smul.addr %s238, 4
      %s240 = smul.addr %s239, 4
      %s241 = scalar_lea.vmem %s6, %s240
      %p242 = scmp.lt.s32.totalorder %s17, 1
      %s243 = scalar_select %p242, %s17, 1
      %s244 = smul.addr %s243, 22
      %s245 = smul.addr %s244, 4
      %s246 = scalar_lea.vmem %s0, %s245
      %p247 = scmp.lt.s32.totalorder %s17, 1
      %s248 = scalar_select %p247, %s17, 1
      %s249 = smul.addr %s248, 4
      %s250 = smul.addr %s249, 4
      %s251 = scalar_lea.vmem %s6, %s250
      %v253 = vld [vmem:[%s1] sm:$0xff]
      %v254 = vld [vmem:[%s1 + $0x8] sm:$0xff]
      %v255 = vld [vmem:[%s1 + $0x10] sm:$0xff]
      %v256 = vld [vmem:[%s1 + $0x18] sm:$0xff]
      %v257 = vld [vmem:[%s1 + $0x20] sm:$0xff]
      %v258 = vld [vmem:[%s1 + $0x28] sm:$0xf]
      %v259 = vld [vmem:[%s1 + $0x2c] sm:$0xff]
      %v260 = vld [vmem:[%s1 + $0x34] sm:$0xff]
      %v261 = vld [vmem:[%s1 + $0x3c] sm:$0xff]
      %v262 = vld [vmem:[%s1 + $0x44] sm:$0xff]
      %v263 = vld [vmem:[%s1 + $0x4c] sm:$0xff]
      %v264 = vld [vmem:[%s1 + $0x54] sm:$0xf]
      %v265 = vld [vmem:[%s1 + $0x58] sm:$0xff]
      %v266 = vld [vmem:[%s1 + $0x60] sm:$0xff]
      %v267 = vld [vmem:[%s1 + $0x68] sm:$0xff]
      %v268 = vld [vmem:[%s1 + $0x70] sm:$0xff]
      %v269 = vld [vmem:[%s1 + $0x78] sm:$0xff]
      %v270 = vld [vmem:[%s1 + $0x80] sm:$0xf]
      %v271 = vld [vmem:[%s1 + $0x84] sm:$0xff]
      %v272 = vld [vmem:[%s1 + $0x8c] sm:$0xff]
      %v273 = vld [vmem:[%s1 + $0x94] sm:$0xff]
      %v274 = vld [vmem:[%s1 + $0x9c] sm:$0xff]
      %v275 = vld [vmem:[%s1 + $0xa4] sm:$0xff]
      %v276 = vld [vmem:[%s1 + $0xac] sm:$0xf]
      %v277 = vld [vmem:[%s246] sm:$0xff]
      %v278 = vld [vmem:[%s246 + $0x8] sm:$0xff]
      %v279 = vld [vmem:[%s246 + $0x10] sm:$0xff]
      %v280 = vld [vmem:[%s246 + $0x18] sm:$0xff]
      %v281 = vld [vmem:[%s246 + $0x20] sm:$0xff]
      %v282 = vld [vmem:[%s246 + $0x28] sm:$0xf]
      %v283 = vld [vmem:[%s246 + $0x2c] sm:$0xff]
      %v284 = vld [vmem:[%s246 + $0x34] sm:$0xff]
      %v285 = vld [vmem:[%s246 + $0x3c] sm:$0xff]
      %v286 = vld [vmem:[%s246 + $0x44] sm:$0xff]
      %v287 = vld [vmem:[%s246 + $0x4c] sm:$0xff]
      %v288 = vld [vmem:[%s246 + $0x54] sm:$0xf]
      %v289 = vld [vmem:[%s2] sm:$0xff]
      %v290 = vld [vmem:[%s2 + $0x8] sm:$0xff]
      %v291 = vld [vmem:[%s2 + $0x10] sm:$0xff]
      %v292 = vld [vmem:[%s2 + $0x18] sm:$0xff]
      %294 = vset.pattern.permute.xlu0 0
      %295 = vperm.xlu0 %294, %v289
      %v296 = vpop.permute.xlu0 %295
      %299 = vset.pattern.permute.xlu0 0
      %300 = vperm.xlu0 %299, %v290
      %v301 = vpop.permute.xlu0 %300
      %304 = vset.pattern.permute.xlu0 0
      %305 = vperm.xlu0 %304, %v291
      %v306 = vpop.permute.xlu0 %305
      %309 = vset.pattern.permute.xlu0 0
      %310 = vperm.xlu0 %309, %v292
      %v311 = vpop.permute.xlu0 %310
      %v337 = vunpack.c.l.b16 %v253
      %v338 = vunpack.c.h.b16 %v253
      %v339 = vunpack.c.l.b16 %v254
      %v340 = vunpack.c.h.b16 %v254
      %v341 = vunpack.c.l.b16 %v255
      %v342 = vunpack.c.h.b16 %v255
      %v343 = vunpack.c.l.b16 %v256
      %v344 = vunpack.c.h.b16 %v256
      %v345 = vunpack.c.l.b16 %v257
      %v346 = vunpack.c.h.b16 %v257
      %v347 = vunpack.c.l.b16 %v258
      %v348 = vunpack.c.l.b16 %v259
      %v349 = vunpack.c.h.b16 %v259
      %v350 = vunpack.c.l.b16 %v260
      %v351 = vunpack.c.h.b16 %v260
      %v352 = vunpack.c.l.b16 %v261
      %v353 = vunpack.c.h.b16 %v261
      %v354 = vunpack.c.l.b16 %v262
      %v355 = vunpack.c.h.b16 %v262
      %v356 = vunpack.c.l.b16 %v263
      %v357 = vunpack.c.h.b16 %v263
      %v358 = vunpack.c.l.b16 %v264
      %v359 = vunpack.c.l.b16 %v265
      %v360 = vunpack.c.h.b16 %v265
      %v361 = vunpack.c.l.b16 %v266
      %v362 = vunpack.c.h.b16 %v266
      %v363 = vunpack.c.l.b16 %v267
      %v364 = vunpack.c.h.b16 %v267
      %v365 = vunpack.c.l.b16 %v268
      %v366 = vunpack.c.h.b16 %v268
      %v367 = vunpack.c.l.b16 %v269
      %v368 = vunpack.c.h.b16 %v269
      %v369 = vunpack.c.l.b16 %v270
      %v370 = vunpack.c.l.b16 %v271
      %v371 = vunpack.c.h.b16 %v271
      %v372 = vunpack.c.l.b16 %v272
      %v373 = vunpack.c.h.b16 %v272
      %v374 = vunpack.c.l.b16 %v273
      %v375 = vunpack.c.h.b16 %v273
      %v376 = vunpack.c.l.b16 %v274
      %v377 = vunpack.c.h.b16 %v274
      %v378 = vunpack.c.l.b16 %v275
      %v379 = vunpack.c.h.b16 %v275
      %v380 = vunpack.c.l.b16 %v276
      %v381 = vpack.c.b16 %v348, %v337
      %v382 = vpack.c.b16 %v349, %v338
      %v383 = vpack.c.b16 %v350, %v339
      %v384 = vpack.c.b16 %v351, %v340
      %v385 = vpack.c.b16 %v352, %v341
      %v386 = vpack.c.b16 %v353, %v342
      %v387 = vpack.c.b16 %v354, %v343
      %v388 = vpack.c.b16 %v355, %v344
      %v389 = vpack.c.b16 %v356, %v345
      %v390 = vpack.c.b16 %v357, %v346
      %v391 = vpack.c.b16 %v358, %v347
      %v392 = vpack.c.b16 %v370, %v359
      %v393 = vpack.c.b16 %v371, %v360
      %v394 = vpack.c.b16 %v372, %v361
      %v395 = vpack.c.b16 %v373, %v362
      %v396 = vpack.c.b16 %v374, %v363
      %v397 = vpack.c.b16 %v375, %v364
      %v398 = vpack.c.b16 %v376, %v365
      %v399 = vpack.c.b16 %v377, %v366
      %v400 = vpack.c.b16 %v378, %v367
      %v401 = vpack.c.b16 %v379, %v368
      %v402 = vpack.c.b16 %v380, %v369
      %v437 = vunpack.c.l.b16 %v277
      %v438 = vunpack.c.h.b16 %v277
      %v439 = vunpack.c.l.b16 %v278
      %v440 = vunpack.c.h.b16 %v278
      %v441 = vunpack.c.l.b16 %v279
      %v442 = vunpack.c.h.b16 %v279
      %v443 = vunpack.c.l.b16 %v280
      %v444 = vunpack.c.h.b16 %v280
      %v445 = vunpack.c.l.b16 %v281
      %v446 = vunpack.c.h.b16 %v281
      %v447 = vunpack.c.l.b16 %v282
      %v448 = vunpack.c.l.b16 %v283
      %v449 = vunpack.c.h.b16 %v283
      %v450 = vunpack.c.l.b16 %v284
      %v451 = vunpack.c.h.b16 %v284
      %v452 = vunpack.c.l.b16 %v285
      %v453 = vunpack.c.h.b16 %v285
      %v454 = vunpack.c.l.b16 %v286
      %v455 = vunpack.c.h.b16 %v286
      %v456 = vunpack.c.l.b16 %v287
      %v457 = vunpack.c.h.b16 %v287
      %v458 = vunpack.c.l.b16 %v288
      %v459 = vpack.c.b16 %v448, %v437
      %v460 = vpack.c.b16 %v449, %v438
      %v461 = vpack.c.b16 %v450, %v439
      %v462 = vpack.c.b16 %v451, %v440
      %v463 = vpack.c.b16 %v452, %v441
      %v464 = vpack.c.b16 %v453, %v442
      %v465 = vpack.c.b16 %v454, %v443
      %v466 = vpack.c.b16 %v455, %v444
      %v467 = vpack.c.b16 %v456, %v445
      %v468 = vpack.c.b16 %v457, %v446
      %v469 = vpack.c.b16 %v458, %v447
      %481 = vmatpush.bf16.xpose.msra.mxu0 0
      %482 = vmatpush.bf16.xpose.msra.mxu0 0
      %483 = vmatpush.bf16.xpose.msra.mxu0 0
      %484 = vmatpush.bf16.xpose.msra.mxu0 0
      %485 = vmatpush.bf16.xpose.msra.mxu0 0
      %486 = vmatpush.bf16.xpose.msra.mxu0 0
      %487 = vmatpush.bf16.xpose.msra.mxu0 0
      %488 = vmatpush.bf16.xpose.msra.mxu0 %v459
      %489 = vmatmul.bf16.gmra.mxu0 %v381
      %v490 = vpop.f32.mrf.mxu0
      %v491 = vadd.f32 %v296, %v490
      %v492 = vpop.f32.mrf.mxu0
      %v493 = vadd.f32 %v301, %v492
      %494 = vmatmul.bf16.gmra.mxu0 %v392
      %v495 = vpop.f32.mrf.mxu0
      %v496 = vadd.f32 %v306, %v495
      %v497 = vpop.f32.mrf.mxu0
      %v498 = vadd.f32 %v311, %v497
      %499 = vdwg.mxu0
      %500 = vmatpush.bf16.xpose.msra.mxu0 0
      %501 = vmatpush.bf16.xpose.msra.mxu0 0
      %502 = vmatpush.bf16.xpose.msra.mxu0 0
      %503 = vmatpush.bf16.xpose.msra.mxu0 0
      %504 = vmatpush.bf16.xpose.msra.mxu0 0
      %505 = vmatpush.bf16.xpose.msra.mxu0 0
      %506 = vmatpush.bf16.xpose.msra.mxu0 0
      %507 = vmatpush.bf16.xpose.msra.mxu0 %v460
      %508 = vmatmul.bf16.gmra.mxu0 %v382
      %v509 = vpop.f32.mrf.mxu0
      %v510 = vadd.f32 %v491, %v509
      %v511 = vpop.f32.mrf.mxu0
      %v512 = vadd.f32 %v493, %v511
      %513 = vmatmul.bf16.gmra.mxu0 %v393
      %v514 = vpop.f32.mrf.mxu0
      %v515 = vadd.f32 %v496, %v514
      %v516 = vpop.f32.mrf.mxu0
      %v517 = vadd.f32 %v498, %v516
      %518 = vdwg.mxu0
      %519 = vmatpush.bf16.xpose.msra.mxu0 0
      %520 = vmatpush.bf16.xpose.msra.mxu0 0
      %521 = vmatpush.bf16.xpose.msra.mxu0 0
      %522 = vmatpush.bf16.xpose.msra.mxu0 0
      %523 = vmatpush.bf16.xpose.msra.mxu0 0
      %524 = vmatpush.bf16.xpose.msra.mxu0 0
      %525 = vmatpush.bf16.xpose.msra.mxu0 0
      %526 = vmatpush.bf16.xpose.msra.mxu0 %v461
      %527 = vmatmul.bf16.gmra.mxu0 %v383
      %v528 = vpop.f32.mrf.mxu0
      %v529 = vadd.f32 %v510, %v528
      %v530 = vpop.f32.mrf.mxu0
      %v531 = vadd.f32 %v512, %v530
      %532 = vmatmul.bf16.gmra.mxu0 %v394
      %v533 = vpop.f32.mrf.mxu0
      %v534 = vadd.f32 %v515, %v533
      %v535 = vpop.f32.mrf.mxu0
      %v536 = vadd.f32 %v517, %v535
      %537 = vdwg.mxu0
      %538 = vmatpush.bf16.xpose.msra.mxu0 0
      %539 = vmatpush.bf16.xpose.msra.mxu0 0
      %540 = vmatpush.bf16.xpose.msra.mxu0 0
      %541 = vmatpush.bf16.xpose.msra.mxu0 0
      %542 = vmatpush.bf16.xpose.msra.mxu0 0
      %543 = vmatpush.bf16.xpose.msra.mxu0 0
      %544 = vmatpush.bf16.xpose.msra.mxu0 0
      %545 = vmatpush.bf16.xpose.msra.mxu0 %v462
      %546 = vmatmul.bf16.gmra.mxu0 %v384
      %v547 = vpop.f32.mrf.mxu0
      %v548 = vadd.f32 %v529, %v547
      %v549 = vpop.f32.mrf.mxu0
      %v550 = vadd.f32 %v531, %v549
      %551 = vmatmul.bf16.gmra.mxu0 %v395
      %v552 = vpop.f32.mrf.mxu0
      %v553 = vadd.f32 %v534, %v552
      %v554 = vpop.f32.mrf.mxu0
      %v555 = vadd.f32 %v536, %v554
      %556 = vdwg.mxu0
      %557 = vmatpush.bf16.xpose.msra.mxu0 0
      %558 = vmatpush.bf16.xpose.msra.mxu0 0
      %559 = vmatpush.bf16.xpose.msra.mxu0 0
      %560 = vmatpush.bf16.xpose.msra.mxu0 0
      %561 = vmatpush.bf16.xpose.msra.mxu0 0
      %562 = vmatpush.bf16.xpose.msra.mxu0 0
      %563 = vmatpush.bf16.xpose.msra.mxu0 0
      %564 = vmatpush.bf16.xpose.msra.mxu0 %v463
      %565 = vmatmul.bf16.gmra.mxu0 %v385
      %v566 = vpop.f32.mrf.mxu0
      %v567 = vadd.f32 %v548, %v566
      %v568 = vpop.f32.mrf.mxu0
      %v569 = vadd.f32 %v550, %v568
      %570 = vmatmul.bf16.gmra.mxu0 %v396
      %v571 = vpop.f32.mrf.mxu0
      %v572 = vadd.f32 %v553, %v571
      %v573 = vpop.f32.mrf.mxu0
      %v574 = vadd.f32 %v555, %v573
      %575 = vdwg.mxu0
      %576 = vmatpush.bf16.xpose.msra.mxu0 0
      %577 = vmatpush.bf16.xpose.msra.mxu0 0
      %578 = vmatpush.bf16.xpose.msra.mxu0 0
      %579 = vmatpush.bf16.xpose.msra.mxu0 0
      %580 = vmatpush.bf16.xpose.msra.mxu0 0
      %581 = vmatpush.bf16.xpose.msra.mxu0 0
      %582 = vmatpush.bf16.xpose.msra.mxu0 0
      %583 = vmatpush.bf16.xpose.msra.mxu0 %v464
      %584 = vmatmul.bf16.gmra.mxu0 %v386
      %v585 = vpop.f32.mrf.mxu0
      %v586 = vadd.f32 %v567, %v585
      %v587 = vpop.f32.mrf.mxu0
      %v588 = vadd.f32 %v569, %v587
      %589 = vmatmul.bf16.gmra.mxu0 %v397
      %v590 = vpop.f32.mrf.mxu0
      %v591 = vadd.f32 %v572, %v590
      %v592 = vpop.f32.mrf.mxu0
      %v593 = vadd.f32 %v574, %v592
      %594 = vdwg.mxu0
      %595 = vmatpush.bf16.xpose.msra.mxu0 0
      %596 = vmatpush.bf16.xpose.msra.mxu0 0
      %597 = vmatpush.bf16.xpose.msra.mxu0 0
      %598 = vmatpush.bf16.xpose.msra.mxu0 0
      %599 = vmatpush.bf16.xpose.msra.mxu0 0
      %600 = vmatpush.bf16.xpose.msra.mxu0 0
      %601 = vmatpush.bf16.xpose.msra.mxu0 0
      %602 = vmatpush.bf16.xpose.msra.mxu0 %v465
      %603 = vmatmul.bf16.gmra.mxu0 %v387
      %v604 = vpop.f32.mrf.mxu0
      %v605 = vadd.f32 %v586, %v604
      %v606 = vpop.f32.mrf.mxu0
      %v607 = vadd.f32 %v588, %v606
      %608 = vmatmul.bf16.gmra.mxu0 %v398
      %v609 = vpop.f32.mrf.mxu0
      %v610 = vadd.f32 %v591, %v609
      %v611 = vpop.f32.mrf.mxu0
      %v612 = vadd.f32 %v593, %v611
      %613 = vdwg.mxu0
      %614 = vmatpush.bf16.xpose.msra.mxu0 0
      %615 = vmatpush.bf16.xpose.msra.mxu0 0
      %616 = vmatpush.bf16.xpose.msra.mxu0 0
      %617 = vmatpush.bf16.xpose.msra.mxu0 0
      %618 = vmatpush.bf16.xpose.msra.mxu0 0
      %619 = vmatpush.bf16.xpose.msra.mxu0 0
      %620 = vmatpush.bf16.xpose.msra.mxu0 0
      %621 = vmatpush.bf16.xpose.msra.mxu0 %v466
      %622 = vmatmul.bf16.gmra.mxu0 %v388
      %v623 = vpop.f32.mrf.mxu0
      %v624 = vadd.f32 %v605, %v623
      %v625 = vpop.f32.mrf.mxu0
      %v626 = vadd.f32 %v607, %v625
      %627 = vmatmul.bf16.gmra.mxu0 %v399
      %v628 = vpop.f32.mrf.mxu0
      %v629 = vadd.f32 %v610, %v628
      %v630 = vpop.f32.mrf.mxu0
      %v631 = vadd.f32 %v612, %v630
      %632 = vdwg.mxu0
      %633 = vmatpush.bf16.xpose.msra.mxu0 0
      %634 = vmatpush.bf16.xpose.msra.mxu0 0
      %635 = vmatpush.bf16.xpose.msra.mxu0 0
      %636 = vmatpush.bf16.xpose.msra.mxu0 0
      %637 = vmatpush.bf16.xpose.msra.mxu0 0
      %638 = vmatpush.bf16.xpose.msra.mxu0 0
      %639 = vmatpush.bf16.xpose.msra.mxu0 0
      %640 = vmatpush.bf16.xpose.msra.mxu0 %v467
      %641 = vmatmul.bf16.gmra.mxu0 %v389
      %v642 = vpop.f32.mrf.mxu0
      %v643 = vadd.f32 %v624, %v642
      %v644 = vpop.f32.mrf.mxu0
      %v645 = vadd.f32 %v626, %v644
      %646 = vmatmul.bf16.gmra.mxu0 %v400
      %v647 = vpop.f32.mrf.mxu0
      %v648 = vadd.f32 %v629, %v647
      %v649 = vpop.f32.mrf.mxu0
      %v650 = vadd.f32 %v631, %v649
      %651 = vdwg.mxu0
      %652 = vmatpush.bf16.xpose.msra.mxu0 0
      %653 = vmatpush.bf16.xpose.msra.mxu0 0
      %654 = vmatpush.bf16.xpose.msra.mxu0 0
      %655 = vmatpush.bf16.xpose.msra.mxu0 0
      %656 = vmatpush.bf16.xpose.msra.mxu0 0
      %657 = vmatpush.bf16.xpose.msra.mxu0 0
      %658 = vmatpush.bf16.xpose.msra.mxu0 0
      %659 = vmatpush.bf16.xpose.msra.mxu0 %v468
      %660 = vmatmul.bf16.gmra.mxu0 %v390
      %v661 = vpop.f32.mrf.mxu0
      %v662 = vadd.f32 %v643, %v661
      %v663 = vpop.f32.mrf.mxu0
      %v664 = vadd.f32 %v645, %v663
      %665 = vmatmul.bf16.gmra.mxu0 %v401
      %v666 = vpop.f32.mrf.mxu0
      %v667 = vadd.f32 %v648, %v666
      %v668 = vpop.f32.mrf.mxu0
      %v669 = vadd.f32 %v650, %v668
      %670 = vdwg.mxu0
      %671 = vmatpush.bf16.xpose.msra.mxu0 0
      %672 = vmatpush.bf16.xpose.msra.mxu0 0
      %673 = vmatpush.bf16.xpose.msra.mxu0 0
      %674 = vmatpush.bf16.xpose.msra.mxu0 0
      %675 = vmatpush.bf16.xpose.msra.mxu0 0
      %676 = vmatpush.bf16.xpose.msra.mxu0 0
      %677 = vmatpush.bf16.xpose.msra.mxu0 0
      %678 = vmatpush.bf16.xpose.msra.mxu0 %v469
      %679 = vmatmul.bf16.gmra.mxu0 %v391
      %v680 = vpop.f32.mrf.mxu0
      %v681 = vadd.f32 %v662, %v680
      %v682 = vpop.f32.mrf.mxu0
      %v683 = vadd.f32 %v664, %v682
      %684 = vmatmul.bf16.gmra.mxu0 %v402
      %v685 = vpop.f32.mrf.mxu0
      %v686 = vadd.f32 %v667, %v685
      %v687 = vpop.f32.mrf.mxu0
      %v688 = vadd.f32 %v669, %v687
      %689 = vdwg.mxu0
      %vm690 = vcmask 130048
      %v691 = vsel %vm690, %v681, 0.0
      %692 = vadd.xlane.f32.xlu0 %v691
      %v693 = vpop.xlane.xlu0 %692
      %v694 = vsel %vm690, %v683, 0.0
      %695 = vadd.xlane.f32.xlu0 %v694
      %v696 = vpop.xlane.xlu0 %695
      %v697 = vsel %vm690, %v686, 0.0
      %698 = vadd.xlane.f32.xlu0 %v697
      %v699 = vpop.xlane.xlu0 %698
      %v700 = vsel %vm690, %v688, 0.0
      %701 = vadd.xlane.f32.xlu0 %v700
      %v702 = vpop.xlane.xlu0 %701
      %v703 = vld [vmem:[%s5] sm:$0xff]
      %v704 = vld [vmem:[%s5 + $0x8] sm:$0xff]
      %v705 = vld [vmem:[%s5 + $0x10] sm:$0xff]
      %v706 = vld [vmem:[%s5 + $0x18] sm:$0xff]
      %vm707 = vcmask 261120
      %v709 = vsel %vm707, %v703, 0
      %v712 = vsel %vm707, %v704, 0
      %v715 = vsel %vm707, %v705, 0
      %v718 = vsel %vm707, %v706, 0
      %720 = vmatpush.msra.mxu0 0.0
      %721 = vmatpush.msra.mxu0 0.0
      %722 = vmatpush.msra.mxu0 0.0
      %723 = vmatpush.msra.mxu0 0.0
      %724 = vmatpush.msra.mxu0 0.0
      %725 = vmatpush.msra.mxu0 0.0
      %726 = vmatpush.msra.mxu0 0.0
      %727 = vmatpush.msra.mxu0 0.0
      %728 = vmatpush.msra.mxu0 0.0
      %729 = vmatpush.msra.mxu0 0.0
      %730 = vmatpush.msra.mxu0 0.0
      %731 = vmatpush.msra.mxu0 0.0
      %732 = vmatpush.msra.mxu0 %v702
      %733 = vmatpush.msra.mxu0 %v699
      %734 = vmatpush.msra.mxu0 %v696
      %735 = vmatpush.msra.mxu0 %v693
      %736 = vmatmul.f32.gmra.mxu0 %v709
      %v737 = vpop.f32.mrf.mxu0
      %v738 = vadd.f32 0.0, %v737
      %739 = vmatmul.f32.gmra.mxu0 %v712
      %v740 = vpop.f32.mrf.mxu0
      %v741 = vadd.f32 0.0, %v740
      %742 = vmatmul.f32.gmra.mxu0 %v715
      %v743 = vpop.f32.mrf.mxu0
      %v744 = vadd.f32 0.0, %v743
      %745 = vmatmul.f32.gmra.mxu0 %v718
      %v746 = vpop.f32.mrf.mxu0
      %v747 = vadd.f32 0.0, %v746
      %748 = vdwg.mxu0
      %v749 = vmul.f32 %v738, 0.0078125
      %v750 = vmul.f32 %v741, 0.0078125
      %v751 = vmul.f32 %v744, 0.0078125
      %v752 = vmul.f32 %v747, 0.0078125
      %754 = vset.pattern.permute.xlu0 0
      %755 = vperm.xlu0 %754, %v749
      %v756 = vpop.permute.xlu0 %755
      %759 = vset.pattern.permute.xlu0 0
      %760 = vperm.xlu0 %759, %v750
      %v761 = vpop.permute.xlu0 %760
      %764 = vset.pattern.permute.xlu0 0
      %765 = vperm.xlu0 %764, %v751
      %v766 = vpop.permute.xlu0 %765
      %769 = vset.pattern.permute.xlu0 0
      %770 = vperm.xlu0 %769, %v752
      %v771 = vpop.permute.xlu0 %770
      %v773 = vsub.f32 %v681, %v756
      %v774 = vsub.f32 %v683, %v761
      %v775 = vsub.f32 %v686, %v766
      %v776 = vsub.f32 %v688, %v771
      %v777 = vmul.f32 %v773, %v773
      %v778 = vmul.f32 %v774, %v774
      %v779 = vmul.f32 %v775, %v775
      %v780 = vmul.f32 %v776, %v776
      %v781 = vsel %vm690, %v777, 0.0
      %782 = vadd.xlane.f32.xlu0 %v781
      %v783 = vpop.xlane.xlu0 %782
      %v784 = vsel %vm690, %v778, 0.0
      %785 = vadd.xlane.f32.xlu0 %v784
      %v786 = vpop.xlane.xlu0 %785
      %v787 = vsel %vm690, %v779, 0.0
      %788 = vadd.xlane.f32.xlu0 %v787
      %v789 = vpop.xlane.xlu0 %788
      %v790 = vsel %vm690, %v780, 0.0
      %791 = vadd.xlane.f32.xlu0 %v790
      %v792 = vpop.xlane.xlu0 %791
      %793 = vmatpush.msra.mxu0 0.0
      %794 = vmatpush.msra.mxu0 0.0
      %795 = vmatpush.msra.mxu0 0.0
      %796 = vmatpush.msra.mxu0 0.0
      %797 = vmatpush.msra.mxu0 0.0
      %798 = vmatpush.msra.mxu0 0.0
      %799 = vmatpush.msra.mxu0 0.0
      %800 = vmatpush.msra.mxu0 0.0
      %801 = vmatpush.msra.mxu0 0.0
      %802 = vmatpush.msra.mxu0 0.0
      %803 = vmatpush.msra.mxu0 0.0
      %804 = vmatpush.msra.mxu0 0.0
      %805 = vmatpush.msra.mxu0 %v792
      %806 = vmatpush.msra.mxu0 %v789
      %807 = vmatpush.msra.mxu0 %v786
      %808 = vmatpush.msra.mxu0 %v783
      %809 = vmatmul.f32.gmra.mxu0 %v709
      %v810 = vpop.f32.mrf.mxu0
      %v811 = vadd.f32 0.0, %v810
      %812 = vmatmul.f32.gmra.mxu0 %v712
      %v813 = vpop.f32.mrf.mxu0
      %v814 = vadd.f32 0.0, %v813
      %815 = vmatmul.f32.gmra.mxu0 %v715
      %v816 = vpop.f32.mrf.mxu0
      %v817 = vadd.f32 0.0, %v816
      %818 = vmatmul.f32.gmra.mxu0 %v718
      %v819 = vpop.f32.mrf.mxu0
      %v820 = vadd.f32 0.0, %v819
      %821 = vdwg.mxu0
      %v822 = vmul.f32 %v811, 0.0078125
      %v823 = vmul.f32 %v814, 0.0078125
      %v824 = vmul.f32 %v817, 0.0078125
      %v825 = vmul.f32 %v820, 0.0078125
      %v826 = vadd.f32 %v822, 1e-05
      %v827 = vadd.f32 %v823, 1e-05
      %v828 = vadd.f32 %v824, 1e-05
      %v829 = vadd.f32 %v825, 1e-05
      %v830 = vrsqrt.pop %v826
      %v831 = vmul.f32 %v830, %v826
      %v832 = vmul.f32 %v831, %v830
      %v833 = vmul.f32 0.5, %v832
      %v834 = vsub.f32 1.5, %v833
      %v835 = vmul.f32 %v830, %v834
      %vm836 = vweird.f32 %v826
      %vm837 = vweird.f32 %v830
      %vm838 = vmor %vm836, %vm837
      %v839 = vsel %vm838, %v830, %v835
      %v840 = vrsqrt.pop %v827
      %v841 = vmul.f32 %v840, %v827
      %v842 = vmul.f32 %v841, %v840
      %v843 = vmul.f32 0.5, %v842
      %v844 = vsub.f32 1.5, %v843
      %v845 = vmul.f32 %v840, %v844
      %vm846 = vweird.f32 %v827
      %vm847 = vweird.f32 %v840
      %vm848 = vmor %vm846, %vm847
      %v849 = vsel %vm848, %v840, %v845
      %v850 = vrsqrt.pop %v828
      %v851 = vmul.f32 %v850, %v828
      %v852 = vmul.f32 %v851, %v850
      %v853 = vmul.f32 0.5, %v852
      %v854 = vsub.f32 1.5, %v853
      %v855 = vmul.f32 %v850, %v854
      %vm856 = vweird.f32 %v828
      %vm857 = vweird.f32 %v850
      %vm858 = vmor %vm856, %vm857
      %v859 = vsel %vm858, %v850, %v855
      %v860 = vrsqrt.pop %v829
      %v861 = vmul.f32 %v860, %v829
      %v862 = vmul.f32 %v861, %v860
      %v863 = vmul.f32 0.5, %v862
      %v864 = vsub.f32 1.5, %v863
      %v865 = vmul.f32 %v860, %v864
      %vm866 = vweird.f32 %v829
      %vm867 = vweird.f32 %v860
      %vm868 = vmor %vm866, %vm867
      %v869 = vsel %vm868, %v860, %v865
      %v870 = vld [vmem:[%s3] sm:$0xff]
      %v871 = vld [vmem:[%s3 + $0x8] sm:$0xff]
      %v872 = vld [vmem:[%s3 + $0x10] sm:$0xff]
      %v873 = vld [vmem:[%s3 + $0x18] sm:$0xff]
      %v874 = vmul.f32 %v839, %v870
      %v875 = vmul.f32 %v849, %v871
      %v876 = vmul.f32 %v859, %v872
      %v877 = vmul.f32 %v869, %v873
      %879 = vset.pattern.permute.xlu0 0
      %880 = vperm.xlu0 %879, %v874
      %v881 = vpop.permute.xlu0 %880
      %884 = vset.pattern.permute.xlu0 0
      %885 = vperm.xlu0 %884, %v875
      %v886 = vpop.permute.xlu0 %885
      %889 = vset.pattern.permute.xlu0 0
      %890 = vperm.xlu0 %889, %v876
      %v891 = vpop.permute.xlu0 %890
      %894 = vset.pattern.permute.xlu0 0
      %895 = vperm.xlu0 %894, %v877
      %v896 = vpop.permute.xlu0 %895
      %v898 = vmul.f32 %v773, %v881
      %v899 = vmul.f32 %v774, %v886
      %v900 = vmul.f32 %v775, %v891
      %v901 = vmul.f32 %v776, %v896
      %v902 = vld [vmem:[%s4] sm:$0xff]
      %v903 = vld [vmem:[%s4 + $0x8] sm:$0xff]
      %v904 = vld [vmem:[%s4 + $0x10] sm:$0xff]
      %v905 = vld [vmem:[%s4 + $0x18] sm:$0xff]
      %907 = vset.pattern.permute.xlu0 0
      %908 = vperm.xlu0 %907, %v902
      %v909 = vpop.permute.xlu0 %908
      %912 = vset.pattern.permute.xlu0 0
      %913 = vperm.xlu0 %912, %v903
      %v914 = vpop.permute.xlu0 %913
      %917 = vset.pattern.permute.xlu0 0
      %918 = vperm.xlu0 %917, %v904
      %v919 = vpop.permute.xlu0 %918
      %922 = vset.pattern.permute.xlu0 0
      %923 = vperm.xlu0 %922, %v905
      %v924 = vpop.permute.xlu0 %923
      %v926 = vadd.f32 %v898, %v909
      %v927 = vadd.f32 %v899, %v914
      %v928 = vadd.f32 %v900, %v919
      %v929 = vadd.f32 %v901, %v924
      %v930 = vmax.f32 %v926, 0.0
      %v931 = vmax.f32 %v927, 0.0
      %v932 = vmax.f32 %v928, 0.0
      %v933 = vmax.f32 %v929, 0.0
      %v934 = vpack.c.bf16 %v930, %v930
      %v935 = vpack.c.bf16 %v931, %v931
      %v936 = vpack.c.bf16 %v932, %v932
      %v937 = vpack.c.bf16 %v933, %v933
      %vm938 = vcmask 125952
      %939 = vst.msk [vmem:[%s251] sm:$0xf] %vm938, %v934
      %940 = vst.msk [vmem:[%s251 + $0x4] sm:$0xf] %vm938, %v935
      %941 = vst.msk [vmem:[%s251 + $0x8] sm:$0xf] %vm938, %v936
      %942 = vst.msk [vmem:[%s251 + $0xc] sm:$0xf] %vm938, %v937
      %p943 = scmp.lt.s32.totalorder %s17, 1
      %s944 = scalar_select %p943, %s17, 1
      %s945 = smul.addr %s944, 4
      %s946 = smul.addr %s945, 4
      %s947 = scalar_lea.vmem %s6, %s946
      // Predicated region
      $region45: #{cvlearner_forward.8} parent=43 // pred_check
        %p948 = pneg %p166
      $region46: #{cvlearner_forward.8} parent=43 // pred_check_branch
        %950 = sbr.rel (%p948) target = $region48
      $region47: #{cvlearner_forward.8} parent=43 // pred_region
        _
      $region48: #{cvlearner_forward.8} parent=43 // pred_fallthru
        _
    $region44: #{cvlearner_forward.8} parent=5 // pred_fallthru
      _
    %p951 = scmp.le.s32.totalorder 2, %s12
    // Predicated region
    $region49: #{cvlearner_forward.8} parent=5 // pred_check
      %p952 = pneg %p951
    $region50: #{cvlearner_forward.8} parent=5 // pred_check_branch
      %954 = sbr.rel (%p952) target = $region52
    $region51: #{cvlearner_forward.8} parent=5 // pred_region
      %s955 = ssub.s32 %s12, 2
      // Predicated region
      $region53: #{cvlearner_forward.8} parent=51 // pred_check
        %p956 = pneg %p172
      $region54: #{cvlearner_forward.8} parent=51 // pred_check_branch
        %958 = sbr.rel (%p956) target = $region56
      $region55: #{cvlearner_forward.8} parent=51 // pred_region
        %p959 = scmp.lt.s32.totalorder %s18, 1
        %s960 = scalar_select %p959, %s18, 1
        %s961 = smul.addr %s960, 4
        %s962 = smul.addr %s961, 4
        %s963 = scalar_lea.vmem %s6, %s962
      $region56: #{cvlearner_forward.8} parent=51 // pred_fallthru
        _
    $region52: #{cvlearner_forward.8} parent=5 // pred_fallthru
      _
  $region6: #{cvlearner_forward.8} parent=0 // loop_footer
    %s16 = sadd.s32 1, %s12
  $region7: #{cvlearner_forward.8} parent=0 // loop_footer_branch
    %11 = sbr.rel target = $region3
  $region8: #{cvlearner_forward.8} parent=0 // loop_exit
    _

// kernel: cvlearner_forward.9
$region0: #{cvlearner_forward.9}
  #allocation0 [shape = 'u32[]', space=smem, size = 0x4, offset = 0x4, fixed_abs, tag = 'smem constant byte address 0x4 - core index']
  #allocation1 [shape = 'u32[72,128]{1,0:T(1,128)}', space=vmem, size = 0x9000, scoped, tag = 'internal scratch']
  %s0 = inlined_call_operand.vmem [shape: bf16[2,16,2688], index: 0, kind: input, shape index: {}]
  %s1 = inlined_call_operand.vmem [shape: bf16[32,2688], index: 1, kind: input, shape index: {}]
  %s2 = inlined_call_operand.vmem [shape: f32[32,1], index: 2, kind: input, shape index: {}]
  %s3 = inlined_call_operand.vmem [shape: f32[32,1], index: 3, kind: input, shape index: {}]
  %s4 = inlined_call_operand.vmem [shape: f32[32,1], index: 4, kind: input, shape index: {}]
  %s5 = inlined_call_operand.vmem [shape: f32[32,32], index: 5, kind: input, shape index: {}]
  %s6 = inlined_call_operand.vmem [shape: bf16[2,32,16], index: 6, kind: output, shape index: {}]
  %s7 = sld [smem:[#allocation0]]
  $region57: #{cvlearner_forward.9} parent=0
    _
  %s9 = ssub.s32 1, %s7
  %s10 = scalar_select 0, %s9, %s7
  loop: start=0, step=1, limit=4
  $region2: #{cvlearner_forward.9} parent=0 // loop_pre_header
    _
  $region3: #{cvlearner_forward.9} parent=0 // loop_header
    %s12 = sphi 0, %s16
    %p13 = scmp.ge.s32.totalorder %s12, 4
    %s22 = sphi 0, %s24
    %s25 = sphi 0, %s22
    %s26 = sphi 0, %s25
    %s42 = sphi 0, %s26
    %s46 = sphi 0, %s46
    %s48 = sphi 0, %s46
    %s49 = sphi 0, %s48
    %s63 = sphi 0, %s49
    %s67 = sphi 0, %s67
    %s69 = sphi 0, %s67
    %s70 = sphi 0, %s69
    %s84 = sphi 0, %s70
    %s88 = sphi 0, %s88
    %s90 = sphi 0, %s88
    %s91 = sphi 0, %s90
    %s105 = sphi 0, %s91
    %s109 = sphi 0, %s109
    %s111 = sphi 0, %s109
    %s112 = sphi 0, %s111
    %s126 = sphi 0, %s112
    %s130 = sphi 0, %s130
    %s132 = sphi 0, %s130
    %s133 = sphi 0, %s132
    %s147 = sphi 0, %s133
    %s153 = sphi 0, %s155
    %s156 = sphi 0, %s153
    %s157 = sphi 0, %s156
    %s173 = sphi 0, %s157
  $region4: #{cvlearner_forward.9} parent=0 // loop_header_branch
    %15 = sbr.rel (%p13) target = $region8
  $region5: #{cvlearner_forward.9} parent=0 // loop_body
    %s17 = ssub.s32 %s12, 1
    %s18 = ssub.s32 %s12, 2
    %s19 = sadd.s32 %s12, 1
    %s20 = ssub.s32 %s12, %s19
    %p21 = scmp.eq.s32.totalorder %s20, 0
    %s23 = sadd.s32 %s22, 1
    %s24 = scalar_select %p21, %s22, %s23
    %p27 = pneg %p21
    %p28 = scmp.eq.s32.totalorder %s12, 1
    %p29 = por %p27, %p28
    %p30 = scmp.ne.s32.totalorder %s22, %s25
    %p31 = scmp.eq.s32.totalorder %s12, 0
    %p32 = por %p30, %p31
    %p33 = scmp.ne.s32.totalorder %s22, %s25
    %p34 = scmp.eq.s32.totalorder %s17, 1
    %p35 = por %p33, %p34
    %p36 = scmp.ne.s32.totalorder %s25, %s26
    %p37 = scmp.eq.s32.totalorder %s17, 0
    %p38 = por %p36, %p37
    %p39 = scmp.ne.s32.totalorder %s25, %s26
    %p40 = scmp.eq.s32.totalorder %s18, 1
    %p41 = por %p39, %p40
    %p43 = scmp.ne.s32.totalorder %s26, %s42
    %p44 = scmp.eq.s32.totalorder %s18, 0
    %p45 = por %p43, %p44
    %s47 = sadd.s32 %s46, 1
    %p50 = scmp.eq.s32.totalorder %s12, 1
    %p51 = scmp.ne.s32.totalorder %s46, %s48
    %p52 = scmp.eq.s32.totalorder %s12, 0
    %p53 = por %p51, %p52
    %p54 = scmp.ne.s32.totalorder %s46, %s48
    %p55 = scmp.eq.s32.totalorder %s17, 1
    %p56 = por %p54, %p55
    %p57 = scmp.ne.s32.totalorder %s48, %s49
    %p58 = scmp.eq.s32.totalorder %s17, 0
    %p59 = por %p57, %p58
    %p60 = scmp.ne.s32.totalorder %s48, %s49
    %p61 = scmp.eq.s32.totalorder %s18, 1
    %p62 = por %p60, %p61
    %p64 = scmp.ne.s32.totalorder %s49, %s63
    %p65 = scmp.eq.s32.totalorder %s18, 0
    %p66 = por %p64, %p65
    %s68 = sadd.s32 %s67, 1
    %p71 = scmp.eq.s32.totalorder %s12, 1
    %p72 = scmp.ne.s32.totalorder %s67, %s69
    %p73 = scmp.eq.s32.totalorder %s12, 0
    %p74 = por %p72, %p73
    %p75 = scmp.ne.s32.totalorder %s67, %s69
    %p76 = scmp.eq.s32.totalorder %s17, 1
    %p77 = por %p75, %p76
    %p78 = scmp.ne.s32.totalorder %s69, %s70
    %p79 = scmp.eq.s32.totalorder %s17, 0
    %p80 = por %p78, %p79
    %p81 = scmp.ne.s32.totalorder %s69, %s70
    %p82 = scmp.eq.s32.totalorder %s18, 1
    %p83 = por %p81, %p82
    %p85 = scmp.ne.s32.totalorder %s70, %s84
    %p86 = scmp.eq.s32.totalorder %s18, 0
    %p87 = por %p85, %p86
    %s89 = sadd.s32 %s88, 1
    %p92 = scmp.eq.s32.totalorder %s12, 1
    %p93 = scmp.ne.s32.totalorder %s88, %s90
    %p94 = scmp.eq.s32.totalorder %s12, 0
    %p95 = por %p93, %p94
    %p96 = scmp.ne.s32.totalorder %s88, %s90
    %p97 = scmp.eq.s32.totalorder %s17, 1
    %p98 = por %p96, %p97
    %p99 = scmp.ne.s32.totalorder %s90, %s91
    %p100 = scmp.eq.s32.totalorder %s17, 0
    %p101 = por %p99, %p100
    %p102 = scmp.ne.s32.totalorder %s90, %s91
    %p103 = scmp.eq.s32.totalorder %s18, 1
    %p104 = por %p102, %p103
    %p106 = scmp.ne.s32.totalorder %s91, %s105
    %p107 = scmp.eq.s32.totalorder %s18, 0
    %p108 = por %p106, %p107
    %s110 = sadd.s32 %s109, 1
    %p113 = scmp.eq.s32.totalorder %s12, 1
    %p114 = scmp.ne.s32.totalorder %s109, %s111
    %p115 = scmp.eq.s32.totalorder %s12, 0
    %p116 = por %p114, %p115
    %p117 = scmp.ne.s32.totalorder %s109, %s111
    %p118 = scmp.eq.s32.totalorder %s17, 1
    %p119 = por %p117, %p118
    %p120 = scmp.ne.s32.totalorder %s111, %s112
    %p121 = scmp.eq.s32.totalorder %s17, 0
    %p122 = por %p120, %p121
    %p123 = scmp.ne.s32.totalorder %s111, %s112
    %p124 = scmp.eq.s32.totalorder %s18, 1
    %p125 = por %p123, %p124
    %p127 = scmp.ne.s32.totalorder %s112, %s126
    %p128 = scmp.eq.s32.totalorder %s18, 0
    %p129 = por %p127, %p128
    %s131 = sadd.s32 %s130, 1
    %p134 = scmp.eq.s32.totalorder %s12, 1
    %p135 = scmp.ne.s32.totalorder %s130, %s132
    %p136 = scmp.eq.s32.totalorder %s12, 0
    %p137 = por %p135, %p136
    %p138 = scmp.ne.s32.totalorder %s130, %s132
    %p139 = scmp.eq.s32.totalorder %s17, 1
    %p140 = por %p138, %p139
    %p141 = scmp.ne.s32.totalorder %s132, %s133
    %p142 = scmp.eq.s32.totalorder %s17, 0
    %p143 = por %p141, %p142
    %p144 = scmp.ne.s32.totalorder %s132, %s133
    %p145 = scmp.eq.s32.totalorder %s18, 1
    %p146 = por %p144, %p145
    %p148 = scmp.ne.s32.totalorder %s133, %s147
    %p149 = scmp.eq.s32.totalorder %s18, 0
    %p150 = por %p148, %p149
    %s151 = ssub.s32 %s12, %s19
    %p152 = scmp.eq.s32.totalorder %s151, 0
    %s154 = sadd.s32 %s153, 1
    %s155 = scalar_select %p152, %s153, %s154
    %p158 = pneg %p152
    %p159 = scmp.eq.s32.totalorder %s12, 1
    %p160 = por %p158, %p159
    %p161 = scmp.ne.s32.totalorder %s153, %s156
    %p162 = scmp.eq.s32.totalorder %s12, 0
    %p163 = por %p161, %p162
    %p164 = scmp.ne.s32.totalorder %s153, %s156
    %p165 = scmp.eq.s32.totalorder %s17, 1
    %p166 = por %p164, %p165
    %p167 = scmp.ne.s32.totalorder %s156, %s157
    %p168 = scmp.eq.s32.totalorder %s17, 0
    %p169 = por %p167, %p168
    %p170 = scmp.ne.s32.totalorder %s156, %s157
    %p171 = scmp.eq.s32.totalorder %s18, 1
    %p172 = por %p170, %p171
    %p174 = scmp.ne.s32.totalorder %s157, %s173
    %p175 = scmp.eq.s32.totalorder %s18, 0
    %p176 = por %p174, %p175
    %p177 = scmp.le.s32.totalorder 1, %s12
    %p178 = scmp.lt.s32.totalorder %s12, 3
    %p179 = pnand %p177, %p178
    %p180 = pneg %p179
    // Predicated region
    $region9: #{cvlearner_forward.9} parent=5 // pred_check
      _
    $region10: #{cvlearner_forward.9} parent=5 // pred_check_branch
      %182 = sbr.rel (%p179) target = $region12
    $region11: #{cvlearner_forward.9} parent=5 // pred_region
      %s183 = ssub.s32 %s12, 1
      // Predicated region
      $region13: #{cvlearner_forward.9} parent=11 // pred_check
        %p184 = pneg %p59
      $region14: #{cvlearner_forward.9} parent=11 // pred_check_branch
        %186 = sbr.rel (%p184) target = $region16
      $region15: #{cvlearner_forward.9} parent=11 // pred_region
        _
      $region16: #{cvlearner_forward.9} parent=11 // pred_fallthru
        _
      // Predicated region
      $region17: #{cvlearner_forward.9} parent=11 // pred_check
        %p187 = pneg %p80
      $region18: #{cvlearner_forward.9} parent=11 // pred_check_branch
        %189 = sbr.rel (%p187) target = $region20
      $region19: #{cvlearner_forward.9} parent=11 // pred_region
        _
      $region20: #{cvlearner_forward.9} parent=11 // pred_fallthru
        _
      // Predicated region
      $region21: #{cvlearner_forward.9} parent=11 // pred_check
        %p190 = pneg %p101
      $region22: #{cvlearner_forward.9} parent=11 // pred_check_branch
        %192 = sbr.rel (%p190) target = $region24
      $region23: #{cvlearner_forward.9} parent=11 // pred_region
        _
      $region24: #{cvlearner_forward.9} parent=11 // pred_fallthru
        _
      // Predicated region
      $region25: #{cvlearner_forward.9} parent=11 // pred_check
        %p193 = pneg %p122
      $region26: #{cvlearner_forward.9} parent=11 // pred_check_branch
        %195 = sbr.rel (%p193) target = $region28
      $region27: #{cvlearner_forward.9} parent=11 // pred_region
        _
      $region28: #{cvlearner_forward.9} parent=11 // pred_fallthru
        _
      // Predicated region
      $region29: #{cvlearner_forward.9} parent=11 // pred_check
        %p196 = pneg %p143
      $region30: #{cvlearner_forward.9} parent=11 // pred_check_branch
        %198 = sbr.rel (%p196) target = $region32
      $region31: #{cvlearner_forward.9} parent=11 // pred_region
        _
      $region32: #{cvlearner_forward.9} parent=11 // pred_fallthru
        _
    $region12: #{cvlearner_forward.9} parent=5 // pred_fallthru
      _
    %p199 = scmp.lt.s32.totalorder %s12, 2
    // Predicated region
    $region33: #{cvlearner_forward.9} parent=5 // pred_check
      %p200 = pneg %p199
    $region34: #{cvlearner_forward.9} parent=5 // pred_check_branch
      %202 = sbr.rel (%p200) target = $region36
    $region35: #{cvlearner_forward.9} parent=5 // pred_region
      // Predicated region
      $region37: #{cvlearner_forward.9} parent=35 // pred_check
        %p203 = pneg %p32
      $region38: #{cvlearner_forward.9} parent=35 // pred_check_branch
        %205 = sbr.rel (%p203) target = $region40
      $region39: #{cvlearner_forward.9} parent=35 // pred_region
        %p206 = scmp.lt.s32.totalorder %s12, 1
        %s207 = scalar_select %p206, %s12, 1
        %s208 = smul.addr %s207, 42
        %s209 = smul.addr %s208, 4
        %s210 = scalar_lea.vmem %s0, %s209
      $region40: #{cvlearner_forward.9} parent=35 // pred_fallthru
        _
    $region36: #{cvlearner_forward.9} parent=5 // pred_fallthru
      _
    %p211 = scmp.le.s32.totalorder 1, %s12
    %p212 = scmp.lt.s32.totalorder %s12, 3
    %p213 = pnand %p211, %p212
    %p214 = pneg %p213
    // Predicated region
    $region41: #{cvlearner_forward.9} parent=5 // pred_check
      _
    $region42: #{cvlearner_forward.9} parent=5 // pred_check_branch
      %216 = sbr.rel (%p213) target = $region44
    $region43: #{cvlearner_forward.9} parent=5 // pred_region
      %s217 = ssub.s32 %s12, 1
      %p218 = scmp.lt.s32.totalorder %s17, 1
      %s219 = scalar_select %p218, %s17, 1
      %s220 = smul.addr %s219, 42
      %s221 = smul.addr %s220, 4
      %s222 = scalar_lea.vmem %s0, %s221
      %p223 = pneg %p38
      %p224 = pneg %p35
      %p225 = pneg %p59
      %p226 = pneg %p56
      %p227 = pneg %p80
      %p228 = pneg %p77
      %p229 = pneg %p101
      %p230 = pneg %p98
      %p231 = pneg %p122
      %p232 = pneg %p119
      %p233 = pneg %p143
      %p234 = pneg %p140
      %p235 = pneg %p169
      %p236 = pneg %p166
      %p237 = scmp.lt.s32.totalorder %s17, 1
      %s238 = scalar_select %p237, %s17, 1
      %s239 = smul.addr %s238, 4
      %s240 = smul.addr %s239, 4
      %s241 = scalar_lea.vmem %s6, %s240
      %p242 = scmp.lt.s32.totalorder %s17, 1
      %s243 = scalar_select %p242, %s17, 1
      %s244 = smul.addr %s243, 42
      %s245 = smul.addr %s244, 4
      %s246 = scalar_lea.vmem %s0, %s245
      %p247 = scmp.lt.s32.totalorder %s17, 1
      %s248 = scalar_select %p247, %s17, 1
      %s249 = smul.addr %s248, 4
      %s250 = smul.addr %s249, 4
      %s251 = scalar_lea.vmem %s6, %s250
      %v253 = vld [vmem:[%s1] sm:$0xff]
      %v254 = vld [vmem:[%s1 + $0x8] sm:$0xff]
      %v255 = vld [vmem:[%s1 + $0x10] sm:$0xff]
      %v256 = vld [vmem:[%s1 + $0x18] sm:$0xff]
      %v257 = vld [vmem:[%s1 + $0x20] sm:$0xff]
      %v258 = vld [vmem:[%s1 + $0x28] sm:$0xff]
      %v259 = vld [vmem:[%s1 + $0x30] sm:$0xff]
      %v260 = vld [vmem:[%s1 + $0x38] sm:$0xff]
      %v261 = vld [vmem:[%s1 + $0x40] sm:$0xff]
      %v262 = vld [vmem:[%s1 + $0x48] sm:$0xff]
      %v263 = vld [vmem:[%s1 + $0x50] sm:$0xf]
      %v264 = vld [vmem:[%s1 + $0x54] sm:$0xff]
      %v265 = vld [vmem:[%s1 + $0x5c] sm:$0xff]
      %v266 = vld [vmem:[%s1 + $0x64] sm:$0xff]
      %v267 = vld [vmem:[%s1 + $0x6c] sm:$0xff]
      %v268 = vld [vmem:[%s1 + $0x74] sm:$0xff]
      %v269 = vld [vmem:[%s1 + $0x7c] sm:$0xff]
      %v270 = vld [vmem:[%s1 + $0x84] sm:$0xff]
      %v271 = vld [vmem:[%s1 + $0x8c] sm:$0xff]
      %v272 = vld [vmem:[%s1 + $0x94] sm:$0xff]
      %v273 = vld [vmem:[%s1 + $0x9c] sm:$0xff]
      %v274 = vld [vmem:[%s1 + $0xa4] sm:$0xf]
      %v275 = vld [vmem:[%s1 + $0xa8] sm:$0xff]
      %v276 = vld [vmem:[%s1 + $0xb0] sm:$0xff]
      %v277 = vld [vmem:[%s1 + $0xb8] sm:$0xff]
      %v278 = vld [vmem:[%s1 + $0xc0] sm:$0xff]
      %v279 = vld [vmem:[%s1 + $0xc8] sm:$0xff]
      %v280 = vld [vmem:[%s1 + $0xd0] sm:$0xff]
      %v281 = vld [vmem:[%s1 + $0xd8] sm:$0xff]
      %v282 = vld [vmem:[%s1 + $0xe0] sm:$0xff]
      %v283 = vld [vmem:[%s1 + $0xe8] sm:$0xff]
      %v284 = vld [vmem:[%s1 + $0xf0] sm:$0xff]
      %v285 = vld [vmem:[%s1 + $0xf8] sm:$0xf]
      %v286 = vld [vmem:[%s1 + $0xfc] sm:$0xff]
      %v287 = vld [vmem:[%s1 + $0x104] sm:$0xff]
      %v288 = vld [vmem:[%s1 + $0x10c] sm:$0xff]
      %v289 = vld [vmem:[%s1 + $0x114] sm:$0xff]
      %v290 = vld [vmem:[%s1 + $0x11c] sm:$0xff]
      %v291 = vld [vmem:[%s1 + $0x124] sm:$0xff]
      %v292 = vld [vmem:[%s1 + $0x12c] sm:$0xff]
      %v293 = vld [vmem:[%s1 + $0x134] sm:$0xff]
      %v294 = vld [vmem:[%s1 + $0x13c] sm:$0xff]
      %v295 = vld [vmem:[%s1 + $0x144] sm:$0xff]
      %v296 = vld [vmem:[%s1 + $0x14c] sm:$0xf]
      %v297 = vld [vmem:[%s246] sm:$0xff]
      %v298 = vld [vmem:[%s246 + $0x8] sm:$0xff]
      %v299 = vld [vmem:[%s246 + $0x10] sm:$0xff]
      %v300 = vld [vmem:[%s246 + $0x18] sm:$0xff]
      %v301 = vld [vmem:[%s246 + $0x20] sm:$0xff]
      %v302 = vld [vmem:[%s246 + $0x28] sm:$0xff]
      %v303 = vld [vmem:[%s246 + $0x30] sm:$0xff]
      %v304 = vld [vmem:[%s246 + $0x38] sm:$0xff]
      %v305 = vld [vmem:[%s246 + $0x40] sm:$0xff]
      %v306 = vld [vmem:[%s246 + $0x48] sm:$0xff]
      %v307 = vld [vmem:[%s246 + $0x50] sm:$0xf]
      %v308 = vld [vmem:[%s246 + $0x54] sm:$0xff]
      %v309 = vld [vmem:[%s246 + $0x5c] sm:$0xff]
      %v310 = vld [vmem:[%s246 + $0x64] sm:$0xff]
      %v311 = vld [vmem:[%s246 + $0x6c] sm:$0xff]
      %v312 = vld [vmem:[%s246 + $0x74] sm:$0xff]
      %v313 = vld [vmem:[%s246 + $0x7c] sm:$0xff]
      %v314 = vld [vmem:[%s246 + $0x84] sm:$0xff]
      %v315 = vld [vmem:[%s246 + $0x8c] sm:$0xff]
      %v316 = vld [vmem:[%s246 + $0x94] sm:$0xff]
      %v317 = vld [vmem:[%s246 + $0x9c] sm:$0xff]
      %v318 = vld [vmem:[%s246 + $0xa4] sm:$0xf]
      %v319 = vld [vmem:[%s2] sm:$0xff]
      %v320 = vld [vmem:[%s2 + $0x8] sm:$0xff]
      %v321 = vld [vmem:[%s2 + $0x10] sm:$0xff]
      %v322 = vld [vmem:[%s2 + $0x18] sm:$0xff]
      %324 = vset.pattern.permute.xlu0 0
      %325 = vperm.xlu0 %324, %v319
      %v326 = vpop.permute.xlu0 %325
      %329 = vset.pattern.permute.xlu0 0
      %330 = vperm.xlu0 %329, %v320
      %v331 = vpop.permute.xlu0 %330
      %334 = vset.pattern.permute.xlu0 0
      %335 = vperm.xlu0 %334, %v321
      %v336 = vpop.permute.xlu0 %335
      %339 = vset.pattern.permute.xlu0 0
      %340 = vperm.xlu0 %339, %v322
      %v341 = vpop.permute.xlu0 %340
      %v387 = vunpack.c.l.b16 %v253
      %v388 = vunpack.c.h.b16 %v253
      %v389 = vunpack.c.l.b16 %v254
      %v390 = vunpack.c.h.b16 %v254
      %v391 = vunpack.c.l.b16 %v255
      %v392 = vunpack.c.h.b16 %v255
      %v393 = vunpack.c.l.b16 %v256
      %v394 = vunpack.c.h.b16 %v256
      %v395 = vunpack.c.l.b16 %v257
      %v396 = vunpack.c.h.b16 %v257
      %v397 = vunpack.c.l.b16 %v258
      %v398 = vunpack.c.h.b16 %v258
      %v399 = vunpack.c.l.b16 %v259
      %v400 = vunpack.c.h.b16 %v259
      %v401 = vunpack.c.l.b16 %v260
      %v402 = vunpack.c.h.b16 %v260
      %v403 = vunpack.c.l.b16 %v261
      %v404 = vunpack.c.h.b16 %v261
      %v405 = vunpack.c.l.b16 %v262
      %v406 = vunpack.c.h.b16 %v262
      %v407 = vunpack.c.l.b16 %v263
      %v408 = vunpack.c.l.b16 %v264
      %v409 = vunpack.c.h.b16 %v264
      %v410 = vunpack.c.l.b16 %v265
      %v411 = vunpack.c.h.b16 %v265
      %v412 = vunpack.c.l.b16 %v266
      %v413 = vunpack.c.h.b16 %v266
      %v414 = vunpack.c.l.b16 %v267
      %v415 = vunpack.c.h.b16 %v267
      %v416 = vunpack.c.l.b16 %v268
      %v417 = vunpack.c.h.b16 %v268
      %v418 = vunpack.c.l.b16 %v269
      %v419 = vunpack.c.h.b16 %v269
      %v420 = vunpack.c.l.b16 %v270
      %v421 = vunpack.c.h.b16 %v270
      %v422 = vunpack.c.l.b16 %v271
      %v423 = vunpack.c.h.b16 %v271
      %v424 = vunpack.c.l.b16 %v272
      %v425 = vunpack.c.h.b16 %v272
      %v426 = vunpack.c.l.b16 %v273
      %v427 = vunpack.c.h.b16 %v273
      %v428 = vunpack.c.l.b16 %v274
      %v429 = vunpack.c.l.b16 %v275
      %v430 = vunpack.c.h.b16 %v275
      %v431 = vunpack.c.l.b16 %v276
      %v432 = vunpack.c.h.b16 %v276
      %v433 = vunpack.c.l.b16 %v277
      %v434 = vunpack.c.h.b16 %v277
      %v435 = vunpack.c.l.b16 %v278
      %v436 = vunpack.c.h.b16 %v278
      %v437 = vunpack.c.l.b16 %v279
      %v438 = vunpack.c.h.b16 %v279
      %v439 = vunpack.c.l.b16 %v280
      %v440 = vunpack.c.h.b16 %v280
      %v441 = vunpack.c.l.b16 %v281
      %v442 = vunpack.c.h.b16 %v281
      %v443 = vunpack.c.l.b16 %v282
      %v444 = vunpack.c.h.b16 %v282
      %v445 = vunpack.c.l.b16 %v283
      %v446 = vunpack.c.h.b16 %v283
      %v447 = vunpack.c.l.b16 %v284
      %v448 = vunpack.c.h.b16 %v284
      %v449 = vunpack.c.l.b16 %v285
      %v450 = vunpack.c.l.b16 %v286
      %v451 = vunpack.c.h.b16 %v286
      %v452 = vunpack.c.l.b16 %v287
      %v453 = vunpack.c.h.b16 %v287
      %v454 = vunpack.c.l.b16 %v288
      %v455 = vunpack.c.h.b16 %v288
      %v456 = vunpack.c.l.b16 %v289
      %v457 = vunpack.c.h.b16 %v289
      %v458 = vunpack.c.l.b16 %v290
      %v459 = vunpack.c.h.b16 %v290
      %v460 = vunpack.c.l.b16 %v291
      %v461 = vunpack.c.h.b16 %v291
      %v462 = vunpack.c.l.b16 %v292
      %v463 = vunpack.c.h.b16 %v292
      %v464 = vunpack.c.l.b16 %v293
      %v465 = vunpack.c.h.b16 %v293
      %v466 = vunpack.c.l.b16 %v294
      %v467 = vunpack.c.h.b16 %v294
      %v468 = vunpack.c.l.b16 %v295
      %v469 = vunpack.c.h.b16 %v295
      %v470 = vunpack.c.l.b16 %v296
      %v471 = vpack.c.b16 %v408, %v387
      %v472 = vpack.c.b16 %v409, %v388
      %v473 = vpack.c.b16 %v410, %v389
      %v474 = vpack.c.b16 %v411, %v390
      %v475 = vpack.c.b16 %v412, %v391
      %v476 = vpack.c.b16 %v413, %v392
      %v477 = vpack.c.b16 %v414, %v393
      %v478 = vpack.c.b16 %v415, %v394
      %v479 = vpack.c.b16 %v416, %v395
      %v480 = vpack.c.b16 %v417, %v396
      %v481 = vpack.c.b16 %v418, %v397
      %v482 = vpack.c.b16 %v419, %v398
      %v483 = vpack.c.b16 %v420, %v399
      %v484 = vpack.c.b16 %v421, %v400
      %v485 = vpack.c.b16 %v422, %v401
      %v486 = vpack.c.b16 %v423, %v402
      %v487 = vpack.c.b16 %v424, %v403
      %v488 = vpack.c.b16 %v425, %v404
      %v489 = vpack.c.b16 %v426, %v405
      %v490 = vpack.c.b16 %v427, %v406
      %v491 = vpack.c.b16 %v428, %v407
      %v492 = vpack.c.b16 %v450, %v429
      %v493 = vpack.c.b16 %v451, %v430
      %v494 = vpack.c.b16 %v452, %v431
      %v495 = vpack.c.b16 %v453, %v432
      %v496 = vpack.c.b16 %v454, %v433
      %v497 = vpack.c.b16 %v455, %v434
      %v498 = vpack.c.b16 %v456, %v435
      %v499 = vpack.c.b16 %v457, %v436
      %v500 = vpack.c.b16 %v458, %v437
      %v501 = vpack.c.b16 %v459, %v438
      %v502 = vpack.c.b16 %v460, %v439
      %v503 = vpack.c.b16 %v461, %v440
      %v504 = vpack.c.b16 %v462, %v441
      %v505 = vpack.c.b16 %v463, %v442
      %v506 = vpack.c.b16 %v464, %v443
      %v507 = vpack.c.b16 %v465, %v444
      %v508 = vpack.c.b16 %v466, %v445
      %v509 = vpack.c.b16 %v467, %v446
      %v510 = vpack.c.b16 %v468, %v447
      %v511 = vpack.c.b16 %v469, %v448
      %v512 = vpack.c.b16 %v470, %v449
      %v577 = vunpack.c.l.b16 %v297
      %v578 = vunpack.c.h.b16 %v297
      %v579 = vunpack.c.l.b16 %v298
      %v580 = vunpack.c.h.b16 %v298
      %v581 = vunpack.c.l.b16 %v299
      %v582 = vunpack.c.h.b16 %v299
      %v583 = vunpack.c.l.b16 %v300
      %v584 = vunpack.c.h.b16 %v300
      %v585 = vunpack.c.l.b16 %v301
      %v586 = vunpack.c.h.b16 %v301
      %v587 = vunpack.c.l.b16 %v302
      %v588 = vunpack.c.h.b16 %v302
      %v589 = vunpack.c.l.b16 %v303
      %v590 = vunpack.c.h.b16 %v303
      %v591 = vunpack.c.l.b16 %v304
      %v592 = vunpack.c.h.b16 %v304
      %v593 = vunpack.c.l.b16 %v305
      %v594 = vunpack.c.h.b16 %v305
      %v595 = vunpack.c.l.b16 %v306
      %v596 = vunpack.c.h.b16 %v306
      %v597 = vunpack.c.l.b16 %v307
      %v598 = vunpack.c.l.b16 %v308
      %v599 = vunpack.c.h.b16 %v308
      %v600 = vunpack.c.l.b16 %v309
      %v601 = vunpack.c.h.b16 %v309
      %v602 = vunpack.c.l.b16 %v310
      %v603 = vunpack.c.h.b16 %v310
      %v604 = vunpack.c.l.b16 %v311
      %v605 = vunpack.c.h.b16 %v311
      %v606 = vunpack.c.l.b16 %v312
      %v607 = vunpack.c.h.b16 %v312
      %v608 = vunpack.c.l.b16 %v313
      %v609 = vunpack.c.h.b16 %v313
      %v610 = vunpack.c.l.b16 %v314
      %v611 = vunpack.c.h.b16 %v314
      %v612 = vunpack.c.l.b16 %v315
      %v613 = vunpack.c.h.b16 %v315
      %v614 = vunpack.c.l.b16 %v316
      %v615 = vunpack.c.h.b16 %v316
      %v616 = vunpack.c.l.b16 %v317
      %v617 = vunpack.c.h.b16 %v317
      %v618 = vunpack.c.l.b16 %v318
      %v619 = vpack.c.b16 %v598, %v577
      %v620 = vpack.c.b16 %v599, %v578
      %v621 = vpack.c.b16 %v600, %v579
      %v622 = vpack.c.b16 %v601, %v580
      %v623 = vpack.c.b16 %v602, %v581
      %v624 = vpack.c.b16 %v603, %v582
      %v625 = vpack.c.b16 %v604, %v583
      %v626 = vpack.c.b16 %v605, %v584
      %v627 = vpack.c.b16 %v606, %v585
      %v628 = vpack.c.b16 %v607, %v586
      %v629 = vpack.c.b16 %v608, %v587
      %v630 = vpack.c.b16 %v609, %v588
      %v631 = vpack.c.b16 %v610, %v589
      %v632 = vpack.c.b16 %v611, %v590
      %v633 = vpack.c.b16 %v612, %v591
      %v634 = vpack.c.b16 %v613, %v592
      %v635 = vpack.c.b16 %v614, %v593
      %v636 = vpack.c.b16 %v615, %v594
      %v637 = vpack.c.b16 %v616, %v595
      %v638 = vpack.c.b16 %v617, %v596
      %v639 = vpack.c.b16 %v618, %v597
      %661 = vmatpush.bf16.xpose.msra.mxu0 0
      %662 = vmatpush.bf16.xpose.msra.mxu0 0
      %663 = vmatpush.bf16.xpose.msra.mxu0 0
      %664 = vmatpush.bf16.xpose.msra.mxu0 0
      %665 = vmatpush.bf16.xpose.msra.mxu0 0
      %666 = vmatpush.bf16.xpose.msra.mxu0 0
      %667 = vmatpush.bf16.xpose.msra.mxu0 0
      %668 = vmatpush.bf16.xpose.msra.mxu0 %v619
      %669 = vmatmul.bf16.gmra.mxu0 %v471
      %v670 = vpop.f32.mrf.mxu0
      %v671 = vadd.f32 %v326, %v670
      %v672 = vpop.f32.mrf.mxu0
      %v673 = vadd.f32 %v331, %v672
      %674 = vmatmul.bf16.gmra.mxu0 %v492
      %v675 = vpop.f32.mrf.mxu0
      %v676 = vadd.f32 %v336, %v675
      %v677 = vpop.f32.mrf.mxu0
      %v678 = vadd.f32 %v341, %v677
      %679 = vdwg.mxu0
      %680 = vmatpush.bf16.xpose.msra.mxu0 0
      %681 = vmatpush.bf16.xpose.msra.mxu0 0
      %682 = vmatpush.bf16.xpose.msra.mxu0 0
      %683 = vmatpush.bf16.xpose.msra.mxu0 0
      %684 = vmatpush.bf16.xpose.msra.mxu0 0
      %685 = vmatpush.bf16.xpose.msra.mxu0 0
      %686 = vmatpush.bf16.xpose.msra.mxu0 0
      %687 = vmatpush.bf16.xpose.msra.mxu0 %v620
      %688 = vmatmul.bf16.gmra.mxu0 %v472
      %v689 = vpop.f32.mrf.mxu0
      %v690 = vadd.f32 %v671, %v689
      %v691 = vpop.f32.mrf.mxu0
      %v692 = vadd.f32 %v673, %v691
      %693 = vmatmul.bf16.gmra.mxu0 %v493
      %v694 = vpop.f32.mrf.mxu0
      %v695 = vadd.f32 %v676, %v694
      %v696 = vpop.f32.mrf.mxu0
      %v697 = vadd.f32 %v678, %v696
      %698 = vdwg.mxu0
      %699 = vmatpush.bf16.xpose.msra.mxu0 0
      %700 = vmatpush.bf16.xpose.msra.mxu0 0
      %701 = vmatpush.bf16.xpose.msra.mxu0 0
      %702 = vmatpush.bf16.xpose.msra.mxu0 0
      %703 = vmatpush.bf16.xpose.msra.mxu0 0
      %704 = vmatpush.bf16.xpose.msra.mxu0 0
      %705 = vmatpush.bf16.xpose.msra.mxu0 0
      %706 = vmatpush.bf16.xpose.msra.mxu0 %v621
      %707 = vmatmul.bf16.gmra.mxu0 %v473
      %v708 = vpop.f32.mrf.mxu0
      %v709 = vadd.f32 %v690, %v708
      %v710 = vpop.f32.mrf.mxu0
      %v711 = vadd.f32 %v692, %v710
      %712 = vmatmul.bf16.gmra.mxu0 %v494
      %v713 = vpop.f32.mrf.mxu0
      %v714 = vadd.f32 %v695, %v713
      %v715 = vpop.f32.mrf.mxu0
      %v716 = vadd.f32 %v697, %v715
      %717 = vdwg.mxu0
      %718 = vmatpush.bf16.xpose.msra.mxu0 0
      %719 = vmatpush.bf16.xpose.msra.mxu0 0
      %720 = vmatpush.bf16.xpose.msra.mxu0 0
      %721 = vmatpush.bf16.xpose.msra.mxu0 0
      %722 = vmatpush.bf16.xpose.msra.mxu0 0
      %723 = vmatpush.bf16.xpose.msra.mxu0 0
      %724 = vmatpush.bf16.xpose.msra.mxu0 0
      %725 = vmatpush.bf16.xpose.msra.mxu0 %v622
      %726 = vmatmul.bf16.gmra.mxu0 %v474
      %v727 = vpop.f32.mrf.mxu0
      %v728 = vadd.f32 %v709, %v727
      %v729 = vpop.f32.mrf.mxu0
      %v730 = vadd.f32 %v711, %v729
      %731 = vmatmul.bf16.gmra.mxu0 %v495
      %v732 = vpop.f32.mrf.mxu0
      %v733 = vadd.f32 %v714, %v732
      %v734 = vpop.f32.mrf.mxu0
      %v735 = vadd.f32 %v716, %v734
      %736 = vdwg.mxu0
      %737 = vmatpush.bf16.xpose.msra.mxu0 0
      %738 = vmatpush.bf16.xpose.msra.mxu0 0
      %739 = vmatpush.bf16.xpose.msra.mxu0 0
      %740 = vmatpush.bf16.xpose.msra.mxu0 0
      %741 = vmatpush.bf16.xpose.msra.mxu0 0
      %742 = vmatpush.bf16.xpose.msra.mxu0 0
      %743 = vmatpush.bf16.xpose.msra.mxu0 0
      %744 = vmatpush.bf16.xpose.msra.mxu0 %v623
      %745 = vmatmul.bf16.gmra.mxu0 %v475
      %v746 = vpop.f32.mrf.mxu0
      %v747 = vadd.f32 %v728, %v746
      %v748 = vpop.f32.mrf.mxu0
      %v749 = vadd.f32 %v730, %v748
      %750 = vmatmul.bf16.gmra.mxu0 %v496
      %v751 = vpop.f32.mrf.mxu0
      %v752 = vadd.f32 %v733, %v751
      %v753 = vpop.f32.mrf.mxu0
      %v754 = vadd.f32 %v735, %v753
      %755 = vdwg.mxu0
      %756 = vmatpush.bf16.xpose.msra.mxu0 0
      %757 = vmatpush.bf16.xpose.msra.mxu0 0
      %758 = vmatpush.bf16.xpose.msra.mxu0 0
      %759 = vmatpush.bf16.xpose.msra.mxu0 0
      %760 = vmatpush.bf16.xpose.msra.mxu0 0
      %761 = vmatpush.bf16.xpose.msra.mxu0 0
      %762 = vmatpush.bf16.xpose.msra.mxu0 0
      %763 = vmatpush.bf16.xpose.msra.mxu0 %v624
      %764 = vmatmul.bf16.gmra.mxu0 %v476
      %v765 = vpop.f32.mrf.mxu0
      %v766 = vadd.f32 %v747, %v765
      %v767 = vpop.f32.mrf.mxu0
      %v768 = vadd.f32 %v749, %v767
      %769 = vmatmul.bf16.gmra.mxu0 %v497
      %v770 = vpop.f32.mrf.mxu0
      %v771 = vadd.f32 %v752, %v770
      %v772 = vpop.f32.mrf.mxu0
      %v773 = vadd.f32 %v754, %v772
      %774 = vdwg.mxu0
      %775 = vmatpush.bf16.xpose.msra.mxu0 0
      %776 = vmatpush.bf16.xpose.msra.mxu0 0
      %777 = vmatpush.bf16.xpose.msra.mxu0 0
      %778 = vmatpush.bf16.xpose.msra.mxu0 0
      %779 = vmatpush.bf16.xpose.msra.mxu0 0
      %780 = vmatpush.bf16.xpose.msra.mxu0 0
      %781 = vmatpush.bf16.xpose.msra.mxu0 0
      %782 = vmatpush.bf16.xpose.msra.mxu0 %v625
      %783 = vmatmul.bf16.gmra.mxu0 %v477
      %v784 = vpop.f32.mrf.mxu0
      %v785 = vadd.f32 %v766, %v784
      %v786 = vpop.f32.mrf.mxu0
      %v787 = vadd.f32 %v768, %v786
      %788 = vmatmul.bf16.gmra.mxu0 %v498
      %v789 = vpop.f32.mrf.mxu0
      %v790 = vadd.f32 %v771, %v789
      %v791 = vpop.f32.mrf.mxu0
      %v792 = vadd.f32 %v773, %v791
      %793 = vdwg.mxu0
      %794 = vmatpush.bf16.xpose.msra.mxu0 0
      %795 = vmatpush.bf16.xpose.msra.mxu0 0
      %796 = vmatpush.bf16.xpose.msra.mxu0 0
      %797 = vmatpush.bf16.xpose.msra.mxu0 0
      %798 = vmatpush.bf16.xpose.msra.mxu0 0
      %799 = vmatpush.bf16.xpose.msra.mxu0 0
      %800 = vmatpush.bf16.xpose.msra.mxu0 0
      %801 = vmatpush.bf16.xpose.msra.mxu0 %v626
      %802 = vmatmul.bf16.gmra.mxu0 %v478
      %v803 = vpop.f32.mrf.mxu0
      %v804 = vadd.f32 %v785, %v803
      %v805 = vpop.f32.mrf.mxu0
      %v806 = vadd.f32 %v787, %v805
      %807 = vmatmul.bf16.gmra.mxu0 %v499
      %v808 = vpop.f32.mrf.mxu0
      %v809 = vadd.f32 %v790, %v808
      %v810 = vpop.f32.mrf.mxu0
      %v811 = vadd.f32 %v792, %v810
      %812 = vdwg.mxu0
      %813 = vmatpush.bf16.xpose.msra.mxu0 0
      %814 = vmatpush.bf16.xpose.msra.mxu0 0
      %815 = vmatpush.bf16.xpose.msra.mxu0 0
      %816 = vmatpush.bf16.xpose.msra.mxu0 0
      %817 = vmatpush.bf16.xpose.msra.mxu0 0
      %818 = vmatpush.bf16.xpose.msra.mxu0 0
      %819 = vmatpush.bf16.xpose.msra.mxu0 0
      %820 = vmatpush.bf16.xpose.msra.mxu0 %v627
      %821 = vmatmul.bf16.gmra.mxu0 %v479
      %v822 = vpop.f32.mrf.mxu0
      %v823 = vadd.f32 %v804, %v822
      %v824 = vpop.f32.mrf.mxu0
      %v825 = vadd.f32 %v806, %v824
      %826 = vmatmul.bf16.gmra.mxu0 %v500
      %v827 = vpop.f32.mrf.mxu0
      %v828 = vadd.f32 %v809, %v827
      %v829 = vpop.f32.mrf.mxu0
      %v830 = vadd.f32 %v811, %v829
      %831 = vdwg.mxu0
      %832 = vmatpush.bf16.xpose.msra.mxu0 0
      %833 = vmatpush.bf16.xpose.msra.mxu0 0
      %834 = vmatpush.bf16.xpose.msra.mxu0 0
      %835 = vmatpush.bf16.xpose.msra.mxu0 0
      %836 = vmatpush.bf16.xpose.msra.mxu0 0
      %837 = vmatpush.bf16.xpose.msra.mxu0 0
      %838 = vmatpush.bf16.xpose.msra.mxu0 0
      %839 = vmatpush.bf16.xpose.msra.mxu0 %v628
      %840 = vmatmul.bf16.gmra.mxu0 %v480
      %v841 = vpop.f32.mrf.mxu0
      %v842 = vadd.f32 %v823, %v841
      %v843 = vpop.f32.mrf.mxu0
      %v844 = vadd.f32 %v825, %v843
      %845 = vmatmul.bf16.gmra.mxu0 %v501
      %v846 = vpop.f32.mrf.mxu0
      %v847 = vadd.f32 %v828, %v846
      %v848 = vpop.f32.mrf.mxu0
      %v849 = vadd.f32 %v830, %v848
      %850 = vdwg.mxu0
      %851 = vmatpush.bf16.xpose.msra.mxu0 0
      %852 = vmatpush.bf16.xpose.msra.mxu0 0
      %853 = vmatpush.bf16.xpose.msra.mxu0 0
      %854 = vmatpush.bf16.xpose.msra.mxu0 0
      %855 = vmatpush.bf16.xpose.msra.mxu0 0
      %856 = vmatpush.bf16.xpose.msra.mxu0 0
      %857 = vmatpush.bf16.xpose.msra.mxu0 0
      %858 = vmatpush.bf16.xpose.msra.mxu0 %v629
      %859 = vmatmul.bf16.gmra.mxu0 %v481
      %v860 = vpop.f32.mrf.mxu0
      %v861 = vadd.f32 %v842, %v860
      %v862 = vpop.f32.mrf.mxu0
      %v863 = vadd.f32 %v844, %v862
      %864 = vmatmul.bf16.gmra.mxu0 %v502
      %v865 = vpop.f32.mrf.mxu0
      %v866 = vadd.f32 %v847, %v865
      %v867 = vpop.f32.mrf.mxu0
      %v868 = vadd.f32 %v849, %v867
      %869 = vdwg.mxu0
      %870 = vmatpush.bf16.xpose.msra.mxu0 0
      %871 = vmatpush.bf16.xpose.msra.mxu0 0
      %872 = vmatpush.bf16.xpose.msra.mxu0 0
      %873 = vmatpush.bf16.xpose.msra.mxu0 0
      %874 = vmatpush.bf16.xpose.msra.mxu0 0
      %875 = vmatpush.bf16.xpose.msra.mxu0 0
      %876 = vmatpush.bf16.xpose.msra.mxu0 0
      %877 = vmatpush.bf16.xpose.msra.mxu0 %v630
      %878 = vmatmul.bf16.gmra.mxu0 %v482
      %v879 = vpop.f32.mrf.mxu0
      %v880 = vadd.f32 %v861, %v879
      %v881 = vpop.f32.mrf.mxu0
      %v882 = vadd.f32 %v863, %v881
      %883 = vmatmul.bf16.gmra.mxu0 %v503
      %v884 = vpop.f32.mrf.mxu0
      %v885 = vadd.f32 %v866, %v884
      %v886 = vpop.f32.mrf.mxu0
      %v887 = vadd.f32 %v868, %v886
      %888 = vdwg.mxu0
      %889 = vmatpush.bf16.xpose.msra.mxu0 0
      %890 = vmatpush.bf16.xpose.msra.mxu0 0
      %891 = vmatpush.bf16.xpose.msra.mxu0 0
      %892 = vmatpush.bf16.xpose.msra.mxu0 0
      %893 = vmatpush.bf16.xpose.msra.mxu0 0
      %894 = vmatpush.bf16.xpose.msra.mxu0 0
      %895 = vmatpush.bf16.xpose.msra.mxu0 0
      %896 = vmatpush.bf16.xpose.msra.mxu0 %v631
      %897 = vmatmul.bf16.gmra.mxu0 %v483
      %v898 = vpop.f32.mrf.mxu0
      %v899 = vadd.f32 %v880, %v898
      %v900 = vpop.f32.mrf.mxu0
      %v901 = vadd.f32 %v882, %v900
      %902 = vmatmul.bf16.gmra.mxu0 %v504
      %v903 = vpop.f32.mrf.mxu0
      %v904 = vadd.f32 %v885, %v903
      %v905 = vpop.f32.mrf.mxu0
      %v906 = vadd.f32 %v887, %v905
      %907 = vdwg.mxu0
      %908 = vmatpush.bf16.xpose.msra.mxu0 0
      %909 = vmatpush.bf16.xpose.msra.mxu0 0
      %910 = vmatpush.bf16.xpose.msra.mxu0 0
      %911 = vmatpush.bf16.xpose.msra.mxu0 0
      %912 = vmatpush.bf16.xpose.msra.mxu0 0
      %913 = vmatpush.bf16.xpose.msra.mxu0 0
      %914 = vmatpush.bf16.xpose.msra.mxu0 0
      %915 = vmatpush.bf16.xpose.msra.mxu0 %v632
      %916 = vmatmul.bf16.gmra.mxu0 %v484
      %v917 = vpop.f32.mrf.mxu0
      %v918 = vadd.f32 %v899, %v917
      %v919 = vpop.f32.mrf.mxu0
      %v920 = vadd.f32 %v901, %v919
      %921 = vmatmul.bf16.gmra.mxu0 %v505
      %v922 = vpop.f32.mrf.mxu0
      %v923 = vadd.f32 %v904, %v922
      %v924 = vpop.f32.mrf.mxu0
      %v925 = vadd.f32 %v906, %v924
      %926 = vdwg.mxu0
      %927 = vmatpush.bf16.xpose.msra.mxu0 0
      %928 = vmatpush.bf16.xpose.msra.mxu0 0
      %929 = vmatpush.bf16.xpose.msra.mxu0 0
      %930 = vmatpush.bf16.xpose.msra.mxu0 0
      %931 = vmatpush.bf16.xpose.msra.mxu0 0
      %932 = vmatpush.bf16.xpose.msra.mxu0 0
      %933 = vmatpush.bf16.xpose.msra.mxu0 0
      %934 = vmatpush.bf16.xpose.msra.mxu0 %v633
      %935 = vmatmul.bf16.gmra.mxu0 %v485
      %v936 = vpop.f32.mrf.mxu0
      %v937 = vadd.f32 %v918, %v936
      %v938 = vpop.f32.mrf.mxu0
      %v939 = vadd.f32 %v920, %v938
      %940 = vmatmul.bf16.gmra.mxu0 %v506
      %v941 = vpop.f32.mrf.mxu0
      %v942 = vadd.f32 %v923, %v941
      %v943 = vpop.f32.mrf.mxu0
      %v944 = vadd.f32 %v925, %v943
      %945 = vdwg.mxu0
      %946 = vmatpush.bf16.xpose.msra.mxu0 0
      %947 = vmatpush.bf16.xpose.msra.mxu0 0
      %948 = vmatpush.bf16.xpose.msra.mxu0 0
      %949 = vmatpush.bf16.xpose.msra.mxu0 0
      %950 = vmatpush.bf16.xpose.msra.mxu0 0
      %951 = vmatpush.bf16.xpose.msra.mxu0 0
      %952 = vmatpush.bf16.xpose.msra.mxu0 0
      %953 = vmatpush.bf16.xpose.msra.mxu0 %v634
      %954 = vmatmul.bf16.gmra.mxu0 %v486
      %v955 = vpop.f32.mrf.mxu0
      %v956 = vadd.f32 %v937, %v955
      %v957 = vpop.f32.mrf.mxu0
      %v958 = vadd.f32 %v939, %v957
      %959 = vmatmul.bf16.gmra.mxu0 %v507
      %v960 = vpop.f32.mrf.mxu0
      %v961 = vadd.f32 %v942, %v960
      %v962 = vpop.f32.mrf.mxu0
      %v963 = vadd.f32 %v944, %v962
      %964 = vdwg.mxu0
      %965 = vmatpush.bf16.xpose.msra.mxu0 0
      %966 = vmatpush.bf16.xpose.msra.mxu0 0
      %967 = vmatpush.bf16.xpose.msra.mxu0 0
      %968 = vmatpush.bf16.xpose.msra.mxu0 0
      %969 = vmatpush.bf16.xpose.msra.mxu0 0
      %970 = vmatpush.bf16.xpose.msra.mxu0 0
      %971 = vmatpush.bf16.xpose.msra.mxu0 0
      %972 = vmatpush.bf16.xpose.msra.mxu0 %v635
      %973 = vmatmul.bf16.gmra.mxu0 %v487
      %v974 = vpop.f32.mrf.mxu0
      %v975 = vadd.f32 %v956, %v974
      %v976 = vpop.f32.mrf.mxu0
      %v977 = vadd.f32 %v958, %v976
      %978 = vmatmul.bf16.gmra.mxu0 %v508
      %v979 = vpop.f32.mrf.mxu0
      %v980 = vadd.f32 %v961, %v979
      %v981 = vpop.f32.mrf.mxu0
      %v982 = vadd.f32 %v963, %v981
      %983 = vdwg.mxu0
      %984 = vmatpush.bf16.xpose.msra.mxu0 0
      %985 = vmatpush.bf16.xpose.msra.mxu0 0
      %986 = vmatpush.bf16.xpose.msra.mxu0 0
      %987 = vmatpush.bf16.xpose.msra.mxu0 0
      %988 = vmatpush.bf16.xpose.msra.mxu0 0
      %989 = vmatpush.bf16.xpose.msra.mxu0 0
      %990 = vmatpush.bf16.xpose.msra.mxu0 0
      %991 = vmatpush.bf16.xpose.msra.mxu0 %v636
      %992 = vmatmul.bf16.gmra.mxu0 %v488
      %v993 = vpop.f32.mrf.mxu0
      %v994 = vadd.f32 %v975, %v993
      %v995 = vpop.f32.mrf.mxu0
      %v996 = vadd.f32 %v977, %v995
      %997 = vmatmul.bf16.gmra.mxu0 %v509
      %v998 = vpop.f32.mrf.mxu0
      %v999 = vadd.f32 %v980, %v998
      %v1000 = vpop.f32.mrf.mxu0
      %v1001 = vadd.f32 %v982, %v1000
      %1002 = vdwg.mxu0
      %1003 = vmatpush.bf16.xpose.msra.mxu0 0
      %1004 = vmatpush.bf16.xpose.msra.mxu0 0
      %1005 = vmatpush.bf16.xpose.msra.mxu0 0
      %1006 = vmatpush.bf16.xpose.msra.mxu0 0
      %1007 = vmatpush.bf16.xpose.msra.mxu0 0
      %1008 = vmatpush.bf16.xpose.msra.mxu0 0
      %1009 = vmatpush.bf16.xpose.msra.mxu0 0
      %1010 = vmatpush.bf16.xpose.msra.mxu0 %v637
      %1011 = vmatmul.bf16.gmra.mxu0 %v489
      %v1012 = vpop.f32.mrf.mxu0
      %v1013 = vadd.f32 %v994, %v1012
      %v1014 = vpop.f32.mrf.mxu0
      %v1015 = vadd.f32 %v996, %v1014
      %1016 = vmatmul.bf16.gmra.mxu0 %v510
      %v1017 = vpop.f32.mrf.mxu0
      %v1018 = vadd.f32 %v999, %v1017
      %v1019 = vpop.f32.mrf.mxu0
      %v1020 = vadd.f32 %v1001, %v1019
      %1021 = vdwg.mxu0
      %1022 = vmatpush.bf16.xpose.msra.mxu0 0
      %1023 = vmatpush.bf16.xpose.msra.mxu0 0
      %1024 = vmatpush.bf16.xpose.msra.mxu0 0
      %1025 = vmatpush.bf16.xpose.msra.mxu0 0
      %1026 = vmatpush.bf16.xpose.msra.mxu0 0
      %1027 = vmatpush.bf16.xpose.msra.mxu0 0
      %1028 = vmatpush.bf16.xpose.msra.mxu0 0
      %1029 = vmatpush.bf16.xpose.msra.mxu0 %v638
      %1030 = vmatmul.bf16.gmra.mxu0 %v490
      %v1031 = vpop.f32.mrf.mxu0
      %v1032 = vadd.f32 %v1013, %v1031
      %v1033 = vpop.f32.mrf.mxu0
      %v1034 = vadd.f32 %v1015, %v1033
      %1035 = vmatmul.bf16.gmra.mxu0 %v511
      %v1036 = vpop.f32.mrf.mxu0
      %v1037 = vadd.f32 %v1018, %v1036
      %v1038 = vpop.f32.mrf.mxu0
      %v1039 = vadd.f32 %v1020, %v1038
      %1040 = vdwg.mxu0
      %1041 = vmatpush.bf16.xpose.msra.mxu0 0
      %1042 = vmatpush.bf16.xpose.msra.mxu0 0
      %1043 = vmatpush.bf16.xpose.msra.mxu0 0
      %1044 = vmatpush.bf16.xpose.msra.mxu0 0
      %1045 = vmatpush.bf16.xpose.msra.mxu0 0
      %1046 = vmatpush.bf16.xpose.msra.mxu0 0
      %1047 = vmatpush.bf16.xpose.msra.mxu0 0
      %1048 = vmatpush.bf16.xpose.msra.mxu0 %v639
      %1049 = vmatmul.bf16.gmra.mxu0 %v491
      %v1050 = vpop.f32.mrf.mxu0
      %v1051 = vadd.f32 %v1032, %v1050
      %v1052 = vpop.f32.mrf.mxu0
      %v1053 = vadd.f32 %v1034, %v1052
      %1054 = vmatmul.bf16.gmra.mxu0 %v512
      %v1055 = vpop.f32.mrf.mxu0
      %v1056 = vadd.f32 %v1037, %v1055
      %v1057 = vpop.f32.mrf.mxu0
      %v1058 = vadd.f32 %v1039, %v1057
      %1059 = vdwg.mxu0
      %vm1060 = vcmask 130048
      %v1061 = vsel %vm1060, %v1051, 0.0
      %1062 = vadd.xlane.f32.xlu0 %v1061
      %v1063 = vpop.xlane.xlu0 %1062
      %v1064 = vsel %vm1060, %v1053, 0.0
      %1065 = vadd.xlane.f32.xlu0 %v1064
      %v1066 = vpop.xlane.xlu0 %1065
      %v1067 = vsel %vm1060, %v1056, 0.0
      %1068 = vadd.xlane.f32.xlu0 %v1067
      %v1069 = vpop.xlane.xlu0 %1068
      %v1070 = vsel %vm1060, %v1058, 0.0
      %1071 = vadd.xlane.f32.xlu0 %v1070
      %v1072 = vpop.xlane.xlu0 %1071
      %v1073 = vld [vmem:[%s5] sm:$0xff]
      %v1074 = vld [vmem:[%s5 + $0x8] sm:$0xff]
      %v1075 = vld [vmem:[%s5 + $0x10] sm:$0xff]
      %v1076 = vld [vmem:[%s5 + $0x18] sm:$0xff]
      %vm1077 = vcmask 261120
      %v1079 = vsel %vm1077, %v1073, 0
      %v1082 = vsel %vm1077, %v1074, 0
      %v1085 = vsel %vm1077, %v1075, 0
      %v1088 = vsel %vm1077, %v1076, 0
      %1090 = vmatpush.msra.mxu0 0.0
      %1091 = vmatpush.msra.mxu0 0.0
      %1092 = vmatpush.msra.mxu0 0.0
      %1093 = vmatpush.msra.mxu0 0.0
      %1094 = vmatpush.msra.mxu0 0.0
      %1095 = vmatpush.msra.mxu0 0.0
      %1096 = vmatpush.msra.mxu0 0.0
      %1097 = vmatpush.msra.mxu0 0.0
      %1098 = vmatpush.msra.mxu0 0.0
      %1099 = vmatpush.msra.mxu0 0.0
      %1100 = vmatpush.msra.mxu0 0.0
      %1101 = vmatpush.msra.mxu0 0.0
      %1102 = vmatpush.msra.mxu0 %v1072
      %1103 = vmatpush.msra.mxu0 %v1069
      %1104 = vmatpush.msra.mxu0 %v1066
      %1105 = vmatpush.msra.mxu0 %v1063
      %1106 = vmatmul.f32.gmra.mxu0 %v1079
      %v1107 = vpop.f32.mrf.mxu0
      %v1108 = vadd.f32 0.0, %v1107
      %1109 = vmatmul.f32.gmra.mxu0 %v1082
      %v1110 = vpop.f32.mrf.mxu0
      %v1111 = vadd.f32 0.0, %v1110
      %1112 = vmatmul.f32.gmra.mxu0 %v1085
      %v1113 = vpop.f32.mrf.mxu0
      %v1114 = vadd.f32 0.0, %v1113
      %1115 = vmatmul.f32.gmra.mxu0 %v1088
      %v1116 = vpop.f32.mrf.mxu0
      %v1117 = vadd.f32 0.0, %v1116
      %1118 = vdwg.mxu0
      %v1119 = vmul.f32 %v1108, 0.0078125
      %v1120 = vmul.f32 %v1111, 0.0078125
      %v1121 = vmul.f32 %v1114, 0.0078125
      %v1122 = vmul.f32 %v1117, 0.0078125
      %1124 = vset.pattern.permute.xlu0 0
      %1125 = vperm.xlu0 %1124, %v1119
      %v1126 = vpop.permute.xlu0 %1125
      %1129 = vset.pattern.permute.xlu0 0
      %1130 = vperm.xlu0 %1129, %v1120
      %v1131 = vpop.permute.xlu0 %1130
      %1134 = vset.pattern.permute.xlu0 0
      %1135 = vperm.xlu0 %1134, %v1121
      %v1136 = vpop.permute.xlu0 %1135
      %1139 = vset.pattern.permute.xlu0 0
      %1140 = vperm.xlu0 %1139, %v1122
      %v1141 = vpop.permute.xlu0 %1140
      %v1143 = vsub.f32 %v1051, %v1126
      %v1144 = vsub.f32 %v1053, %v1131
      %v1145 = vsub.f32 %v1056, %v1136
      %v1146 = vsub.f32 %v1058, %v1141
      %v1147 = vmul.f32 %v1143, %v1143
      %v1148 = vmul.f32 %v1144, %v1144
      %v1149 = vmul.f32 %v1145, %v1145
      %v1150 = vmul.f32 %v1146, %v1146
      %v1151 = vsel %vm1060, %v1147, 0.0
      %1152 = vadd.xlane.f32.xlu0 %v1151
      %v1153 = vpop.xlane.xlu0 %1152
      %v1154 = vsel %vm1060, %v1148, 0.0
      %1155 = vadd.xlane.f32.xlu0 %v1154
      %v1156 = vpop.xlane.xlu0 %1155
      %v1157 = vsel %vm1060, %v1149, 0.0
      %1158 = vadd.xlane.f32.xlu0 %v1157
      %v1159 = vpop.xlane.xlu0 %1158
      %v1160 = vsel %vm1060, %v1150, 0.0
      %1161 = vadd.xlane.f32.xlu0 %v1160
      %v1162 = vpop.xlane.xlu0 %1161
      %1163 = vmatpush.msra.mxu0 0.0
      %1164 = vmatpush.msra.mxu0 0.0
      %1165 = vmatpush.msra.mxu0 0.0
      %1166 = vmatpush.msra.mxu0 0.0
      %1167 = vmatpush.msra.mxu0 0.0
      %1168 = vmatpush.msra.mxu0 0.0
      %1169 = vmatpush.msra.mxu0 0.0
      %1170 = vmatpush.msra.mxu0 0.0
      %1171 = vmatpush.msra.mxu0 0.0
      %1172 = vmatpush.msra.mxu0 0.0
      %1173 = vmatpush.msra.mxu0 0.0
      %1174 = vmatpush.msra.mxu0 0.0
      %1175 = vmatpush.msra.mxu0 %v1162
      %1176 = vmatpush.msra.mxu0 %v1159
      %1177 = vmatpush.msra.mxu0 %v1156
      %1178 = vmatpush.msra.mxu0 %v1153
      %1179 = vmatmul.f32.gmra.mxu0 %v1079
      %v1180 = vpop.f32.mrf.mxu0
      %v1181 = vadd.f32 0.0, %v1180
      %1182 = vmatmul.f32.gmra.mxu0 %v1082
      %v1183 = vpop.f32.mrf.mxu0
      %v1184 = vadd.f32 0.0, %v1183
      %1185 = vmatmul.f32.gmra.mxu0 %v1085
      %v1186 = vpop.f32.mrf.mxu0
      %v1187 = vadd.f32 0.0, %v1186
      %1188 = vmatmul.f32.gmra.mxu0 %v1088
      %v1189 = vpop.f32.mrf.mxu0
      %v1190 = vadd.f32 0.0, %v1189
      %1191 = vdwg.mxu0
      %v1192 = vmul.f32 %v1181, 0.0078125
      %v1193 = vmul.f32 %v1184, 0.0078125
      %v1194 = vmul.f32 %v1187, 0.0078125
      %v1195 = vmul.f32 %v1190, 0.0078125
      %v1196 = vadd.f32 %v1192, 1e-05
      %v1197 = vadd.f32 %v1193, 1e-05
      %v1198 = vadd.f32 %v1194, 1e-05
      %v1199 = vadd.f32 %v1195, 1e-05
      %v1200 = vrsqrt.pop %v1196
      %v1201 = vmul.f32 %v1200, %v1196
      %v1202 = vmul.f32 %v1201, %v1200
      %v1203 = vmul.f32 0.5, %v1202
      %v1204 = vsub.f32 1.5, %v1203
      %v1205 = vmul.f32 %v1200, %v1204
      %vm1206 = vweird.f32 %v1196
      %vm1207 = vweird.f32 %v1200
      %vm1208 = vmor %vm1206, %vm1207
      %v1209 = vsel %vm1208, %v1200, %v1205
      %v1210 = vrsqrt.pop %v1197
      %v1211 = vmul.f32 %v1210, %v1197
      %v1212 = vmul.f32 %v1211, %v1210
      %v1213 = vmul.f32 0.5, %v1212
      %v1214 = vsub.f32 1.5, %v1213
      %v1215 = vmul.f32 %v1210, %v1214
      %vm1216 = vweird.f32 %v1197
      %vm1217 = vweird.f32 %v1210
      %vm1218 = vmor %vm1216, %vm1217
      %v1219 = vsel %vm1218, %v1210, %v1215
      %v1220 = vrsqrt.pop %v1198
      %v1221 = vmul.f32 %v1220, %v1198
      %v1222 = vmul.f32 %v1221, %v1220
      %v1223 = vmul.f32 0.5, %v1222
      %v1224 = vsub.f32 1.5, %v1223
      %v1225 = vmul.f32 %v1220, %v1224
      %vm1226 = vweird.f32 %v1198
      %vm1227 = vweird.f32 %v1220
      %vm1228 = vmor %vm1226, %vm1227
      %v1229 = vsel %vm1228, %v1220, %v1225
      %v1230 = vrsqrt.pop %v1199
      %v1231 = vmul.f32 %v1230, %v1199
      %v1232 = vmul.f32 %v1231, %v1230
      %v1233 = vmul.f32 0.5, %v1232
      %v1234 = vsub.f32 1.5, %v1233
      %v1235 = vmul.f32 %v1230, %v1234
      %vm1236 = vweird.f32 %v1199
      %vm1237 = vweird.f32 %v1230
      %vm1238 = vmor %vm1236, %vm1237
      %v1239 = vsel %vm1238, %v1230, %v1235
      %v1240 = vld [vmem:[%s3] sm:$0xff]
      %v1241 = vld [vmem:[%s3 + $0x8] sm:$0xff]
      %v1242 = vld [vmem:[%s3 + $0x10] sm:$0xff]
      %v1243 = vld [vmem:[%s3 + $0x18] sm:$0xff]
      %v1244 = vmul.f32 %v1209, %v1240
      %v1245 = vmul.f32 %v1219, %v1241
      %v1246 = vmul.f32 %v1229, %v1242
      %v1247 = vmul.f32 %v1239, %v1243
      %1249 = vset.pattern.permute.xlu0 0
      %1250 = vperm.xlu0 %1249, %v1244
      %v1251 = vpop.permute.xlu0 %1250
      %1254 = vset.pattern.permute.xlu0 0
      %1255 = vperm.xlu0 %1254, %v1245
      %v1256 = vpop.permute.xlu0 %1255
      %1259 = vset.pattern.permute.xlu0 0
      %1260 = vperm.xlu0 %1259, %v1246
      %v1261 = vpop.permute.xlu0 %1260
      %1264 = vset.pattern.permute.xlu0 0
      %1265 = vperm.xlu0 %1264, %v1247
      %v1266 = vpop.permute.xlu0 %1265
      %v1268 = vmul.f32 %v1143, %v1251
      %v1269 = vmul.f32 %v1144, %v1256
      %v1270 = vmul.f32 %v1145, %v1261
      %v1271 = vmul.f32 %v1146, %v1266
      %v1272 = vld [vmem:[%s4] sm:$0xff]
      %v1273 = vld [vmem:[%s4 + $0x8] sm:$0xff]
      %v1274 = vld [vmem:[%s4 + $0x10] sm:$0xff]
      %v1275 = vld [vmem:[%s4 + $0x18] sm:$0xff]
      %1277 = vset.pattern.permute.xlu0 0
      %1278 = vperm.xlu0 %1277, %v1272
      %v1279 = vpop.permute.xlu0 %1278
      %1282 = vset.pattern.permute.xlu0 0
      %1283 = vperm.xlu0 %1282, %v1273
      %v1284 = vpop.permute.xlu0 %1283
      %1287 = vset.pattern.permute.xlu0 0
      %1288 = vperm.xlu0 %1287, %v1274
      %v1289 = vpop.permute.xlu0 %1288
      %1292 = vset.pattern.permute.xlu0 0
      %1293 = vperm.xlu0 %1292, %v1275
      %v1294 = vpop.permute.xlu0 %1293
      %v1296 = vadd.f32 %v1268, %v1279
      %v1297 = vadd.f32 %v1269, %v1284
      %v1298 = vadd.f32 %v1270, %v1289
      %v1299 = vadd.f32 %v1271, %v1294
      %v1300 = vmax.f32 %v1296, 0.0
      %v1301 = vmax.f32 %v1297, 0.0
      %v1302 = vmax.f32 %v1298, 0.0
      %v1303 = vmax.f32 %v1299, 0.0
      %v1304 = vpack.c.bf16 %v1300, %v1300
      %v1305 = vpack.c.bf16 %v1301, %v1301
      %v1306 = vpack.c.bf16 %v1302, %v1302
      %v1307 = vpack.c.bf16 %v1303, %v1303
      %vm1308 = vcmask 125952
      %1309 = vst.msk [vmem:[%s251] sm:$0xf] %vm1308, %v1304
      %1310 = vst.msk [vmem:[%s251 + $0x4] sm:$0xf] %vm1308, %v1305
      %1311 = vst.msk [vmem:[%s251 + $0x8] sm:$0xf] %vm1308, %v1306
      %1312 = vst.msk [vmem:[%s251 + $0xc] sm:$0xf] %vm1308, %v1307
      %p1313 = scmp.lt.s32.totalorder %s17, 1
      %s1314 = scalar_select %p1313, %s17, 1
      %s1315 = smul.addr %s1314, 4
      %s1316 = smul.addr %s1315, 4
      %s1317 = scalar_lea.vmem %s6, %s1316
      // Predicated region
      $region45: #{cvlearner_forward.9} parent=43 // pred_check
        %p1318 = pneg %p166
      $region46: #{cvlearner_forward.9} parent=43 // pred_check_branch
        %1320 = sbr.rel (%p1318) target = $region48
      $region47: #{cvlearner_forward.9} parent=43 // pred_region
        _
      $region48: #{cvlearner_forward.9} parent=43 // pred_fallthru
        _
    $region44: #{cvlearner_forward.9} parent=5 // pred_fallthru
      _
    %p1321 = scmp.le.s32.totalorder 2, %s12
    // Predicated region
    $region49: #{cvlearner_forward.9} parent=5 // pred_check
      %p1322 = pneg %p1321
    $region50: #{cvlearner_forward.9} parent=5 // pred_check_branch
      %1324 = sbr.rel (%p1322) target = $region52
    $region51: #{cvlearner_forward.9} parent=5 // pred_region
      %s1325 = ssub.s32 %s12, 2
      // Predicated region
      $region53: #{cvlearner_forward.9} parent=51 // pred_check
        %p1326 = pneg %p172
      $region54: #{cvlearner_forward.9} parent=51 // pred_check_branch
        %1328 = sbr.rel (%p1326) target = $region56
      $region55: #{cvlearner_forward.9} parent=51 // pred_region
        %p1329 = scmp.lt.s32.totalorder %s18, 1
        %s1330 = scalar_select %p1329, %s18, 1
        %s1331 = smul.addr %s1330, 4
        %s1332 = smul.addr %s1331, 4
        %s1333 = scalar_lea.vmem %s6, %s1332
      $region56: #{cvlearner_forward.9} parent=51 // pred_fallthru
        _
    $region52: #{cvlearner_forward.9} parent=5 // pred_fallthru
      _
  $region6: #{cvlearner_forward.9} parent=0 // loop_footer
    %s16 = sadd.s32 1, %s12
  $region7: #{cvlearner_forward.9} parent=0 // loop_footer_branch
    %11 = sbr.rel target = $region3
  $region8: #{cvlearner_forward.9} parent=0 // loop_exit
    _

// kernel: cvlearner_forward.11
$region0: #{cvlearner_forward.11}
  #allocation0 [shape = 'u32[]', space=smem, size = 0x4, offset = 0x4, fixed_abs, tag = 'smem constant byte address 0x4 - core index']
  #allocation1 [shape = 'u32[72,128]{1,0:T(1,128)}', space=vmem, size = 0x9000, scoped, tag = 'internal scratch']
  %s0 = inlined_call_operand.vmem [shape: bf16[2,512], index: 0, kind: input, shape index: {}]
  %s1 = inlined_call_operand.vmem [shape: bf16[512,64], index: 1, kind: input, shape index: {}]
  %s2 = inlined_call_operand.vmem [shape: f32[3,64], index: 2, kind: input, shape index: {}]
  %s3 = inlined_call_operand.vmem [shape: bf16[64,64], index: 3, kind: input, shape index: {}]
  %s4 = inlined_call_operand.vmem [shape: f32[3,64], index: 4, kind: input, shape index: {}]
  %s5 = inlined_call_operand.vmem [shape: bf16[64,64], index: 5, kind: input, shape index: {}]
  %s6 = inlined_call_operand.vmem [shape: f32[3,64], index: 6, kind: input, shape index: {}]
  %s7 = inlined_call_operand.vmem [shape: bf16[64,128], index: 7, kind: input, shape index: {}]
  %s8 = inlined_call_operand.vmem [shape: f32[3,128], index: 8, kind: input, shape index: {}]
  %s9 = inlined_call_operand.vmem [shape: f32[64,64], index: 9, kind: input, shape index: {}]
  %s10 = inlined_call_operand.vmem [shape: f32[128,128], index: 10, kind: input, shape index: {}]
  %s11 = inlined_call_operand.vmem [shape: f32[128,128], index: 11, kind: input, shape index: {}]
  %s12 = inlined_call_operand.vmem [shape: f32[1,128], index: 12, kind: input, shape index: {}]
  %s13 = inlined_call_operand.vmem [shape: f32[128,2], index: 13, kind: input, shape index: {}]
  %s14 = inlined_call_operand.vmem [shape: f32[1,2], index: 14, kind: input, shape index: {}]
  %s15 = inlined_call_operand.hbm [shape: f32[2,2], index: 15, kind: output, shape index: {}]
  %s16 = sld [smem:[#allocation0]]
  $region70: #{cvlearner_forward.11} parent=0
    _
  %s18 = ssub.s32 1, %s16
  %s19 = scalar_select 0, %s18, %s16
  $region1: #{cvlearner_forward.11} parent=0
    #allocation2 [shape = 'u8[1024]{0}', space=vmem, size = 0x400, scoped, tag = 'output window, operand 0, single buffered']
    #allocation3 [shape = 's32[1]{0}', space=sflag, size = 0x4, scoped, tag = 'scoped memory for cvlearner_forward.11']
    %20 = vsyncpa [#allocation3], 0
    // Predicated region
    $region2: #{cvlearner_forward.11} parent=1 // pred_check
      _
    $region3: #{cvlearner_forward.11} parent=1 // pred_check_branch
      %22 = sbr.rel (0) target = $region5
    $region4: #{cvlearner_forward.11} parent=1 // pred_region
      _
    $region5: #{cvlearner_forward.11} parent=1 // pred_fallthru
      _
    // Predicated region
    $region6: #{cvlearner_forward.11} parent=1 // pred_check
      _
    $region7: #{cvlearner_forward.11} parent=1 // pred_check_branch
      %24 = sbr.rel (0) target = $region9
    $region8: #{cvlearner_forward.11} parent=1 // pred_region
      _
    $region9: #{cvlearner_forward.11} parent=1 // pred_fallthru
      _
    // Predicated region
    $region10: #{cvlearner_forward.11} parent=1 // pred_check
      _
    $region11: #{cvlearner_forward.11} parent=1 // pred_check_branch
      %26 = sbr.rel (0) target = $region13
    $region12: #{cvlearner_forward.11} parent=1 // pred_region
      _
    $region13: #{cvlearner_forward.11} parent=1 // pred_fallthru
      _
    // Predicated region
    $region14: #{cvlearner_forward.11} parent=1 // pred_check
      _
    $region15: #{cvlearner_forward.11} parent=1 // pred_check_branch
      %28 = sbr.rel (0) target = $region17
    $region16: #{cvlearner_forward.11} parent=1 // pred_region
      _
    $region17: #{cvlearner_forward.11} parent=1 // pred_fallthru
      _
    // Predicated region
    $region18: #{cvlearner_forward.11} parent=1 // pred_check
      _
    $region19: #{cvlearner_forward.11} parent=1 // pred_check_branch
      %30 = sbr.rel (0) target = $region21
    $region20: #{cvlearner_forward.11} parent=1 // pred_region
      _
    $region21: #{cvlearner_forward.11} parent=1 // pred_fallthru
      _
    // Predicated region
    $region22: #{cvlearner_forward.11} parent=1 // pred_check
      _
    $region23: #{cvlearner_forward.11} parent=1 // pred_check_branch
      %32 = sbr.rel (0) target = $region25
    $region24: #{cvlearner_forward.11} parent=1 // pred_region
      _
    $region25: #{cvlearner_forward.11} parent=1 // pred_fallthru
      _
    // Predicated region
    $region26: #{cvlearner_forward.11} parent=1 // pred_check
      _
    $region27: #{cvlearner_forward.11} parent=1 // pred_check_branch
      %34 = sbr.rel (0) target = $region29
    $region28: #{cvlearner_forward.11} parent=1 // pred_region
      _
    $region29: #{cvlearner_forward.11} parent=1 // pred_fallthru
      _
    // Predicated region
    $region30: #{cvlearner_forward.11} parent=1 // pred_check
      _
    $region31: #{cvlearner_forward.11} parent=1 // pred_check_branch
      %36 = sbr.rel (0) target = $region33
    $region32: #{cvlearner_forward.11} parent=1 // pred_region
      _
    $region33: #{cvlearner_forward.11} parent=1 // pred_fallthru
      _
    // Predicated region
    $region34: #{cvlearner_forward.11} parent=1 // pred_check
      _
    $region35: #{cvlearner_forward.11} parent=1 // pred_check_branch
      %38 = sbr.rel (0) target = $region37
    $region36: #{cvlearner_forward.11} parent=1 // pred_region
      _
    $region37: #{cvlearner_forward.11} parent=1 // pred_fallthru
      _
    // Predicated region
    $region38: #{cvlearner_forward.11} parent=1 // pred_check
      _
    $region39: #{cvlearner_forward.11} parent=1 // pred_check_branch
      %40 = sbr.rel (0) target = $region41
    $region40: #{cvlearner_forward.11} parent=1 // pred_region
      _
    $region41: #{cvlearner_forward.11} parent=1 // pred_fallthru
      _
    // Predicated region
    $region42: #{cvlearner_forward.11} parent=1 // pred_check
      _
    $region43: #{cvlearner_forward.11} parent=1 // pred_check_branch
      %42 = sbr.rel (0) target = $region45
    $region44: #{cvlearner_forward.11} parent=1 // pred_region
      _
    $region45: #{cvlearner_forward.11} parent=1 // pred_fallthru
      _
    // Predicated region
    $region46: #{cvlearner_forward.11} parent=1 // pred_check
      _
    $region47: #{cvlearner_forward.11} parent=1 // pred_check_branch
      %44 = sbr.rel (0) target = $region49
    $region48: #{cvlearner_forward.11} parent=1 // pred_region
      _
    $region49: #{cvlearner_forward.11} parent=1 // pred_fallthru
      _
    // Predicated region
    $region50: #{cvlearner_forward.11} parent=1 // pred_check
      _
    $region51: #{cvlearner_forward.11} parent=1 // pred_check_branch
      %46 = sbr.rel (0) target = $region53
    $region52: #{cvlearner_forward.11} parent=1 // pred_region
      _
    $region53: #{cvlearner_forward.11} parent=1 // pred_fallthru
      _
    // Predicated region
    $region54: #{cvlearner_forward.11} parent=1 // pred_check
      _
    $region55: #{cvlearner_forward.11} parent=1 // pred_check_branch
      %48 = sbr.rel (0) target = $region57
    $region56: #{cvlearner_forward.11} parent=1 // pred_region
      _
    $region57: #{cvlearner_forward.11} parent=1 // pred_fallthru
      _
    // Predicated region
    $region58: #{cvlearner_forward.11} parent=1 // pred_check
      _
    $region59: #{cvlearner_forward.11} parent=1 // pred_check_branch
      %50 = sbr.rel (0) target = $region61
    $region60: #{cvlearner_forward.11} parent=1 // pred_region
      _
    $region61: #{cvlearner_forward.11} parent=1 // pred_fallthru
      _
    %v52 = vld [vmem:[%s9] sm:$0xff]
    %v53 = vld [vmem:[%s9 + $0x8] sm:$0xff]
    %v54 = vld [vmem:[%s9 + $0x10] sm:$0xff]
    %v55 = vld [vmem:[%s9 + $0x18] sm:$0xff]
    %v56 = vld [vmem:[%s9 + $0x20] sm:$0xff]
    %v57 = vld [vmem:[%s9 + $0x28] sm:$0xff]
    %v58 = vld [vmem:[%s9 + $0x30] sm:$0xff]
    %v59 = vld [vmem:[%s9 + $0x38] sm:$0xff]
    %v60 = vld [vmem:[%s10] sm:$0xff]
    %v61 = vld [vmem:[%s10 + $0x8] sm:$0xff]
    %v62 = vld [vmem:[%s10 + $0x10] sm:$0xff]
    %v63 = vld [vmem:[%s10 + $0x18] sm:$0xff]
    %v64 = vld [vmem:[%s10 + $0x20] sm:$0xff]
    %v65 = vld [vmem:[%s10 + $0x28] sm:$0xff]
    %v66 = vld [vmem:[%s10 + $0x30] sm:$0xff]
    %v67 = vld [vmem:[%s10 + $0x38] sm:$0xff]
    %v68 = vld [vmem:[%s10 + $0x40] sm:$0xff]
    %v69 = vld [vmem:[%s10 + $0x48] sm:$0xff]
    %v70 = vld [vmem:[%s10 + $0x50] sm:$0xff]
    %v71 = vld [vmem:[%s10 + $0x58] sm:$0xff]
    %v72 = vld [vmem:[%s10 + $0x60] sm:$0xff]
    %v73 = vld [vmem:[%s10 + $0x68] sm:$0xff]
    %v74 = vld [vmem:[%s10 + $0x70] sm:$0xff]
    %v75 = vld [vmem:[%s10 + $0x78] sm:$0xff]
    %v76 = vld [vmem:[%s0] sm:$0xf]
    %v77 = vld [vmem:[%s1] sm:$0xf]
    %v78 = vld [vmem:[%s1 + $0x4] sm:$0xf]
    %v79 = vld [vmem:[%s1 + $0x8] sm:$0xf]
    %v80 = vld [vmem:[%s1 + $0xc] sm:$0xf]
    %v81 = vld [vmem:[%s1 + $0x10] sm:$0xf]
    %v82 = vld [vmem:[%s1 + $0x14] sm:$0xf]
    %v83 = vld [vmem:[%s1 + $0x18] sm:$0xf]
    %v84 = vld [vmem:[%s1 + $0x1c] sm:$0xf]
    %v85 = vld [vmem:[%s1 + $0x20] sm:$0xf]
    %v86 = vld [vmem:[%s1 + $0x24] sm:$0xf]
    %v87 = vld [vmem:[%s1 + $0x28] sm:$0xf]
    %v88 = vld [vmem:[%s1 + $0x2c] sm:$0xf]
    %v89 = vld [vmem:[%s1 + $0x30] sm:$0xf]
    %v90 = vld [vmem:[%s1 + $0x34] sm:$0xf]
    %v91 = vld [vmem:[%s1 + $0x38] sm:$0xf]
    %v92 = vld [vmem:[%s1 + $0x3c] sm:$0xf]
    %v93 = vld [vmem:[%s1 + $0x40] sm:$0xf]
    %v94 = vld [vmem:[%s1 + $0x44] sm:$0xf]
    %v95 = vld [vmem:[%s1 + $0x48] sm:$0xf]
    %v96 = vld [vmem:[%s1 + $0x4c] sm:$0xf]
    %v97 = vld [vmem:[%s1 + $0x50] sm:$0xf]
    %v98 = vld [vmem:[%s1 + $0x54] sm:$0xf]
    %v99 = vld [vmem:[%s1 + $0x58] sm:$0xf]
    %v100 = vld [vmem:[%s1 + $0x5c] sm:$0xf]
    %v101 = vld [vmem:[%s1 + $0x60] sm:$0xf]
    %v102 = vld [vmem:[%s1 + $0x64] sm:$0xf]
    %v103 = vld [vmem:[%s1 + $0x68] sm:$0xf]
    %v104 = vld [vmem:[%s1 + $0x6c] sm:$0xf]
    %v105 = vld [vmem:[%s1 + $0x70] sm:$0xf]
    %v106 = vld [vmem:[%s1 + $0x74] sm:$0xf]
    %v107 = vld [vmem:[%s1 + $0x78] sm:$0xf]
    %v108 = vld [vmem:[%s1 + $0x7c] sm:$0xf]
    %v109 = vld [vmem:[%s1 + $0x80] sm:$0xf]
    %v110 = vld [vmem:[%s1 + $0x84] sm:$0xf]
    %v111 = vld [vmem:[%s1 + $0x88] sm:$0xf]
    %v112 = vld [vmem:[%s1 + $0x8c] sm:$0xf]
    %v113 = vld [vmem:[%s1 + $0x90] sm:$0xf]
    %v114 = vld [vmem:[%s1 + $0x94] sm:$0xf]
    %v115 = vld [vmem:[%s1 + $0x98] sm:$0xf]
    %v116 = vld [vmem:[%s1 + $0x9c] sm:$0xf]
    %v117 = vld [vmem:[%s1 + $0xa0] sm:$0xf]
    %v118 = vld [vmem:[%s1 + $0xa4] sm:$0xf]
    %v119 = vld [vmem:[%s1 + $0xa8] sm:$0xf]
    %v120 = vld [vmem:[%s1 + $0xac] sm:$0xf]
    %v121 = vld [vmem:[%s1 + $0xb0] sm:$0xf]
    %v122 = vld [vmem:[%s1 + $0xb4] sm:$0xf]
    %v123 = vld [vmem:[%s1 + $0xb8] sm:$0xf]
    %v124 = vld [vmem:[%s1 + $0xbc] sm:$0xf]
    %v125 = vld [vmem:[%s1 + $0xc0] sm:$0xf]
    %v126 = vld [vmem:[%s1 + $0xc4] sm:$0xf]
    %v127 = vld [vmem:[%s1 + $0xc8] sm:$0xf]
    %v128 = vld [vmem:[%s1 + $0xcc] sm:$0xf]
    %v129 = vld [vmem:[%s1 + $0xd0] sm:$0xf]
    %v130 = vld [vmem:[%s1 + $0xd4] sm:$0xf]
    %v131 = vld [vmem:[%s1 + $0xd8] sm:$0xf]
    %v132 = vld [vmem:[%s1 + $0xdc] sm:$0xf]
    %v133 = vld [vmem:[%s1 + $0xe0] sm:$0xf]
    %v134 = vld [vmem:[%s1 + $0xe4] sm:$0xf]
    %v135 = vld [vmem:[%s1 + $0xe8] sm:$0xf]
    %v136 = vld [vmem:[%s1 + $0xec] sm:$0xf]
    %v137 = vld [vmem:[%s1 + $0xf0] sm:$0xf]
    %v138 = vld [vmem:[%s1 + $0xf4] sm:$0xf]
    %v139 = vld [vmem:[%s1 + $0xf8] sm:$0xf]
    %v140 = vld [vmem:[%s1 + $0xfc] sm:$0xf]
    %v141 = vld [vmem:[%s2] sm:$0x1]
    %v142 = vperm.slane %v141, 0
    %144 = vst [vmem:[#allocation1] ss:$9 sm:$0xff] %v76
    %v145 = vld [vmem:[#allocation1] sm:$0xff]
    %v146 = vld [vmem:[#allocation1 + $0x9] sm:$0xff]
    %v147 = vld [vmem:[#allocation1 + $0x12] sm:$0xff]
    %v148 = vld [vmem:[#allocation1 + $0x1b] sm:$0xff]
    %v217 = vunpack.c.l.b16 %v77
    %v218 = vunpack.c.l.b16 %v78
    %v219 = vunpack.c.l.b16 %v79
    %v220 = vunpack.c.l.b16 %v80
    %v221 = vunpack.c.l.b16 %v81
    %v222 = vunpack.c.l.b16 %v82
    %v223 = vunpack.c.l.b16 %v83
    %v224 = vunpack.c.l.b16 %v84
    %v225 = vunpack.c.l.b16 %v85
    %v226 = vunpack.c.l.b16 %v86
    %v227 = vunpack.c.l.b16 %v87
    %v228 = vunpack.c.l.b16 %v88
    %v229 = vunpack.c.l.b16 %v89
    %v230 = vunpack.c.l.b16 %v90
    %v231 = vunpack.c.l.b16 %v91
    %v232 = vunpack.c.l.b16 %v92
    %v233 = vunpack.c.l.b16 %v93
    %v234 = vunpack.c.l.b16 %v94
    %v235 = vunpack.c.l.b16 %v95
    %v236 = vunpack.c.l.b16 %v96
    %v237 = vunpack.c.l.b16 %v97
    %v238 = vunpack.c.l.b16 %v98
    %v239 = vunpack.c.l.b16 %v99
    %v240 = vunpack.c.l.b16 %v100
    %v241 = vunpack.c.l.b16 %v101
    %v242 = vunpack.c.l.b16 %v102
    %v243 = vunpack.c.l.b16 %v103
    %v244 = vunpack.c.l.b16 %v104
    %v245 = vunpack.c.l.b16 %v105
    %v246 = vunpack.c.l.b16 %v106
    %v247 = vunpack.c.l.b16 %v107
    %v248 = vunpack.c.l.b16 %v108
    %v249 = vunpack.c.l.b16 %v109
    %v250 = vunpack.c.l.b16 %v110
    %v251 = vunpack.c.l.b16 %v111
    %v252 = vunpack.c.l.b16 %v112
    %v253 = vunpack.c.l.b16 %v113
    %v254 = vunpack.c.l.b16 %v114
    %v255 = vunpack.c.l.b16 %v115
    %v256 = vunpack.c.l.b16 %v116
    %v257 = vunpack.c.l.b16 %v117
    %v258 = vunpack.c.l.b16 %v118
    %v259 = vunpack.c.l.b16 %v119
    %v260 = vunpack.c.l.b16 %v120
    %v261 = vunpack.c.l.b16 %v121
    %v262 = vunpack.c.l.b16 %v122
    %v263 = vunpack.c.l.b16 %v123
    %v264 = vunpack.c.l.b16 %v124
    %v265 = vunpack.c.l.b16 %v125
    %v266 = vunpack.c.l.b16 %v126
    %v267 = vunpack.c.l.b16 %v127
    %v268 = vunpack.c.l.b16 %v128
    %v269 = vunpack.c.l.b16 %v129
    %v270 = vunpack.c.l.b16 %v130
    %v271 = vunpack.c.l.b16 %v131
    %v272 = vunpack.c.l.b16 %v132
    %v273 = vunpack.c.l.b16 %v133
    %v274 = vunpack.c.l.b16 %v134
    %v275 = vunpack.c.l.b16 %v135
    %v276 = vunpack.c.l.b16 %v136
    %v277 = vunpack.c.l.b16 %v137
    %v278 = vunpack.c.l.b16 %v138
    %v279 = vunpack.c.l.b16 %v139
    %v280 = vunpack.c.l.b16 %v140
    %v281 = vpack.c.b16 %v218, %v217
    %v282 = vpack.c.b16 %v220, %v219
    %v283 = vpack.c.b16 %v222, %v221
    %v284 = vpack.c.b16 %v224, %v223
    %v285 = vpack.c.b16 %v226, %v225
    %v286 = vpack.c.b16 %v228, %v227
    %v287 = vpack.c.b16 %v230, %v229
    %v288 = vpack.c.b16 %v232, %v231
    %v289 = vpack.c.b16 %v234, %v233
    %v290 = vpack.c.b16 %v236, %v235
    %v291 = vpack.c.b16 %v238, %v237
    %v292 = vpack.c.b16 %v240, %v239
    %v293 = vpack.c.b16 %v242, %v241
    %v294 = vpack.c.b16 %v244, %v243
    %v295 = vpack.c.b16 %v246, %v245
    %v296 = vpack.c.b16 %v248, %v247
    %v297 = vpack.c.b16 %v250, %v249
    %v298 = vpack.c.b16 %v252, %v251
    %v299 = vpack.c.b16 %v254, %v253
    %v300 = vpack.c.b16 %v256, %v255
    %v301 = vpack.c.b16 %v258, %v257
    %v302 = vpack.c.b16 %v260, %v259
    %v303 = vpack.c.b16 %v262, %v261
    %v304 = vpack.c.b16 %v264, %v263
    %v305 = vpack.c.b16 %v266, %v265
    %v306 = vpack.c.b16 %v268, %v267
    %v307 = vpack.c.b16 %v270, %v269
    %v308 = vpack.c.b16 %v272, %v271
    %v309 = vpack.c.b16 %v274, %v273
    %v310 = vpack.c.b16 %v276, %v275
    %v311 = vpack.c.b16 %v278, %v277
    %v312 = vpack.c.b16 %v280, %v279
    %345 = vmatpush.bf16.msra.mxu0 %v288
    %346 = vmatpush.bf16.msra.mxu0 %v287
    %347 = vmatpush.bf16.msra.mxu0 %v286
    %348 = vmatpush.bf16.msra.mxu0 %v285
    %349 = vmatpush.bf16.msra.mxu0 %v284
    %350 = vmatpush.bf16.msra.mxu0 %v283
    %351 = vmatpush.bf16.msra.mxu0 %v282
    %352 = vmatpush.bf16.msra.mxu0 %v281
    %353 = vmatmul.bf16.gmra.mxu0 %v145
    %v354 = vpop.f32.mrf.mxu0
    %v355 = vadd.f32 %v142, %v354
    %v356 = vpop.f32.mrf.mxu0
    %357 = vdwg.mxu0
    %358 = vmatpush.bf16.msra.mxu0 %v296
    %359 = vmatpush.bf16.msra.mxu0 %v295
    %360 = vmatpush.bf16.msra.mxu0 %v294
    %361 = vmatpush.bf16.msra.mxu0 %v293
    %362 = vmatpush.bf16.msra.mxu0 %v292
    %363 = vmatpush.bf16.msra.mxu0 %v291
    %364 = vmatpush.bf16.msra.mxu0 %v290
    %365 = vmatpush.bf16.msra.mxu0 %v289
    %366 = vmatmul.bf16.gmra.mxu0 %v146
    %v367 = vpop.f32.mrf.mxu0
    %v368 = vadd.f32 %v355, %v367
    %v369 = vpop.f32.mrf.mxu0
    %370 = vdwg.mxu0
    %371 = vmatpush.bf16.msra.mxu0 %v304
    %372 = vmatpush.bf16.msra.mxu0 %v303
    %373 = vmatpush.bf16.msra.mxu0 %v302
    %374 = vmatpush.bf16.msra.mxu0 %v301
    %375 = vmatpush.bf16.msra.mxu0 %v300
    %376 = vmatpush.bf16.msra.mxu0 %v299
    %377 = vmatpush.bf16.msra.mxu0 %v298
    %378 = vmatpush.bf16.msra.mxu0 %v297
    %379 = vmatmul.bf16.gmra.mxu0 %v147
    %v380 = vpop.f32.mrf.mxu0
    %v381 = vadd.f32 %v368, %v380
    %v382 = vpop.f32.mrf.mxu0
    %383 = vdwg.mxu0
    %384 = vmatpush.bf16.msra.mxu0 %v312
    %385 = vmatpush.bf16.msra.mxu0 %v311
    %386 = vmatpush.bf16.msra.mxu0 %v310
    %387 = vmatpush.bf16.msra.mxu0 %v309
    %388 = vmatpush.bf16.msra.mxu0 %v308
    %389 = vmatpush.bf16.msra.mxu0 %v307
    %390 = vmatpush.bf16.msra.mxu0 %v306
    %391 = vmatpush.bf16.msra.mxu0 %v305
    %392 = vmatmul.bf16.gmra.mxu0 %v148
    %v393 = vpop.f32.mrf.mxu0
    %v394 = vadd.f32 %v381, %v393
    %v395 = vpop.f32.mrf.mxu0
    %396 = vdwg.mxu0
    %vm397 = vcmask 523264
    %v399 = vsel %vm397, %v394, 0
    %401 = vmatpush.msra.mxu0 0.0
    %402 = vmatpush.msra.mxu0 0.0
    %403 = vmatpush.msra.mxu0 0.0
    %404 = vmatpush.msra.mxu0 0.0
    %405 = vmatpush.msra.mxu0 0.0
    %406 = vmatpush.msra.mxu0 0.0
    %407 = vmatpush.msra.mxu0 0.0
    %408 = vmatpush.msra.mxu0 0.0
    %409 = vmatpush.msra.mxu0 %v59
    %410 = vmatpush.msra.mxu0 %v58
    %411 = vmatpush.msra.mxu0 %v57
    %412 = vmatpush.msra.mxu0 %v56
    %413 = vmatpush.msra.mxu0 %v55
    %414 = vmatpush.msra.mxu0 %v54
    %415 = vmatpush.msra.mxu0 %v53
    %416 = vmatpush.msra.mxu0 %v52
    %417 = vmatmul.f32.gmra.mxu0 %v399
    %v418 = vpop.f32.mrf.mxu0
    %v419 = vadd.f32 0.0, %v418
    %420 = vdwg.mxu0
    %v421 = vmul.f32 %v419, 0.0625
    %v422 = vsub.f32 %v394, %v421
    %v423 = vmul.f32 %v422, %v422
    %v425 = vsel %vm397, %v423, 0
    %427 = vmatpush.msra.mxu0 0.0
    %428 = vmatpush.msra.mxu0 0.0
    %429 = vmatpush.msra.mxu0 0.0
    %430 = vmatpush.msra.mxu0 0.0
    %431 = vmatpush.msra.mxu0 0.0
    %432 = vmatpush.msra.mxu0 0.0
    %433 = vmatpush.msra.mxu0 0.0
    %434 = vmatpush.msra.mxu0 0.0
    %435 = vmatpush.msra.mxu0 %v59
    %436 = vmatpush.msra.mxu0 %v58
    %437 = vmatpush.msra.mxu0 %v57
    %438 = vmatpush.msra.mxu0 %v56
    %439 = vmatpush.msra.mxu0 %v55
    %440 = vmatpush.msra.mxu0 %v54
    %441 = vmatpush.msra.mxu0 %v53
    %442 = vmatpush.msra.mxu0 %v52
    %443 = vmatmul.f32.gmra.mxu0 %v425
    %v444 = vpop.f32.mrf.mxu0
    %v445 = vadd.f32 0.0, %v444
    %446 = vdwg.mxu0
    %v447 = vmul.f32 %v445, 0.0625
    %v448 = vadd.f32 %v447, 1e-05
    %v449 = vrsqrt.pop %v448
    %v450 = vmul.f32 %v449, %v448
    %v451 = vmul.f32 %v450, %v449
    %v452 = vmul.f32 0.5, %v451
    %v453 = vsub.f32 1.5, %v452
    %v454 = vmul.f32 %v449, %v453
    %vm455 = vweird.f32 %v448
    %vm456 = vweird.f32 %v449
    %vm457 = vmor %vm455, %vm456
    %v458 = vsel %vm457, %v449, %v454
    %v459 = vld [vmem:[%s2 + $0x1] sm:$0x1]
    %v460 = vperm.slane %v459, 0
    %v461 = vmul.f32 %v458, %v460
    %v462 = vmul.f32 %v422, %v461
    %v463 = vld [vmem:[%s2 + $0x2] sm:$0x1]
    %v464 = vperm.slane %v463, 0
    %v465 = vadd.f32 %v462, %v464
    %v466 = vmax.f32 %v465, 0.0
    %v467 = vpack.c.bf16 %v466, %v466
    %v468 = vld [vmem:[%s3] sm:$0xf]
    %v469 = vld [vmem:[%s3 + $0x4] sm:$0xf]
    %v470 = vld [vmem:[%s3 + $0x8] sm:$0xf]
    %v471 = vld [vmem:[%s3 + $0xc] sm:$0xf]
    %v472 = vld [vmem:[%s3 + $0x10] sm:$0xf]
    %v473 = vld [vmem:[%s3 + $0x14] sm:$0xf]
    %v474 = vld [vmem:[%s3 + $0x18] sm:$0xf]
    %v475 = vld [vmem:[%s3 + $0x1c] sm:$0xf]
    %v476 = vld [vmem:[%s4] sm:$0x1]
    %v477 = vperm.slane %v476, 0
    %v486 = vunpack.c.l.b16 %v468
    %v487 = vunpack.c.l.b16 %v469
    %v488 = vunpack.c.l.b16 %v470
    %v489 = vunpack.c.l.b16 %v471
    %v490 = vunpack.c.l.b16 %v472
    %v491 = vunpack.c.l.b16 %v473
    %v492 = vunpack.c.l.b16 %v474
    %v493 = vunpack.c.l.b16 %v475
    %v494 = vpack.c.b16 %v487, %v486
    %v495 = vpack.c.b16 %v489, %v488
    %v496 = vpack.c.b16 %v491, %v490
    %v497 = vpack.c.b16 %v493, %v492
    %v503 = vsel %vm397, %v467, 0
    %505 = vmatpush.bf16.msra.mxu0 0
    %506 = vmatpush.bf16.msra.mxu0 0
    %507 = vmatpush.bf16.msra.mxu0 0
    %508 = vmatpush.bf16.msra.mxu0 0
    %509 = vmatpush.bf16.msra.mxu0 %v497
    %510 = vmatpush.bf16.msra.mxu0 %v496
    %511 = vmatpush.bf16.msra.mxu0 %v495
    %512 = vmatpush.bf16.msra.mxu0 %v494
    %513 = vmatmul.bf16.gmra.mxu0 %v503
    %v514 = vpop.f32.mrf.mxu0
    %v515 = vadd.f32 %v477, %v514
    %v516 = vpop.f32.mrf.mxu0
    %517 = vdwg.mxu0
    %v519 = vsel %vm397, %v515, 0
    %521 = vmatpush.msra.mxu0 0.0
    %522 = vmatpush.msra.mxu0 0.0
    %523 = vmatpush.msra.mxu0 0.0
    %524 = vmatpush.msra.mxu0 0.0
    %525 = vmatpush.msra.mxu0 0.0
    %526 = vmatpush.msra.mxu0 0.0
    %527 = vmatpush.msra.mxu0 0.0
    %528 = vmatpush.msra.mxu0 0.0
    %529 = vmatpush.msra.mxu0 %v59
    %530 = vmatpush.msra.mxu0 %v58
    %531 = vmatpush.msra.mxu0 %v57
    %532 = vmatpush.msra.mxu0 %v56
    %533 = vmatpush.msra.mxu0 %v55
    %534 = vmatpush.msra.mxu0 %v54
    %535 = vmatpush.msra.mxu0 %v53
    %536 = vmatpush.msra.mxu0 %v52
    %537 = vmatmul.f32.gmra.mxu0 %v519
    %v538 = vpop.f32.mrf.mxu0
    %v539 = vadd.f32 0.0, %v538
    %540 = vdwg.mxu0
    %v541 = vmul.f32 %v539, 0.0625
    %v542 = vsub.f32 %v515, %v541
    %v543 = vmul.f32 %v542, %v542
    %v545 = vsel %vm397, %v543, 0
    %547 = vmatpush.msra.mxu0 0.0
    %548 = vmatpush.msra.mxu0 0.0
    %549 = vmatpush.msra.mxu0 0.0
    %550 = vmatpush.msra.mxu0 0.0
    %551 = vmatpush.msra.mxu0 0.0
    %552 = vmatpush.msra.mxu0 0.0
    %553 = vmatpush.msra.mxu0 0.0
    %554 = vmatpush.msra.mxu0 0.0
    %555 = vmatpush.msra.mxu0 %v59
    %556 = vmatpush.msra.mxu0 %v58
    %557 = vmatpush.msra.mxu0 %v57
    %558 = vmatpush.msra.mxu0 %v56
    %559 = vmatpush.msra.mxu0 %v55
    %560 = vmatpush.msra.mxu0 %v54
    %561 = vmatpush.msra.mxu0 %v53
    %562 = vmatpush.msra.mxu0 %v52
    %563 = vmatmul.f32.gmra.mxu0 %v545
    %v564 = vpop.f32.mrf.mxu0
    %v565 = vadd.f32 0.0, %v564
    %566 = vdwg.mxu0
    %v567 = vmul.f32 %v565, 0.0625
    %v568 = vadd.f32 %v567, 1e-05
    %v569 = vrsqrt.pop %v568
    %v570 = vmul.f32 %v569, %v568
    %v571 = vmul.f32 %v570, %v569
    %v572 = vmul.f32 0.5, %v571
    %v573 = vsub.f32 1.5, %v572
    %v574 = vmul.f32 %v569, %v573
    %vm575 = vweird.f32 %v568
    %vm576 = vweird.f32 %v569
    %vm577 = vmor %vm575, %vm576
    %v578 = vsel %vm577, %v569, %v574
    %v579 = vld [vmem:[%s4 + $0x1] sm:$0x1]
    %v580 = vperm.slane %v579, 0
    %v581 = vmul.f32 %v578, %v580
    %v582 = vmul.f32 %v542, %v581
    %v583 = vld [vmem:[%s4 + $0x2] sm:$0x1]
    %v584 = vperm.slane %v583, 0
    %v585 = vadd.f32 %v582, %v584
    %v586 = vmax.f32 %v585, 0.0
    %v587 = vpack.c.bf16 %v586, %v586
    %v588 = vld [vmem:[%s5] sm:$0xf]
    %v589 = vld [vmem:[%s5 + $0x4] sm:$0xf]
    %v590 = vld [vmem:[%s5 + $0x8] sm:$0xf]
    %v591 = vld [vmem:[%s5 + $0xc] sm:$0xf]
    %v592 = vld [vmem:[%s5 + $0x10] sm:$0xf]
    %v593 = vld [vmem:[%s5 + $0x14] sm:$0xf]
    %v594 = vld [vmem:[%s5 + $0x18] sm:$0xf]
    %v595 = vld [vmem:[%s5 + $0x1c] sm:$0xf]
    %v596 = vld [vmem:[%s6] sm:$0x1]
    %v597 = vperm.slane %v596, 0
    %v606 = vunpack.c.l.b16 %v588
    %v607 = vunpack.c.l.b16 %v589
    %v608 = vunpack.c.l.b16 %v590
    %v609 = vunpack.c.l.b16 %v591
    %v610 = vunpack.c.l.b16 %v592
    %v611 = vunpack.c.l.b16 %v593
    %v612 = vunpack.c.l.b16 %v594
    %v613 = vunpack.c.l.b16 %v595
    %v614 = vpack.c.b16 %v607, %v606
    %v615 = vpack.c.b16 %v609, %v608
    %v616 = vpack.c.b16 %v611, %v610
    %v617 = vpack.c.b16 %v613, %v612
    %v623 = vsel %vm397, %v587, 0
    %625 = vmatpush.bf16.msra.mxu0 0
    %626 = vmatpush.bf16.msra.mxu0 0
    %627 = vmatpush.bf16.msra.mxu0 0
    %628 = vmatpush.bf16.msra.mxu0 0
    %629 = vmatpush.bf16.msra.mxu0 %v617
    %630 = vmatpush.bf16.msra.mxu0 %v616
    %631 = vmatpush.bf16.msra.mxu0 %v615
    %632 = vmatpush.bf16.msra.mxu0 %v614
    %633 = vmatmul.bf16.gmra.mxu0 %v623
    %v634 = vpop.f32.mrf.mxu0
    %v635 = vadd.f32 %v597, %v634
    %v636 = vpop.f32.mrf.mxu0
    %637 = vdwg.mxu0
    %v639 = vsel %vm397, %v635, 0
    %641 = vmatpush.msra.mxu0 0.0
    %642 = vmatpush.msra.mxu0 0.0
    %643 = vmatpush.msra.mxu0 0.0
    %644 = vmatpush.msra.mxu0 0.0
    %645 = vmatpush.msra.mxu0 0.0
    %646 = vmatpush.msra.mxu0 0.0
    %647 = vmatpush.msra.mxu0 0.0
    %648 = vmatpush.msra.mxu0 0.0
    %649 = vmatpush.msra.mxu0 %v59
    %650 = vmatpush.msra.mxu0 %v58
    %651 = vmatpush.msra.mxu0 %v57
    %652 = vmatpush.msra.mxu0 %v56
    %653 = vmatpush.msra.mxu0 %v55
    %654 = vmatpush.msra.mxu0 %v54
    %655 = vmatpush.msra.mxu0 %v53
    %656 = vmatpush.msra.mxu0 %v52
    %657 = vmatmul.f32.gmra.mxu0 %v639
    %v658 = vpop.f32.mrf.mxu0
    %v659 = vadd.f32 0.0, %v658
    %660 = vdwg.mxu0
    %v661 = vmul.f32 %v659, 0.0625
    %v662 = vsub.f32 %v635, %v661
    %v663 = vmul.f32 %v662, %v662
    %v665 = vsel %vm397, %v663, 0
    %667 = vmatpush.msra.mxu0 0.0
    %668 = vmatpush.msra.mxu0 0.0
    %669 = vmatpush.msra.mxu0 0.0
    %670 = vmatpush.msra.mxu0 0.0
    %671 = vmatpush.msra.mxu0 0.0
    %672 = vmatpush.msra.mxu0 0.0
    %673 = vmatpush.msra.mxu0 0.0
    %674 = vmatpush.msra.mxu0 0.0
    %675 = vmatpush.msra.mxu0 %v59
    %676 = vmatpush.msra.mxu0 %v58
    %677 = vmatpush.msra.mxu0 %v57
    %678 = vmatpush.msra.mxu0 %v56
    %679 = vmatpush.msra.mxu0 %v55
    %680 = vmatpush.msra.mxu0 %v54
    %681 = vmatpush.msra.mxu0 %v53
    %682 = vmatpush.msra.mxu0 %v52
    %683 = vmatmul.f32.gmra.mxu0 %v665
    %v684 = vpop.f32.mrf.mxu0
    %v685 = vadd.f32 0.0, %v684
    %686 = vdwg.mxu0
    %v687 = vmul.f32 %v685, 0.0625
    %v688 = vadd.f32 %v687, 1e-05
    %v689 = vrsqrt.pop %v688
    %v690 = vmul.f32 %v689, %v688
    %v691 = vmul.f32 %v690, %v689
    %v692 = vmul.f32 0.5, %v691
    %v693 = vsub.f32 1.5, %v692
    %v694 = vmul.f32 %v689, %v693
    %vm695 = vweird.f32 %v688
    %vm696 = vweird.f32 %v689
    %vm697 = vmor %vm695, %vm696
    %v698 = vsel %vm697, %v689, %v694
    %v699 = vld [vmem:[%s6 + $0x1] sm:$0x1]
    %v700 = vperm.slane %v699, 0
    %v701 = vmul.f32 %v698, %v700
    %v702 = vmul.f32 %v662, %v701
    %v703 = vld [vmem:[%s6 + $0x2] sm:$0x1]
    %v704 = vperm.slane %v703, 0
    %v705 = vadd.f32 %v702, %v704
    %v706 = vmax.f32 %v705, 0.0
    %v707 = vpack.c.bf16 %v706, %v706
    %v708 = vld [vmem:[%s7] sm:$0xf]
    %v709 = vld [vmem:[%s7 + $0x4] sm:$0xf]
    %v710 = vld [vmem:[%s7 + $0x8] sm:$0xf]
    %v711 = vld [vmem:[%s7 + $0xc] sm:$0xf]
    %v712 = vld [vmem:[%s7 + $0x10] sm:$0xf]
    %v713 = vld [vmem:[%s7 + $0x14] sm:$0xf]
    %v714 = vld [vmem:[%s7 + $0x18] sm:$0xf]
    %v715 = vld [vmem:[%s7 + $0x1c] sm:$0xf]
    %v716 = vld [vmem:[%s8] sm:$0x1]
    %v717 = vperm.slane %v716, 0
    %v726 = vunpack.c.l.b16 %v708
    %v727 = vunpack.c.l.b16 %v709
    %v728 = vunpack.c.l.b16 %v710
    %v729 = vunpack.c.l.b16 %v711
    %v730 = vunpack.c.l.b16 %v712
    %v731 = vunpack.c.l.b16 %v713
    %v732 = vunpack.c.l.b16 %v714
    %v733 = vunpack.c.l.b16 %v715
    %v734 = vpack.c.b16 %v727, %v726
    %v735 = vpack.c.b16 %v729, %v728
    %v736 = vpack.c.b16 %v731, %v730
    %v737 = vpack.c.b16 %v733, %v732
    %v743 = vsel %vm397, %v707, 0
    %745 = vmatpush.bf16.msra.mxu0 0
    %746 = vmatpush.bf16.msra.mxu0 0
    %747 = vmatpush.bf16.msra.mxu0 0
    %748 = vmatpush.bf16.msra.mxu0 0
    %749 = vmatpush.bf16.msra.mxu0 %v737
    %750 = vmatpush.bf16.msra.mxu0 %v736
    %751 = vmatpush.bf16.msra.mxu0 %v735
    %752 = vmatpush.bf16.msra.mxu0 %v734
    %753 = vmatmul.bf16.gmra.mxu0 %v743
    %v754 = vpop.f32.mrf.mxu0
    %v755 = vadd.f32 %v717, %v754
    %v756 = vpop.f32.mrf.mxu0
    %757 = vdwg.mxu0
    %758 = vmatpush.msra.mxu0 %v75
    %759 = vmatpush.msra.mxu0 %v74
    %760 = vmatpush.msra.mxu0 %v73
    %761 = vmatpush.msra.mxu0 %v72
    %762 = vmatpush.msra.mxu0 %v71
    %763 = vmatpush.msra.mxu0 %v70
    %764 = vmatpush.msra.mxu0 %v69
    %765 = vmatpush.msra.mxu0 %v68
    %766 = vmatpush.msra.mxu0 %v67
    %767 = vmatpush.msra.mxu0 %v66
    %768 = vmatpush.msra.mxu0 %v65
    %769 = vmatpush.msra.mxu0 %v64
    %770 = vmatpush.msra.mxu0 %v63
    %771 = vmatpush.msra.mxu0 %v62
    %772 = vmatpush.msra.mxu0 %v61
    %773 = vmatpush.msra.mxu0 %v60
    %774 = vmatmul.f32.gmra.mxu0 %v755
    %v775 = vpop.f32.mrf.mxu0
    %v776 = vadd.f32 0.0, %v775
    %777 = vdwg.mxu0
    %v778 = vmul.f32 %v776, 0.03125
    %v779 = vsub.f32 %v755, %v778
    %v780 = vmul.f32 %v779, %v779
    %781 = vmatpush.msra.mxu0 %v75
    %782 = vmatpush.msra.mxu0 %v74
    %783 = vmatpush.msra.mxu0 %v73
    %784 = vmatpush.msra.mxu0 %v72
    %785 = vmatpush.msra.mxu0 %v71
    %786 = vmatpush.msra.mxu0 %v70
    %787 = vmatpush.msra.mxu0 %v69
    %788 = vmatpush.msra.mxu0 %v68
    %789 = vmatpush.msra.mxu0 %v67
    %790 = vmatpush.msra.mxu0 %v66
    %791 = vmatpush.msra.mxu0 %v65
    %792 = vmatpush.msra.mxu0 %v64
    %793 = vmatpush.msra.mxu0 %v63
    %794 = vmatpush.msra.mxu0 %v62
    %795 = vmatpush.msra.mxu0 %v61
    %796 = vmatpush.msra.mxu0 %v60
    %797 = vmatmul.f32.gmra.mxu0 %v780
    %v798 = vpop.f32.mrf.mxu0
    %v799 = vadd.f32 0.0, %v798
    %800 = vdwg.mxu0
    %v801 = vmul.f32 %v799, 0.03125
    %v802 = vadd.f32 %v801, 1e-05
    %v803 = vrsqrt.pop %v802
    %v804 = vmul.f32 %v803, %v802
    %v805 = vmul.f32 %v804, %v803
    %v806 = vmul.f32 0.5, %v805
    %v807 = vsub.f32 1.5, %v806
    %v808 = vmul.f32 %v803, %v807
    %vm809 = vweird.f32 %v802
    %vm810 = vweird.f32 %v803
    %vm811 = vmor %vm809, %vm810
    %v812 = vsel %vm811, %v803, %v808
    %v813 = vld [vmem:[%s8 + $0x1] sm:$0x1]
    %v814 = vperm.slane %v813, 0
    %v815 = vmul.f32 %v812, %v814
    %v816 = vmul.f32 %v779, %v815
    %v817 = vld [vmem:[%s8 + $0x2] sm:$0x1]
    %v818 = vperm.slane %v817, 0
    %v819 = vadd.f32 %v816, %v818
    %v820 = vmax.f32 %v819, 0.0
    %v821 = vld [vmem:[%s11] sm:$0xff]
    %v822 = vld [vmem:[%s11 + $0x8] sm:$0xff]
    %v823 = vld [vmem:[%s11 + $0x10] sm:$0xff]
    %v824 = vld [vmem:[%s11 + $0x18] sm:$0xff]
    %v825 = vld [vmem:[%s11 + $0x20] sm:$0xff]
    %v826 = vld [vmem:[%s11 + $0x28] sm:$0xff]
    %v827 = vld [vmem:[%s11 + $0x30] sm:$0xff]
    %v828 = vld [vmem:[%s11 + $0x38] sm:$0xff]
    %v829 = vld [vmem:[%s11 + $0x40] sm:$0xff]
    %v830 = vld [vmem:[%s11 + $0x48] sm:$0xff]
    %v831 = vld [vmem:[%s11 + $0x50] sm:$0xff]
    %v832 = vld [vmem:[%s11 + $0x58] sm:$0xff]
    %v833 = vld [vmem:[%s11 + $0x60] sm:$0xff]
    %v834 = vld [vmem:[%s11 + $0x68] sm:$0xff]
    %v835 = vld [vmem:[%s11 + $0x70] sm:$0xff]
    %v836 = vld [vmem:[%s11 + $0x78] sm:$0xff]
    %v837 = vld [vmem:[%s12] sm:$0x1]
    %v839 = vperm.slane %v837, 0
    %841 = vmatpush.msra.mxu0 %v836
    %842 = vmatpush.msra.mxu0 %v835
    %843 = vmatpush.msra.mxu0 %v834
    %844 = vmatpush.msra.mxu0 %v833
    %845 = vmatpush.msra.mxu0 %v832
    %846 = vmatpush.msra.mxu0 %v831
    %847 = vmatpush.msra.mxu0 %v830
    %848 = vmatpush.msra.mxu0 %v829
    %849 = vmatpush.msra.mxu0 %v828
    %850 = vmatpush.msra.mxu0 %v827
    %851 = vmatpush.msra.mxu0 %v826
    %852 = vmatpush.msra.mxu0 %v825
    %853 = vmatpush.msra.mxu0 %v824
    %854 = vmatpush.msra.mxu0 %v823
    %855 = vmatpush.msra.mxu0 %v822
    %856 = vmatpush.msra.mxu0 %v821
    %857 = vmatmul.f32.gmra.mxu0 %v820
    %v858 = vpop.f32.mrf.mxu0
    %v859 = vadd.f32 %v839, %v858
    %860 = vdwg.mxu0
    %v861 = vmax.f32 %v859, 0.0
    %v862 = vld [vmem:[%s13] sm:$0xff]
    %v863 = vld [vmem:[%s13 + $0x8] sm:$0xff]
    %v864 = vld [vmem:[%s13 + $0x10] sm:$0xff]
    %v865 = vld [vmem:[%s13 + $0x18] sm:$0xff]
    %v866 = vld [vmem:[%s13 + $0x20] sm:$0xff]
    %v867 = vld [vmem:[%s13 + $0x28] sm:$0xff]
    %v868 = vld [vmem:[%s13 + $0x30] sm:$0xff]
    %v869 = vld [vmem:[%s13 + $0x38] sm:$0xff]
    %v870 = vld [vmem:[%s13 + $0x40] sm:$0xff]
    %v871 = vld [vmem:[%s13 + $0x48] sm:$0xff]
    %v872 = vld [vmem:[%s13 + $0x50] sm:$0xff]
    %v873 = vld [vmem:[%s13 + $0x58] sm:$0xff]
    %v874 = vld [vmem:[%s13 + $0x60] sm:$0xff]
    %v875 = vld [vmem:[%s13 + $0x68] sm:$0xff]
    %v876 = vld [vmem:[%s13 + $0x70] sm:$0xff]
    %v877 = vld [vmem:[%s13 + $0x78] sm:$0xff]
    %v878 = vld [vmem:[%s14] sm:$0x1]
    %v880 = vperm.slane %v878, 0
    %882 = vmatpush.msra.mxu0 %v877
    %883 = vmatpush.msra.mxu0 %v876
    %884 = vmatpush.msra.mxu0 %v875
    %885 = vmatpush.msra.mxu0 %v874
    %886 = vmatpush.msra.mxu0 %v873
    %887 = vmatpush.msra.mxu0 %v872
    %888 = vmatpush.msra.mxu0 %v871
    %889 = vmatpush.msra.mxu0 %v870
    %890 = vmatpush.msra.mxu0 %v869
    %891 = vmatpush.msra.mxu0 %v868
    %892 = vmatpush.msra.mxu0 %v867
    %893 = vmatpush.msra.mxu0 %v866
    %894 = vmatpush.msra.mxu0 %v865
    %895 = vmatpush.msra.mxu0 %v864
    %896 = vmatpush.msra.mxu0 %v863
    %897 = vmatpush.msra.mxu0 %v862
    %898 = vmatmul.f32.gmra.mxu0 %v861
    %v899 = vpop.f32.mrf.mxu0
    %v900 = vadd.f32 %v880, %v899
    %901 = vdwg.mxu0
    %vm902 = vcmask 9216
    %903 = vst.msk [vmem:[#allocation2] sm:$0x3] %vm902, %v900
    // Predicated region
    $region62: #{cvlearner_forward.11} parent=1 // pred_check
      _
    $region63: #{cvlearner_forward.11} parent=1 // pred_check_branch
      %905 = sbr.rel (0) target = $region65
    $region64: #{cvlearner_forward.11} parent=1 // pred_region
      %907 = vsyncadd [#allocation3], 0
      %s909 = sshll.u32 [#allocation2], 4
      %s910 = int_to_ptr.vmem [resolvable:$true] %s909
      %s911 = sshll.u32 %s15, 4
      %s912 = int_to_ptr.hbm [resolvable:$true] %s911
      %914 = dma.vmem_to_hbm [thread:$0]  %s910, 32, %s912, [#allocation3]
    $region65: #{cvlearner_forward.11} parent=1 // pred_fallthru
      _
    // Predicated region
    $region66: #{cvlearner_forward.11} parent=1 // pred_check
      _
    $region67: #{cvlearner_forward.11} parent=1 // pred_check_branch
      %916 = sbr.rel (0) target = $region69
    $region68: #{cvlearner_forward.11} parent=1 // pred_region
      %918 = dma.done [#allocation3], 32
    $region69: #{cvlearner_forward.11} parent=1 // pred_fallthru
      _
    %919 = vsyncpa [#allocation3], 1

</llo_original>
